<compile_context>
chip_gen: v6e
topology: v6e:2x2x1
jax: 0.10.0
libtpu: 0.0.40
codegen_flags: <defaults>
</compile_context>

<pallas_src>
import numpy as np
import jax
import jax.numpy as jnp
from jax.experimental import pallas as pl
from jax.experimental.pallas import tpu as pltpu

IN_CHANNELS = 32
H_SHAPE = (8, 3, 3)
HIDDEN = [16, 12]
LAST_CHANNEL = 16
BN_EPS = 1e-5


# ----------------------------- Pallas kernels ------------------------------

def _front_kernel(x_ref, fcw_ref, fcb_ref,
                  mb0_ref, gb0_ref,
                  d1_ref, b1_ref, mb1_ref, gb1_ref,
                  d2_ref, b2_ref, mb2_ref, gb2_ref,
                  o_ref):
    """fc -> ReLU -> BN0 -> deconv1(+ReLU) -> BN1 -> deconv2(+ReLU) -> BN2.

    All intermediates stay in VMEM/vregs.  deconv1/2 are exact dense operators
    over the flattened activation.  BatchNorm uses training-mode batch stats
    (biased variance, eps=1e-5), matching nn.BatchNorm2d as used in forward().
    """

    def bn(h, mb, gamma, beta, ohw):
        # h: (B, N) flattened activation; mb: (C, N) 0/1 channel mask;
        # gamma/beta: (C, 1).  Per-channel stats over batch + spatial.
        rm = jnp.mean(h, axis=0, keepdims=True)                           # (1, N)
        rm2 = jnp.mean(h * h, axis=0, keepdims=True)                      # (1, N)
        mean_c = jnp.sum(mb * rm, axis=1, keepdims=True) * (1.0 / ohw)    # (C, 1)
        ex2_c = jnp.sum(mb * rm2, axis=1, keepdims=True) * (1.0 / ohw)    # (C, 1)
        var_c = jnp.maximum(ex2_c - mean_c * mean_c, 0.0)
        scale_c = gamma * jax.lax.rsqrt(var_c + BN_EPS)                   # (C, 1)
        shift_c = beta - mean_c * scale_c                                 # (C, 1)
        scale = jnp.sum(mb * scale_c, axis=0, keepdims=True)              # (1, N)
        shift = jnp.sum(mb * shift_c, axis=0, keepdims=True)              # (1, N)
        return h * scale + shift

    h = jnp.dot(x_ref[...], fcw_ref[...], preferred_element_type=jnp.float32)
    h = jnp.maximum(h + fcb_ref[...], 0.0)                                # (B, 72)
    h = bn(h, mb0_ref[...], gb0_ref[:, 0:1], gb0_ref[:, 1:2], 9.0)

    h = jnp.dot(h, d1_ref[...], preferred_element_type=jnp.float32)
    h = jnp.maximum(h + b1_ref[...], 0.0)                                 # (B, 588)
    h = bn(h, mb1_ref[...], gb1_ref[:, 0:1], gb1_ref[:, 1:2], 49.0)

    h = jnp.dot(h, d2_ref[...], preferred_element_type=jnp.float32)
    h = jnp.maximum(h + b2_ref[...], 0.0)                                 # (B, 3136)
    h = bn(h, mb2_ref[...], gb2_ref[:, 0:1], gb2_ref[:, 1:2], 196.0)

    o_ref[...] = h


def _deconv3_kernel(c_ref, w_ref, b_ref, o_ref):
    # Phase-decomposed ConvTranspose2d GEMM + bias + ReLU.
    # Output last dim is padded to 128 lanes -> unmasked (lane-dense) stores.
    y = jnp.dot(c_ref[...], w_ref[...], preferred_element_type=jnp.float32)
    o_ref[...] = jnp.maximum(y + b_ref[...], 0.0)


# ------------------------------ call wrappers -------------------------------

def _full_spec(a):
    assert a.ndim == 2
    return pl.BlockSpec(a.shape, lambda i: (0, 0))


def decoder_front(x, q):
    B = x.shape[0]
    n_out = q["d2"].shape[1]
    ins = [x, q["fc_w"], q["fc_b"],
           q["mb0"], q["gb0"],
           q["d1"], q["b1"], q["mb1"], q["gb1"],
           q["d2"], q["b2"], q["mb2"], q["gb2"]]
    return pl.pallas_call(
        _front_kernel,
        out_shape=jax.ShapeDtypeStruct((B, n_out), jnp.float32),
        grid=(1,),
        in_specs=[_full_spec(a) for a in ins],
        out_specs=pl.BlockSpec((B, n_out), lambda i: (0, 0)),
        compiler_params=pltpu.CompilerParams(
            dimension_semantics=("arbitrary",),
            vmem_limit_bytes=40 * 1024 * 1024),
    )(*ins)


def deconv3_gemm(cols, w, b):
    M, K = cols.shape
    N = w.shape[1]
    return pl.pallas_call(
        _deconv3_kernel,
        out_shape=jax.ShapeDtypeStruct((M, N), jnp.float32),
        grid=(1,),
        in_specs=[pl.BlockSpec((M, K), lambda i: (0, 0)),
                  pl.BlockSpec((K, N), lambda i: (0, 0)),
                  pl.BlockSpec((1, N), lambda i: (0, 0))],
        out_specs=pl.BlockSpec((M, N), lambda i: (0, 0)),
        compiler_params=pltpu.CompilerParams(
            dimension_semantics=("arbitrary",)),
    )(cols, w, b)


def decoder_forward(x, q):
    B = x.shape[0]
    C2 = HIDDEN[0]          # channels into deconv3 (16)
    CL = LAST_CHANNEL       # output channels (16)

    # Fused front: fc -> BN0 -> deconv1+ReLU -> BN1 -> deconv2+ReLU -> BN2.
    a2 = decoder_front(x, q)                                # (B, 14*14*16) NHWC-flat

    # deconv3 (k=5, s=2, p=2, op=1) as 4 output-parity phases sharing one
    # 3x3 stride-1 im2col of the *non-dilated* input (no zeros fed to the MXU).
    xs = a2.reshape(B, 14, 14, C2)
    xp = jnp.pad(xs, ((0, 0), (1, 1), (1, 1), (0, 0)))      # (B, 16, 16, 16)
    cols = jnp.concatenate(
        [xp[:, dh:dh + 14, dw:dw + 14, :] for dh in range(3) for dw in range(3)],
        axis=-1)                                            # (B, 14, 14, 144)
    cols = cols.reshape(B * 14 * 14, 9 * C2)

    y = deconv3_gemm(cols, q["w3"], q["b3"])                # (B*196, 128), ReLU'd
    y = y[:, :4 * CL].reshape(B, 14, 14, 2, 2, CL)          # (b, m, n, r, s, co)
    # pixel-shuffle the 2x2 phases into the 28x28 NCHW output
    y = jnp.transpose(y, (0, 5, 1, 3, 2, 4)).reshape(B, CL, 28, 28)
    return y


# -------------------- one-time parameter preprocessing ----------------------

def _dense_deconv_operator(w, H, W, stride, pad, OH, OW):
    """Exact dense operator of a ConvTranspose2d (w: (Cin, Cout, k, k)).

    out[b, co, oh, ow] = sum_{ci,h,w} x[b, ci, h, w] * D[ci, h, w, co, oh, ow]
    with D[ci, h, w, co, oh, ow] = w[ci, co, kh, kw] for oh = h*s - p + kh,
    ow = w*s - p + kw (contributions outside [0, OH)x[0, OW) are cropped).
    """
    Cin, Cout, k, _ = w.shape
    D = np.zeros((Cin, H, W, Cout, OH, OW), np.float32)
    for kh in range(k):
        for kw in range(k):
            for h in range(H):
                oh = h * stride - pad + kh
                if oh < 0 or oh >= OH:
                    continue
                for ww in range(W):
                    ow = ww * stride - pad + kw
                    if ow < 0 or ow >= OW:
                        continue
                    D[:, h, ww, :, oh, ow] += w[:, :, kh, kw]
    return D


def _channel_mask(n, chan_of, C):
    ch = chan_of(np.arange(n))
    return (np.arange(C)[:, None] == ch[None, :]).astype(np.float32)   # (C, n)


def prepare_params(p):
    """One-time transform of PyTorch-layout params into fused-kernel operands."""
    f32 = np.float32
    C0 = H_SHAPE[0]
    C1, C2, CL = HIDDEN[1], HIDDEN[0], LAST_CHANNEL      # 12, 16, 16

    dc1_w = np.asarray(p["dc1_w"], f32)                  # (8, 12, 3, 3)
    dc2_w = np.asarray(p["dc2_w"], f32)                  # (12, 16, 5, 5)
    dc3_w = np.asarray(p["dc3_w"], f32)                  # (16, 16, 5, 5)

    # deconv1: 3x3 -> 7x7 dense operator, output NCHW-flat (co, oh, ow).
    d1 = _dense_deconv_operator(dc1_w, 3, 3, 2, 0, 7, 7).reshape(C0 * 9, C1 * 49)
    b1 = np.repeat(np.asarray(p["dc1_b"], f32), 49)[None, :]             # (1, 588)

    # deconv2: 7x7 -> 14x14 dense operator, output NHWC-flat (oh, ow, co) so
    # the deconv3 im2col needs only a trivial XLA reshape of the kernel output.
    d2 = (_dense_deconv_operator(dc2_w, 7, 7, 2, 2, 14, 14)
          .transpose(0, 1, 2, 4, 5, 3).reshape(C1 * 49, 196 * C2))
    b2 = np.tile(np.asarray(p["dc2_b"], f32), 196)[None, :]              # (1, 3136)

    # deconv3 (k=5, s=2, p=2, op=1): 4-phase sub-pixel filters over a 3x3
    # window of the 1-padded input: tap (dh, dw) of phase (r, s) is
    # w[:, :, 4-2*dh+r, 4-2*dw+s] when that kernel index lies in [0, 5).
    wph = np.zeros((2, 2, C2, CL, 3, 3), f32)
    for r in range(2):
        for s in range(2):
            for dh in range(3):
                kh = 4 - 2 * dh + r
                if kh < 0 or kh >= 5:
                    continue
                for dw in range(3):
                    kw = 4 - 2 * dw + s
                    if kw < 0 or kw >= 5:
                        continue
                    wph[r, s, :, :, dh, dw] = dc3_w[:, :, kh, kw]
    # GEMM weight: rows (dh, dw, ci), cols (r, s, co); pad cols to 128 lanes.
    wm = wph.transpose(4, 5, 2, 0, 1, 3).reshape(9 * C2, 4 * CL)
    w3 = np.zeros((9 * C2, 128), f32)
    w3[:, :4 * CL] = wm
    b3 = np.zeros((1, 128), f32)
    b3[0, :4 * CL] = np.tile(np.asarray(p["dc3_b"], f32), 4)

    # BatchNorm channel masks (C, N) + packed (gamma, beta) as (C, 2).
    mb0 = _channel_mask(C0 * 9, lambda j: j // 9, C0)
    mb1 = _channel_mask(C1 * 49, lambda j: j // 49, C1)
    mb2 = _channel_mask(196 * C2, lambda j: j % C2, C2)
    gb0 = np.stack([np.asarray(p["bn0_g"], f32), np.asarray(p["bn0_b"], f32)], 1)
    gb1 = np.stack([np.asarray(p["bn1_g"], f32), np.asarray(p["bn1_b"], f32)], 1)
    gb2 = np.stack([np.asarray(p["bn2_g"], f32), np.asarray(p["bn2_b"], f32)], 1)

    q = {"fc_w": np.asarray(p["fc_w"], f32),
         "fc_b": np.asarray(p["fc_b"], f32)[None, :],
         "mb0": mb0, "gb0": gb0,
         "d1": d1, "b1": b1, "mb1": mb1, "gb1": gb1,
         "d2": d2, "b2": b2, "mb2": mb2, "gb2": gb2,
         "w3": w3, "b3": b3}
    return {k: jnp.asarray(v) for k, v in q.items()}


# ------------------------- plain-JAX reference check ------------------------

def _ref_conv_transpose(x, w, b, stride, pad, opad):
    B, Cin, H, W = x.shape
    _, Cout, k, _ = w.shape
    hd, wd = (H - 1) * stride + 1, (W - 1) * stride + 1
    xd = jnp.zeros((B, Cin, hd, wd), x.dtype).at[:, :, ::stride, ::stride].set(x)
    lo, hi = k - 1 - pad, k - 1 - pad + opad
    xp = jnp.pad(xd, ((0, 0), (0, 0), (lo, hi), (lo, hi)))
    wf = jnp.flip(w, axis=(2, 3)).transpose(1, 0, 2, 3)      # (Cout, Cin, k, k)
    OH, OW = xp.shape[2] - k + 1, xp.shape[3] - k + 1
    out = jnp.zeros((B, Cout, OH, OW), jnp.float32)
    for kh in range(k):
        for kw in range(k):
            patch = xp[:, :, kh:kh + OH, kw:kw + OW]
            out = out + jnp.einsum('bchw,oc->bohw', patch, wf[:, :, kh, kw])
    return out + b.reshape(1, Cout, 1, 1)


def _ref_bn(x, g, b):
    mean = jnp.mean(x, axis=(0, 2, 3), keepdims=True)
    var = jnp.mean(jnp.square(x - mean), axis=(0, 2, 3), keepdims=True)
    return (x - mean) * jax.lax.rsqrt(var + BN_EPS) * g.reshape(1, -1, 1, 1) \
        + b.reshape(1, -1, 1, 1)


def decoder_reference(x, p):
    B = x.shape[0]
    h = jnp.maximum(x @ p["fc_w"] + p["fc_b"], 0.0).reshape(B, *H_SHAPE)
    h = _ref_bn(h, p["bn0_g"], p["bn0_b"])
    h = jnp.maximum(_ref_conv_transpose(h, p["dc1_w"], p["dc1_b"], 2, 0, 0), 0.0)
    h = _ref_bn(h, p["bn1_g"], p["bn1_b"])
    h = jnp.maximum(_ref_conv_transpose(h, p["dc2_w"], p["dc2_b"], 2, 2, 1), 0.0)
    h = _ref_bn(h, p["bn2_g"], p["bn2_b"])
    h = jnp.maximum(_ref_conv_transpose(h, p["dc3_w"], p["dc3_b"], 2, 2, 1), 0.0)
    return h


# ----------------------------------- main ------------------------------------

if __name__ == "__main__":
    B = 2
    key = jax.random.PRNGKey(0)
    ks = jax.random.split(key, 16)

    def rnd(k, shape, scale=0.1):
        return scale * jax.random.normal(k, shape, jnp.float32)

    h_channels = H_SHAPE[0] * H_SHAPE[1] * H_SHAPE[2]        # 72
    params = {
        "fc_w": rnd(ks[0], (IN_CHANNELS, h_channels)),
        "fc_b": rnd(ks[1], (h_channels,)),
        "bn0_g": 1.0 + rnd(ks[2], (H_SHAPE[0],)),
        "bn0_b": rnd(ks[3], (H_SHAPE[0],)),
        # ConvTranspose2d weight layout (PyTorch): (Cin, Cout, kH, kW)
        "dc1_w": rnd(ks[4], (H_SHAPE[0], HIDDEN[1], 3, 3)),
        "dc1_b": rnd(ks[5], (HIDDEN[1],)),
        "bn1_g": 1.0 + rnd(ks[6], (HIDDEN[1],)),
        "bn1_b": rnd(ks[7], (HIDDEN[1],)),
        "dc2_w": rnd(ks[8], (HIDDEN[1], HIDDEN[0], 5, 5)),
        "dc2_b": rnd(ks[9], (HIDDEN[0],)),
        "bn2_g": 1.0 + rnd(ks[10], (HIDDEN[0],)),
        "bn2_b": rnd(ks[11], (HIDDEN[0],)),
        "dc3_w": rnd(ks[12], (HIDDEN[0], LAST_CHANNEL, 5, 5)),
        "dc3_b": rnd(ks[13], (LAST_CHANNEL,)),
    }
    x = jax.random.normal(ks[14], (B, IN_CHANNELS), jnp.float32)

    q = prepare_params(params)                 # one-time, outside the jit
    out = jax.jit(decoder_forward)(x, q)
    out = jax.block_until_ready(out)

    assert out.shape == (B, LAST_CHANNEL, 28, 28), out.shape
    assert bool(jnp.all(jnp.isfinite(out)))
    assert bool(jnp.all(out >= 0.0))           # final ReLU

    # Cross-check the fused Pallas pipeline against a plain-JAX reference.
    ref = decoder_reference(x, params)
    err = float(jnp.max(jnp.abs(out - ref)))
    assert err < 2e-3, f"max abs err vs reference: {err}"

    print("KERNEL_OK")
</pallas_src>

<mosaic_0001>
module attributes {stable_mosaic.version = 11 : i64} {
  func.func @_front_kernel(%arg0: i32, %arg1: memref<2x32xf32, #tpu.memory_space<vmem>>, %arg2: memref<32x72xf32, #tpu.memory_space<vmem>>, %arg3: memref<1x72xf32, #tpu.memory_space<vmem>>, %arg4: memref<8x72xf32, #tpu.memory_space<vmem>>, %arg5: memref<8x2xf32, #tpu.memory_space<vmem>>, %arg6: memref<72x588xf32, #tpu.memory_space<vmem>>, %arg7: memref<1x588xf32, #tpu.memory_space<vmem>>, %arg8: memref<12x588xf32, #tpu.memory_space<vmem>>, %arg9: memref<12x2xf32, #tpu.memory_space<vmem>>, %arg10: memref<588x3136xf32, #tpu.memory_space<vmem>>, %arg11: memref<1x3136xf32, #tpu.memory_space<vmem>>, %arg12: memref<16x3136xf32, #tpu.memory_space<vmem>>, %arg13: memref<16x2xf32, #tpu.memory_space<vmem>>, %arg14: memref<2x3136xf32, #tpu.memory_space<vmem>>) attributes {dimension_semantics = [#tpu.dimension_semantics<arbitrary>], iteration_bounds = array<i64: 1>, scalar_prefetch = 0 : i64, scratch_operands = 0 : i64, tpu.core_type = #tpu.core_type<tc>, window_params = [{pipeline_mode = #tpu.pipeline_mode<synchronous>, transform_indices = @transform_0, window_bounds = array<i64: 2, 32>}, {pipeline_mode = #tpu.pipeline_mode<synchronous>, transform_indices = @transform_1, window_bounds = array<i64: 32, 72>}, {pipeline_mode = #tpu.pipeline_mode<synchronous>, transform_indices = @transform_2, window_bounds = array<i64: 1, 72>}, {pipeline_mode = #tpu.pipeline_mode<synchronous>, transform_indices = @transform_3, window_bounds = array<i64: 8, 72>}, {pipeline_mode = #tpu.pipeline_mode<synchronous>, transform_indices = @transform_4, window_bounds = array<i64: 8, 2>}, {pipeline_mode = #tpu.pipeline_mode<synchronous>, transform_indices = @transform_5, window_bounds = array<i64: 72, 588>}, {pipeline_mode = #tpu.pipeline_mode<synchronous>, transform_indices = @transform_6, window_bounds = array<i64: 1, 588>}, {pipeline_mode = #tpu.pipeline_mode<synchronous>, transform_indices = @transform_7, window_bounds = array<i64: 12, 588>}, {pipeline_mode = #tpu.pipeline_mode<synchronous>, transform_indices = @transform_8, window_bounds = array<i64: 12, 2>}, {pipeline_mode = #tpu.pipeline_mode<synchronous>, transform_indices = @transform_9, window_bounds = array<i64: 588, 3136>}, {pipeline_mode = #tpu.pipeline_mode<synchronous>, transform_indices = @transform_10, window_bounds = array<i64: 1, 3136>}, {pipeline_mode = #tpu.pipeline_mode<synchronous>, transform_indices = @transform_11, window_bounds = array<i64: 16, 3136>}, {pipeline_mode = #tpu.pipeline_mode<synchronous>, transform_indices = @transform_12, window_bounds = array<i64: 16, 2>}, {pipeline_mode = #tpu.pipeline_mode<synchronous>, transform_indices = @transform_13, window_bounds = array<i64: 2, 3136>}]} {
    %c0 = arith.constant 0 : index
    %c0_0 = arith.constant 0 : index
    %0 = vector.load %arg1[%c0, %c0_0] : memref<2x32xf32, #tpu.memory_space<vmem>>, vector<2x32xf32>
    %c0_1 = arith.constant 0 : index
    %c0_2 = arith.constant 0 : index
    %1 = vector.load %arg2[%c0_1, %c0_2] : memref<32x72xf32, #tpu.memory_space<vmem>>, vector<32x72xf32>
    %cst = arith.constant dense<0.000000e+00> : vector<2x72xf32>
    %2 = tpu.matmul %0, %1, %cst {dimension_numbers = #tpu.dot_dimension_numbers<[1], [0], [0], [1], [0, 0, 1, 1], [], []>} : vector<2x32xf32>, vector<32x72xf32>, vector<2x72xf32> -> vector<2x72xf32>
    %c0_3 = arith.constant 0 : index
    %c0_4 = arith.constant 0 : index
    %3 = vector.load %arg3[%c0_3, %c0_4] : memref<1x72xf32, #tpu.memory_space<vmem>>, vector<1x72xf32>
    %4 = vector.broadcast %3 : vector<1x72xf32> to vector<2x72xf32>
    %5 = arith.addf %2, %4 : vector<2x72xf32>
    %cst_5 = arith.constant 0.000000e+00 : f32
    %6 = vector.broadcast %cst_5 : f32 to vector<2x72xf32>
    %7 = arith.maximumf %5, %6 : vector<2x72xf32>
    %c0_6 = arith.constant 0 : index
    %c0_7 = arith.constant 0 : index
    %8 = vector.load %arg4[%c0_6, %c0_7] : memref<8x72xf32, #tpu.memory_space<vmem>>, vector<8x72xf32>
    %c0_8 = arith.constant 0 : index
    %c0_9 = arith.constant 0 : index
    %9 = vector.load %arg5[%c0_8, %c0_9] : memref<8x2xf32, #tpu.memory_space<vmem>>, vector<8x1xf32>
    %c0_10 = arith.constant 0 : index
    %c1 = arith.constant 1 : index
    %10 = vector.load %arg5[%c0_10, %c1] : memref<8x2xf32, #tpu.memory_space<vmem>>, vector<8x1xf32>
    %cst_11 = arith.constant dense<0.000000e+00> : vector<72xf32>
    %11 = vector.multi_reduction <add>, %7, %cst_11 [0] : vector<2x72xf32> to vector<72xf32>
    %12 = vector.shape_cast %11 : vector<72xf32> to vector<1x72xf32>
    %cst_12 = arith.constant 2.000000e+00 : f32
    %13 = vector.broadcast %cst_12 : f32 to vector<1x72xf32>
    %14 = arith.divf %12, %13 : vector<1x72xf32>
    %15 = arith.mulf %7, %7 : vector<2x72xf32>
    %cst_13 = arith.constant dense<0.000000e+00> : vector<72xf32>
    %16 = vector.multi_reduction <add>, %15, %cst_13 [0] : vector<2x72xf32> to vector<72xf32>
    %17 = vector.shape_cast %16 : vector<72xf32> to vector<1x72xf32>
    %cst_14 = arith.constant 2.000000e+00 : f32
    %18 = vector.broadcast %cst_14 : f32 to vector<1x72xf32>
    %19 = arith.divf %17, %18 : vector<1x72xf32>
    %20 = vector.broadcast %14 : vector<1x72xf32> to vector<8x72xf32>
    %21 = arith.mulf %8, %20 : vector<8x72xf32>
    %cst_15 = arith.constant dense<0.000000e+00> : vector<8xf32>
    %22 = vector.multi_reduction <add>, %21, %cst_15 [1] : vector<8x72xf32> to vector<8xf32>
    %23 = vector.shape_cast %22 : vector<8xf32> to vector<8x1xf32>
    %cst_16 = arith.constant 0.111111112 : f32
    %24 = vector.broadcast %cst_16 : f32 to vector<8x1xf32>
    %25 = arith.mulf %23, %24 : vector<8x1xf32>
    %26 = vector.broadcast %19 : vector<1x72xf32> to vector<8x72xf32>
    %27 = arith.mulf %8, %26 : vector<8x72xf32>
    %cst_17 = arith.constant dense<0.000000e+00> : vector<8xf32>
    %28 = vector.multi_reduction <add>, %27, %cst_17 [1] : vector<8x72xf32> to vector<8xf32>
    %29 = vector.shape_cast %28 : vector<8xf32> to vector<8x1xf32>
    %cst_18 = arith.constant 0.111111112 : f32
    %30 = vector.broadcast %cst_18 : f32 to vector<8x1xf32>
    %31 = arith.mulf %29, %30 : vector<8x1xf32>
    %32 = arith.mulf %25, %25 : vector<8x1xf32>
    %33 = arith.subf %31, %32 : vector<8x1xf32>
    %cst_19 = arith.constant 0.000000e+00 : f32
    %34 = vector.broadcast %cst_19 : f32 to vector<8x1xf32>
    %35 = arith.maximumf %33, %34 : vector<8x1xf32>
    %cst_20 = arith.constant 9.99999974E-6 : f32
    %36 = vector.broadcast %cst_20 : f32 to vector<8x1xf32>
    %37 = arith.addf %35, %36 : vector<8x1xf32>
    %38 = math.rsqrt %37 : vector<8x1xf32>
    %39 = arith.mulf %9, %38 : vector<8x1xf32>
    %40 = arith.mulf %25, %39 : vector<8x1xf32>
    %41 = arith.subf %10, %40 : vector<8x1xf32>
    %42 = vector.broadcast %39 : vector<8x1xf32> to vector<8x72xf32>
    %43 = arith.mulf %8, %42 : vector<8x72xf32>
    %cst_21 = arith.constant dense<0.000000e+00> : vector<72xf32>
    %44 = vector.multi_reduction <add>, %43, %cst_21 [0] : vector<8x72xf32> to vector<72xf32>
    %45 = vector.shape_cast %44 : vector<72xf32> to vector<1x72xf32>
    %46 = vector.broadcast %41 : vector<8x1xf32> to vector<8x72xf32>
    %47 = arith.mulf %8, %46 : vector<8x72xf32>
    %cst_22 = arith.constant dense<0.000000e+00> : vector<72xf32>
    %48 = vector.multi_reduction <add>, %47, %cst_22 [0] : vector<8x72xf32> to vector<72xf32>
    %49 = vector.shape_cast %48 : vector<72xf32> to vector<1x72xf32>
    %50 = vector.broadcast %45 : vector<1x72xf32> to vector<2x72xf32>
    %51 = arith.mulf %7, %50 : vector<2x72xf32>
    %52 = vector.broadcast %49 : vector<1x72xf32> to vector<2x72xf32>
    %53 = arith.addf %51, %52 : vector<2x72xf32>
    %c0_23 = arith.constant 0 : index
    %c0_24 = arith.constant 0 : index
    %54 = vector.load %arg6[%c0_23, %c0_24] : memref<72x588xf32, #tpu.memory_space<vmem>>, vector<72x588xf32>
    %cst_25 = arith.constant dense<0.000000e+00> : vector<2x588xf32>
    %55 = tpu.matmul %53, %54, %cst_25 {dimension_numbers = #tpu.dot_dimension_numbers<[1], [0], [0], [1], [0, 0, 1, 1], [], []>} : vector<2x72xf32>, vector<72x588xf32>, vector<2x588xf32> -> vector<2x588xf32>
    %c0_26 = arith.constant 0 : index
    %c0_27 = arith.constant 0 : index
    %56 = vector.load %arg7[%c0_26, %c0_27] : memref<1x588xf32, #tpu.memory_space<vmem>>, vector<1x588xf32>
    %57 = vector.broadcast %56 : vector<1x588xf32> to vector<2x588xf32>
    %58 = arith.addf %55, %57 : vector<2x588xf32>
    %cst_28 = arith.constant 0.000000e+00 : f32
    %59 = vector.broadcast %cst_28 : f32 to vector<2x588xf32>
    %60 = arith.maximumf %58, %59 : vector<2x588xf32>
    %c0_29 = arith.constant 0 : index
    %c0_30 = arith.constant 0 : index
    %61 = vector.load %arg8[%c0_29, %c0_30] : memref<12x588xf32, #tpu.memory_space<vmem>>, vector<12x588xf32>
    %c0_31 = arith.constant 0 : index
    %c0_32 = arith.constant 0 : index
    %62 = vector.load %arg9[%c0_31, %c0_32] : memref<12x2xf32, #tpu.memory_space<vmem>>, vector<12x1xf32>
    %c0_33 = arith.constant 0 : index
    %c1_34 = arith.constant 1 : index
    %63 = vector.load %arg9[%c0_33, %c1_34] : memref<12x2xf32, #tpu.memory_space<vmem>>, vector<12x1xf32>
    %cst_35 = arith.constant dense<0.000000e+00> : vector<588xf32>
    %64 = vector.multi_reduction <add>, %60, %cst_35 [0] : vector<2x588xf32> to vector<588xf32>
    %65 = vector.shape_cast %64 : vector<588xf32> to vector<1x588xf32>
    %cst_36 = arith.constant 2.000000e+00 : f32
    %66 = vector.broadcast %cst_36 : f32 to vector<1x588xf32>
    %67 = arith.divf %65, %66 : vector<1x588xf32>
    %68 = arith.mulf %60, %60 : vector<2x588xf32>
    %cst_37 = arith.constant dense<0.000000e+00> : vector<588xf32>
    %69 = vector.multi_reduction <add>, %68, %cst_37 [0] : vector<2x588xf32> to vector<588xf32>
    %70 = vector.shape_cast %69 : vector<588xf32> to vector<1x588xf32>
    %cst_38 = arith.constant 2.000000e+00 : f32
    %71 = vector.broadcast %cst_38 : f32 to vector<1x588xf32>
    %72 = arith.divf %70, %71 : vector<1x588xf32>
    %73 = vector.broadcast %67 : vector<1x588xf32> to vector<12x588xf32>
    %74 = arith.mulf %61, %73 : vector<12x588xf32>
    %cst_39 = arith.constant dense<0.000000e+00> : vector<12xf32>
    %75 = vector.multi_reduction <add>, %74, %cst_39 [1] : vector<12x588xf32> to vector<12xf32>
    %76 = vector.shape_cast %75 : vector<12xf32> to vector<12x1xf32>
    %cst_40 = arith.constant 0.0204081628 : f32
    %77 = vector.broadcast %cst_40 : f32 to vector<12x1xf32>
    %78 = arith.mulf %76, %77 : vector<12x1xf32>
    %79 = vector.broadcast %72 : vector<1x588xf32> to vector<12x588xf32>
    %80 = arith.mulf %61, %79 : vector<12x588xf32>
    %cst_41 = arith.constant dense<0.000000e+00> : vector<12xf32>
    %81 = vector.multi_reduction <add>, %80, %cst_41 [1] : vector<12x588xf32> to vector<12xf32>
    %82 = vector.shape_cast %81 : vector<12xf32> to vector<12x1xf32>
    %cst_42 = arith.constant 0.0204081628 : f32
    %83 = vector.broadcast %cst_42 : f32 to vector<12x1xf32>
    %84 = arith.mulf %82, %83 : vector<12x1xf32>
    %85 = arith.mulf %78, %78 : vector<12x1xf32>
    %86 = arith.subf %84, %85 : vector<12x1xf32>
    %cst_43 = arith.constant 0.000000e+00 : f32
    %87 = vector.broadcast %cst_43 : f32 to vector<12x1xf32>
    %88 = arith.maximumf %86, %87 : vector<12x1xf32>
    %cst_44 = arith.constant 9.99999974E-6 : f32
    %89 = vector.broadcast %cst_44 : f32 to vector<12x1xf32>
    %90 = arith.addf %88, %89 : vector<12x1xf32>
    %91 = math.rsqrt %90 : vector<12x1xf32>
    %92 = arith.mulf %62, %91 : vector<12x1xf32>
    %93 = arith.mulf %78, %92 : vector<12x1xf32>
    %94 = arith.subf %63, %93 : vector<12x1xf32>
    %95 = vector.broadcast %92 : vector<12x1xf32> to vector<12x588xf32>
    %96 = arith.mulf %61, %95 : vector<12x588xf32>
    %cst_45 = arith.constant dense<0.000000e+00> : vector<588xf32>
    %97 = vector.multi_reduction <add>, %96, %cst_45 [0] : vector<12x588xf32> to vector<588xf32>
    %98 = vector.shape_cast %97 : vector<588xf32> to vector<1x588xf32>
    %99 = vector.broadcast %94 : vector<12x1xf32> to vector<12x588xf32>
    %100 = arith.mulf %61, %99 : vector<12x588xf32>
    %cst_46 = arith.constant dense<0.000000e+00> : vector<588xf32>
    %101 = vector.multi_reduction <add>, %100, %cst_46 [0] : vector<12x588xf32> to vector<588xf32>
    %102 = vector.shape_cast %101 : vector<588xf32> to vector<1x588xf32>
    %103 = vector.broadcast %98 : vector<1x588xf32> to vector<2x588xf32>
    %104 = arith.mulf %60, %103 : vector<2x588xf32>
    %105 = vector.broadcast %102 : vector<1x588xf32> to vector<2x588xf32>
    %106 = arith.addf %104, %105 : vector<2x588xf32>
    %c0_47 = arith.constant 0 : index
    %c0_48 = arith.constant 0 : index
    %107 = vector.load %arg10[%c0_47, %c0_48] : memref<588x3136xf32, #tpu.memory_space<vmem>>, vector<588x3136xf32>
    %cst_49 = arith.constant dense<0.000000e+00> : vector<2x3136xf32>
    %108 = tpu.matmul %106, %107, %cst_49 {dimension_numbers = #tpu.dot_dimension_numbers<[1], [0], [0], [1], [0, 0, 1, 1], [], []>} : vector<2x588xf32>, vector<588x3136xf32>, vector<2x3136xf32> -> vector<2x3136xf32>
    %c0_50 = arith.constant 0 : index
    %c0_51 = arith.constant 0 : index
    %109 = vector.load %arg11[%c0_50, %c0_51] : memref<1x3136xf32, #tpu.memory_space<vmem>>, vector<1x3136xf32>
    %110 = vector.broadcast %109 : vector<1x3136xf32> to vector<2x3136xf32>
    %111 = arith.addf %108, %110 : vector<2x3136xf32>
    %cst_52 = arith.constant 0.000000e+00 : f32
    %112 = vector.broadcast %cst_52 : f32 to vector<2x3136xf32>
    %113 = arith.maximumf %111, %112 : vector<2x3136xf32>
    %c0_53 = arith.constant 0 : index
    %c0_54 = arith.constant 0 : index
    %114 = vector.load %arg12[%c0_53, %c0_54] : memref<16x3136xf32, #tpu.memory_space<vmem>>, vector<16x3136xf32>
    %c0_55 = arith.constant 0 : index
    %c0_56 = arith.constant 0 : index
    %115 = vector.load %arg13[%c0_55, %c0_56] : memref<16x2xf32, #tpu.memory_space<vmem>>, vector<16x1xf32>
    %c0_57 = arith.constant 0 : index
    %c1_58 = arith.constant 1 : index
    %116 = vector.load %arg13[%c0_57, %c1_58] : memref<16x2xf32, #tpu.memory_space<vmem>>, vector<16x1xf32>
    %cst_59 = arith.constant dense<0.000000e+00> : vector<3136xf32>
    %117 = vector.multi_reduction <add>, %113, %cst_59 [0] : vector<2x3136xf32> to vector<3136xf32>
    %118 = vector.shape_cast %117 : vector<3136xf32> to vector<1x3136xf32>
    %cst_60 = arith.constant 2.000000e+00 : f32
    %119 = vector.broadcast %cst_60 : f32 to vector<1x3136xf32>
    %120 = arith.divf %118, %119 : vector<1x3136xf32>
    %121 = arith.mulf %113, %113 : vector<2x3136xf32>
    %cst_61 = arith.constant dense<0.000000e+00> : vector<3136xf32>
    %122 = vector.multi_reduction <add>, %121, %cst_61 [0] : vector<2x3136xf32> to vector<3136xf32>
    %123 = vector.shape_cast %122 : vector<3136xf32> to vector<1x3136xf32>
    %cst_62 = arith.constant 2.000000e+00 : f32
    %124 = vector.broadcast %cst_62 : f32 to vector<1x3136xf32>
    %125 = arith.divf %123, %124 : vector<1x3136xf32>
    %126 = vector.broadcast %120 : vector<1x3136xf32> to vector<16x3136xf32>
    %127 = arith.mulf %114, %126 : vector<16x3136xf32>
    %cst_63 = arith.constant dense<0.000000e+00> : vector<16xf32>
    %128 = vector.multi_reduction <add>, %127, %cst_63 [1] : vector<16x3136xf32> to vector<16xf32>
    %129 = vector.shape_cast %128 : vector<16xf32> to vector<16x1xf32>
    %cst_64 = arith.constant 0.00510204071 : f32
    %130 = vector.broadcast %cst_64 : f32 to vector<16x1xf32>
    %131 = arith.mulf %129, %130 : vector<16x1xf32>
    %132 = vector.broadcast %125 : vector<1x3136xf32> to vector<16x3136xf32>
    %133 = arith.mulf %114, %132 : vector<16x3136xf32>
    %cst_65 = arith.constant dense<0.000000e+00> : vector<16xf32>
    %134 = vector.multi_reduction <add>, %133, %cst_65 [1] : vector<16x3136xf32> to vector<16xf32>
    %135 = vector.shape_cast %134 : vector<16xf32> to vector<16x1xf32>
    %cst_66 = arith.constant 0.00510204071 : f32
    %136 = vector.broadcast %cst_66 : f32 to vector<16x1xf32>
    %137 = arith.mulf %135, %136 : vector<16x1xf32>
    %138 = arith.mulf %131, %131 : vector<16x1xf32>
    %139 = arith.subf %137, %138 : vector<16x1xf32>
    %cst_67 = arith.constant 0.000000e+00 : f32
    %140 = vector.broadcast %cst_67 : f32 to vector<16x1xf32>
    %141 = arith.maximumf %139, %140 : vector<16x1xf32>
    %cst_68 = arith.constant 9.99999974E-6 : f32
    %142 = vector.broadcast %cst_68 : f32 to vector<16x1xf32>
    %143 = arith.addf %141, %142 : vector<16x1xf32>
    %144 = math.rsqrt %143 : vector<16x1xf32>
    %145 = arith.mulf %115, %144 : vector<16x1xf32>
    %146 = arith.mulf %131, %145 : vector<16x1xf32>
    %147 = arith.subf %116, %146 : vector<16x1xf32>
    %148 = vector.broadcast %145 : vector<16x1xf32> to vector<16x3136xf32>
    %149 = arith.mulf %114, %148 : vector<16x3136xf32>
    %cst_69 = arith.constant dense<0.000000e+00> : vector<3136xf32>
    %150 = vector.multi_reduction <add>, %149, %cst_69 [0] : vector<16x3136xf32> to vector<3136xf32>
    %151 = vector.shape_cast %150 : vector<3136xf32> to vector<1x3136xf32>
    %152 = vector.broadcast %147 : vector<16x1xf32> to vector<16x3136xf32>
    %153 = arith.mulf %114, %152 : vector<16x3136xf32>
    %cst_70 = arith.constant dense<0.000000e+00> : vector<3136xf32>
    %154 = vector.multi_reduction <add>, %153, %cst_70 [0] : vector<16x3136xf32> to vector<3136xf32>
    %155 = vector.shape_cast %154 : vector<3136xf32> to vector<1x3136xf32>
    %156 = vector.broadcast %151 : vector<1x3136xf32> to vector<2x3136xf32>
    %157 = arith.mulf %113, %156 : vector<2x3136xf32>
    %158 = vector.broadcast %155 : vector<1x3136xf32> to vector<2x3136xf32>
    %159 = arith.addf %157, %158 : vector<2x3136xf32>
    %c0_71 = arith.constant 0 : index
    %c0_72 = arith.constant 0 : index
    %160 = vector.load %arg14[%c0_71, %c0_72] : memref<2x3136xf32, #tpu.memory_space<vmem>>, vector<2x3136xf32>
    tpu.vector_store %arg14[%c0_71, %c0_72], %159 {strides = array<i32>} : memref<2x3136xf32, #tpu.memory_space<vmem>>, vector<2x3136xf32>,
    return
  }
  func.func @transform_0(%arg0: i32) -> (i32, i32) {
    %c0_i32 = arith.constant 0 : i32
    %c0_i32_0 = arith.constant 0 : i32
    %c0_i32_1 = arith.constant 0 : i32
    return %c0_i32, %c0_i32_0 : i32, i32
  }
  func.func @transform_1(%arg0: i32) -> (i32, i32) {
    %c0_i32 = arith.constant 0 : i32
    %c0_i32_0 = arith.constant 0 : i32
    %c0_i32_1 = arith.constant 0 : i32
    return %c0_i32, %c0_i32_0 : i32, i32
  }
  func.func @transform_2(%arg0: i32) -> (i32, i32) {
    %c0_i32 = arith.constant 0 : i32
    %c0_i32_0 = arith.constant 0 : i32
    %c0_i32_1 = arith.constant 0 : i32
    return %c0_i32, %c0_i32_0 : i32, i32
  }
  func.func @transform_3(%arg0: i32) -> (i32, i32) {
    %c0_i32 = arith.constant 0 : i32
    %c0_i32_0 = arith.constant 0 : i32
    %c0_i32_1 = arith.constant 0 : i32
    return %c0_i32, %c0_i32_0 : i32, i32
  }
  func.func @transform_4(%arg0: i32) -> (i32, i32) {
    %c0_i32 = arith.constant 0 : i32
    %c0_i32_0 = arith.constant 0 : i32
    %c0_i32_1 = arith.constant 0 : i32
    return %c0_i32, %c0_i32_0 : i32, i32
  }
  func.func @transform_5(%arg0: i32) -> (i32, i32) {
    %c0_i32 = arith.constant 0 : i32
    %c0_i32_0 = arith.constant 0 : i32
    %c0_i32_1 = arith.constant 0 : i32
    return %c0_i32, %c0_i32_0 : i32, i32
  }
  func.func @transform_6(%arg0: i32) -> (i32, i32) {
    %c0_i32 = arith.constant 0 : i32
    %c0_i32_0 = arith.constant 0 : i32
    %c0_i32_1 = arith.constant 0 : i32
    return %c0_i32, %c0_i32_0 : i32, i32
  }
  func.func @transform_7(%arg0: i32) -> (i32, i32) {
    %c0_i32 = arith.constant 0 : i32
    %c0_i32_0 = arith.constant 0 : i32
    %c0_i32_1 = arith.constant 0 : i32
    return %c0_i32, %c0_i32_0 : i32, i32
  }
  func.func @transform_8(%arg0: i32) -> (i32, i32) {
    %c0_i32 = arith.constant 0 : i32
    %c0_i32_0 = arith.constant 0 : i32
    %c0_i32_1 = arith.constant 0 : i32
    return %c0_i32, %c0_i32_0 : i32, i32
  }
  func.func @transform_9(%arg0: i32) -> (i32, i32) {
    %c0_i32 = arith.constant 0 : i32
    %c0_i32_0 = arith.constant 0 : i32
    %c0_i32_1 = arith.constant 0 : i32
    return %c0_i32, %c0_i32_0 : i32, i32
  }
  func.func @transform_10(%arg0: i32) -> (i32, i32) {
    %c0_i32 = arith.constant 0 : i32
    %c0_i32_0 = arith.constant 0 : i32
    %c0_i32_1 = arith.constant 0 : i32
    return %c0_i32, %c0_i32_0 : i32, i32
  }
  func.func @transform_11(%arg0: i32) -> (i32, i32) {
    %c0_i32 = arith.constant 0 : i32
    %c0_i32_0 = arith.constant 0 : i32
    %c0_i32_1 = arith.constant 0 : i32
    return %c0_i32, %c0_i32_0 : i32, i32
  }
  func.func @transform_12(%arg0: i32) -> (i32, i32) {
    %c0_i32 = arith.constant 0 : i32
    %c0_i32_0 = arith.constant 0 : i32
    %c0_i32_1 = arith.constant 0 : i32
    return %c0_i32, %c0_i32_0 : i32, i32
  }
  func.func @transform_13(%arg0: i32) -> (i32, i32) {
    %c0_i32 = arith.constant 0 : i32
    %c0_i32_0 = arith.constant 0 : i32
    %c0_i32_1 = arith.constant 0 : i32
    return %c0_i32, %c0_i32_0 : i32, i32
  }
}

module attributes {stable_mosaic.version = 11 : i64} {
  func.func @_deconv3_kernel(%arg0: i32, %arg1: memref<392x144xf32, #tpu.memory_space<vmem>>, %arg2: memref<144x128xf32, #tpu.memory_space<vmem>>, %arg3: memref<1x128xf32, #tpu.memory_space<vmem>>, %arg4: memref<392x128xf32, #tpu.memory_space<vmem>>) attributes {dimension_semantics = [#tpu.dimension_semantics<arbitrary>], iteration_bounds = array<i64: 1>, scalar_prefetch = 0 : i64, scratch_operands = 0 : i64, tpu.core_type = #tpu.core_type<tc>, window_params = [{pipeline_mode = #tpu.pipeline_mode<synchronous>, transform_indices = @transform_0, window_bounds = array<i64: 392, 144>}, {pipeline_mode = #tpu.pipeline_mode<synchronous>, transform_indices = @transform_1, window_bounds = array<i64: 144, 128>}, {pipeline_mode = #tpu.pipeline_mode<synchronous>, transform_indices = @transform_2, window_bounds = array<i64: 1, 128>}, {pipeline_mode = #tpu.pipeline_mode<synchronous>, transform_indices = @transform_3, window_bounds = array<i64: 392, 128>}]} {
    %c0 = arith.constant 0 : index
    %c0_0 = arith.constant 0 : index
    %0 = vector.load %arg1[%c0, %c0_0] : memref<392x144xf32, #tpu.memory_space<vmem>>, vector<392x144xf32>
    %c0_1 = arith.constant 0 : index
    %c0_2 = arith.constant 0 : index
    %1 = vector.load %arg2[%c0_1, %c0_2] : memref<144x128xf32, #tpu.memory_space<vmem>>, vector<144x128xf32>
    %cst = arith.constant dense<0.000000e+00> : vector<392x128xf32>
    %2 = tpu.matmul %0, %1, %cst {dimension_numbers = #tpu.dot_dimension_numbers<[1], [0], [0], [1], [0, 0, 1, 1], [], []>} : vector<392x144xf32>, vector<144x128xf32>, vector<392x128xf32> -> vector<392x128xf32>
    %c0_3 = arith.constant 0 : index
    %c0_4 = arith.constant 0 : index
    %3 = vector.load %arg3[%c0_3, %c0_4] : memref<1x128xf32, #tpu.memory_space<vmem>>, vector<1x128xf32>
    %4 = vector.broadcast %3 : vector<1x128xf32> to vector<392x128xf32>
    %5 = arith.addf %2, %4 : vector<392x128xf32>
    %cst_5 = arith.constant 0.000000e+00 : f32
    %6 = vector.broadcast %cst_5 : f32 to vector<392x128xf32>
    %7 = arith.maximumf %5, %6 : vector<392x128xf32>
    %c0_6 = arith.constant 0 : index
    %c0_7 = arith.constant 0 : index
    %8 = vector.load %arg4[%c0_6, %c0_7] : memref<392x128xf32, #tpu.memory_space<vmem>>, vector<392x128xf32>
    tpu.vector_store %arg4[%c0_6, %c0_7], %7 {strides = array<i32>} : memref<392x128xf32, #tpu.memory_space<vmem>>, vector<392x128xf32>,
    return
  }
  func.func @transform_0(%arg0: i32) -> (i32, i32) {
    %c0_i32 = arith.constant 0 : i32
    %c0_i32_0 = arith.constant 0 : i32
    %c0_i32_1 = arith.constant 0 : i32
    return %c0_i32, %c0_i32_0 : i32, i32
  }
  func.func @transform_1(%arg0: i32) -> (i32, i32) {
    %c0_i32 = arith.constant 0 : i32
    %c0_i32_0 = arith.constant 0 : i32
    %c0_i32_1 = arith.constant 0 : i32
    return %c0_i32, %c0_i32_0 : i32, i32
  }
  func.func @transform_2(%arg0: i32) -> (i32, i32) {
    %c0_i32 = arith.constant 0 : i32
    %c0_i32_0 = arith.constant 0 : i32
    %c0_i32_1 = arith.constant 0 : i32
    return %c0_i32, %c0_i32_0 : i32, i32
  }
  func.func @transform_3(%arg0: i32) -> (i32, i32) {
    %c0_i32 = arith.constant 0 : i32
    %c0_i32_0 = arith.constant 0 : i32
    %c0_i32_1 = arith.constant 0 : i32
    return %c0_i32, %c0_i32_0 : i32, i32
  }
}

</mosaic_0001>

<llo_original>
// kernel: decoder_forward.3
$region0: #{decoder_forward.3}
  #allocation0 [shape = 'u32[]', space=smem, size = 0x4, offset = 0x4, fixed_abs, tag = 'smem constant byte address 0x4 - core index']
  #allocation1 [shape = 'u32[144,128]{1,0:T(1,128)}', space=vmem, size = 0x12000, scoped, tag = 'internal scratch']
  %s0 = inlined_call_operand.vmem [shape: f32[392,144], index: 0, kind: input, shape index: {}]
  %s1 = inlined_call_operand.vmem [shape: f32[144,128], index: 1, kind: input, shape index: {}]
  %s2 = inlined_call_operand.vmem [shape: f32[1,128], index: 2, kind: input, shape index: {}]
  %s3 = inlined_call_operand.vmem [shape: f32[392,128], index: 3, kind: output, shape index: {}]
  %s4 = sld [smem:[#allocation0]]
  $region22: #{decoder_forward.3} parent=0
    _
  %s6 = ssub.s32 1, %s4
  %s7 = scalar_select 0, %s6, %s4
  // Predicated region
  $region2: #{decoder_forward.3} parent=0 // pred_check
    _
  $region3: #{decoder_forward.3} parent=0 // pred_check_branch
    %9 = sbr.rel (0) target = $region5
  $region4: #{decoder_forward.3} parent=0 // pred_region
    _
  $region5: #{decoder_forward.3} parent=0 // pred_fallthru
    _
  // Predicated region
  $region6: #{decoder_forward.3} parent=0 // pred_check
    _
  $region7: #{decoder_forward.3} parent=0 // pred_check_branch
    %11 = sbr.rel (0) target = $region9
  $region8: #{decoder_forward.3} parent=0 // pred_region
    _
  $region9: #{decoder_forward.3} parent=0 // pred_fallthru
    _
  // Predicated region
  $region10: #{decoder_forward.3} parent=0 // pred_check
    _
  $region11: #{decoder_forward.3} parent=0 // pred_check_branch
    %13 = sbr.rel (0) target = $region13
  $region12: #{decoder_forward.3} parent=0 // pred_region
    _
  $region13: #{decoder_forward.3} parent=0 // pred_fallthru
    _
  %v14 = vld [vmem:[%s0] sm:$0xff]
  %v15 = vld [vmem:[%s0 + $0x8] sm:$0xff]
  %v16 = vld [vmem:[%s0 + $0x10] sm:$0xff]
  %v17 = vld [vmem:[%s0 + $0x18] sm:$0xff]
  %v18 = vld [vmem:[%s0 + $0x20] sm:$0xff]
  %v19 = vld [vmem:[%s0 + $0x28] sm:$0xff]
  %v20 = vld [vmem:[%s0 + $0x30] sm:$0xff]
  %v21 = vld [vmem:[%s0 + $0x38] sm:$0xff]
  %v22 = vld [vmem:[%s0 + $0x40] sm:$0xff]
  %v23 = vld [vmem:[%s0 + $0x48] sm:$0xff]
  %v24 = vld [vmem:[%s0 + $0x50] sm:$0xff]
  %v25 = vld [vmem:[%s0 + $0x58] sm:$0xff]
  %v26 = vld [vmem:[%s0 + $0x60] sm:$0xff]
  %v27 = vld [vmem:[%s0 + $0x68] sm:$0xff]
  %v28 = vld [vmem:[%s0 + $0x70] sm:$0xff]
  %v29 = vld [vmem:[%s0 + $0x78] sm:$0xff]
  %v30 = vld [vmem:[%s0 + $0x80] sm:$0xff]
  %v31 = vld [vmem:[%s0 + $0x88] sm:$0xff]
  %v32 = vld [vmem:[%s0 + $0x90] sm:$0xff]
  %v33 = vld [vmem:[%s0 + $0x98] sm:$0xff]
  %v34 = vld [vmem:[%s0 + $0xa0] sm:$0xff]
  %v35 = vld [vmem:[%s0 + $0xa8] sm:$0xff]
  %v36 = vld [vmem:[%s0 + $0xb0] sm:$0xff]
  %v37 = vld [vmem:[%s0 + $0xb8] sm:$0xff]
  %v38 = vld [vmem:[%s0 + $0xc0] sm:$0xff]
  %v39 = vld [vmem:[%s0 + $0xc8] sm:$0xff]
  %v40 = vld [vmem:[%s0 + $0xd0] sm:$0xff]
  %v41 = vld [vmem:[%s0 + $0xd8] sm:$0xff]
  %v42 = vld [vmem:[%s0 + $0xe0] sm:$0xff]
  %v43 = vld [vmem:[%s0 + $0xe8] sm:$0xff]
  %v44 = vld [vmem:[%s0 + $0xf0] sm:$0xff]
  %v45 = vld [vmem:[%s0 + $0xf8] sm:$0xff]
  %v46 = vld [vmem:[%s0 + $0x100] sm:$0xff]
  %v47 = vld [vmem:[%s0 + $0x108] sm:$0xff]
  %v48 = vld [vmem:[%s0 + $0x110] sm:$0xff]
  %v49 = vld [vmem:[%s0 + $0x118] sm:$0xff]
  %v50 = vld [vmem:[%s0 + $0x120] sm:$0xff]
  %v51 = vld [vmem:[%s0 + $0x128] sm:$0xff]
  %v52 = vld [vmem:[%s0 + $0x130] sm:$0xff]
  %v53 = vld [vmem:[%s0 + $0x138] sm:$0xff]
  %v54 = vld [vmem:[%s0 + $0x140] sm:$0xff]
  %v55 = vld [vmem:[%s0 + $0x148] sm:$0xff]
  %v56 = vld [vmem:[%s0 + $0x150] sm:$0xff]
  %v57 = vld [vmem:[%s0 + $0x158] sm:$0xff]
  %v58 = vld [vmem:[%s0 + $0x160] sm:$0xff]
  %v59 = vld [vmem:[%s0 + $0x168] sm:$0xff]
  %v60 = vld [vmem:[%s0 + $0x170] sm:$0xff]
  %v61 = vld [vmem:[%s0 + $0x178] sm:$0xff]
  %v62 = vld [vmem:[%s0 + $0x180] sm:$0xff]
  %v63 = vld [vmem:[%s0 + $0x188] sm:$0xff]
  %v64 = vld [vmem:[%s0 + $0x190] sm:$0xff]
  %v65 = vld [vmem:[%s0 + $0x198] sm:$0xff]
  %v66 = vld [vmem:[%s0 + $0x1a0] sm:$0xff]
  %v67 = vld [vmem:[%s0 + $0x1a8] sm:$0xff]
  %v68 = vld [vmem:[%s0 + $0x1b0] sm:$0xff]
  %v69 = vld [vmem:[%s0 + $0x1b8] sm:$0xff]
  %v70 = vld [vmem:[%s0 + $0x1c0] sm:$0xff]
  %v71 = vld [vmem:[%s0 + $0x1c8] sm:$0xff]
  %v72 = vld [vmem:[%s0 + $0x1d0] sm:$0xff]
  %v73 = vld [vmem:[%s0 + $0x1d8] sm:$0xff]
  %v74 = vld [vmem:[%s0 + $0x1e0] sm:$0xff]
  %v75 = vld [vmem:[%s0 + $0x1e8] sm:$0xff]
  %v76 = vld [vmem:[%s0 + $0x1f0] sm:$0xff]
  %v77 = vld [vmem:[%s0 + $0x1f8] sm:$0xff]
  %v78 = vld [vmem:[%s0 + $0x200] sm:$0xff]
  %v79 = vld [vmem:[%s0 + $0x208] sm:$0xff]
  %v80 = vld [vmem:[%s0 + $0x210] sm:$0xff]
  %v81 = vld [vmem:[%s0 + $0x218] sm:$0xff]
  %v82 = vld [vmem:[%s0 + $0x220] sm:$0xff]
  %v83 = vld [vmem:[%s0 + $0x228] sm:$0xff]
  %v84 = vld [vmem:[%s0 + $0x230] sm:$0xff]
  %v85 = vld [vmem:[%s0 + $0x238] sm:$0xff]
  %v86 = vld [vmem:[%s0 + $0x240] sm:$0xff]
  %v87 = vld [vmem:[%s0 + $0x248] sm:$0xff]
  %v88 = vld [vmem:[%s0 + $0x250] sm:$0xff]
  %v89 = vld [vmem:[%s0 + $0x258] sm:$0xff]
  %v90 = vld [vmem:[%s0 + $0x260] sm:$0xff]
  %v91 = vld [vmem:[%s0 + $0x268] sm:$0xff]
  %v92 = vld [vmem:[%s0 + $0x270] sm:$0xff]
  %v93 = vld [vmem:[%s0 + $0x278] sm:$0xff]
  %v94 = vld [vmem:[%s0 + $0x280] sm:$0xff]
  %v95 = vld [vmem:[%s0 + $0x288] sm:$0xff]
  %v96 = vld [vmem:[%s0 + $0x290] sm:$0xff]
  %v97 = vld [vmem:[%s0 + $0x298] sm:$0xff]
  %v98 = vld [vmem:[%s0 + $0x2a0] sm:$0xff]
  %v99 = vld [vmem:[%s0 + $0x2a8] sm:$0xff]
  %v100 = vld [vmem:[%s0 + $0x2b0] sm:$0xff]
  %v101 = vld [vmem:[%s0 + $0x2b8] sm:$0xff]
  %v102 = vld [vmem:[%s0 + $0x2c0] sm:$0xff]
  %v103 = vld [vmem:[%s0 + $0x2c8] sm:$0xff]
  %v104 = vld [vmem:[%s0 + $0x2d0] sm:$0xff]
  %v105 = vld [vmem:[%s0 + $0x2d8] sm:$0xff]
  %v106 = vld [vmem:[%s0 + $0x2e0] sm:$0xff]
  %v107 = vld [vmem:[%s0 + $0x2e8] sm:$0xff]
  %v108 = vld [vmem:[%s0 + $0x2f0] sm:$0xff]
  %v109 = vld [vmem:[%s0 + $0x2f8] sm:$0xff]
  %v110 = vld [vmem:[%s0 + $0x300] sm:$0xff]
  %v111 = vld [vmem:[%s0 + $0x308] sm:$0xff]
  %v112 = vld [vmem:[%s1] sm:$0xff]
  %v113 = vld [vmem:[%s1 + $0x8] sm:$0xff]
  %v114 = vld [vmem:[%s1 + $0x10] sm:$0xff]
  %v115 = vld [vmem:[%s1 + $0x18] sm:$0xff]
  %v116 = vld [vmem:[%s1 + $0x20] sm:$0xff]
  %v117 = vld [vmem:[%s1 + $0x28] sm:$0xff]
  %v118 = vld [vmem:[%s1 + $0x30] sm:$0xff]
  %v119 = vld [vmem:[%s1 + $0x38] sm:$0xff]
  %v120 = vld [vmem:[%s1 + $0x40] sm:$0xff]
  %v121 = vld [vmem:[%s1 + $0x48] sm:$0xff]
  %v122 = vld [vmem:[%s1 + $0x50] sm:$0xff]
  %v123 = vld [vmem:[%s1 + $0x58] sm:$0xff]
  %v124 = vld [vmem:[%s1 + $0x60] sm:$0xff]
  %v125 = vld [vmem:[%s1 + $0x68] sm:$0xff]
  %v126 = vld [vmem:[%s1 + $0x70] sm:$0xff]
  %v127 = vld [vmem:[%s1 + $0x78] sm:$0xff]
  %v128 = vld [vmem:[%s1 + $0x80] sm:$0xff]
  %v129 = vld [vmem:[%s1 + $0x88] sm:$0xff]
  %v130 = vld [vmem:[%s2] sm:$0x1]
  %v132 = vlaneseq
  %v133 = vshrl.u32 %v132, 7
  %v134 = vsub.s32 0, %v133
  %v135 = vrot.slane %v130, %v134
  %vm137 = vcmask 130048
  %v139 = vsel %vm137, %v15, 0
  %v142 = vsel %vm137, %v17, 0
  %v145 = vsel %vm137, %v19, 0
  %v148 = vsel %vm137, %v21, 0
  %v151 = vsel %vm137, %v23, 0
  %v154 = vsel %vm137, %v25, 0
  %v157 = vsel %vm137, %v27, 0
  %v160 = vsel %vm137, %v29, 0
  %v163 = vsel %vm137, %v31, 0
  %v166 = vsel %vm137, %v33, 0
  %v169 = vsel %vm137, %v35, 0
  %v172 = vsel %vm137, %v37, 0
  %v175 = vsel %vm137, %v39, 0
  %v178 = vsel %vm137, %v41, 0
  %v181 = vsel %vm137, %v43, 0
  %v184 = vsel %vm137, %v45, 0
  %v187 = vsel %vm137, %v47, 0
  %v190 = vsel %vm137, %v49, 0
  %v193 = vsel %vm137, %v51, 0
  %v196 = vsel %vm137, %v53, 0
  %v199 = vsel %vm137, %v55, 0
  %v202 = vsel %vm137, %v57, 0
  %v205 = vsel %vm137, %v59, 0
  %v208 = vsel %vm137, %v61, 0
  %v211 = vsel %vm137, %v63, 0
  %v214 = vsel %vm137, %v65, 0
  %v217 = vsel %vm137, %v67, 0
  %v220 = vsel %vm137, %v69, 0
  %v223 = vsel %vm137, %v71, 0
  %v226 = vsel %vm137, %v73, 0
  %v229 = vsel %vm137, %v75, 0
  %v232 = vsel %vm137, %v77, 0
  %v235 = vsel %vm137, %v79, 0
  %v238 = vsel %vm137, %v81, 0
  %v241 = vsel %vm137, %v83, 0
  %v244 = vsel %vm137, %v85, 0
  %v247 = vsel %vm137, %v87, 0
  %v250 = vsel %vm137, %v89, 0
  %v253 = vsel %vm137, %v91, 0
  %v256 = vsel %vm137, %v93, 0
  %v259 = vsel %vm137, %v95, 0
  %v262 = vsel %vm137, %v97, 0
  %v265 = vsel %vm137, %v99, 0
  %v268 = vsel %vm137, %v101, 0
  %v271 = vsel %vm137, %v103, 0
  %v274 = vsel %vm137, %v105, 0
  %v277 = vsel %vm137, %v107, 0
  %v280 = vsel %vm137, %v109, 0
  %v283 = vsel %vm137, %v111, 0
  %285 = vmatprep.subr.mxu0 0.0
  %286 = vmatpush1.msra.mxu0 %v127
  %287 = vmatprep.subr.mxu0 0.0
  %288 = vmatpush1.msra.mxu0 %v126
  %289 = vmatprep.subr.mxu0 0.0
  %290 = vmatpush1.msra.mxu0 %v125
  %291 = vmatprep.subr.mxu0 0.0
  %292 = vmatpush1.msra.mxu0 %v124
  %293 = vmatprep.subr.mxu0 0.0
  %294 = vmatpush1.msra.mxu0 %v123
  %295 = vmatprep.subr.mxu0 0.0
  %296 = vmatpush1.msra.mxu0 %v122
  %297 = vmatprep.subr.mxu0 0.0
  %298 = vmatpush1.msra.mxu0 %v121
  %299 = vmatprep.subr.mxu0 0.0
  %300 = vmatpush1.msra.mxu0 %v120
  %301 = vmatprep.subr.mxu0 0.0
  %302 = vmatpush1.msra.mxu0 %v119
  %303 = vmatprep.subr.mxu0 0.0
  %304 = vmatpush1.msra.mxu0 %v118
  %305 = vmatprep.subr.mxu0 0.0
  %306 = vmatpush1.msra.mxu0 %v117
  %307 = vmatprep.subr.mxu0 0.0
  %308 = vmatpush1.msra.mxu0 %v116
  %309 = vmatprep.subr.mxu0 0.0
  %310 = vmatpush1.msra.mxu0 %v115
  %311 = vmatprep.subr.mxu0 0.0
  %312 = vmatpush1.msra.mxu0 %v114
  %313 = vmatprep.subr.mxu0 0.0
  %314 = vmatpush1.msra.mxu0 %v113
  %315 = vmatprep.subr.mxu0 0.0
  %316 = vmatpush1.msra.mxu0 %v112
  %317 = vmatprep.subr.mxu0 0.0
  %318 = vmatpush2.msra.mxu0 0.0
  %319 = vmatprep.subr.mxu0 0.0
  %320 = vmatpush2.msra.mxu0 0.0
  %321 = vmatprep.subr.mxu0 0.0
  %322 = vmatpush2.msra.mxu0 0.0
  %323 = vmatprep.subr.mxu0 0.0
  %324 = vmatpush2.msra.mxu0 0.0
  %325 = vmatprep.subr.mxu0 0.0
  %326 = vmatpush2.msra.mxu0 0.0
  %327 = vmatprep.subr.mxu0 0.0
  %328 = vmatpush2.msra.mxu0 0.0
  %329 = vmatprep.subr.mxu0 0.0
  %330 = vmatpush2.msra.mxu0 0.0
  %331 = vmatprep.subr.mxu0 0.0
  %332 = vmatpush2.msra.mxu0 0.0
  %333 = vmatprep.subr.mxu0 0.0
  %334 = vmatpush2.msra.mxu0 0.0
  %335 = vmatprep.subr.mxu0 0.0
  %336 = vmatpush2.msra.mxu0 0.0
  %337 = vmatprep.subr.mxu0 0.0
  %338 = vmatpush2.msra.mxu0 0.0
  %339 = vmatprep.subr.mxu0 0.0
  %340 = vmatpush2.msra.mxu0 0.0
  %341 = vmatprep.subr.mxu0 0.0
  %342 = vmatpush2.msra.mxu0 0.0
  %343 = vmatprep.subr.mxu0 0.0
  %344 = vmatpush2.msra.mxu0 0.0
  %345 = vmatprep.subr.mxu0 0.0
  %346 = vmatpush2.msra.mxu0 %v129
  %347 = vmatprep.subr.mxu0 0.0
  %348 = vmatpush2.msra.mxu0 %v128
  %349 = vmatprep.mubr.f32.mxu0 %v139
  %350 = vmatmul.mubr.f32.gmra.mxu0 %v14
  %v351 = vpop.f32.mrf.mxu0
  %v352 = vadd.f32 %v135, %v351
  %v353 = vpop.f32.mrf.mxu0
  %354 = vmatprep.mubr.f32.mxu0 %v142
  %355 = vmatmul.mubr.f32.gmra.mxu0 %v16
  %v356 = vpop.f32.mrf.mxu0
  %v357 = vadd.f32 %v135, %v356
  %v358 = vpop.f32.mrf.mxu0
  %359 = vmatprep.mubr.f32.mxu0 %v145
  %360 = vmatmul.mubr.f32.gmra.mxu0 %v18
  %v361 = vpop.f32.mrf.mxu0
  %v362 = vadd.f32 %v135, %v361
  %v363 = vpop.f32.mrf.mxu0
  %364 = vmatprep.mubr.f32.mxu0 %v148
  %365 = vmatmul.mubr.f32.gmra.mxu0 %v20
  %v366 = vpop.f32.mrf.mxu0
  %v367 = vadd.f32 %v135, %v366
  %v368 = vpop.f32.mrf.mxu0
  %369 = vmatprep.mubr.f32.mxu0 %v151
  %370 = vmatmul.mubr.f32.gmra.mxu0 %v22
  %v371 = vpop.f32.mrf.mxu0
  %v372 = vadd.f32 %v135, %v371
  %v373 = vpop.f32.mrf.mxu0
  %374 = vmatprep.mubr.f32.mxu0 %v154
  %375 = vmatmul.mubr.f32.gmra.mxu0 %v24
  %v376 = vpop.f32.mrf.mxu0
  %v377 = vadd.f32 %v135, %v376
  %v378 = vpop.f32.mrf.mxu0
  %379 = vmatprep.mubr.f32.mxu0 %v157
  %380 = vmatmul.mubr.f32.gmra.mxu0 %v26
  %v381 = vpop.f32.mrf.mxu0
  %v382 = vadd.f32 %v135, %v381
  %v383 = vpop.f32.mrf.mxu0
  %384 = vmatprep.mubr.f32.mxu0 %v160
  %385 = vmatmul.mubr.f32.gmra.mxu0 %v28
  %v386 = vpop.f32.mrf.mxu0
  %v387 = vadd.f32 %v135, %v386
  %v388 = vpop.f32.mrf.mxu0
  %389 = vmatprep.mubr.f32.mxu0 %v163
  %390 = vmatmul.mubr.f32.gmra.mxu0 %v30
  %v391 = vpop.f32.mrf.mxu0
  %v392 = vadd.f32 %v135, %v391
  %v393 = vpop.f32.mrf.mxu0
  %394 = vmatprep.mubr.f32.mxu0 %v166
  %395 = vmatmul.mubr.f32.gmra.mxu0 %v32
  %v396 = vpop.f32.mrf.mxu0
  %v397 = vadd.f32 %v135, %v396
  %v398 = vpop.f32.mrf.mxu0
  %399 = vmatprep.mubr.f32.mxu0 %v169
  %400 = vmatmul.mubr.f32.gmra.mxu0 %v34
  %v401 = vpop.f32.mrf.mxu0
  %v402 = vadd.f32 %v135, %v401
  %v403 = vpop.f32.mrf.mxu0
  %404 = vmatprep.mubr.f32.mxu0 %v172
  %405 = vmatmul.mubr.f32.gmra.mxu0 %v36
  %v406 = vpop.f32.mrf.mxu0
  %v407 = vadd.f32 %v135, %v406
  %v408 = vpop.f32.mrf.mxu0
  %409 = vmatprep.mubr.f32.mxu0 %v175
  %410 = vmatmul.mubr.f32.gmra.mxu0 %v38
  %v411 = vpop.f32.mrf.mxu0
  %v412 = vadd.f32 %v135, %v411
  %v413 = vpop.f32.mrf.mxu0
  %414 = vmatprep.mubr.f32.mxu0 %v178
  %415 = vmatmul.mubr.f32.gmra.mxu0 %v40
  %v416 = vpop.f32.mrf.mxu0
  %v417 = vadd.f32 %v135, %v416
  %v418 = vpop.f32.mrf.mxu0
  %419 = vmatprep.mubr.f32.mxu0 %v181
  %420 = vmatmul.mubr.f32.gmra.mxu0 %v42
  %v421 = vpop.f32.mrf.mxu0
  %v422 = vadd.f32 %v135, %v421
  %v423 = vpop.f32.mrf.mxu0
  %424 = vmatprep.mubr.f32.mxu0 %v184
  %425 = vmatmul.mubr.f32.gmra.mxu0 %v44
  %v426 = vpop.f32.mrf.mxu0
  %v427 = vadd.f32 %v135, %v426
  %v428 = vpop.f32.mrf.mxu0
  %429 = vmatprep.mubr.f32.mxu0 %v187
  %430 = vmatmul.mubr.f32.gmra.mxu0 %v46
  %v431 = vpop.f32.mrf.mxu0
  %v432 = vadd.f32 %v135, %v431
  %v433 = vpop.f32.mrf.mxu0
  %434 = vmatprep.mubr.f32.mxu0 %v190
  %435 = vmatmul.mubr.f32.gmra.mxu0 %v48
  %v436 = vpop.f32.mrf.mxu0
  %v437 = vadd.f32 %v135, %v436
  %v438 = vpop.f32.mrf.mxu0
  %439 = vmatprep.mubr.f32.mxu0 %v193
  %440 = vmatmul.mubr.f32.gmra.mxu0 %v50
  %v441 = vpop.f32.mrf.mxu0
  %v442 = vadd.f32 %v135, %v441
  %v443 = vpop.f32.mrf.mxu0
  %444 = vmatprep.mubr.f32.mxu0 %v196
  %445 = vmatmul.mubr.f32.gmra.mxu0 %v52
  %v446 = vpop.f32.mrf.mxu0
  %v447 = vadd.f32 %v135, %v446
  %v448 = vpop.f32.mrf.mxu0
  %449 = vmatprep.mubr.f32.mxu0 %v199
  %450 = vmatmul.mubr.f32.gmra.mxu0 %v54
  %v451 = vpop.f32.mrf.mxu0
  %v452 = vadd.f32 %v135, %v451
  %v453 = vpop.f32.mrf.mxu0
  %454 = vmatprep.mubr.f32.mxu0 %v202
  %455 = vmatmul.mubr.f32.gmra.mxu0 %v56
  %v456 = vpop.f32.mrf.mxu0
  %v457 = vadd.f32 %v135, %v456
  %v458 = vpop.f32.mrf.mxu0
  %459 = vmatprep.mubr.f32.mxu0 %v205
  %460 = vmatmul.mubr.f32.gmra.mxu0 %v58
  %v461 = vpop.f32.mrf.mxu0
  %v462 = vadd.f32 %v135, %v461
  %v463 = vpop.f32.mrf.mxu0
  %464 = vmatprep.mubr.f32.mxu0 %v208
  %465 = vmatmul.mubr.f32.gmra.mxu0 %v60
  %v466 = vpop.f32.mrf.mxu0
  %v467 = vadd.f32 %v135, %v466
  %v468 = vpop.f32.mrf.mxu0
  %469 = vmatprep.mubr.f32.mxu0 %v211
  %470 = vmatmul.mubr.f32.gmra.mxu0 %v62
  %v471 = vpop.f32.mrf.mxu0
  %v472 = vadd.f32 %v135, %v471
  %v473 = vpop.f32.mrf.mxu0
  %474 = vmatprep.mubr.f32.mxu0 %v214
  %475 = vmatmul.mubr.f32.gmra.mxu0 %v64
  %v476 = vpop.f32.mrf.mxu0
  %v477 = vadd.f32 %v135, %v476
  %v478 = vpop.f32.mrf.mxu0
  %479 = vmatprep.mubr.f32.mxu0 %v217
  %480 = vmatmul.mubr.f32.gmra.mxu0 %v66
  %v481 = vpop.f32.mrf.mxu0
  %v482 = vadd.f32 %v135, %v481
  %v483 = vpop.f32.mrf.mxu0
  %484 = vmatprep.mubr.f32.mxu0 %v220
  %485 = vmatmul.mubr.f32.gmra.mxu0 %v68
  %v486 = vpop.f32.mrf.mxu0
  %v487 = vadd.f32 %v135, %v486
  %v488 = vpop.f32.mrf.mxu0
  %489 = vmatprep.mubr.f32.mxu0 %v223
  %490 = vmatmul.mubr.f32.gmra.mxu0 %v70
  %v491 = vpop.f32.mrf.mxu0
  %v492 = vadd.f32 %v135, %v491
  %v493 = vpop.f32.mrf.mxu0
  %494 = vmatprep.mubr.f32.mxu0 %v226
  %495 = vmatmul.mubr.f32.gmra.mxu0 %v72
  %v496 = vpop.f32.mrf.mxu0
  %v497 = vadd.f32 %v135, %v496
  %v498 = vpop.f32.mrf.mxu0
  %499 = vmatprep.mubr.f32.mxu0 %v229
  %500 = vmatmul.mubr.f32.gmra.mxu0 %v74
  %v501 = vpop.f32.mrf.mxu0
  %v502 = vadd.f32 %v135, %v501
  %v503 = vpop.f32.mrf.mxu0
  %504 = vmatprep.mubr.f32.mxu0 %v232
  %505 = vmatmul.mubr.f32.gmra.mxu0 %v76
  %v506 = vpop.f32.mrf.mxu0
  %v507 = vadd.f32 %v135, %v506
  %v508 = vpop.f32.mrf.mxu0
  %509 = vmatprep.mubr.f32.mxu0 %v235
  %510 = vmatmul.mubr.f32.gmra.mxu0 %v78
  %v511 = vpop.f32.mrf.mxu0
  %v512 = vadd.f32 %v135, %v511
  %v513 = vpop.f32.mrf.mxu0
  %514 = vmatprep.mubr.f32.mxu0 %v238
  %515 = vmatmul.mubr.f32.gmra.mxu0 %v80
  %v516 = vpop.f32.mrf.mxu0
  %v517 = vadd.f32 %v135, %v516
  %v518 = vpop.f32.mrf.mxu0
  %519 = vmatprep.mubr.f32.mxu0 %v241
  %520 = vmatmul.mubr.f32.gmra.mxu0 %v82
  %v521 = vpop.f32.mrf.mxu0
  %v522 = vadd.f32 %v135, %v521
  %v523 = vpop.f32.mrf.mxu0
  %524 = vmatprep.mubr.f32.mxu0 %v244
  %525 = vmatmul.mubr.f32.gmra.mxu0 %v84
  %v526 = vpop.f32.mrf.mxu0
  %v527 = vadd.f32 %v135, %v526
  %v528 = vpop.f32.mrf.mxu0
  %529 = vmatprep.mubr.f32.mxu0 %v247
  %530 = vmatmul.mubr.f32.gmra.mxu0 %v86
  %v531 = vpop.f32.mrf.mxu0
  %v532 = vadd.f32 %v135, %v531
  %v533 = vpop.f32.mrf.mxu0
  %534 = vmatprep.mubr.f32.mxu0 %v250
  %535 = vmatmul.mubr.f32.gmra.mxu0 %v88
  %v536 = vpop.f32.mrf.mxu0
  %v537 = vadd.f32 %v135, %v536
  %v538 = vpop.f32.mrf.mxu0
  %539 = vmatprep.mubr.f32.mxu0 %v253
  %540 = vmatmul.mubr.f32.gmra.mxu0 %v90
  %v541 = vpop.f32.mrf.mxu0
  %v542 = vadd.f32 %v135, %v541
  %v543 = vpop.f32.mrf.mxu0
  %544 = vmatprep.mubr.f32.mxu0 %v256
  %545 = vmatmul.mubr.f32.gmra.mxu0 %v92
  %v546 = vpop.f32.mrf.mxu0
  %v547 = vadd.f32 %v135, %v546
  %v548 = vpop.f32.mrf.mxu0
  %549 = vmatprep.mubr.f32.mxu0 %v259
  %550 = vmatmul.mubr.f32.gmra.mxu0 %v94
  %v551 = vpop.f32.mrf.mxu0
  %v552 = vadd.f32 %v135, %v551
  %v553 = vpop.f32.mrf.mxu0
  %554 = vmatprep.mubr.f32.mxu0 %v262
  %555 = vmatmul.mubr.f32.gmra.mxu0 %v96
  %v556 = vpop.f32.mrf.mxu0
  %v557 = vadd.f32 %v135, %v556
  %v558 = vpop.f32.mrf.mxu0
  %559 = vmatprep.mubr.f32.mxu0 %v265
  %560 = vmatmul.mubr.f32.gmra.mxu0 %v98
  %v561 = vpop.f32.mrf.mxu0
  %v562 = vadd.f32 %v135, %v561
  %v563 = vpop.f32.mrf.mxu0
  %564 = vmatprep.mubr.f32.mxu0 %v268
  %565 = vmatmul.mubr.f32.gmra.mxu0 %v100
  %v566 = vpop.f32.mrf.mxu0
  %v567 = vadd.f32 %v135, %v566
  %v568 = vpop.f32.mrf.mxu0
  %569 = vmatprep.mubr.f32.mxu0 %v271
  %570 = vmatmul.mubr.f32.gmra.mxu0 %v102
  %v571 = vpop.f32.mrf.mxu0
  %v572 = vadd.f32 %v135, %v571
  %v573 = vpop.f32.mrf.mxu0
  %574 = vmatprep.mubr.f32.mxu0 %v274
  %575 = vmatmul.mubr.f32.gmra.mxu0 %v104
  %v576 = vpop.f32.mrf.mxu0
  %v577 = vadd.f32 %v135, %v576
  %v578 = vpop.f32.mrf.mxu0
  %579 = vmatprep.mubr.f32.mxu0 %v277
  %580 = vmatmul.mubr.f32.gmra.mxu0 %v106
  %v581 = vpop.f32.mrf.mxu0
  %v582 = vadd.f32 %v135, %v581
  %v583 = vpop.f32.mrf.mxu0
  %584 = vmatprep.mubr.f32.mxu0 %v280
  %585 = vmatmul.mubr.f32.gmra.mxu0 %v108
  %v586 = vpop.f32.mrf.mxu0
  %v587 = vadd.f32 %v135, %v586
  %v588 = vpop.f32.mrf.mxu0
  %589 = vmatprep.mubr.f32.mxu0 %v283
  %590 = vmatmul.mubr.f32.gmra.mxu0 %v110
  %v591 = vpop.f32.mrf.mxu0
  %v592 = vadd.f32 %v135, %v591
  %v593 = vpop.f32.mrf.mxu0
  %594 = vdwg.mxu0
  %v595 = vmax.f32 %v352, 0.0
  %v596 = vmax.f32 %v357, 0.0
  %v597 = vmax.f32 %v362, 0.0
  %v598 = vmax.f32 %v367, 0.0
  %v599 = vmax.f32 %v372, 0.0
  %v600 = vmax.f32 %v377, 0.0
  %v601 = vmax.f32 %v382, 0.0
  %v602 = vmax.f32 %v387, 0.0
  %v603 = vmax.f32 %v392, 0.0
  %v604 = vmax.f32 %v397, 0.0
  %v605 = vmax.f32 %v402, 0.0
  %v606 = vmax.f32 %v407, 0.0
  %v607 = vmax.f32 %v412, 0.0
  %v608 = vmax.f32 %v417, 0.0
  %v609 = vmax.f32 %v422, 0.0
  %v610 = vmax.f32 %v427, 0.0
  %v611 = vmax.f32 %v432, 0.0
  %v612 = vmax.f32 %v437, 0.0
  %v613 = vmax.f32 %v442, 0.0
  %v614 = vmax.f32 %v447, 0.0
  %v615 = vmax.f32 %v452, 0.0
  %v616 = vmax.f32 %v457, 0.0
  %v617 = vmax.f32 %v462, 0.0
  %v618 = vmax.f32 %v467, 0.0
  %v619 = vmax.f32 %v472, 0.0
  %v620 = vmax.f32 %v477, 0.0
  %v621 = vmax.f32 %v482, 0.0
  %v622 = vmax.f32 %v487, 0.0
  %v623 = vmax.f32 %v492, 0.0
  %v624 = vmax.f32 %v497, 0.0
  %v625 = vmax.f32 %v502, 0.0
  %v626 = vmax.f32 %v507, 0.0
  %v627 = vmax.f32 %v512, 0.0
  %v628 = vmax.f32 %v517, 0.0
  %v629 = vmax.f32 %v522, 0.0
  %v630 = vmax.f32 %v527, 0.0
  %v631 = vmax.f32 %v532, 0.0
  %v632 = vmax.f32 %v537, 0.0
  %v633 = vmax.f32 %v542, 0.0
  %v634 = vmax.f32 %v547, 0.0
  %v635 = vmax.f32 %v552, 0.0
  %v636 = vmax.f32 %v557, 0.0
  %v637 = vmax.f32 %v562, 0.0
  %v638 = vmax.f32 %v567, 0.0
  %v639 = vmax.f32 %v572, 0.0
  %v640 = vmax.f32 %v577, 0.0
  %v641 = vmax.f32 %v582, 0.0
  %v642 = vmax.f32 %v587, 0.0
  %v643 = vmax.f32 %v592, 0.0
  %644 = vst [vmem:[%s3] sm:$0xff] %v595
  %645 = vst [vmem:[%s3 + $0x8] sm:$0xff] %v596
  %646 = vst [vmem:[%s3 + $0x10] sm:$0xff] %v597
  %647 = vst [vmem:[%s3 + $0x18] sm:$0xff] %v598
  %648 = vst [vmem:[%s3 + $0x20] sm:$0xff] %v599
  %649 = vst [vmem:[%s3 + $0x28] sm:$0xff] %v600
  %650 = vst [vmem:[%s3 + $0x30] sm:$0xff] %v601
  %651 = vst [vmem:[%s3 + $0x38] sm:$0xff] %v602
  %652 = vst [vmem:[%s3 + $0x40] sm:$0xff] %v603
  %653 = vst [vmem:[%s3 + $0x48] sm:$0xff] %v604
  %654 = vst [vmem:[%s3 + $0x50] sm:$0xff] %v605
  %655 = vst [vmem:[%s3 + $0x58] sm:$0xff] %v606
  %656 = vst [vmem:[%s3 + $0x60] sm:$0xff] %v607
  %657 = vst [vmem:[%s3 + $0x68] sm:$0xff] %v608
  %658 = vst [vmem:[%s3 + $0x70] sm:$0xff] %v609
  %659 = vst [vmem:[%s3 + $0x78] sm:$0xff] %v610
  %660 = vst [vmem:[%s3 + $0x80] sm:$0xff] %v611
  %661 = vst [vmem:[%s3 + $0x88] sm:$0xff] %v612
  %662 = vst [vmem:[%s3 + $0x90] sm:$0xff] %v613
  %663 = vst [vmem:[%s3 + $0x98] sm:$0xff] %v614
  %664 = vst [vmem:[%s3 + $0xa0] sm:$0xff] %v615
  %665 = vst [vmem:[%s3 + $0xa8] sm:$0xff] %v616
  %666 = vst [vmem:[%s3 + $0xb0] sm:$0xff] %v617
  %667 = vst [vmem:[%s3 + $0xb8] sm:$0xff] %v618
  %668 = vst [vmem:[%s3 + $0xc0] sm:$0xff] %v619
  %669 = vst [vmem:[%s3 + $0xc8] sm:$0xff] %v620
  %670 = vst [vmem:[%s3 + $0xd0] sm:$0xff] %v621
  %671 = vst [vmem:[%s3 + $0xd8] sm:$0xff] %v622
  %672 = vst [vmem:[%s3 + $0xe0] sm:$0xff] %v623
  %673 = vst [vmem:[%s3 + $0xe8] sm:$0xff] %v624
  %674 = vst [vmem:[%s3 + $0xf0] sm:$0xff] %v625
  %675 = vst [vmem:[%s3 + $0xf8] sm:$0xff] %v626
  %676 = vst [vmem:[%s3 + $0x100] sm:$0xff] %v627
  %677 = vst [vmem:[%s3 + $0x108] sm:$0xff] %v628
  %678 = vst [vmem:[%s3 + $0x110] sm:$0xff] %v629
  %679 = vst [vmem:[%s3 + $0x118] sm:$0xff] %v630
  %680 = vst [vmem:[%s3 + $0x120] sm:$0xff] %v631
  %681 = vst [vmem:[%s3 + $0x128] sm:$0xff] %v632
  %682 = vst [vmem:[%s3 + $0x130] sm:$0xff] %v633
  %683 = vst [vmem:[%s3 + $0x138] sm:$0xff] %v634
  %684 = vst [vmem:[%s3 + $0x140] sm:$0xff] %v635
  %685 = vst [vmem:[%s3 + $0x148] sm:$0xff] %v636
  %686 = vst [vmem:[%s3 + $0x150] sm:$0xff] %v637
  %687 = vst [vmem:[%s3 + $0x158] sm:$0xff] %v638
  %688 = vst [vmem:[%s3 + $0x160] sm:$0xff] %v639
  %689 = vst [vmem:[%s3 + $0x168] sm:$0xff] %v640
  %690 = vst [vmem:[%s3 + $0x170] sm:$0xff] %v641
  %691 = vst [vmem:[%s3 + $0x178] sm:$0xff] %v642
  %692 = vst [vmem:[%s3 + $0x180] sm:$0xff] %v643
  // Predicated region
  $region14: #{decoder_forward.3} parent=0 // pred_check
    _
  $region15: #{decoder_forward.3} parent=0 // pred_check_branch
    %694 = sbr.rel (0) target = $region17
  $region16: #{decoder_forward.3} parent=0 // pred_region
    _
  $region17: #{decoder_forward.3} parent=0 // pred_fallthru
    _
  // Predicated region
  $region18: #{decoder_forward.3} parent=0 // pred_check
    _
  $region19: #{decoder_forward.3} parent=0 // pred_check_branch
    %696 = sbr.rel (0) target = $region21
  $region20: #{decoder_forward.3} parent=0 // pred_region
    _
  $region21: #{decoder_forward.3} parent=0 // pred_fallthru
    _

// kernel: decoder_forward.2
$region0: #{decoder_forward.2}
  #allocation0 [shape = 'u32[]', space=smem, size = 0x4, offset = 0x4, fixed_abs, tag = 'smem constant byte address 0x4 - core index']
  #allocation1 [shape = 'u32[144,128]{1,0:T(1,128)}', space=vmem, size = 0x12000, scoped, tag = 'internal scratch']
  %s0 = inlined_call_operand.hbm [shape: f32[2,32], index: 0, kind: input, shape index: {}]
  %s1 = inlined_call_operand.hbm [shape: f32[32,72], index: 1, kind: input, shape index: {}]
  %s2 = inlined_call_operand.hbm [shape: f32[1,72], index: 2, kind: input, shape index: {}]
  %s3 = inlined_call_operand.hbm [shape: f32[8,72], index: 3, kind: input, shape index: {}]
  %s4 = inlined_call_operand.vmem [shape: f32[8,2], index: 4, kind: input, shape index: {}]
  %s5 = inlined_call_operand.hbm [shape: f32[72,588], index: 5, kind: input, shape index: {}]
  %s6 = inlined_call_operand.hbm [shape: f32[1,588], index: 6, kind: input, shape index: {}]
  %s7 = inlined_call_operand.hbm [shape: f32[12,588], index: 7, kind: input, shape index: {}]
  %s8 = inlined_call_operand.vmem [shape: f32[12,2], index: 8, kind: input, shape index: {}]
  %s9 = inlined_call_operand.hbm [shape: f32[588,3136], index: 9, kind: input, shape index: {}]
  %s10 = inlined_call_operand.hbm [shape: f32[1,3136], index: 10, kind: input, shape index: {}]
  %s11 = inlined_call_operand.hbm [shape: f32[16,3136], index: 11, kind: input, shape index: {}]
  %s12 = inlined_call_operand.vmem [shape: f32[16,2], index: 12, kind: input, shape index: {}]
  %s13 = inlined_call_operand.vmem [shape: f32[2,3136], index: 13, kind: output, shape index: {}]
  %s14 = sld [smem:[#allocation0]]
  $region102: #{decoder_forward.2} parent=0
    _
  %s16 = ssub.s32 1, %s14
  %s17 = scalar_select 0, %s16, %s14
  $region1: #{decoder_forward.2} parent=0
    #allocation2 [shape = 'u8[1024]{0}', space=vmem, size = 0x400, scoped, tag = 'input window, operand 0, single buffered']
    #allocation3 [shape = 's32[1]{0}', space=sflag, size = 0x4, scoped, tag = 'scoped memory for decoder_forward.2']
    #allocation4 [shape = 'u8[16384]{0}', space=vmem, size = 0x4000, scoped, tag = 'input window, operand 1, single buffered']
    #allocation5 [shape = 's32[1]{0}', space=sflag, size = 0x4, scoped, tag = 'scoped memory for decoder_forward.2']
    #allocation6 [shape = 'u8[512]{0}', space=vmem, size = 0x400, scoped, tag = 'input window, operand 2, single buffered']
    #allocation7 [shape = 'u8[4096]{0}', space=vmem, size = 0x1000, scoped, tag = 'input window, operand 3, single buffered']
    #allocation8 [shape = 's32[1]{0}', space=sflag, size = 0x4, scoped, tag = 'scoped memory for decoder_forward.2']
    #allocation9 [shape = 'u8[184320]{0}', space=vmem, size = 0x2d000, scoped, tag = 'input window, operand 5, single buffered']
    #allocation10 [shape = 'u8[2560]{0}', space=vmem, size = 0xc00, scoped, tag = 'input window, operand 6, single buffered']
    #allocation11 [shape = 's32[1]{0}', space=sflag, size = 0x4, scoped, tag = 'scoped memory for decoder_forward.2']
    #allocation12 [shape = 'u8[40960]{0}', space=vmem, size = 0xa000, scoped, tag = 'input window, operand 7, single buffered']
    #allocation13 [shape = 'u8[7577600]{0}', space=vmem, size = 0x73a000, scoped, tag = 'input window, operand 9, single buffered']
    #allocation14 [shape = 's32[1]{0}', space=sflag, size = 0x4, scoped, tag = 'scoped memory for decoder_forward.2']
    #allocation15 [shape = 'u8[12800]{0}', space=vmem, size = 0x3400, scoped, tag = 'input window, operand 10, single buffered']
    #allocation16 [shape = 'u8[204800]{0}', space=vmem, size = 0x32000, scoped, tag = 'input window, operand 11, single buffered']
    #allocation17 [shape = 's32[1]{0}', space=sflag, size = 0x4, scoped, tag = 'scoped memory for decoder_forward.2']
    %18 = vsyncpa [#allocation3], 0
    %19 = vsyncpa [#allocation5], 0
    %20 = vsyncpa [#allocation8], 0
    %21 = vsyncpa [#allocation11], 0
    %22 = vsyncpa [#allocation14], 0
    %23 = vsyncpa [#allocation17], 0
    // Predicated region
    $region2: #{decoder_forward.2} parent=1 // pred_check
      _
    $region3: #{decoder_forward.2} parent=1 // pred_check_branch
      %25 = sbr.rel (0) target = $region5
    $region4: #{decoder_forward.2} parent=1 // pred_region
      %s27 = ssub.s32 32, 32
      %28 = vsyncadd [#allocation3], %s27
      %s30 = sshll.u32 [#allocation2], 4
      %s31 = int_to_ptr.vmem [resolvable:$true] %s30
      %33 = dma.hbm_to_vmem [thread:$0]  %s0, 32, %s31, [#allocation3]
    $region5: #{decoder_forward.2} parent=1 // pred_fallthru
      _
    // Predicated region
    $region6: #{decoder_forward.2} parent=1 // pred_check
      _
    $region7: #{decoder_forward.2} parent=1 // pred_check_branch
      %35 = sbr.rel (0) target = $region9
    $region8: #{decoder_forward.2} parent=1 // pred_region
      %s37 = ssub.s32 512, 512
      %38 = vsyncadd [#allocation5], %s37
      %s39 = sshll.u32 [#allocation4], 4
      %s40 = int_to_ptr.vmem [resolvable:$true] %s39
      %45 = dma.hbm_to_vmem [thread:$0]  %s1, 512, %s40, [#allocation5], 128, 128, 8
    $region9: #{decoder_forward.2} parent=1 // pred_fallthru
      _
    // Predicated region
    $region10: #{decoder_forward.2} parent=1 // pred_check
      _
    $region11: #{decoder_forward.2} parent=1 // pred_check_branch
      %47 = sbr.rel (0) target = $region13
    $region12: #{decoder_forward.2} parent=1 // pred_region
      %s49 = ssub.s32 16, 16
      %50 = vsyncadd [#allocation5], %s49
      %s52 = sshll.u32 [#allocation6], 4
      %s53 = int_to_ptr.vmem [resolvable:$true] %s52
      %55 = dma.hbm_to_vmem [thread:$0]  %s2, 16, %s53, [#allocation5]
    $region13: #{decoder_forward.2} parent=1 // pred_fallthru
      _
    // Predicated region
    $region14: #{decoder_forward.2} parent=1 // pred_check
      _
    $region15: #{decoder_forward.2} parent=1 // pred_check_branch
      %57 = sbr.rel (0) target = $region17
    $region16: #{decoder_forward.2} parent=1 // pred_region
      %s59 = ssub.s32 128, 128
      %60 = vsyncadd [#allocation8], %s59
      %s62 = sshll.u32 [#allocation7], 4
      %s63 = int_to_ptr.vmem [resolvable:$true] %s62
      %65 = dma.hbm_to_vmem [thread:$0]  %s3, 128, %s63, [#allocation8]
    $region17: #{decoder_forward.2} parent=1 // pred_fallthru
      _
    // Predicated region
    $region18: #{decoder_forward.2} parent=1 // pred_check
      _
    $region19: #{decoder_forward.2} parent=1 // pred_check_branch
      %67 = sbr.rel (0) target = $region21
    $region20: #{decoder_forward.2} parent=1 // pred_region
      _
    $region21: #{decoder_forward.2} parent=1 // pred_fallthru
      _
    // Predicated region
    $region22: #{decoder_forward.2} parent=1 // pred_check
      _
    $region23: #{decoder_forward.2} parent=1 // pred_check_branch
      %69 = sbr.rel (0) target = $region25
    $region24: #{decoder_forward.2} parent=1 // pred_region
      %s71 = ssub.s32 5760, 5760
      %72 = vsyncadd [#allocation8], %s71
      %s73 = sshll.u32 [#allocation9], 4
      %s74 = int_to_ptr.vmem [resolvable:$true] %s73
      %79 = dma.hbm_to_vmem [thread:$0]  %s5, 5760, %s74, [#allocation8], 640, 640, 40
    $region25: #{decoder_forward.2} parent=1 // pred_fallthru
      _
    // Predicated region
    $region26: #{decoder_forward.2} parent=1 // pred_check
      _
    $region27: #{decoder_forward.2} parent=1 // pred_check_branch
      %81 = sbr.rel (0) target = $region29
    $region28: #{decoder_forward.2} parent=1 // pred_region
      %s83 = ssub.s32 80, 80
      %84 = vsyncadd [#allocation11], %s83
      %s86 = sshll.u32 [#allocation10], 4
      %s87 = int_to_ptr.vmem [resolvable:$true] %s86
      %89 = dma.hbm_to_vmem [thread:$0]  %s6, 80, %s87, [#allocation11]
    $region29: #{decoder_forward.2} parent=1 // pred_fallthru
      _
    // Predicated region
    $region30: #{decoder_forward.2} parent=1 // pred_check
      _
    $region31: #{decoder_forward.2} parent=1 // pred_check_branch
      %91 = sbr.rel (0) target = $region33
    $region32: #{decoder_forward.2} parent=1 // pred_region
      %s93 = ssub.s32 1280, 1280
      %94 = vsyncadd [#allocation11], %s93
      %s95 = sshll.u32 [#allocation12], 4
      %s96 = int_to_ptr.vmem [resolvable:$true] %s95
      %101 = dma.hbm_to_vmem [thread:$0]  %s7, 1280, %s96, [#allocation11], 640, 640, 40
    $region33: #{decoder_forward.2} parent=1 // pred_fallthru
      _
    // Predicated region
    $region34: #{decoder_forward.2} parent=1 // pred_check
      _
    $region35: #{decoder_forward.2} parent=1 // pred_check_branch
      %103 = sbr.rel (0) target = $region37
    $region36: #{decoder_forward.2} parent=1 // pred_region
      _
    $region37: #{decoder_forward.2} parent=1 // pred_fallthru
      _
    // Predicated region
    $region38: #{decoder_forward.2} parent=1 // pred_check
      _
    $region39: #{decoder_forward.2} parent=1 // pred_check_branch
      %105 = sbr.rel (0) target = $region41
    $region40: #{decoder_forward.2} parent=1 // pred_region
      %s107 = ssub.s32 236800, 236800
      %108 = vsyncadd [#allocation14], %s107
      %s109 = sshll.u32 [#allocation13], 4
      %s110 = int_to_ptr.vmem [resolvable:$true] %s109
      %115 = dma.hbm_to_vmem [thread:$0]  %s9, 236800, %s110, [#allocation14], 3200, 3200, 200
    $region41: #{decoder_forward.2} parent=1 // pred_fallthru
      _
    // Predicated region
    $region42: #{decoder_forward.2} parent=1 // pred_check
      _
    $region43: #{decoder_forward.2} parent=1 // pred_check_branch
      %117 = sbr.rel (0) target = $region45
    $region44: #{decoder_forward.2} parent=1 // pred_region
      %s119 = ssub.s32 400, 400
      %120 = vsyncadd [#allocation14], %s119
      %s122 = sshll.u32 [#allocation15], 4
      %s123 = int_to_ptr.vmem [resolvable:$true] %s122
      %125 = dma.hbm_to_vmem [thread:$0]  %s10, 400, %s123, [#allocation14]
    $region45: #{decoder_forward.2} parent=1 // pred_fallthru
      _
    // Predicated region
    $region46: #{decoder_forward.2} parent=1 // pred_check
      _
    $region47: #{decoder_forward.2} parent=1 // pred_check_branch
      %127 = sbr.rel (0) target = $region49
    $region48: #{decoder_forward.2} parent=1 // pred_region
      %s129 = ssub.s32 6400, 6400
      %130 = vsyncadd [#allocation17], %s129
      %s131 = sshll.u32 [#allocation16], 4
      %s132 = int_to_ptr.vmem [resolvable:$true] %s131
      %137 = dma.hbm_to_vmem [thread:$0]  %s11, 6400, %s132, [#allocation17], 3200, 3200, 200
    $region49: #{decoder_forward.2} parent=1 // pred_fallthru
      _
    // Predicated region
    $region50: #{decoder_forward.2} parent=1 // pred_check
      _
    $region51: #{decoder_forward.2} parent=1 // pred_check_branch
      %139 = sbr.rel (0) target = $region53
    $region52: #{decoder_forward.2} parent=1 // pred_region
      _
    $region53: #{decoder_forward.2} parent=1 // pred_fallthru
      _
    // Predicated region
    $region54: #{decoder_forward.2} parent=1 // pred_check
      _
    $region55: #{decoder_forward.2} parent=1 // pred_check_branch
      %141 = sbr.rel (0) target = $region57
    $region56: #{decoder_forward.2} parent=1 // pred_region
      %142 = dma.done [#allocation3], 32
    $region57: #{decoder_forward.2} parent=1 // pred_fallthru
      _
    // Predicated region
    $region58: #{decoder_forward.2} parent=1 // pred_check
      _
    $region59: #{decoder_forward.2} parent=1 // pred_check_branch
      %144 = sbr.rel (0) target = $region61
    $region60: #{decoder_forward.2} parent=1 // pred_region
      %145 = dma.done [#allocation5], 512
    $region61: #{decoder_forward.2} parent=1 // pred_fallthru
      _
    // Predicated region
    $region62: #{decoder_forward.2} parent=1 // pred_check
      _
    $region63: #{decoder_forward.2} parent=1 // pred_check_branch
      %147 = sbr.rel (0) target = $region65
    $region64: #{decoder_forward.2} parent=1 // pred_region
      %148 = dma.done [#allocation5], 16
    $region65: #{decoder_forward.2} parent=1 // pred_fallthru
      _
    // Predicated region
    $region66: #{decoder_forward.2} parent=1 // pred_check
      _
    $region67: #{decoder_forward.2} parent=1 // pred_check_branch
      %150 = sbr.rel (0) target = $region69
    $region68: #{decoder_forward.2} parent=1 // pred_region
      %151 = dma.done [#allocation8], 128
    $region69: #{decoder_forward.2} parent=1 // pred_fallthru
      _
    // Predicated region
    $region70: #{decoder_forward.2} parent=1 // pred_check
      _
    $region71: #{decoder_forward.2} parent=1 // pred_check_branch
      %153 = sbr.rel (0) target = $region73
    $region72: #{decoder_forward.2} parent=1 // pred_region
      %154 = dma.done [#allocation8], 5760
    $region73: #{decoder_forward.2} parent=1 // pred_fallthru
      _
    // Predicated region
    $region74: #{decoder_forward.2} parent=1 // pred_check
      _
    $region75: #{decoder_forward.2} parent=1 // pred_check_branch
      %156 = sbr.rel (0) target = $region77
    $region76: #{decoder_forward.2} parent=1 // pred_region
      %157 = dma.done [#allocation11], 80
    $region77: #{decoder_forward.2} parent=1 // pred_fallthru
      _
    // Predicated region
    $region78: #{decoder_forward.2} parent=1 // pred_check
      _
    $region79: #{decoder_forward.2} parent=1 // pred_check_branch
      %159 = sbr.rel (0) target = $region81
    $region80: #{decoder_forward.2} parent=1 // pred_region
      %160 = dma.done [#allocation11], 1280
    $region81: #{decoder_forward.2} parent=1 // pred_fallthru
      _
    // Predicated region
    $region82: #{decoder_forward.2} parent=1 // pred_check
      _
    $region83: #{decoder_forward.2} parent=1 // pred_check_branch
      %162 = sbr.rel (0) target = $region85
    $region84: #{decoder_forward.2} parent=1 // pred_region
      %163 = dma.done [#allocation14], 236800
    $region85: #{decoder_forward.2} parent=1 // pred_fallthru
      _
    // Predicated region
    $region86: #{decoder_forward.2} parent=1 // pred_check
      _
    $region87: #{decoder_forward.2} parent=1 // pred_check_branch
      %165 = sbr.rel (0) target = $region89
    $region88: #{decoder_forward.2} parent=1 // pred_region
      %166 = dma.done [#allocation14], 400
    $region89: #{decoder_forward.2} parent=1 // pred_fallthru
      _
    // Predicated region
    $region90: #{decoder_forward.2} parent=1 // pred_check
      _
    $region91: #{decoder_forward.2} parent=1 // pred_check_branch
      %168 = sbr.rel (0) target = $region93
    $region92: #{decoder_forward.2} parent=1 // pred_region
      %169 = dma.done [#allocation17], 6400
    $region93: #{decoder_forward.2} parent=1 // pred_fallthru
      _
    %v170 = vld [vmem:[#allocation2] sm:$0x3]
    %v171 = vld [vmem:[#allocation4] sm:$0xff]
    %v172 = vld [vmem:[#allocation4 + $0x8] sm:$0xff]
    %v173 = vld [vmem:[#allocation4 + $0x10] sm:$0xff]
    %v174 = vld [vmem:[#allocation4 + $0x18] sm:$0xff]
    %v175 = vld [vmem:[#allocation6] sm:$0x1]
    %v177 = vlaneseq
    %v178 = vshrl.u32 %v177, 7
    %v179 = vsub.s32 0, %v178
    %v180 = vrot.slane %v175, %v179
    %vm182 = vcmask 261120
    %v184 = vsel %vm182, %v170, 0
    %186 = vmatprep.subr.mxu0 0.0
    %187 = vmatpush1.msra.mxu0 0.0
    %188 = vmatprep.subr.mxu0 0.0
    %189 = vmatpush1.msra.mxu0 0.0
    %190 = vmatprep.subr.mxu0 0.0
    %191 = vmatpush1.msra.mxu0 0.0
    %192 = vmatprep.subr.mxu0 0.0
    %193 = vmatpush1.msra.mxu0 0.0
    %194 = vmatprep.subr.mxu0 0.0
    %195 = vmatpush1.msra.mxu0 0.0
    %196 = vmatprep.subr.mxu0 0.0
    %197 = vmatpush1.msra.mxu0 0.0
    %198 = vmatprep.subr.mxu0 0.0
    %199 = vmatpush1.msra.mxu0 0.0
    %200 = vmatprep.subr.mxu0 0.0
    %201 = vmatpush1.msra.mxu0 0.0
    %202 = vmatprep.subr.mxu0 0.0
    %203 = vmatpush1.msra.mxu0 0.0
    %204 = vmatprep.subr.mxu0 0.0
    %205 = vmatpush1.msra.mxu0 0.0
    %206 = vmatprep.subr.mxu0 0.0
    %207 = vmatpush1.msra.mxu0 0.0
    %208 = vmatprep.subr.mxu0 0.0
    %209 = vmatpush1.msra.mxu0 0.0
    %210 = vmatprep.subr.mxu0 0.0
    %211 = vmatpush1.msra.mxu0 %v174
    %212 = vmatprep.subr.mxu0 0.0
    %213 = vmatpush1.msra.mxu0 %v173
    %214 = vmatprep.subr.mxu0 0.0
    %215 = vmatpush1.msra.mxu0 %v172
    %216 = vmatprep.subr.mxu0 0.0
    %217 = vmatpush1.msra.mxu0 %v171
    %218 = vmatprep.subr.mxu0 0.0
    %219 = vmatpush2.msra.mxu0 0.0
    %220 = vmatprep.subr.mxu0 0.0
    %221 = vmatpush2.msra.mxu0 0.0
    %222 = vmatprep.subr.mxu0 0.0
    %223 = vmatpush2.msra.mxu0 0.0
    %224 = vmatprep.subr.mxu0 0.0
    %225 = vmatpush2.msra.mxu0 0.0
    %226 = vmatprep.subr.mxu0 0.0
    %227 = vmatpush2.msra.mxu0 0.0
    %228 = vmatprep.subr.mxu0 0.0
    %229 = vmatpush2.msra.mxu0 0.0
    %230 = vmatprep.subr.mxu0 0.0
    %231 = vmatpush2.msra.mxu0 0.0
    %232 = vmatprep.subr.mxu0 0.0
    %233 = vmatpush2.msra.mxu0 0.0
    %234 = vmatprep.subr.mxu0 0.0
    %235 = vmatpush2.msra.mxu0 0.0
    %236 = vmatprep.subr.mxu0 0.0
    %237 = vmatpush2.msra.mxu0 0.0
    %238 = vmatprep.subr.mxu0 0.0
    %239 = vmatpush2.msra.mxu0 0.0
    %240 = vmatprep.subr.mxu0 0.0
    %241 = vmatpush2.msra.mxu0 0.0
    %242 = vmatprep.subr.mxu0 0.0
    %243 = vmatpush2.msra.mxu0 0.0
    %244 = vmatprep.subr.mxu0 0.0
    %245 = vmatpush2.msra.mxu0 0.0
    %246 = vmatprep.subr.mxu0 0.0
    %247 = vmatpush2.msra.mxu0 0.0
    %248 = vmatprep.subr.mxu0 0.0
    %249 = vmatpush2.msra.mxu0 0.0
    %250 = vmatprep.mubr.f32.mxu0 0.0
    %251 = vmatmul.mubr.f32.gmra.mxu0 %v184
    %v252 = vpop.f32.mrf.mxu0
    %v253 = vadd.f32 %v180, %v252
    %v254 = vpop.f32.mrf.mxu0
    %255 = vdwg.mxu0
    %v256 = vmax.f32 %v253, 0.0
    %v257 = vld [vmem:[#allocation7] sm:$0xff]
    %v258 = vld [vmem:[%s4] sm:$0xff]
    %vm259 = vcmask 582656
    %v260 = vsel %vm259, %v256, 0.0
    %v261 = vrot.slane %v260, 4
    %v262 = vadd.f32 %v260, %v261
    %v263 = vrot.slane %v262, 2
    %v264 = vadd.f32 %v262, %v263
    %v265 = vrot.slane %v264, 1
    %v266 = vadd.f32 %v264, %v265
    %v267 = vrcp.pop 2.0
    %v268 = vmul.f32 %v266, %v267
    %v269 = vmul.f32 %v256, %v256
    %v270 = vsel %vm259, %v269, 0.0
    %v271 = vrot.slane %v270, 4
    %v272 = vadd.f32 %v270, %v271
    %v273 = vrot.slane %v272, 2
    %v274 = vadd.f32 %v272, %v273
    %v275 = vrot.slane %v274, 1
    %v276 = vadd.f32 %v274, %v275
    %v277 = vmul.f32 %v276, %v267
    %v278 = vmul.f32 %v257, %v268
    %vm279 = vcmask 588800
    %v280 = vsel %vm279, %v278, 0.0
    %281 = vadd.xlane.f32.xlu0 %v280
    %v282 = vpop.xlane.xlu0 %281
    %v283 = vmul.f32 %v282, 0.11111111
    %v284 = vmul.f32 %v257, %v277
    %v285 = vsel %vm279, %v284, 0.0
    %286 = vadd.xlane.f32.xlu0 %v285
    %v287 = vpop.xlane.xlu0 %286
    %v288 = vmul.f32 %v287, 0.11111111
    %v289 = vmul.f32 %v283, %v283
    %v290 = vsub.f32 %v288, %v289
    %v291 = vmax.f32 %v290, 0.0
    %v292 = vadd.f32 %v291, 1e-05
    %v293 = vrsqrt.pop %v292
    %v294 = vmul.f32 %v258, %v293
    %v295 = vmul.f32 %v283, %v294
    %297 = vrot.lane.b32.xlu0 %v295, 1
    %v298 = vpop.permute.xlu0 %297
    %v300 = vsub.f32 %v258, %v298
    %302 = vset.pattern.permute.xlu0 0
    %303 = vperm.xlu0 %302, %v294
    %v304 = vpop.permute.xlu0 %303
    %v306 = vmul.f32 %v257, %v304
    %v307 = vsel %vm279, %v306, 0.0
    %v308 = vrot.slane %v307, 4
    %v309 = vadd.f32 %v307, %v308
    %v310 = vrot.slane %v309, 2
    %v311 = vadd.f32 %v309, %v310
    %v312 = vrot.slane %v311, 1
    %v313 = vadd.f32 %v311, %v312
    %315 = vset.pattern.permute.xlu0 1
    %316 = vperm.xlu0 %315, %v300
    %v317 = vpop.permute.xlu0 %316
    %v319 = vmul.f32 %v257, %v317
    %v320 = vsel %vm279, %v319, 0.0
    %v321 = vrot.slane %v320, 4
    %v322 = vadd.f32 %v320, %v321
    %v323 = vrot.slane %v322, 2
    %v324 = vadd.f32 %v322, %v323
    %v325 = vrot.slane %v324, 1
    %v326 = vadd.f32 %v324, %v325
    %v327 = vmul.f32 %v256, %v313
    %v328 = vadd.f32 %v327, %v326
    %v329 = vld [vmem:[#allocation9] sm:$0xff]
    %v330 = vld [vmem:[#allocation9 + $0x8] sm:$0xff]
    %v331 = vld [vmem:[#allocation9 + $0x10] sm:$0xff]
    %v332 = vld [vmem:[#allocation9 + $0x18] sm:$0xff]
    %v333 = vld [vmem:[#allocation9 + $0x20] sm:$0xff]
    %v334 = vld [vmem:[#allocation9 + $0x28] sm:$0xff]
    %v335 = vld [vmem:[#allocation9 + $0x30] sm:$0xff]
    %v336 = vld [vmem:[#allocation9 + $0x38] sm:$0xff]
    %v337 = vld [vmem:[#allocation9 + $0x40] sm:$0xff]
    %v338 = vld [vmem:[#allocation9 + $0x48] sm:$0xff]
    %v339 = vld [vmem:[#allocation9 + $0x50] sm:$0xff]
    %v340 = vld [vmem:[#allocation9 + $0x58] sm:$0xff]
    %v341 = vld [vmem:[#allocation9 + $0x60] sm:$0xff]
    %v342 = vld [vmem:[#allocation9 + $0x68] sm:$0xff]
    %v343 = vld [vmem:[#allocation9 + $0x70] sm:$0xff]
    %v344 = vld [vmem:[#allocation9 + $0x78] sm:$0xff]
    %v345 = vld [vmem:[#allocation9 + $0x80] sm:$0xff]
    %v346 = vld [vmem:[#allocation9 + $0x88] sm:$0xff]
    %v347 = vld [vmem:[#allocation9 + $0x90] sm:$0xff]
    %v348 = vld [vmem:[#allocation9 + $0x98] sm:$0xff]
    %v349 = vld [vmem:[#allocation9 + $0xa0] sm:$0xff]
    %v350 = vld [vmem:[#allocation9 + $0xa8] sm:$0xff]
    %v351 = vld [vmem:[#allocation9 + $0xb0] sm:$0xff]
    %v352 = vld [vmem:[#allocation9 + $0xb8] sm:$0xff]
    %v353 = vld [vmem:[#allocation9 + $0xc0] sm:$0xff]
    %v354 = vld [vmem:[#allocation9 + $0xc8] sm:$0xff]
    %v355 = vld [vmem:[#allocation9 + $0xd0] sm:$0xff]
    %v356 = vld [vmem:[#allocation9 + $0xd8] sm:$0xff]
    %v357 = vld [vmem:[#allocation9 + $0xe0] sm:$0xff]
    %v358 = vld [vmem:[#allocation9 + $0xe8] sm:$0xff]
    %v359 = vld [vmem:[#allocation9 + $0xf0] sm:$0xff]
    %v360 = vld [vmem:[#allocation9 + $0xf8] sm:$0xff]
    %v361 = vld [vmem:[#allocation9 + $0x100] sm:$0xff]
    %v362 = vld [vmem:[#allocation9 + $0x108] sm:$0xff]
    %v363 = vld [vmem:[#allocation9 + $0x110] sm:$0xff]
    %v364 = vld [vmem:[#allocation9 + $0x118] sm:$0xff]
    %v365 = vld [vmem:[#allocation9 + $0x120] sm:$0xff]
    %v366 = vld [vmem:[#allocation9 + $0x128] sm:$0xff]
    %v367 = vld [vmem:[#allocation9 + $0x130] sm:$0xff]
    %v368 = vld [vmem:[#allocation9 + $0x138] sm:$0xff]
    %v369 = vld [vmem:[#allocation9 + $0x140] sm:$0xff]
    %v370 = vld [vmem:[#allocation9 + $0x148] sm:$0xff]
    %v371 = vld [vmem:[#allocation9 + $0x150] sm:$0xff]
    %v372 = vld [vmem:[#allocation9 + $0x158] sm:$0xff]
    %v373 = vld [vmem:[#allocation9 + $0x160] sm:$0xff]
    %v374 = vld [vmem:[#allocation10] sm:$0x1f]
    %v376 = vlaneseq
    %v377 = vshrl.u32 %v376, 7
    %v378 = vsub.s32 0, %v377
    %v379 = vrot.slane %v374, %v378
    %v380 = vlaneseq
    %v381 = vshrl.u32 %v380, 7
    %v382 = vsub.s32 1, %v381
    %v383 = vrot.slane %v374, %v382
    %v384 = vlaneseq
    %v385 = vshrl.u32 %v384, 7
    %v386 = vsub.s32 2, %v385
    %v387 = vrot.slane %v374, %v386
    %v388 = vlaneseq
    %v389 = vshrl.u32 %v388, 7
    %v390 = vsub.s32 3, %v389
    %v391 = vrot.slane %v374, %v390
    %v392 = vlaneseq
    %v393 = vshrl.u32 %v392, 7
    %v394 = vsub.s32 4, %v393
    %v395 = vrot.slane %v374, %v394
    %v402 = vsel %vm279, %v328, 0
    %404 = vmatprep.subr.mxu0 0.0
    %405 = vmatpush1.msra.mxu0 0.0
    %406 = vmatprep.subr.mxu0 0.0
    %407 = vmatpush1.msra.mxu0 0.0
    %408 = vmatprep.subr.mxu0 0.0
    %409 = vmatpush1.msra.mxu0 0.0
    %410 = vmatprep.subr.mxu0 0.0
    %411 = vmatpush1.msra.mxu0 0.0
    %412 = vmatprep.subr.mxu0 0.0
    %413 = vmatpush1.msra.mxu0 0.0
    %414 = vmatprep.subr.mxu0 0.0
    %415 = vmatpush1.msra.mxu0 0.0
    %416 = vmatprep.subr.mxu0 0.0
    %417 = vmatpush1.msra.mxu0 0.0
    %418 = vmatprep.subr.mxu0 %v370
    %419 = vmatpush1.msra.mxu0 %v369
    %420 = vmatprep.subr.mxu0 %v365
    %421 = vmatpush1.msra.mxu0 %v364
    %422 = vmatprep.subr.mxu0 %v360
    %423 = vmatpush1.msra.mxu0 %v359
    %424 = vmatprep.subr.mxu0 %v355
    %425 = vmatpush1.msra.mxu0 %v354
    %426 = vmatprep.subr.mxu0 %v350
    %427 = vmatpush1.msra.mxu0 %v349
    %428 = vmatprep.subr.mxu0 %v345
    %429 = vmatpush1.msra.mxu0 %v344
    %430 = vmatprep.subr.mxu0 %v340
    %431 = vmatpush1.msra.mxu0 %v339
    %432 = vmatprep.subr.mxu0 %v335
    %433 = vmatpush1.msra.mxu0 %v334
    %434 = vmatprep.subr.mxu0 %v330
    %435 = vmatpush1.msra.mxu0 %v329
    %436 = vmatprep.subr.mxu0 0.0
    %437 = vmatpush2.msra.mxu0 0.0
    %438 = vmatprep.subr.mxu0 0.0
    %439 = vmatpush2.msra.mxu0 0.0
    %440 = vmatprep.subr.mxu0 0.0
    %441 = vmatpush2.msra.mxu0 0.0
    %442 = vmatprep.subr.mxu0 0.0
    %443 = vmatpush2.msra.mxu0 0.0
    %444 = vmatprep.subr.mxu0 0.0
    %445 = vmatpush2.msra.mxu0 0.0
    %446 = vmatprep.subr.mxu0 0.0
    %447 = vmatpush2.msra.mxu0 0.0
    %448 = vmatprep.subr.mxu0 0.0
    %449 = vmatpush2.msra.mxu0 0.0
    %450 = vmatprep.subr.mxu0 0.0
    %451 = vmatpush2.msra.mxu0 0.0
    %452 = vmatprep.subr.mxu0 0.0
    %453 = vmatpush2.msra.mxu0 0.0
    %454 = vmatprep.subr.mxu0 0.0
    %455 = vmatpush2.msra.mxu0 0.0
    %456 = vmatprep.subr.mxu0 0.0
    %457 = vmatpush2.msra.mxu0 0.0
    %458 = vmatprep.subr.mxu0 0.0
    %459 = vmatpush2.msra.mxu0 0.0
    %460 = vmatprep.subr.mxu0 0.0
    %461 = vmatpush2.msra.mxu0 0.0
    %462 = vmatprep.subr.mxu0 0.0
    %463 = vmatpush2.msra.mxu0 0.0
    %464 = vmatprep.subr.mxu0 0.0
    %465 = vmatpush2.msra.mxu0 0.0
    %466 = vmatprep.subr.mxu0 0.0
    %467 = vmatpush2.msra.mxu0 0.0
    %468 = vmatprep.mubr.f32.mxu0 0.0
    %469 = vmatmul.mubr.f32.gmra.mxu0 %v402
    %v470 = vpop.f32.mrf.mxu0
    %v471 = vadd.f32 %v379, %v470
    %v472 = vpop.f32.mrf.mxu0
    %v473 = vadd.f32 %v383, %v472
    %474 = vdwg.mxu0
    %475 = vmatprep.subr.mxu0 0.0
    %476 = vmatpush1.msra.mxu0 0.0
    %477 = vmatprep.subr.mxu0 0.0
    %478 = vmatpush1.msra.mxu0 0.0
    %479 = vmatprep.subr.mxu0 0.0
    %480 = vmatpush1.msra.mxu0 0.0
    %481 = vmatprep.subr.mxu0 0.0
    %482 = vmatpush1.msra.mxu0 0.0
    %483 = vmatprep.subr.mxu0 0.0
    %484 = vmatpush1.msra.mxu0 0.0
    %485 = vmatprep.subr.mxu0 0.0
    %486 = vmatpush1.msra.mxu0 0.0
    %487 = vmatprep.subr.mxu0 0.0
    %488 = vmatpush1.msra.mxu0 0.0
    %489 = vmatprep.subr.mxu0 %v372
    %490 = vmatpush1.msra.mxu0 %v371
    %491 = vmatprep.subr.mxu0 %v367
    %492 = vmatpush1.msra.mxu0 %v366
    %493 = vmatprep.subr.mxu0 %v362
    %494 = vmatpush1.msra.mxu0 %v361
    %495 = vmatprep.subr.mxu0 %v357
    %496 = vmatpush1.msra.mxu0 %v356
    %497 = vmatprep.subr.mxu0 %v352
    %498 = vmatpush1.msra.mxu0 %v351
    %499 = vmatprep.subr.mxu0 %v347
    %500 = vmatpush1.msra.mxu0 %v346
    %501 = vmatprep.subr.mxu0 %v342
    %502 = vmatpush1.msra.mxu0 %v341
    %503 = vmatprep.subr.mxu0 %v337
    %504 = vmatpush1.msra.mxu0 %v336
    %505 = vmatprep.subr.mxu0 %v332
    %506 = vmatpush1.msra.mxu0 %v331
    %507 = vmatprep.subr.mxu0 0.0
    %508 = vmatpush2.msra.mxu0 0.0
    %509 = vmatprep.subr.mxu0 0.0
    %510 = vmatpush2.msra.mxu0 0.0
    %511 = vmatprep.subr.mxu0 0.0
    %512 = vmatpush2.msra.mxu0 0.0
    %513 = vmatprep.subr.mxu0 0.0
    %514 = vmatpush2.msra.mxu0 0.0
    %515 = vmatprep.subr.mxu0 0.0
    %516 = vmatpush2.msra.mxu0 0.0
    %517 = vmatprep.subr.mxu0 0.0
    %518 = vmatpush2.msra.mxu0 0.0
    %519 = vmatprep.subr.mxu0 0.0
    %520 = vmatpush2.msra.mxu0 0.0
    %521 = vmatprep.subr.mxu0 0.0
    %522 = vmatpush2.msra.mxu0 0.0
    %523 = vmatprep.subr.mxu0 0.0
    %524 = vmatpush2.msra.mxu0 0.0
    %525 = vmatprep.subr.mxu0 0.0
    %526 = vmatpush2.msra.mxu0 0.0
    %527 = vmatprep.subr.mxu0 0.0
    %528 = vmatpush2.msra.mxu0 0.0
    %529 = vmatprep.subr.mxu0 0.0
    %530 = vmatpush2.msra.mxu0 0.0
    %531 = vmatprep.subr.mxu0 0.0
    %532 = vmatpush2.msra.mxu0 0.0
    %533 = vmatprep.subr.mxu0 0.0
    %534 = vmatpush2.msra.mxu0 0.0
    %535 = vmatprep.subr.mxu0 0.0
    %536 = vmatpush2.msra.mxu0 0.0
    %537 = vmatprep.subr.mxu0 0.0
    %538 = vmatpush2.msra.mxu0 0.0
    %539 = vmatprep.mubr.f32.mxu0 0.0
    %540 = vmatmul.mubr.f32.gmra.mxu0 %v402
    %v541 = vpop.f32.mrf.mxu0
    %v542 = vadd.f32 %v387, %v541
    %v543 = vpop.f32.mrf.mxu0
    %v544 = vadd.f32 %v391, %v543
    %545 = vdwg.mxu0
    %546 = vmatprep.subr.mxu0 0.0
    %547 = vmatpush1.msra.mxu0 0.0
    %548 = vmatprep.subr.mxu0 0.0
    %549 = vmatpush1.msra.mxu0 0.0
    %550 = vmatprep.subr.mxu0 0.0
    %551 = vmatpush1.msra.mxu0 0.0
    %552 = vmatprep.subr.mxu0 0.0
    %553 = vmatpush1.msra.mxu0 0.0
    %554 = vmatprep.subr.mxu0 0.0
    %555 = vmatpush1.msra.mxu0 0.0
    %556 = vmatprep.subr.mxu0 0.0
    %557 = vmatpush1.msra.mxu0 0.0
    %558 = vmatprep.subr.mxu0 0.0
    %559 = vmatpush1.msra.mxu0 0.0
    %560 = vmatprep.subr.mxu0 0.0
    %561 = vmatpush1.msra.mxu0 %v373
    %562 = vmatprep.subr.mxu0 0.0
    %563 = vmatpush1.msra.mxu0 %v368
    %564 = vmatprep.subr.mxu0 0.0
    %565 = vmatpush1.msra.mxu0 %v363
    %566 = vmatprep.subr.mxu0 0.0
    %567 = vmatpush1.msra.mxu0 %v358
    %568 = vmatprep.subr.mxu0 0.0
    %569 = vmatpush1.msra.mxu0 %v353
    %570 = vmatprep.subr.mxu0 0.0
    %571 = vmatpush1.msra.mxu0 %v348
    %572 = vmatprep.subr.mxu0 0.0
    %573 = vmatpush1.msra.mxu0 %v343
    %574 = vmatprep.subr.mxu0 0.0
    %575 = vmatpush1.msra.mxu0 %v338
    %576 = vmatprep.subr.mxu0 0.0
    %577 = vmatpush1.msra.mxu0 %v333
    %578 = vmatprep.subr.mxu0 0.0
    %579 = vmatpush2.msra.mxu0 0.0
    %580 = vmatprep.subr.mxu0 0.0
    %581 = vmatpush2.msra.mxu0 0.0
    %582 = vmatprep.subr.mxu0 0.0
    %583 = vmatpush2.msra.mxu0 0.0
    %584 = vmatprep.subr.mxu0 0.0
    %585 = vmatpush2.msra.mxu0 0.0
    %586 = vmatprep.subr.mxu0 0.0
    %587 = vmatpush2.msra.mxu0 0.0
    %588 = vmatprep.subr.mxu0 0.0
    %589 = vmatpush2.msra.mxu0 0.0
    %590 = vmatprep.subr.mxu0 0.0
    %591 = vmatpush2.msra.mxu0 0.0
    %592 = vmatprep.subr.mxu0 0.0
    %593 = vmatpush2.msra.mxu0 0.0
    %594 = vmatprep.subr.mxu0 0.0
    %595 = vmatpush2.msra.mxu0 0.0
    %596 = vmatprep.subr.mxu0 0.0
    %597 = vmatpush2.msra.mxu0 0.0
    %598 = vmatprep.subr.mxu0 0.0
    %599 = vmatpush2.msra.mxu0 0.0
    %600 = vmatprep.subr.mxu0 0.0
    %601 = vmatpush2.msra.mxu0 0.0
    %602 = vmatprep.subr.mxu0 0.0
    %603 = vmatpush2.msra.mxu0 0.0
    %604 = vmatprep.subr.mxu0 0.0
    %605 = vmatpush2.msra.mxu0 0.0
    %606 = vmatprep.subr.mxu0 0.0
    %607 = vmatpush2.msra.mxu0 0.0
    %608 = vmatprep.subr.mxu0 0.0
    %609 = vmatpush2.msra.mxu0 0.0
    %610 = vmatprep.mubr.f32.mxu0 0.0
    %611 = vmatmul.mubr.f32.gmra.mxu0 %v402
    %v612 = vpop.f32.mrf.mxu0
    %v613 = vadd.f32 %v395, %v612
    %v614 = vpop.f32.mrf.mxu0
    %615 = vdwg.mxu0
    %v616 = vmax.f32 %v471, 0.0
    %v617 = vmax.f32 %v473, 0.0
    %v618 = vmax.f32 %v542, 0.0
    %v619 = vmax.f32 %v544, 0.0
    %v620 = vmax.f32 %v613, 0.0
    %v621 = vld [vmem:[#allocation12] sm:$0xff]
    %v622 = vld [vmem:[#allocation12 + $0x8] sm:$0xff]
    %v623 = vld [vmem:[#allocation12 + $0x10] sm:$0xff]
    %v624 = vld [vmem:[#allocation12 + $0x18] sm:$0xff]
    %v625 = vld [vmem:[#allocation12 + $0x20] sm:$0xff]
    %v626 = vld [vmem:[#allocation12 + $0x28] sm:$0xf]
    %v627 = vld [vmem:[#allocation12 + $0x30] sm:$0xf]
    %v628 = vld [vmem:[#allocation12 + $0x38] sm:$0xf]
    %v629 = vld [vmem:[#allocation12 + $0x40] sm:$0xf]
    %v630 = vld [vmem:[#allocation12 + $0x48] sm:$0xf]
    %v631 = vld [vmem:[%s8] sm:$0xff]
    %v632 = vld [vmem:[%s8 + $0x8] sm:$0xf]
    %vm633 = vcmask 1041408
    %v634 = vsel %vm633, %v616, 0.0
    %v635 = vrot.slane %v634, 4
    %v636 = vadd.f32 %v634, %v635
    %v637 = vrot.slane %v636, 2
    %v638 = vadd.f32 %v636, %v637
    %v639 = vrot.slane %v638, 1
    %v640 = vadd.f32 %v638, %v639
    %v641 = vsel %vm633, %v617, 0.0
    %v642 = vrot.slane %v641, 4
    %v643 = vadd.f32 %v641, %v642
    %v644 = vrot.slane %v643, 2
    %v645 = vadd.f32 %v643, %v644
    %v646 = vrot.slane %v645, 1
    %v647 = vadd.f32 %v645, %v646
    %v648 = vsel %vm633, %v618, 0.0
    %v649 = vrot.slane %v648, 4
    %v650 = vadd.f32 %v648, %v649
    %v651 = vrot.slane %v650, 2
    %v652 = vadd.f32 %v650, %v651
    %v653 = vrot.slane %v652, 1
    %v654 = vadd.f32 %v652, %v653
    %v655 = vsel %vm633, %v619, 0.0
    %v656 = vrot.slane %v655, 4
    %v657 = vadd.f32 %v655, %v656
    %v658 = vrot.slane %v657, 2
    %v659 = vadd.f32 %v657, %v658
    %v660 = vrot.slane %v659, 1
    %v661 = vadd.f32 %v659, %v660
    %vm662 = vcmask 615424
    %v663 = vsel %vm662, %v620, 0.0
    %v664 = vrot.slane %v663, 4
    %v665 = vadd.f32 %v663, %v664
    %v666 = vrot.slane %v665, 2
    %v667 = vadd.f32 %v665, %v666
    %v668 = vrot.slane %v667, 1
    %v669 = vadd.f32 %v667, %v668
    %v670 = vmul.f32 %v640, %v267
    %v671 = vmul.f32 %v647, %v267
    %v672 = vmul.f32 %v654, %v267
    %v673 = vmul.f32 %v661, %v267
    %v674 = vmul.f32 %v669, %v267
    %v675 = vmul.f32 %v616, %v616
    %v676 = vmul.f32 %v617, %v617
    %v677 = vmul.f32 %v618, %v618
    %v678 = vmul.f32 %v619, %v619
    %v679 = vmul.f32 %v620, %v620
    %v680 = vsel %vm633, %v675, 0.0
    %v681 = vrot.slane %v680, 4
    %v682 = vadd.f32 %v680, %v681
    %v683 = vrot.slane %v682, 2
    %v684 = vadd.f32 %v682, %v683
    %v685 = vrot.slane %v684, 1
    %v686 = vadd.f32 %v684, %v685
    %v687 = vsel %vm633, %v676, 0.0
    %v688 = vrot.slane %v687, 4
    %v689 = vadd.f32 %v687, %v688
    %v690 = vrot.slane %v689, 2
    %v691 = vadd.f32 %v689, %v690
    %v692 = vrot.slane %v691, 1
    %v693 = vadd.f32 %v691, %v692
    %v694 = vsel %vm633, %v677, 0.0
    %v695 = vrot.slane %v694, 4
    %v696 = vadd.f32 %v694, %v695
    %v697 = vrot.slane %v696, 2
    %v698 = vadd.f32 %v696, %v697
    %v699 = vrot.slane %v698, 1
    %v700 = vadd.f32 %v698, %v699
    %v701 = vsel %vm633, %v678, 0.0
    %v702 = vrot.slane %v701, 4
    %v703 = vadd.f32 %v701, %v702
    %v704 = vrot.slane %v703, 2
    %v705 = vadd.f32 %v703, %v704
    %v706 = vrot.slane %v705, 1
    %v707 = vadd.f32 %v705, %v706
    %v708 = vsel %vm662, %v679, 0.0
    %v709 = vrot.slane %v708, 4
    %v710 = vadd.f32 %v708, %v709
    %v711 = vrot.slane %v710, 2
    %v712 = vadd.f32 %v710, %v711
    %v713 = vrot.slane %v712, 1
    %v714 = vadd.f32 %v712, %v713
    %v715 = vmul.f32 %v686, %v267
    %v716 = vmul.f32 %v693, %v267
    %v717 = vmul.f32 %v700, %v267
    %v718 = vmul.f32 %v707, %v267
    %v719 = vmul.f32 %v714, %v267
    %v720 = vmul.f32 %v621, %v670
    %v721 = vmul.f32 %v622, %v671
    %v722 = vmul.f32 %v623, %v672
    %v723 = vmul.f32 %v624, %v673
    %v724 = vmul.f32 %v625, %v674
    %v725 = vmul.f32 %v626, %v670
    %v726 = vmul.f32 %v627, %v671
    %v727 = vmul.f32 %v628, %v672
    %v728 = vmul.f32 %v629, %v673
    %v729 = vmul.f32 %v630, %v674
    %v730 = vadd.f32 %v720, %v721
    %v731 = vadd.f32 %v730, %v722
    %v732 = vadd.f32 %v731, %v723
    %vm733 = vcmask 621568
    %v734 = vsel %vm733, %v724, 0.0
    %v735 = vadd.f32 %v732, %v734
    %736 = vadd.xlane.f32.xlu0 %v735
    %v737 = vpop.xlane.xlu0 %736
    %vm738 = vcmask 1043456
    %v739 = vsel %vm738, %v725, 0.0
    %v740 = vsel %vm738, %v726, 0.0
    %v741 = vadd.f32 %v739, %v740
    %v742 = vsel %vm738, %v727, 0.0
    %v743 = vadd.f32 %v741, %v742
    %v744 = vsel %vm738, %v728, 0.0
    %v745 = vadd.f32 %v743, %v744
    %vm746 = vcmask 617472
    %v747 = vsel %vm746, %v729, 0.0
    %v748 = vadd.f32 %v745, %v747
    %749 = vadd.xlane.f32.xlu0 %v748
    %v750 = vpop.xlane.xlu0 %749
    %v751 = vmul.f32 %v737, 0.020408163
    %v752 = vmul.f32 %v750, 0.020408163
    %v753 = vmul.f32 %v621, %v715
    %v754 = vmul.f32 %v622, %v716
    %v755 = vmul.f32 %v623, %v717
    %v756 = vmul.f32 %v624, %v718
    %v757 = vmul.f32 %v625, %v719
    %v758 = vmul.f32 %v626, %v715
    %v759 = vmul.f32 %v627, %v716
    %v760 = vmul.f32 %v628, %v717
    %v761 = vmul.f32 %v629, %v718
    %v762 = vmul.f32 %v630, %v719
    %v763 = vadd.f32 %v753, %v754
    %v764 = vadd.f32 %v763, %v755
    %v765 = vadd.f32 %v764, %v756
    %v766 = vsel %vm733, %v757, 0.0
    %v767 = vadd.f32 %v765, %v766
    %768 = vadd.xlane.f32.xlu0 %v767
    %v769 = vpop.xlane.xlu0 %768
    %v770 = vsel %vm738, %v758, 0.0
    %v771 = vsel %vm738, %v759, 0.0
    %v772 = vadd.f32 %v770, %v771
    %v773 = vsel %vm738, %v760, 0.0
    %v774 = vadd.f32 %v772, %v773
    %v775 = vsel %vm738, %v761, 0.0
    %v776 = vadd.f32 %v774, %v775
    %v777 = vsel %vm746, %v762, 0.0
    %v778 = vadd.f32 %v776, %v777
    %779 = vadd.xlane.f32.xlu0 %v778
    %v780 = vpop.xlane.xlu0 %779
    %v781 = vmul.f32 %v769, 0.020408163
    %v782 = vmul.f32 %v780, 0.020408163
    %v783 = vmul.f32 %v751, %v751
    %v784 = vmul.f32 %v752, %v752
    %v785 = vsub.f32 %v781, %v783
    %v786 = vsub.f32 %v782, %v784
    %v787 = vmax.f32 %v785, 0.0
    %v788 = vmax.f32 %v786, 0.0
    %v789 = vadd.f32 %v787, 1e-05
    %v790 = vadd.f32 %v788, 1e-05
    %v791 = vrsqrt.pop %v789
    %v792 = vrsqrt.pop %v790
    %v793 = vmul.f32 %v631, %v791
    %v794 = vmul.f32 %v632, %v792
    %v795 = vmul.f32 %v751, %v793
    %v796 = vmul.f32 %v752, %v794
    %799 = vrot.lane.b32.xlu0 %v795, 1
    %v800 = vpop.permute.xlu0 %799
    %801 = vrot.lane.b32.xlu0 %v796, 1
    %v802 = vpop.permute.xlu0 %801
    %v805 = vsub.f32 %v631, %v800
    %v806 = vsub.f32 %v632, %v802
    %808 = vset.pattern.permute.xlu0 0
    %809 = vperm.xlu0 %808, %v793
    %v810 = vpop.permute.xlu0 %809
    %813 = vset.pattern.permute.xlu0 0
    %814 = vperm.xlu0 %813, %v794
    %v815 = vpop.permute.xlu0 %814
    %v817 = vmul.f32 %v621, %v810
    %v818 = vmul.f32 %v622, %v810
    %v819 = vmul.f32 %v623, %v810
    %v820 = vmul.f32 %v624, %v810
    %v821 = vmul.f32 %v625, %v810
    %v822 = vmul.f32 %v626, %v815
    %v823 = vmul.f32 %v627, %v815
    %v824 = vmul.f32 %v628, %v815
    %v825 = vmul.f32 %v629, %v815
    %v826 = vmul.f32 %v630, %v815
    %v827 = vsel %vm738, %v822, 0.0
    %v828 = vadd.f32 %v817, %v827
    %v829 = vrot.slane %v828, 4
    %v830 = vadd.f32 %v828, %v829
    %v831 = vrot.slane %v830, 2
    %v832 = vadd.f32 %v830, %v831
    %v833 = vrot.slane %v832, 1
    %v834 = vadd.f32 %v832, %v833
    %v835 = vsel %vm738, %v823, 0.0
    %v836 = vadd.f32 %v818, %v835
    %v837 = vrot.slane %v836, 4
    %v838 = vadd.f32 %v836, %v837
    %v839 = vrot.slane %v838, 2
    %v840 = vadd.f32 %v838, %v839
    %v841 = vrot.slane %v840, 1
    %v842 = vadd.f32 %v840, %v841
    %v843 = vsel %vm738, %v824, 0.0
    %v844 = vadd.f32 %v819, %v843
    %v845 = vrot.slane %v844, 4
    %v846 = vadd.f32 %v844, %v845
    %v847 = vrot.slane %v846, 2
    %v848 = vadd.f32 %v846, %v847
    %v849 = vrot.slane %v848, 1
    %v850 = vadd.f32 %v848, %v849
    %v851 = vsel %vm738, %v825, 0.0
    %v852 = vadd.f32 %v820, %v851
    %v853 = vrot.slane %v852, 4
    %v854 = vadd.f32 %v852, %v853
    %v855 = vrot.slane %v854, 2
    %v856 = vadd.f32 %v854, %v855
    %v857 = vrot.slane %v856, 1
    %v858 = vadd.f32 %v856, %v857
    %v859 = vsel %vm733, %v821, 0.0
    %v860 = vsel %vm746, %v826, 0.0
    %v861 = vadd.f32 %v859, %v860
    %v862 = vrot.slane %v861, 4
    %v863 = vadd.f32 %v861, %v862
    %v864 = vrot.slane %v863, 2
    %v865 = vadd.f32 %v863, %v864
    %v866 = vrot.slane %v865, 1
    %v867 = vadd.f32 %v865, %v866
    %869 = vset.pattern.permute.xlu0 1
    %870 = vperm.xlu0 %869, %v805
    %v871 = vpop.permute.xlu0 %870
    %874 = vset.pattern.permute.xlu0 1
    %875 = vperm.xlu0 %874, %v806
    %v876 = vpop.permute.xlu0 %875
    %v878 = vmul.f32 %v621, %v871
    %v879 = vmul.f32 %v622, %v871
    %v880 = vmul.f32 %v623, %v871
    %v881 = vmul.f32 %v624, %v871
    %v882 = vmul.f32 %v625, %v871
    %v883 = vmul.f32 %v626, %v876
    %v884 = vmul.f32 %v627, %v876
    %v885 = vmul.f32 %v628, %v876
    %v886 = vmul.f32 %v629, %v876
    %v887 = vmul.f32 %v630, %v876
    %v888 = vsel %vm738, %v883, 0.0
    %v889 = vadd.f32 %v878, %v888
    %v890 = vrot.slane %v889, 4
    %v891 = vadd.f32 %v889, %v890
    %v892 = vrot.slane %v891, 2
    %v893 = vadd.f32 %v891, %v892
    %v894 = vrot.slane %v893, 1
    %v895 = vadd.f32 %v893, %v894
    %v896 = vsel %vm738, %v884, 0.0
    %v897 = vadd.f32 %v879, %v896
    %v898 = vrot.slane %v897, 4
    %v899 = vadd.f32 %v897, %v898
    %v900 = vrot.slane %v899, 2
    %v901 = vadd.f32 %v899, %v900
    %v902 = vrot.slane %v901, 1
    %v903 = vadd.f32 %v901, %v902
    %v904 = vsel %vm738, %v885, 0.0
    %v905 = vadd.f32 %v880, %v904
    %v906 = vrot.slane %v905, 4
    %v907 = vadd.f32 %v905, %v906
    %v908 = vrot.slane %v907, 2
    %v909 = vadd.f32 %v907, %v908
    %v910 = vrot.slane %v909, 1
    %v911 = vadd.f32 %v909, %v910
    %v912 = vsel %vm738, %v886, 0.0
    %v913 = vadd.f32 %v881, %v912
    %v914 = vrot.slane %v913, 4
    %v915 = vadd.f32 %v913, %v914
    %v916 = vrot.slane %v915, 2
    %v917 = vadd.f32 %v915, %v916
    %v918 = vrot.slane %v917, 1
    %v919 = vadd.f32 %v917, %v918
    %v920 = vsel %vm733, %v882, 0.0
    %v921 = vsel %vm746, %v887, 0.0
    %v922 = vadd.f32 %v920, %v921
    %v923 = vrot.slane %v922, 4
    %v924 = vadd.f32 %v922, %v923
    %v925 = vrot.slane %v924, 2
    %v926 = vadd.f32 %v924, %v925
    %v927 = vrot.slane %v926, 1
    %v928 = vadd.f32 %v926, %v927
    %v929 = vmul.f32 %v616, %v834
    %v930 = vmul.f32 %v617, %v842
    %v931 = vmul.f32 %v618, %v850
    %v932 = vmul.f32 %v619, %v858
    %v933 = vmul.f32 %v620, %v867
    %v934 = vadd.f32 %v929, %v895
    %v935 = vadd.f32 %v930, %v903
    %v936 = vadd.f32 %v931, %v911
    %v937 = vadd.f32 %v932, %v919
    %v938 = vadd.f32 %v933, %v928
    %v939 = vld [vmem:[#allocation13] sm:$0xff]
    %v940 = vld [vmem:[#allocation13 + $0x8] sm:$0xff]
    %v941 = vld [vmem:[#allocation13 + $0x10] sm:$0xff]
    %v942 = vld [vmem:[#allocation13 + $0x18] sm:$0xff]
    %v943 = vld [vmem:[#allocation13 + $0x20] sm:$0xff]
    %v944 = vld [vmem:[#allocation13 + $0x28] sm:$0xff]
    %v945 = vld [vmem:[#allocation13 + $0x30] sm:$0xff]
    %v946 = vld [vmem:[#allocation13 + $0x38] sm:$0xff]
    %v947 = vld [vmem:[#allocation13 + $0x40] sm:$0xff]
    %v948 = vld [vmem:[#allocation13 + $0x48] sm:$0xff]
    %v949 = vld [vmem:[#allocation13 + $0x50] sm:$0xff]
    %v950 = vld [vmem:[#allocation13 + $0x58] sm:$0xff]
    %v951 = vld [vmem:[#allocation13 + $0x60] sm:$0xff]
    %v952 = vld [vmem:[#allocation13 + $0x68] sm:$0xff]
    %v953 = vld [vmem:[#allocation13 + $0x70] sm:$0xff]
    %v954 = vld [vmem:[#allocation13 + $0x78] sm:$0xff]
    %v955 = vld [vmem:[#allocation13 + $0x80] sm:$0xff]
    %v956 = vld [vmem:[#allocation13 + $0x88] sm:$0xff]
    %v957 = vld [vmem:[#allocation13 + $0x90] sm:$0xff]
    %v958 = vld [vmem:[#allocation13 + $0x98] sm:$0xff]
    %v959 = vld [vmem:[#allocation13 + $0xa0] sm:$0xff]
    %v960 = vld [vmem:[#allocation13 + $0xa8] sm:$0xff]
    %v961 = vld [vmem:[#allocation13 + $0xb0] sm:$0xff]
    %v962 = vld [vmem:[#allocation13 + $0xb8] sm:$0xff]
    %v963 = vld [vmem:[#allocation13 + $0xc0] sm:$0xff]
    %v964 = vld [vmem:[#allocation13 + $0xc8] sm:$0xff]
    %v965 = vld [vmem:[#allocation13 + $0xd0] sm:$0xff]
    %v966 = vld [vmem:[#allocation13 + $0xd8] sm:$0xff]
    %v967 = vld [vmem:[#allocation13 + $0xe0] sm:$0xff]
    %v968 = vld [vmem:[#allocation13 + $0xe8] sm:$0xff]
    %v969 = vld [vmem:[#allocation13 + $0xf0] sm:$0xff]
    %v970 = vld [vmem:[#allocation13 + $0xf8] sm:$0xff]
    %v971 = vld [vmem:[#allocation13 + $0x100] sm:$0xff]
    %v972 = vld [vmem:[#allocation13 + $0x108] sm:$0xff]
    %v973 = vld [vmem:[#allocation13 + $0x110] sm:$0xff]
    %v974 = vld [vmem:[#allocation13 + $0x118] sm:$0xff]
    %v975 = vld [vmem:[#allocation13 + $0x120] sm:$0xff]
    %v976 = vld [vmem:[#allocation13 + $0x128] sm:$0xff]
    %v977 = vld [vmem:[#allocation13 + $0x130] sm:$0xff]
    %v978 = vld [vmem:[#allocation13 + $0x138] sm:$0xff]
    %v979 = vld [vmem:[#allocation13 + $0x140] sm:$0xff]
    %v980 = vld [vmem:[#allocation13 + $0x148] sm:$0xff]
    %v981 = vld [vmem:[#allocation13 + $0x150] sm:$0xff]
    %v982 = vld [vmem:[#allocation13 + $0x158] sm:$0xff]
    %v983 = vld [vmem:[#allocation13 + $0x160] sm:$0xff]
    %v984 = vld [vmem:[#allocation13 + $0x168] sm:$0xff]
    %v985 = vld [vmem:[#allocation13 + $0x170] sm:$0xff]
    %v986 = vld [vmem:[#allocation13 + $0x178] sm:$0xff]
    %v987 = vld [vmem:[#allocation13 + $0x180] sm:$0xff]
    %v988 = vld [vmem:[#allocation13 + $0x188] sm:$0xff]
    %v989 = vld [vmem:[#allocation13 + $0x190] sm:$0xff]
    %v990 = vld [vmem:[#allocation13 + $0x198] sm:$0xff]
    %v991 = vld [vmem:[#allocation13 + $0x1a0] sm:$0xff]
    %v992 = vld [vmem:[#allocation13 + $0x1a8] sm:$0xff]
    %v993 = vld [vmem:[#allocation13 + $0x1b0] sm:$0xff]
    %v994 = vld [vmem:[#allocation13 + $0x1b8] sm:$0xff]
    %v995 = vld [vmem:[#allocation13 + $0x1c0] sm:$0xff]
    %v996 = vld [vmem:[#allocation13 + $0x1c8] sm:$0xff]
    %v997 = vld [vmem:[#allocation13 + $0x1d0] sm:$0xff]
    %v998 = vld [vmem:[#allocation13 + $0x1d8] sm:$0xff]
    %v999 = vld [vmem:[#allocation13 + $0x1e0] sm:$0xff]
    %v1000 = vld [vmem:[#allocation13 + $0x1e8] sm:$0xff]
    %v1001 = vld [vmem:[#allocation13 + $0x1f0] sm:$0xff]
    %v1002 = vld [vmem:[#allocation13 + $0x1f8] sm:$0xff]
    %v1003 = vld [vmem:[#allocation13 + $0x200] sm:$0xff]
    %v1004 = vld [vmem:[#allocation13 + $0x208] sm:$0xff]
    %v1005 = vld [vmem:[#allocation13 + $0x210] sm:$0xff]
    %v1006 = vld [vmem:[#allocation13 + $0x218] sm:$0xff]
    %v1007 = vld [vmem:[#allocation13 + $0x220] sm:$0xff]
    %v1008 = vld [vmem:[#allocation13 + $0x228] sm:$0xff]
    %v1009 = vld [vmem:[#allocation13 + $0x230] sm:$0xff]
    %v1010 = vld [vmem:[#allocation13 + $0x238] sm:$0xff]
    %v1011 = vld [vmem:[#allocation13 + $0x240] sm:$0xff]
    %v1012 = vld [vmem:[#allocation13 + $0x248] sm:$0xff]
    %v1013 = vld [vmem:[#allocation13 + $0x250] sm:$0xff]
    %v1014 = vld [vmem:[#allocation13 + $0x258] sm:$0xff]
    %v1015 = vld [vmem:[#allocation13 + $0x260] sm:$0xff]
    %v1016 = vld [vmem:[#allocation13 + $0x268] sm:$0xff]
    %v1017 = vld [vmem:[#allocation13 + $0x270] sm:$0xff]
    %v1018 = vld [vmem:[#allocation13 + $0x278] sm:$0xff]
    %v1019 = vld [vmem:[#allocation13 + $0x280] sm:$0xff]
    %v1020 = vld [vmem:[#allocation13 + $0x288] sm:$0xff]
    %v1021 = vld [vmem:[#allocation13 + $0x290] sm:$0xff]
    %v1022 = vld [vmem:[#allocation13 + $0x298] sm:$0xff]
    %v1023 = vld [vmem:[#allocation13 + $0x2a0] sm:$0xff]
    %v1024 = vld [vmem:[#allocation13 + $0x2a8] sm:$0xff]
    %v1025 = vld [vmem:[#allocation13 + $0x2b0] sm:$0xff]
    %v1026 = vld [vmem:[#allocation13 + $0x2b8] sm:$0xff]
    %v1027 = vld [vmem:[#allocation13 + $0x2c0] sm:$0xff]
    %v1028 = vld [vmem:[#allocation13 + $0x2c8] sm:$0xff]
    %v1029 = vld [vmem:[#allocation13 + $0x2d0] sm:$0xff]
    %v1030 = vld [vmem:[#allocation13 + $0x2d8] sm:$0xff]
    %v1031 = vld [vmem:[#allocation13 + $0x2e0] sm:$0xff]
    %v1032 = vld [vmem:[#allocation13 + $0x2e8] sm:$0xff]
    %v1033 = vld [vmem:[#allocation13 + $0x2f0] sm:$0xff]
    %v1034 = vld [vmem:[#allocation13 + $0x2f8] sm:$0xff]
    %v1035 = vld [vmem:[#allocation13 + $0x300] sm:$0xff]
    %v1036 = vld [vmem:[#allocation13 + $0x308] sm:$0xff]
    %v1037 = vld [vmem:[#allocation13 + $0x310] sm:$0xff]
    %v1038 = vld [vmem:[#allocation13 + $0x318] sm:$0xff]
    %v1039 = vld [vmem:[#allocation13 + $0x320] sm:$0xff]
    %v1040 = vld [vmem:[#allocation13 + $0x328] sm:$0xff]
    %v1041 = vld [vmem:[#allocation13 + $0x330] sm:$0xff]
    %v1042 = vld [vmem:[#allocation13 + $0x338] sm:$0xff]
    %v1043 = vld [vmem:[#allocation13 + $0x340] sm:$0xff]
    %v1044 = vld [vmem:[#allocation13 + $0x348] sm:$0xff]
    %v1045 = vld [vmem:[#allocation13 + $0x350] sm:$0xff]
    %v1046 = vld [vmem:[#allocation13 + $0x358] sm:$0xff]
    %v1047 = vld [vmem:[#allocation13 + $0x360] sm:$0xff]
    %v1048 = vld [vmem:[#allocation13 + $0x368] sm:$0xff]
    %v1049 = vld [vmem:[#allocation13 + $0x370] sm:$0xff]
    %v1050 = vld [vmem:[#allocation13 + $0x378] sm:$0xff]
    %v1051 = vld [vmem:[#allocation13 + $0x380] sm:$0xff]
    %v1052 = vld [vmem:[#allocation13 + $0x388] sm:$0xff]
    %v1053 = vld [vmem:[#allocation13 + $0x390] sm:$0xff]
    %v1054 = vld [vmem:[#allocation13 + $0x398] sm:$0xff]
    %v1055 = vld [vmem:[#allocation13 + $0x3a0] sm:$0xff]
    %v1056 = vld [vmem:[#allocation13 + $0x3a8] sm:$0xff]
    %v1057 = vld [vmem:[#allocation13 + $0x3b0] sm:$0xff]
    %v1058 = vld [vmem:[#allocation13 + $0x3b8] sm:$0xff]
    %v1059 = vld [vmem:[#allocation13 + $0x3c0] sm:$0xff]
    %v1060 = vld [vmem:[#allocation13 + $0x3c8] sm:$0xff]
    %v1061 = vld [vmem:[#allocation13 + $0x3d0] sm:$0xff]
    %v1062 = vld [vmem:[#allocation13 + $0x3d8] sm:$0xff]
    %v1063 = vld [vmem:[#allocation13 + $0x3e0] sm:$0xff]
    %v1064 = vld [vmem:[#allocation13 + $0x3e8] sm:$0xff]
    %v1065 = vld [vmem:[#allocation13 + $0x3f0] sm:$0xff]
    %v1066 = vld [vmem:[#allocation13 + $0x3f8] sm:$0xff]
    %v1067 = vld [vmem:[#allocation13 + $0x400] sm:$0xff]
    %v1068 = vld [vmem:[#allocation13 + $0x408] sm:$0xff]
    %v1069 = vld [vmem:[#allocation13 + $0x410] sm:$0xff]
    %v1070 = vld [vmem:[#allocation13 + $0x418] sm:$0xff]
    %v1071 = vld [vmem:[#allocation13 + $0x420] sm:$0xff]
    %v1072 = vld [vmem:[#allocation13 + $0x428] sm:$0xff]
    %v1073 = vld [vmem:[#allocation13 + $0x430] sm:$0xff]
    %v1074 = vld [vmem:[#allocation13 + $0x438] sm:$0xff]
    %v1075 = vld [vmem:[#allocation13 + $0x440] sm:$0xff]
    %v1076 = vld [vmem:[#allocation13 + $0x448] sm:$0xff]
    %v1077 = vld [vmem:[#allocation13 + $0x450] sm:$0xff]
    %v1078 = vld [vmem:[#allocation13 + $0x458] sm:$0xff]
    %v1079 = vld [vmem:[#allocation13 + $0x460] sm:$0xff]
    %v1080 = vld [vmem:[#allocation13 + $0x468] sm:$0xff]
    %v1081 = vld [vmem:[#allocation13 + $0x470] sm:$0xff]
    %v1082 = vld [vmem:[#allocation13 + $0x478] sm:$0xff]
    %v1083 = vld [vmem:[#allocation13 + $0x480] sm:$0xff]
    %v1084 = vld [vmem:[#allocation13 + $0x488] sm:$0xff]
    %v1085 = vld [vmem:[#allocation13 + $0x490] sm:$0xff]
    %v1086 = vld [vmem:[#allocation13 + $0x498] sm:$0xff]
    %v1087 = vld [vmem:[#allocation13 + $0x4a0] sm:$0xff]
    %v1088 = vld [vmem:[#allocation13 + $0x4a8] sm:$0xff]
    %v1089 = vld [vmem:[#allocation13 + $0x4b0] sm:$0xff]
    %v1090 = vld [vmem:[#allocation13 + $0x4b8] sm:$0xff]
    %v1091 = vld [vmem:[#allocation13 + $0x4c0] sm:$0xff]
    %v1092 = vld [vmem:[#allocation13 + $0x4c8] sm:$0xff]
    %v1093 = vld [vmem:[#allocation13 + $0x4d0] sm:$0xff]
    %v1094 = vld [vmem:[#allocation13 + $0x4d8] sm:$0xff]
    %v1095 = vld [vmem:[#allocation13 + $0x4e0] sm:$0xff]
    %v1096 = vld [vmem:[#allocation13 + $0x4e8] sm:$0xff]
    %v1097 = vld [vmem:[#allocation13 + $0x4f0] sm:$0xff]
    %v1098 = vld [vmem:[#allocation13 + $0x4f8] sm:$0xff]
    %v1099 = vld [vmem:[#allocation13 + $0x500] sm:$0xff]
    %v1100 = vld [vmem:[#allocation13 + $0x508] sm:$0xff]
    %v1101 = vld [vmem:[#allocation13 + $0x510] sm:$0xff]
    %v1102 = vld [vmem:[#allocation13 + $0x518] sm:$0xff]
    %v1103 = vld [vmem:[#allocation13 + $0x520] sm:$0xff]
    %v1104 = vld [vmem:[#allocation13 + $0x528] sm:$0xff]
    %v1105 = vld [vmem:[#allocation13 + $0x530] sm:$0xff]
    %v1106 = vld [vmem:[#allocation13 + $0x538] sm:$0xff]
    %v1107 = vld [vmem:[#allocation13 + $0x540] sm:$0xff]
    %v1108 = vld [vmem:[#allocation13 + $0x548] sm:$0xff]
    %v1109 = vld [vmem:[#allocation13 + $0x550] sm:$0xff]
    %v1110 = vld [vmem:[#allocation13 + $0x558] sm:$0xff]
    %v1111 = vld [vmem:[#allocation13 + $0x560] sm:$0xff]
    %v1112 = vld [vmem:[#allocation13 + $0x568] sm:$0xff]
    %v1113 = vld [vmem:[#allocation13 + $0x570] sm:$0xff]
    %v1114 = vld [vmem:[#allocation13 + $0x578] sm:$0xff]
    %v1115 = vld [vmem:[#allocation13 + $0x580] sm:$0xff]
    %v1116 = vld [vmem:[#allocation13 + $0x588] sm:$0xff]
    %v1117 = vld [vmem:[#allocation13 + $0x590] sm:$0xff]
    %v1118 = vld [vmem:[#allocation13 + $0x598] sm:$0xff]
    %v1119 = vld [vmem:[#allocation13 + $0x5a0] sm:$0xff]
    %v1120 = vld [vmem:[#allocation13 + $0x5a8] sm:$0xff]
    %v1121 = vld [vmem:[#allocation13 + $0x5b0] sm:$0xff]
    %v1122 = vld [vmem:[#allocation13 + $0x5b8] sm:$0xff]
    %v1123 = vld [vmem:[#allocation13 + $0x5c0] sm:$0xff]
    %v1124 = vld [vmem:[#allocation13 + $0x5c8] sm:$0xff]
    %v1125 = vld [vmem:[#allocation13 + $0x5d0] sm:$0xff]
    %v1126 = vld [vmem:[#allocation13 + $0x5d8] sm:$0xff]
    %v1127 = vld [vmem:[#allocation13 + $0x5e0] sm:$0xff]
    %v1128 = vld [vmem:[#allocation13 + $0x5e8] sm:$0xff]
    %v1129 = vld [vmem:[#allocation13 + $0x5f0] sm:$0xff]
    %v1130 = vld [vmem:[#allocation13 + $0x5f8] sm:$0xff]
    %v1131 = vld [vmem:[#allocation13 + $0x600] sm:$0xff]
    %v1132 = vld [vmem:[#allocation13 + $0x608] sm:$0xff]
    %v1133 = vld [vmem:[#allocation13 + $0x610] sm:$0xff]
    %v1134 = vld [vmem:[#allocation13 + $0x618] sm:$0xff]
    %v1135 = vld [vmem:[#allocation13 + $0x620] sm:$0xff]
    %v1136 = vld [vmem:[#allocation13 + $0x628] sm:$0xff]
    %v1137 = vld [vmem:[#allocation13 + $0x630] sm:$0xff]
    %v1138 = vld [vmem:[#allocation13 + $0x638] sm:$0xff]
    %v1139 = vld [vmem:[#allocation13 + $0x640] sm:$0xff]
    %v1140 = vld [vmem:[#allocation13 + $0x648] sm:$0xff]
    %v1141 = vld [vmem:[#allocation13 + $0x650] sm:$0xff]
    %v1142 = vld [vmem:[#allocation13 + $0x658] sm:$0xff]
    %v1143 = vld [vmem:[#allocation13 + $0x660] sm:$0xff]
    %v1144 = vld [vmem:[#allocation13 + $0x668] sm:$0xff]
    %v1145 = vld [vmem:[#allocation13 + $0x670] sm:$0xff]
    %v1146 = vld [vmem:[#allocation13 + $0x678] sm:$0xff]
    %v1147 = vld [vmem:[#allocation13 + $0x680] sm:$0xff]
    %v1148 = vld [vmem:[#allocation13 + $0x688] sm:$0xff]
    %v1149 = vld [vmem:[#allocation13 + $0x690] sm:$0xff]
    %v1150 = vld [vmem:[#allocation13 + $0x698] sm:$0xff]
    %v1151 = vld [vmem:[#allocation13 + $0x6a0] sm:$0xff]
    %v1152 = vld [vmem:[#allocation13 + $0x6a8] sm:$0xff]
    %v1153 = vld [vmem:[#allocation13 + $0x6b0] sm:$0xff]
    %v1154 = vld [vmem:[#allocation13 + $0x6b8] sm:$0xff]
    %v1155 = vld [vmem:[#allocation13 + $0x6c0] sm:$0xff]
    %v1156 = vld [vmem:[#allocation13 + $0x6c8] sm:$0xff]
    %v1157 = vld [vmem:[#allocation13 + $0x6d0] sm:$0xff]
    %v1158 = vld [vmem:[#allocation13 + $0x6d8] sm:$0xff]
    %v1159 = vld [vmem:[#allocation13 + $0x6e0] sm:$0xff]
    %v1160 = vld [vmem:[#allocation13 + $0x6e8] sm:$0xff]
    %v1161 = vld [vmem:[#allocation13 + $0x6f0] sm:$0xff]
    %v1162 = vld [vmem:[#allocation13 + $0x6f8] sm:$0xff]
    %v1163 = vld [vmem:[#allocation13 + $0x700] sm:$0xff]
    %v1164 = vld [vmem:[#allocation13 + $0x708] sm:$0xff]
    %v1165 = vld [vmem:[#allocation13 + $0x710] sm:$0xff]
    %v1166 = vld [vmem:[#allocation13 + $0x718] sm:$0xff]
    %v1167 = vld [vmem:[#allocation13 + $0x720] sm:$0xff]
    %v1168 = vld [vmem:[#allocation13 + $0x728] sm:$0xff]
    %v1169 = vld [vmem:[#allocation13 + $0x730] sm:$0xff]
    %v1170 = vld [vmem:[#allocation13 + $0x738] sm:$0xff]
    %v1171 = vld [vmem:[#allocation13 + $0x740] sm:$0xff]
    %v1172 = vld [vmem:[#allocation13 + $0x748] sm:$0xff]
    %v1173 = vld [vmem:[#allocation13 + $0x750] sm:$0xff]
    %v1174 = vld [vmem:[#allocation13 + $0x758] sm:$0xff]
    %v1175 = vld [vmem:[#allocation13 + $0x760] sm:$0xff]
    %v1176 = vld [vmem:[#allocation13 + $0x768] sm:$0xff]
    %v1177 = vld [vmem:[#allocation13 + $0x770] sm:$0xff]
    %v1178 = vld [vmem:[#allocation13 + $0x778] sm:$0xff]
    %v1179 = vld [vmem:[#allocation13 + $0x780] sm:$0xff]
    %v1180 = vld [vmem:[#allocation13 + $0x788] sm:$0xff]
    %v1181 = vld [vmem:[#allocation13 + $0x790] sm:$0xff]
    %v1182 = vld [vmem:[#allocation13 + $0x798] sm:$0xff]
    %v1183 = vld [vmem:[#allocation13 + $0x7a0] sm:$0xff]
    %v1184 = vld [vmem:[#allocation13 + $0x7a8] sm:$0xff]
    %v1185 = vld [vmem:[#allocation13 + $0x7b0] sm:$0xff]
    %v1186 = vld [vmem:[#allocation13 + $0x7b8] sm:$0xff]
    %v1187 = vld [vmem:[#allocation13 + $0x7c0] sm:$0xff]
    %v1188 = vld [vmem:[#allocation13 + $0x7c8] sm:$0xff]
    %v1189 = vld [vmem:[#allocation13 + $0x7d0] sm:$0xff]
    %v1190 = vld [vmem:[#allocation13 + $0x7d8] sm:$0xff]
    %v1191 = vld [vmem:[#allocation13 + $0x7e0] sm:$0xff]
    %v1192 = vld [vmem:[#allocation13 + $0x7e8] sm:$0xff]
    %v1193 = vld [vmem:[#allocation13 + $0x7f0] sm:$0xff]
    %v1194 = vld [vmem:[#allocation13 + $0x7f8] sm:$0xff]
    %v1195 = vld [vmem:[#allocation13 + $0x800] sm:$0xff]
    %v1196 = vld [vmem:[#allocation13 + $0x808] sm:$0xff]
    %v1197 = vld [vmem:[#allocation13 + $0x810] sm:$0xff]
    %v1198 = vld [vmem:[#allocation13 + $0x818] sm:$0xff]
    %v1199 = vld [vmem:[#allocation13 + $0x820] sm:$0xff]
    %v1200 = vld [vmem:[#allocation13 + $0x828] sm:$0xff]
    %v1201 = vld [vmem:[#allocation13 + $0x830] sm:$0xff]
    %v1202 = vld [vmem:[#allocation13 + $0x838] sm:$0xff]
    %v1203 = vld [vmem:[#allocation13 + $0x840] sm:$0xff]
    %v1204 = vld [vmem:[#allocation13 + $0x848] sm:$0xff]
    %v1205 = vld [vmem:[#allocation13 + $0x850] sm:$0xff]
    %v1206 = vld [vmem:[#allocation13 + $0x858] sm:$0xff]
    %v1207 = vld [vmem:[#allocation13 + $0x860] sm:$0xff]
    %v1208 = vld [vmem:[#allocation13 + $0x868] sm:$0xff]
    %v1209 = vld [vmem:[#allocation13 + $0x870] sm:$0xff]
    %v1210 = vld [vmem:[#allocation13 + $0x878] sm:$0xff]
    %v1211 = vld [vmem:[#allocation13 + $0x880] sm:$0xff]
    %v1212 = vld [vmem:[#allocation13 + $0x888] sm:$0xff]
    %v1213 = vld [vmem:[#allocation13 + $0x890] sm:$0xff]
    %v1214 = vld [vmem:[#allocation13 + $0x898] sm:$0xff]
    %v1215 = vld [vmem:[#allocation13 + $0x8a0] sm:$0xff]
    %v1216 = vld [vmem:[#allocation13 + $0x8a8] sm:$0xff]
    %v1217 = vld [vmem:[#allocation13 + $0x8b0] sm:$0xff]
    %v1218 = vld [vmem:[#allocation13 + $0x8b8] sm:$0xff]
    %v1219 = vld [vmem:[#allocation13 + $0x8c0] sm:$0xff]
    %v1220 = vld [vmem:[#allocation13 + $0x8c8] sm:$0xff]
    %v1221 = vld [vmem:[#allocation13 + $0x8d0] sm:$0xff]
    %v1222 = vld [vmem:[#allocation13 + $0x8d8] sm:$0xff]
    %v1223 = vld [vmem:[#allocation13 + $0x8e0] sm:$0xff]
    %v1224 = vld [vmem:[#allocation13 + $0x8e8] sm:$0xff]
    %v1225 = vld [vmem:[#allocation13 + $0x8f0] sm:$0xff]
    %v1226 = vld [vmem:[#allocation13 + $0x8f8] sm:$0xff]
    %v1227 = vld [vmem:[#allocation13 + $0x900] sm:$0xff]
    %v1228 = vld [vmem:[#allocation13 + $0x908] sm:$0xff]
    %v1229 = vld [vmem:[#allocation13 + $0x910] sm:$0xff]
    %v1230 = vld [vmem:[#allocation13 + $0x918] sm:$0xff]
    %v1231 = vld [vmem:[#allocation13 + $0x920] sm:$0xff]
    %v1232 = vld [vmem:[#allocation13 + $0x928] sm:$0xff]
    %v1233 = vld [vmem:[#allocation13 + $0x930] sm:$0xff]
    %v1234 = vld [vmem:[#allocation13 + $0x938] sm:$0xff]
    %v1235 = vld [vmem:[#allocation13 + $0x940] sm:$0xff]
    %v1236 = vld [vmem:[#allocation13 + $0x948] sm:$0xff]
    %v1237 = vld [vmem:[#allocation13 + $0x950] sm:$0xff]
    %v1238 = vld [vmem:[#allocation13 + $0x958] sm:$0xff]
    %v1239 = vld [vmem:[#allocation13 + $0x960] sm:$0xff]
    %v1240 = vld [vmem:[#allocation13 + $0x968] sm:$0xff]
    %v1241 = vld [vmem:[#allocation13 + $0x970] sm:$0xff]
    %v1242 = vld [vmem:[#allocation13 + $0x978] sm:$0xff]
    %v1243 = vld [vmem:[#allocation13 + $0x980] sm:$0xff]
    %v1244 = vld [vmem:[#allocation13 + $0x988] sm:$0xff]
    %v1245 = vld [vmem:[#allocation13 + $0x990] sm:$0xff]
    %v1246 = vld [vmem:[#allocation13 + $0x998] sm:$0xff]
    %v1247 = vld [vmem:[#allocation13 + $0x9a0] sm:$0xff]
    %v1248 = vld [vmem:[#allocation13 + $0x9a8] sm:$0xff]
    %v1249 = vld [vmem:[#allocation13 + $0x9b0] sm:$0xff]
    %v1250 = vld [vmem:[#allocation13 + $0x9b8] sm:$0xff]
    %v1251 = vld [vmem:[#allocation13 + $0x9c0] sm:$0xff]
    %v1252 = vld [vmem:[#allocation13 + $0x9c8] sm:$0xff]
    %v1253 = vld [vmem:[#allocation13 + $0x9d0] sm:$0xff]
    %v1254 = vld [vmem:[#allocation13 + $0x9d8] sm:$0xff]
    %v1255 = vld [vmem:[#allocation13 + $0x9e0] sm:$0xff]
    %v1256 = vld [vmem:[#allocation13 + $0x9e8] sm:$0xff]
    %v1257 = vld [vmem:[#allocation13 + $0x9f0] sm:$0xff]
    %v1258 = vld [vmem:[#allocation13 + $0x9f8] sm:$0xff]
    %v1259 = vld [vmem:[#allocation13 + $0xa00] sm:$0xff]
    %v1260 = vld [vmem:[#allocation13 + $0xa08] sm:$0xff]
    %v1261 = vld [vmem:[#allocation13 + $0xa10] sm:$0xff]
    %v1262 = vld [vmem:[#allocation13 + $0xa18] sm:$0xff]
    %v1263 = vld [vmem:[#allocation13 + $0xa20] sm:$0xff]
    %v1264 = vld [vmem:[#allocation13 + $0xa28] sm:$0xff]
    %v1265 = vld [vmem:[#allocation13 + $0xa30] sm:$0xff]
    %v1266 = vld [vmem:[#allocation13 + $0xa38] sm:$0xff]
    %v1267 = vld [vmem:[#allocation13 + $0xa40] sm:$0xff]
    %v1268 = vld [vmem:[#allocation13 + $0xa48] sm:$0xff]
    %v1269 = vld [vmem:[#allocation13 + $0xa50] sm:$0xff]
    %v1270 = vld [vmem:[#allocation13 + $0xa58] sm:$0xff]
    %v1271 = vld [vmem:[#allocation13 + $0xa60] sm:$0xff]
    %v1272 = vld [vmem:[#allocation13 + $0xa68] sm:$0xff]
    %v1273 = vld [vmem:[#allocation13 + $0xa70] sm:$0xff]
    %v1274 = vld [vmem:[#allocation13 + $0xa78] sm:$0xff]
    %v1275 = vld [vmem:[#allocation13 + $0xa80] sm:$0xff]
    %v1276 = vld [vmem:[#allocation13 + $0xa88] sm:$0xff]
    %v1277 = vld [vmem:[#allocation13 + $0xa90] sm:$0xff]
    %v1278 = vld [vmem:[#allocation13 + $0xa98] sm:$0xff]
    %v1279 = vld [vmem:[#allocation13 + $0xaa0] sm:$0xff]
    %v1280 = vld [vmem:[#allocation13 + $0xaa8] sm:$0xff]
    %v1281 = vld [vmem:[#allocation13 + $0xab0] sm:$0xff]
    %v1282 = vld [vmem:[#allocation13 + $0xab8] sm:$0xff]
    %v1283 = vld [vmem:[#allocation13 + $0xac0] sm:$0xff]
    %v1284 = vld [vmem:[#allocation13 + $0xac8] sm:$0xff]
    %v1285 = vld [vmem:[#allocation13 + $0xad0] sm:$0xff]
    %v1286 = vld [vmem:[#allocation13 + $0xad8] sm:$0xff]
    %v1287 = vld [vmem:[#allocation13 + $0xae0] sm:$0xff]
    %v1288 = vld [vmem:[#allocation13 + $0xae8] sm:$0xff]
    %v1289 = vld [vmem:[#allocation13 + $0xaf0] sm:$0xff]
    %v1290 = vld [vmem:[#allocation13 + $0xaf8] sm:$0xff]
    %v1291 = vld [vmem:[#allocation13 + $0xb00] sm:$0xff]
    %v1292 = vld [vmem:[#allocation13 + $0xb08] sm:$0xff]
    %v1293 = vld [vmem:[#allocation13 + $0xb10] sm:$0xff]
    %v1294 = vld [vmem:[#allocation13 + $0xb18] sm:$0xff]
    %v1295 = vld [vmem:[#allocation13 + $0xb20] sm:$0xff]
    %v1296 = vld [vmem:[#allocation13 + $0xb28] sm:$0xff]
    %v1297 = vld [vmem:[#allocation13 + $0xb30] sm:$0xff]
    %v1298 = vld [vmem:[#allocation13 + $0xb38] sm:$0xff]
    %v1299 = vld [vmem:[#allocation13 + $0xb40] sm:$0xff]
    %v1300 = vld [vmem:[#allocation13 + $0xb48] sm:$0xff]
    %v1301 = vld [vmem:[#allocation13 + $0xb50] sm:$0xff]
    %v1302 = vld [vmem:[#allocation13 + $0xb58] sm:$0xff]
    %v1303 = vld [vmem:[#allocation13 + $0xb60] sm:$0xff]
    %v1304 = vld [vmem:[#allocation13 + $0xb68] sm:$0xff]
    %v1305 = vld [vmem:[#allocation13 + $0xb70] sm:$0xff]
    %v1306 = vld [vmem:[#allocation13 + $0xb78] sm:$0xff]
    %v1307 = vld [vmem:[#allocation13 + $0xb80] sm:$0xff]
    %v1308 = vld [vmem:[#allocation13 + $0xb88] sm:$0xff]
    %v1309 = vld [vmem:[#allocation13 + $0xb90] sm:$0xff]
    %v1310 = vld [vmem:[#allocation13 + $0xb98] sm:$0xff]
    %v1311 = vld [vmem:[#allocation13 + $0xba0] sm:$0xff]
    %v1312 = vld [vmem:[#allocation13 + $0xba8] sm:$0xff]
    %v1313 = vld [vmem:[#allocation13 + $0xbb0] sm:$0xff]
    %v1314 = vld [vmem:[#allocation13 + $0xbb8] sm:$0xff]
    %v1315 = vld [vmem:[#allocation13 + $0xbc0] sm:$0xff]
    %v1316 = vld [vmem:[#allocation13 + $0xbc8] sm:$0xff]
    %v1317 = vld [vmem:[#allocation13 + $0xbd0] sm:$0xff]
    %v1318 = vld [vmem:[#allocation13 + $0xbd8] sm:$0xff]
    %v1319 = vld [vmem:[#allocation13 + $0xbe0] sm:$0xff]
    %v1320 = vld [vmem:[#allocation13 + $0xbe8] sm:$0xff]
    %v1321 = vld [vmem:[#allocation13 + $0xbf0] sm:$0xff]
    %v1322 = vld [vmem:[#allocation13 + $0xbf8] sm:$0xff]
    %v1323 = vld [vmem:[#allocation13 + $0xc00] sm:$0xff]
    %v1324 = vld [vmem:[#allocation13 + $0xc08] sm:$0xff]
    %v1325 = vld [vmem:[#allocation13 + $0xc10] sm:$0xff]
    %v1326 = vld [vmem:[#allocation13 + $0xc18] sm:$0xff]
    %v1327 = vld [vmem:[#allocation13 + $0xc20] sm:$0xff]
    %v1328 = vld [vmem:[#allocation13 + $0xc28] sm:$0xff]
    %v1329 = vld [vmem:[#allocation13 + $0xc30] sm:$0xff]
    %v1330 = vld [vmem:[#allocation13 + $0xc38] sm:$0xff]
    %v1331 = vld [vmem:[#allocation13 + $0xc40] sm:$0xff]
    %v1332 = vld [vmem:[#allocation13 + $0xc48] sm:$0xff]
    %v1333 = vld [vmem:[#allocation13 + $0xc50] sm:$0xff]
    %v1334 = vld [vmem:[#allocation13 + $0xc58] sm:$0xff]
    %v1335 = vld [vmem:[#allocation13 + $0xc60] sm:$0xff]
    %v1336 = vld [vmem:[#allocation13 + $0xc68] sm:$0xff]
    %v1337 = vld [vmem:[#allocation13 + $0xc70] sm:$0xff]
    %v1338 = vld [vmem:[#allocation13 + $0xc78] sm:$0xff]
    %v1339 = vld [vmem:[#allocation13 + $0xc80] sm:$0xff]
    %v1340 = vld [vmem:[#allocation13 + $0xc88] sm:$0xff]
    %v1341 = vld [vmem:[#allocation13 + $0xc90] sm:$0xff]
    %v1342 = vld [vmem:[#allocation13 + $0xc98] sm:$0xff]
    %v1343 = vld [vmem:[#allocation13 + $0xca0] sm:$0xff]
    %v1344 = vld [vmem:[#allocation13 + $0xca8] sm:$0xff]
    %v1345 = vld [vmem:[#allocation13 + $0xcb0] sm:$0xff]
    %v1346 = vld [vmem:[#allocation13 + $0xcb8] sm:$0xff]
    %v1347 = vld [vmem:[#allocation13 + $0xcc0] sm:$0xff]
    %v1348 = vld [vmem:[#allocation13 + $0xcc8] sm:$0xff]
    %v1349 = vld [vmem:[#allocation13 + $0xcd0] sm:$0xff]
    %v1350 = vld [vmem:[#allocation13 + $0xcd8] sm:$0xff]
    %v1351 = vld [vmem:[#allocation13 + $0xce0] sm:$0xff]
    %v1352 = vld [vmem:[#allocation13 + $0xce8] sm:$0xff]
    %v1353 = vld [vmem:[#allocation13 + $0xcf0] sm:$0xff]
    %v1354 = vld [vmem:[#allocation13 + $0xcf8] sm:$0xff]
    %v1355 = vld [vmem:[#allocation13 + $0xd00] sm:$0xff]
    %v1356 = vld [vmem:[#allocation13 + $0xd08] sm:$0xff]
    %v1357 = vld [vmem:[#allocation13 + $0xd10] sm:$0xff]
    %v1358 = vld [vmem:[#allocation13 + $0xd18] sm:$0xff]
    %v1359 = vld [vmem:[#allocation13 + $0xd20] sm:$0xff]
    %v1360 = vld [vmem:[#allocation13 + $0xd28] sm:$0xff]
    %v1361 = vld [vmem:[#allocation13 + $0xd30] sm:$0xff]
    %v1362 = vld [vmem:[#allocation13 + $0xd38] sm:$0xff]
    %v1363 = vld [vmem:[#allocation13 + $0xd40] sm:$0xff]
    %v1364 = vld [vmem:[#allocation13 + $0xd48] sm:$0xff]
    %v1365 = vld [vmem:[#allocation13 + $0xd50] sm:$0xff]
    %v1366 = vld [vmem:[#allocation13 + $0xd58] sm:$0xff]
    %v1367 = vld [vmem:[#allocation13 + $0xd60] sm:$0xff]
    %v1368 = vld [vmem:[#allocation13 + $0xd68] sm:$0xff]
    %v1369 = vld [vmem:[#allocation13 + $0xd70] sm:$0xff]
    %v1370 = vld [vmem:[#allocation13 + $0xd78] sm:$0xff]
    %v1371 = vld [vmem:[#allocation13 + $0xd80] sm:$0xff]
    %v1372 = vld [vmem:[#allocation13 + $0xd88] sm:$0xff]
    %v1373 = vld [vmem:[#allocation13 + $0xd90] sm:$0xff]
    %v1374 = vld [vmem:[#allocation13 + $0xd98] sm:$0xff]
    %v1375 = vld [vmem:[#allocation13 + $0xda0] sm:$0xff]
    %v1376 = vld [vmem:[#allocation13 + $0xda8] sm:$0xff]
    %v1377 = vld [vmem:[#allocation13 + $0xdb0] sm:$0xff]
    %v1378 = vld [vmem:[#allocation13 + $0xdb8] sm:$0xff]
    %v1379 = vld [vmem:[#allocation13 + $0xdc0] sm:$0xff]
    %v1380 = vld [vmem:[#allocation13 + $0xdc8] sm:$0xff]
    %v1381 = vld [vmem:[#allocation13 + $0xdd0] sm:$0xff]
    %v1382 = vld [vmem:[#allocation13 + $0xdd8] sm:$0xff]
    %v1383 = vld [vmem:[#allocation13 + $0xde0] sm:$0xff]
    %v1384 = vld [vmem:[#allocation13 + $0xde8] sm:$0xff]
    %v1385 = vld [vmem:[#allocation13 + $0xdf0] sm:$0xff]
    %v1386 = vld [vmem:[#allocation13 + $0xdf8] sm:$0xff]
    %v1387 = vld [vmem:[#allocation13 + $0xe00] sm:$0xff]
    %v1388 = vld [vmem:[#allocation13 + $0xe08] sm:$0xff]
    %v1389 = vld [vmem:[#allocation13 + $0xe10] sm:$0xff]
    %v1390 = vld [vmem:[#allocation13 + $0xe18] sm:$0xff]
    %v1391 = vld [vmem:[#allocation13 + $0xe20] sm:$0xff]
    %v1392 = vld [vmem:[#allocation13 + $0xe28] sm:$0xff]
    %v1393 = vld [vmem:[#allocation13 + $0xe30] sm:$0xff]
    %v1394 = vld [vmem:[#allocation13 + $0xe38] sm:$0xff]
    %v1395 = vld [vmem:[#allocation13 + $0xe40] sm:$0xff]
    %v1396 = vld [vmem:[#allocation13 + $0xe48] sm:$0xff]
    %v1397 = vld [vmem:[#allocation13 + $0xe50] sm:$0xff]
    %v1398 = vld [vmem:[#allocation13 + $0xe58] sm:$0xff]
    %v1399 = vld [vmem:[#allocation13 + $0xe60] sm:$0xff]
    %v1400 = vld [vmem:[#allocation13 + $0xe68] sm:$0xff]
    %v1401 = vld [vmem:[#allocation13 + $0xe70] sm:$0xff]
    %v1402 = vld [vmem:[#allocation13 + $0xe78] sm:$0xff]
    %v1403 = vld [vmem:[#allocation13 + $0xe80] sm:$0xff]
    %v1404 = vld [vmem:[#allocation13 + $0xe88] sm:$0xff]
    %v1405 = vld [vmem:[#allocation13 + $0xe90] sm:$0xff]
    %v1406 = vld [vmem:[#allocation13 + $0xe98] sm:$0xff]
    %v1407 = vld [vmem:[#allocation13 + $0xea0] sm:$0xff]
    %v1408 = vld [vmem:[#allocation13 + $0xea8] sm:$0xff]
    %v1409 = vld [vmem:[#allocation13 + $0xeb0] sm:$0xff]
    %v1410 = vld [vmem:[#allocation13 + $0xeb8] sm:$0xff]
    %v1411 = vld [vmem:[#allocation13 + $0xec0] sm:$0xff]
    %v1412 = vld [vmem:[#allocation13 + $0xec8] sm:$0xff]
    %v1413 = vld [vmem:[#allocation13 + $0xed0] sm:$0xff]
    %v1414 = vld [vmem:[#allocation13 + $0xed8] sm:$0xff]
    %v1415 = vld [vmem:[#allocation13 + $0xee0] sm:$0xff]
    %v1416 = vld [vmem:[#allocation13 + $0xee8] sm:$0xff]
    %v1417 = vld [vmem:[#allocation13 + $0xef0] sm:$0xff]
    %v1418 = vld [vmem:[#allocation13 + $0xef8] sm:$0xff]
    %v1419 = vld [vmem:[#allocation13 + $0xf00] sm:$0xff]
    %v1420 = vld [vmem:[#allocation13 + $0xf08] sm:$0xff]
    %v1421 = vld [vmem:[#allocation13 + $0xf10] sm:$0xff]
    %v1422 = vld [vmem:[#allocation13 + $0xf18] sm:$0xff]
    %v1423 = vld [vmem:[#allocation13 + $0xf20] sm:$0xff]
    %v1424 = vld [vmem:[#allocation13 + $0xf28] sm:$0xff]
    %v1425 = vld [vmem:[#allocation13 + $0xf30] sm:$0xff]
    %v1426 = vld [vmem:[#allocation13 + $0xf38] sm:$0xff]
    %v1427 = vld [vmem:[#allocation13 + $0xf40] sm:$0xff]
    %v1428 = vld [vmem:[#allocation13 + $0xf48] sm:$0xff]
    %v1429 = vld [vmem:[#allocation13 + $0xf50] sm:$0xff]
    %v1430 = vld [vmem:[#allocation13 + $0xf58] sm:$0xff]
    %v1431 = vld [vmem:[#allocation13 + $0xf60] sm:$0xff]
    %v1432 = vld [vmem:[#allocation13 + $0xf68] sm:$0xff]
    %v1433 = vld [vmem:[#allocation13 + $0xf70] sm:$0xff]
    %v1434 = vld [vmem:[#allocation13 + $0xf78] sm:$0xff]
    %v1435 = vld [vmem:[#allocation13 + $0xf80] sm:$0xff]
    %v1436 = vld [vmem:[#allocation13 + $0xf88] sm:$0xff]
    %v1437 = vld [vmem:[#allocation13 + $0xf90] sm:$0xff]
    %v1438 = vld [vmem:[#allocation13 + $0xf98] sm:$0xff]
    %v1439 = vld [vmem:[#allocation13 + $0xfa0] sm:$0xff]
    %v1440 = vld [vmem:[#allocation13 + $0xfa8] sm:$0xff]
    %v1441 = vld [vmem:[#allocation13 + $0xfb0] sm:$0xff]
    %v1442 = vld [vmem:[#allocation13 + $0xfb8] sm:$0xff]
    %v1443 = vld [vmem:[#allocation13 + $0xfc0] sm:$0xff]
    %v1444 = vld [vmem:[#allocation13 + $0xfc8] sm:$0xff]
    %v1445 = vld [vmem:[#allocation13 + $0xfd0] sm:$0xff]
    %v1446 = vld [vmem:[#allocation13 + $0xfd8] sm:$0xff]
    %v1447 = vld [vmem:[#allocation13 + $0xfe0] sm:$0xff]
    %v1448 = vld [vmem:[#allocation13 + $0xfe8] sm:$0xff]
    %v1449 = vld [vmem:[#allocation13 + $0xff0] sm:$0xff]
    %v1450 = vld [vmem:[#allocation13 + $0xff8] sm:$0xff]
    %v1451 = vld [vmem:[#allocation13 + $0x1000] sm:$0xff]
    %v1452 = vld [vmem:[#allocation13 + $0x1008] sm:$0xff]
    %v1453 = vld [vmem:[#allocation13 + $0x1010] sm:$0xff]
    %v1454 = vld [vmem:[#allocation13 + $0x1018] sm:$0xff]
    %v1455 = vld [vmem:[#allocation13 + $0x1020] sm:$0xff]
    %v1456 = vld [vmem:[#allocation13 + $0x1028] sm:$0xff]
    %v1457 = vld [vmem:[#allocation13 + $0x1030] sm:$0xff]
    %v1458 = vld [vmem:[#allocation13 + $0x1038] sm:$0xff]
    %v1459 = vld [vmem:[#allocation13 + $0x1040] sm:$0xff]
    %v1460 = vld [vmem:[#allocation13 + $0x1048] sm:$0xff]
    %v1461 = vld [vmem:[#allocation13 + $0x1050] sm:$0xff]
    %v1462 = vld [vmem:[#allocation13 + $0x1058] sm:$0xff]
    %v1463 = vld [vmem:[#allocation13 + $0x1060] sm:$0xff]
    %v1464 = vld [vmem:[#allocation13 + $0x1068] sm:$0xff]
    %v1465 = vld [vmem:[#allocation13 + $0x1070] sm:$0xff]
    %v1466 = vld [vmem:[#allocation13 + $0x1078] sm:$0xff]
    %v1467 = vld [vmem:[#allocation13 + $0x1080] sm:$0xff]
    %v1468 = vld [vmem:[#allocation13 + $0x1088] sm:$0xff]
    %v1469 = vld [vmem:[#allocation13 + $0x1090] sm:$0xff]
    %v1470 = vld [vmem:[#allocation13 + $0x1098] sm:$0xff]
    %v1471 = vld [vmem:[#allocation13 + $0x10a0] sm:$0xff]
    %v1472 = vld [vmem:[#allocation13 + $0x10a8] sm:$0xff]
    %v1473 = vld [vmem:[#allocation13 + $0x10b0] sm:$0xff]
    %v1474 = vld [vmem:[#allocation13 + $0x10b8] sm:$0xff]
    %v1475 = vld [vmem:[#allocation13 + $0x10c0] sm:$0xff]
    %v1476 = vld [vmem:[#allocation13 + $0x10c8] sm:$0xff]
    %v1477 = vld [vmem:[#allocation13 + $0x10d0] sm:$0xff]
    %v1478 = vld [vmem:[#allocation13 + $0x10d8] sm:$0xff]
    %v1479 = vld [vmem:[#allocation13 + $0x10e0] sm:$0xff]
    %v1480 = vld [vmem:[#allocation13 + $0x10e8] sm:$0xff]
    %v1481 = vld [vmem:[#allocation13 + $0x10f0] sm:$0xff]
    %v1482 = vld [vmem:[#allocation13 + $0x10f8] sm:$0xff]
    %v1483 = vld [vmem:[#allocation13 + $0x1100] sm:$0xff]
    %v1484 = vld [vmem:[#allocation13 + $0x1108] sm:$0xff]
    %v1485 = vld [vmem:[#allocation13 + $0x1110] sm:$0xff]
    %v1486 = vld [vmem:[#allocation13 + $0x1118] sm:$0xff]
    %v1487 = vld [vmem:[#allocation13 + $0x1120] sm:$0xff]
    %v1488 = vld [vmem:[#allocation13 + $0x1128] sm:$0xff]
    %v1489 = vld [vmem:[#allocation13 + $0x1130] sm:$0xff]
    %v1490 = vld [vmem:[#allocation13 + $0x1138] sm:$0xff]
    %v1491 = vld [vmem:[#allocation13 + $0x1140] sm:$0xff]
    %v1492 = vld [vmem:[#allocation13 + $0x1148] sm:$0xff]
    %v1493 = vld [vmem:[#allocation13 + $0x1150] sm:$0xff]
    %v1494 = vld [vmem:[#allocation13 + $0x1158] sm:$0xff]
    %v1495 = vld [vmem:[#allocation13 + $0x1160] sm:$0xff]
    %v1496 = vld [vmem:[#allocation13 + $0x1168] sm:$0xff]
    %v1497 = vld [vmem:[#allocation13 + $0x1170] sm:$0xff]
    %v1498 = vld [vmem:[#allocation13 + $0x1178] sm:$0xff]
    %v1499 = vld [vmem:[#allocation13 + $0x1180] sm:$0xff]
    %v1500 = vld [vmem:[#allocation13 + $0x1188] sm:$0xff]
    %v1501 = vld [vmem:[#allocation13 + $0x1190] sm:$0xff]
    %v1502 = vld [vmem:[#allocation13 + $0x1198] sm:$0xff]
    %v1503 = vld [vmem:[#allocation13 + $0x11a0] sm:$0xff]
    %v1504 = vld [vmem:[#allocation13 + $0x11a8] sm:$0xff]
    %v1505 = vld [vmem:[#allocation13 + $0x11b0] sm:$0xff]
    %v1506 = vld [vmem:[#allocation13 + $0x11b8] sm:$0xff]
    %v1507 = vld [vmem:[#allocation13 + $0x11c0] sm:$0xff]
    %v1508 = vld [vmem:[#allocation13 + $0x11c8] sm:$0xff]
    %v1509 = vld [vmem:[#allocation13 + $0x11d0] sm:$0xff]
    %v1510 = vld [vmem:[#allocation13 + $0x11d8] sm:$0xff]
    %v1511 = vld [vmem:[#allocation13 + $0x11e0] sm:$0xff]
    %v1512 = vld [vmem:[#allocation13 + $0x11e8] sm:$0xff]
    %v1513 = vld [vmem:[#allocation13 + $0x11f0] sm:$0xff]
    %v1514 = vld [vmem:[#allocation13 + $0x11f8] sm:$0xff]
    %v1515 = vld [vmem:[#allocation13 + $0x1200] sm:$0xff]
    %v1516 = vld [vmem:[#allocation13 + $0x1208] sm:$0xff]
    %v1517 = vld [vmem:[#allocation13 + $0x1210] sm:$0xff]
    %v1518 = vld [vmem:[#allocation13 + $0x1218] sm:$0xff]
    %v1519 = vld [vmem:[#allocation13 + $0x1220] sm:$0xff]
    %v1520 = vld [vmem:[#allocation13 + $0x1228] sm:$0xff]
    %v1521 = vld [vmem:[#allocation13 + $0x1230] sm:$0xff]
    %v1522 = vld [vmem:[#allocation13 + $0x1238] sm:$0xff]
    %v1523 = vld [vmem:[#allocation13 + $0x1240] sm:$0xff]
    %v1524 = vld [vmem:[#allocation13 + $0x1248] sm:$0xff]
    %v1525 = vld [vmem:[#allocation13 + $0x1250] sm:$0xff]
    %v1526 = vld [vmem:[#allocation13 + $0x1258] sm:$0xff]
    %v1527 = vld [vmem:[#allocation13 + $0x1260] sm:$0xff]
    %v1528 = vld [vmem:[#allocation13 + $0x1268] sm:$0xff]
    %v1529 = vld [vmem:[#allocation13 + $0x1270] sm:$0xff]
    %v1530 = vld [vmem:[#allocation13 + $0x1278] sm:$0xff]
    %v1531 = vld [vmem:[#allocation13 + $0x1280] sm:$0xff]
    %v1532 = vld [vmem:[#allocation13 + $0x1288] sm:$0xff]
    %v1533 = vld [vmem:[#allocation13 + $0x1290] sm:$0xff]
    %v1534 = vld [vmem:[#allocation13 + $0x1298] sm:$0xff]
    %v1535 = vld [vmem:[#allocation13 + $0x12a0] sm:$0xff]
    %v1536 = vld [vmem:[#allocation13 + $0x12a8] sm:$0xff]
    %v1537 = vld [vmem:[#allocation13 + $0x12b0] sm:$0xff]
    %v1538 = vld [vmem:[#allocation13 + $0x12b8] sm:$0xff]
    %v1539 = vld [vmem:[#allocation13 + $0x12c0] sm:$0xff]
    %v1540 = vld [vmem:[#allocation13 + $0x12c8] sm:$0xff]
    %v1541 = vld [vmem:[#allocation13 + $0x12d0] sm:$0xff]
    %v1542 = vld [vmem:[#allocation13 + $0x12d8] sm:$0xff]
    %v1543 = vld [vmem:[#allocation13 + $0x12e0] sm:$0xff]
    %v1544 = vld [vmem:[#allocation13 + $0x12e8] sm:$0xff]
    %v1545 = vld [vmem:[#allocation13 + $0x12f0] sm:$0xff]
    %v1546 = vld [vmem:[#allocation13 + $0x12f8] sm:$0xff]
    %v1547 = vld [vmem:[#allocation13 + $0x1300] sm:$0xff]
    %v1548 = vld [vmem:[#allocation13 + $0x1308] sm:$0xff]
    %v1549 = vld [vmem:[#allocation13 + $0x1310] sm:$0xff]
    %v1550 = vld [vmem:[#allocation13 + $0x1318] sm:$0xff]
    %v1551 = vld [vmem:[#allocation13 + $0x1320] sm:$0xff]
    %v1552 = vld [vmem:[#allocation13 + $0x1328] sm:$0xff]
    %v1553 = vld [vmem:[#allocation13 + $0x1330] sm:$0xff]
    %v1554 = vld [vmem:[#allocation13 + $0x1338] sm:$0xff]
    %v1555 = vld [vmem:[#allocation13 + $0x1340] sm:$0xff]
    %v1556 = vld [vmem:[#allocation13 + $0x1348] sm:$0xff]
    %v1557 = vld [vmem:[#allocation13 + $0x1350] sm:$0xff]
    %v1558 = vld [vmem:[#allocation13 + $0x1358] sm:$0xff]
    %v1559 = vld [vmem:[#allocation13 + $0x1360] sm:$0xff]
    %v1560 = vld [vmem:[#allocation13 + $0x1368] sm:$0xff]
    %v1561 = vld [vmem:[#allocation13 + $0x1370] sm:$0xff]
    %v1562 = vld [vmem:[#allocation13 + $0x1378] sm:$0xff]
    %v1563 = vld [vmem:[#allocation13 + $0x1380] sm:$0xff]
    %v1564 = vld [vmem:[#allocation13 + $0x1388] sm:$0xff]
    %v1565 = vld [vmem:[#allocation13 + $0x1390] sm:$0xff]
    %v1566 = vld [vmem:[#allocation13 + $0x1398] sm:$0xff]
    %v1567 = vld [vmem:[#allocation13 + $0x13a0] sm:$0xff]
    %v1568 = vld [vmem:[#allocation13 + $0x13a8] sm:$0xff]
    %v1569 = vld [vmem:[#allocation13 + $0x13b0] sm:$0xff]
    %v1570 = vld [vmem:[#allocation13 + $0x13b8] sm:$0xff]
    %v1571 = vld [vmem:[#allocation13 + $0x13c0] sm:$0xff]
    %v1572 = vld [vmem:[#allocation13 + $0x13c8] sm:$0xff]
    %v1573 = vld [vmem:[#allocation13 + $0x13d0] sm:$0xff]
    %v1574 = vld [vmem:[#allocation13 + $0x13d8] sm:$0xff]
    %v1575 = vld [vmem:[#allocation13 + $0x13e0] sm:$0xff]
    %v1576 = vld [vmem:[#allocation13 + $0x13e8] sm:$0xff]
    %v1577 = vld [vmem:[#allocation13 + $0x13f0] sm:$0xff]
    %v1578 = vld [vmem:[#allocation13 + $0x13f8] sm:$0xff]
    %v1579 = vld [vmem:[#allocation13 + $0x1400] sm:$0xff]
    %v1580 = vld [vmem:[#allocation13 + $0x1408] sm:$0xff]
    %v1581 = vld [vmem:[#allocation13 + $0x1410] sm:$0xff]
    %v1582 = vld [vmem:[#allocation13 + $0x1418] sm:$0xff]
    %v1583 = vld [vmem:[#allocation13 + $0x1420] sm:$0xff]
    %v1584 = vld [vmem:[#allocation13 + $0x1428] sm:$0xff]
    %v1585 = vld [vmem:[#allocation13 + $0x1430] sm:$0xff]
    %v1586 = vld [vmem:[#allocation13 + $0x1438] sm:$0xff]
    %v1587 = vld [vmem:[#allocation13 + $0x1440] sm:$0xff]
    %v1588 = vld [vmem:[#allocation13 + $0x1448] sm:$0xff]
    %v1589 = vld [vmem:[#allocation13 + $0x1450] sm:$0xff]
    %v1590 = vld [vmem:[#allocation13 + $0x1458] sm:$0xff]
    %v1591 = vld [vmem:[#allocation13 + $0x1460] sm:$0xff]
    %v1592 = vld [vmem:[#allocation13 + $0x1468] sm:$0xff]
    %v1593 = vld [vmem:[#allocation13 + $0x1470] sm:$0xff]
    %v1594 = vld [vmem:[#allocation13 + $0x1478] sm:$0xff]
    %v1595 = vld [vmem:[#allocation13 + $0x1480] sm:$0xff]
    %v1596 = vld [vmem:[#allocation13 + $0x1488] sm:$0xff]
    %v1597 = vld [vmem:[#allocation13 + $0x1490] sm:$0xff]
    %v1598 = vld [vmem:[#allocation13 + $0x1498] sm:$0xff]
    %v1599 = vld [vmem:[#allocation13 + $0x14a0] sm:$0xff]
    %v1600 = vld [vmem:[#allocation13 + $0x14a8] sm:$0xff]
    %v1601 = vld [vmem:[#allocation13 + $0x14b0] sm:$0xff]
    %v1602 = vld [vmem:[#allocation13 + $0x14b8] sm:$0xff]
    %v1603 = vld [vmem:[#allocation13 + $0x14c0] sm:$0xff]
    %v1604 = vld [vmem:[#allocation13 + $0x14c8] sm:$0xff]
    %v1605 = vld [vmem:[#allocation13 + $0x14d0] sm:$0xff]
    %v1606 = vld [vmem:[#allocation13 + $0x14d8] sm:$0xff]
    %v1607 = vld [vmem:[#allocation13 + $0x14e0] sm:$0xff]
    %v1608 = vld [vmem:[#allocation13 + $0x14e8] sm:$0xff]
    %v1609 = vld [vmem:[#allocation13 + $0x14f0] sm:$0xff]
    %v1610 = vld [vmem:[#allocation13 + $0x14f8] sm:$0xff]
    %v1611 = vld [vmem:[#allocation13 + $0x1500] sm:$0xff]
    %v1612 = vld [vmem:[#allocation13 + $0x1508] sm:$0xff]
    %v1613 = vld [vmem:[#allocation13 + $0x1510] sm:$0xff]
    %v1614 = vld [vmem:[#allocation13 + $0x1518] sm:$0xff]
    %v1615 = vld [vmem:[#allocation13 + $0x1520] sm:$0xff]
    %v1616 = vld [vmem:[#allocation13 + $0x1528] sm:$0xff]
    %v1617 = vld [vmem:[#allocation13 + $0x1530] sm:$0xff]
    %v1618 = vld [vmem:[#allocation13 + $0x1538] sm:$0xff]
    %v1619 = vld [vmem:[#allocation13 + $0x1540] sm:$0xff]
    %v1620 = vld [vmem:[#allocation13 + $0x1548] sm:$0xff]
    %v1621 = vld [vmem:[#allocation13 + $0x1550] sm:$0xff]
    %v1622 = vld [vmem:[#allocation13 + $0x1558] sm:$0xff]
    %v1623 = vld [vmem:[#allocation13 + $0x1560] sm:$0xff]
    %v1624 = vld [vmem:[#allocation13 + $0x1568] sm:$0xff]
    %v1625 = vld [vmem:[#allocation13 + $0x1570] sm:$0xff]
    %v1626 = vld [vmem:[#allocation13 + $0x1578] sm:$0xff]
    %v1627 = vld [vmem:[#allocation13 + $0x1580] sm:$0xff]
    %v1628 = vld [vmem:[#allocation13 + $0x1588] sm:$0xff]
    %v1629 = vld [vmem:[#allocation13 + $0x1590] sm:$0xff]
    %v1630 = vld [vmem:[#allocation13 + $0x1598] sm:$0xff]
    %v1631 = vld [vmem:[#allocation13 + $0x15a0] sm:$0xff]
    %v1632 = vld [vmem:[#allocation13 + $0x15a8] sm:$0xff]
    %v1633 = vld [vmem:[#allocation13 + $0x15b0] sm:$0xff]
    %v1634 = vld [vmem:[#allocation13 + $0x15b8] sm:$0xff]
    %v1635 = vld [vmem:[#allocation13 + $0x15c0] sm:$0xff]
    %v1636 = vld [vmem:[#allocation13 + $0x15c8] sm:$0xff]
    %v1637 = vld [vmem:[#allocation13 + $0x15d0] sm:$0xff]
    %v1638 = vld [vmem:[#allocation13 + $0x15d8] sm:$0xff]
    %v1639 = vld [vmem:[#allocation13 + $0x15e0] sm:$0xff]
    %v1640 = vld [vmem:[#allocation13 + $0x15e8] sm:$0xff]
    %v1641 = vld [vmem:[#allocation13 + $0x15f0] sm:$0xff]
    %v1642 = vld [vmem:[#allocation13 + $0x15f8] sm:$0xff]
    %v1643 = vld [vmem:[#allocation13 + $0x1600] sm:$0xff]
    %v1644 = vld [vmem:[#allocation13 + $0x1608] sm:$0xff]
    %v1645 = vld [vmem:[#allocation13 + $0x1610] sm:$0xff]
    %v1646 = vld [vmem:[#allocation13 + $0x1618] sm:$0xff]
    %v1647 = vld [vmem:[#allocation13 + $0x1620] sm:$0xff]
    %v1648 = vld [vmem:[#allocation13 + $0x1628] sm:$0xff]
    %v1649 = vld [vmem:[#allocation13 + $0x1630] sm:$0xff]
    %v1650 = vld [vmem:[#allocation13 + $0x1638] sm:$0xff]
    %v1651 = vld [vmem:[#allocation13 + $0x1640] sm:$0xff]
    %v1652 = vld [vmem:[#allocation13 + $0x1648] sm:$0xff]
    %v1653 = vld [vmem:[#allocation13 + $0x1650] sm:$0xff]
    %v1654 = vld [vmem:[#allocation13 + $0x1658] sm:$0xff]
    %v1655 = vld [vmem:[#allocation13 + $0x1660] sm:$0xff]
    %v1656 = vld [vmem:[#allocation13 + $0x1668] sm:$0xff]
    %v1657 = vld [vmem:[#allocation13 + $0x1670] sm:$0xff]
    %v1658 = vld [vmem:[#allocation13 + $0x1678] sm:$0xff]
    %v1659 = vld [vmem:[#allocation13 + $0x1680] sm:$0xff]
    %v1660 = vld [vmem:[#allocation13 + $0x1688] sm:$0xff]
    %v1661 = vld [vmem:[#allocation13 + $0x1690] sm:$0xff]
    %v1662 = vld [vmem:[#allocation13 + $0x1698] sm:$0xff]
    %v1663 = vld [vmem:[#allocation13 + $0x16a0] sm:$0xff]
    %v1664 = vld [vmem:[#allocation13 + $0x16a8] sm:$0xff]
    %v1665 = vld [vmem:[#allocation13 + $0x16b0] sm:$0xff]
    %v1666 = vld [vmem:[#allocation13 + $0x16b8] sm:$0xff]
    %v1667 = vld [vmem:[#allocation13 + $0x16c0] sm:$0xff]
    %v1668 = vld [vmem:[#allocation13 + $0x16c8] sm:$0xff]
    %v1669 = vld [vmem:[#allocation13 + $0x16d0] sm:$0xff]
    %v1670 = vld [vmem:[#allocation13 + $0x16d8] sm:$0xff]
    %v1671 = vld [vmem:[#allocation13 + $0x16e0] sm:$0xff]
    %v1672 = vld [vmem:[#allocation13 + $0x16e8] sm:$0xff]
    %v1673 = vld [vmem:[#allocation13 + $0x16f0] sm:$0xff]
    %v1674 = vld [vmem:[#allocation13 + $0x16f8] sm:$0xff]
    %v1675 = vld [vmem:[#allocation13 + $0x1700] sm:$0xff]
    %v1676 = vld [vmem:[#allocation13 + $0x1708] sm:$0xff]
    %v1677 = vld [vmem:[#allocation13 + $0x1710] sm:$0xff]
    %v1678 = vld [vmem:[#allocation13 + $0x1718] sm:$0xff]
    %v1679 = vld [vmem:[#allocation13 + $0x1720] sm:$0xff]
    %v1680 = vld [vmem:[#allocation13 + $0x1728] sm:$0xff]
    %v1681 = vld [vmem:[#allocation13 + $0x1730] sm:$0xff]
    %v1682 = vld [vmem:[#allocation13 + $0x1738] sm:$0xff]
    %v1683 = vld [vmem:[#allocation13 + $0x1740] sm:$0xff]
    %v1684 = vld [vmem:[#allocation13 + $0x1748] sm:$0xff]
    %v1685 = vld [vmem:[#allocation13 + $0x1750] sm:$0xff]
    %v1686 = vld [vmem:[#allocation13 + $0x1758] sm:$0xff]
    %v1687 = vld [vmem:[#allocation13 + $0x1760] sm:$0xff]
    %v1688 = vld [vmem:[#allocation13 + $0x1768] sm:$0xff]
    %v1689 = vld [vmem:[#allocation13 + $0x1770] sm:$0xff]
    %v1690 = vld [vmem:[#allocation13 + $0x1778] sm:$0xff]
    %v1691 = vld [vmem:[#allocation13 + $0x1780] sm:$0xff]
    %v1692 = vld [vmem:[#allocation13 + $0x1788] sm:$0xff]
    %v1693 = vld [vmem:[#allocation13 + $0x1790] sm:$0xff]
    %v1694 = vld [vmem:[#allocation13 + $0x1798] sm:$0xff]
    %v1695 = vld [vmem:[#allocation13 + $0x17a0] sm:$0xff]
    %v1696 = vld [vmem:[#allocation13 + $0x17a8] sm:$0xff]
    %v1697 = vld [vmem:[#allocation13 + $0x17b0] sm:$0xff]
    %v1698 = vld [vmem:[#allocation13 + $0x17b8] sm:$0xff]
    %v1699 = vld [vmem:[#allocation13 + $0x17c0] sm:$0xff]
    %v1700 = vld [vmem:[#allocation13 + $0x17c8] sm:$0xff]
    %v1701 = vld [vmem:[#allocation13 + $0x17d0] sm:$0xff]
    %v1702 = vld [vmem:[#allocation13 + $0x17d8] sm:$0xff]
    %v1703 = vld [vmem:[#allocation13 + $0x17e0] sm:$0xff]
    %v1704 = vld [vmem:[#allocation13 + $0x17e8] sm:$0xff]
    %v1705 = vld [vmem:[#allocation13 + $0x17f0] sm:$0xff]
    %v1706 = vld [vmem:[#allocation13 + $0x17f8] sm:$0xff]
    %v1707 = vld [vmem:[#allocation13 + $0x1800] sm:$0xff]
    %v1708 = vld [vmem:[#allocation13 + $0x1808] sm:$0xff]
    %v1709 = vld [vmem:[#allocation13 + $0x1810] sm:$0xff]
    %v1710 = vld [vmem:[#allocation13 + $0x1818] sm:$0xff]
    %v1711 = vld [vmem:[#allocation13 + $0x1820] sm:$0xff]
    %v1712 = vld [vmem:[#allocation13 + $0x1828] sm:$0xff]
    %v1713 = vld [vmem:[#allocation13 + $0x1830] sm:$0xff]
    %v1714 = vld [vmem:[#allocation13 + $0x1838] sm:$0xff]
    %v1715 = vld [vmem:[#allocation13 + $0x1840] sm:$0xff]
    %v1716 = vld [vmem:[#allocation13 + $0x1848] sm:$0xff]
    %v1717 = vld [vmem:[#allocation13 + $0x1850] sm:$0xff]
    %v1718 = vld [vmem:[#allocation13 + $0x1858] sm:$0xff]
    %v1719 = vld [vmem:[#allocation13 + $0x1860] sm:$0xff]
    %v1720 = vld [vmem:[#allocation13 + $0x1868] sm:$0xff]
    %v1721 = vld [vmem:[#allocation13 + $0x1870] sm:$0xff]
    %v1722 = vld [vmem:[#allocation13 + $0x1878] sm:$0xff]
    %v1723 = vld [vmem:[#allocation13 + $0x1880] sm:$0xff]
    %v1724 = vld [vmem:[#allocation13 + $0x1888] sm:$0xff]
    %v1725 = vld [vmem:[#allocation13 + $0x1890] sm:$0xff]
    %v1726 = vld [vmem:[#allocation13 + $0x1898] sm:$0xff]
    %v1727 = vld [vmem:[#allocation13 + $0x18a0] sm:$0xff]
    %v1728 = vld [vmem:[#allocation13 + $0x18a8] sm:$0xff]
    %v1729 = vld [vmem:[#allocation13 + $0x18b0] sm:$0xff]
    %v1730 = vld [vmem:[#allocation13 + $0x18b8] sm:$0xff]
    %v1731 = vld [vmem:[#allocation13 + $0x18c0] sm:$0xff]
    %v1732 = vld [vmem:[#allocation13 + $0x18c8] sm:$0xff]
    %v1733 = vld [vmem:[#allocation13 + $0x18d0] sm:$0xff]
    %v1734 = vld [vmem:[#allocation13 + $0x18d8] sm:$0xff]
    %v1735 = vld [vmem:[#allocation13 + $0x18e0] sm:$0xff]
    %v1736 = vld [vmem:[#allocation13 + $0x18e8] sm:$0xff]
    %v1737 = vld [vmem:[#allocation13 + $0x18f0] sm:$0xff]
    %v1738 = vld [vmem:[#allocation13 + $0x18f8] sm:$0xff]
    %v1739 = vld [vmem:[#allocation13 + $0x1900] sm:$0xff]
    %v1740 = vld [vmem:[#allocation13 + $0x1908] sm:$0xff]
    %v1741 = vld [vmem:[#allocation13 + $0x1910] sm:$0xff]
    %v1742 = vld [vmem:[#allocation13 + $0x1918] sm:$0xff]
    %v1743 = vld [vmem:[#allocation13 + $0x1920] sm:$0xff]
    %v1744 = vld [vmem:[#allocation13 + $0x1928] sm:$0xff]
    %v1745 = vld [vmem:[#allocation13 + $0x1930] sm:$0xff]
    %v1746 = vld [vmem:[#allocation13 + $0x1938] sm:$0xff]
    %v1747 = vld [vmem:[#allocation13 + $0x1940] sm:$0xff]
    %v1748 = vld [vmem:[#allocation13 + $0x1948] sm:$0xff]
    %v1749 = vld [vmem:[#allocation13 + $0x1950] sm:$0xff]
    %v1750 = vld [vmem:[#allocation13 + $0x1958] sm:$0xff]
    %v1751 = vld [vmem:[#allocation13 + $0x1960] sm:$0xff]
    %v1752 = vld [vmem:[#allocation13 + $0x1968] sm:$0xff]
    %v1753 = vld [vmem:[#allocation13 + $0x1970] sm:$0xff]
    %v1754 = vld [vmem:[#allocation13 + $0x1978] sm:$0xff]
    %v1755 = vld [vmem:[#allocation13 + $0x1980] sm:$0xff]
    %v1756 = vld [vmem:[#allocation13 + $0x1988] sm:$0xff]
    %v1757 = vld [vmem:[#allocation13 + $0x1990] sm:$0xff]
    %v1758 = vld [vmem:[#allocation13 + $0x1998] sm:$0xff]
    %v1759 = vld [vmem:[#allocation13 + $0x19a0] sm:$0xff]
    %v1760 = vld [vmem:[#allocation13 + $0x19a8] sm:$0xff]
    %v1761 = vld [vmem:[#allocation13 + $0x19b0] sm:$0xff]
    %v1762 = vld [vmem:[#allocation13 + $0x19b8] sm:$0xff]
    %v1763 = vld [vmem:[#allocation13 + $0x19c0] sm:$0xff]
    %v1764 = vld [vmem:[#allocation13 + $0x19c8] sm:$0xff]
    %v1765 = vld [vmem:[#allocation13 + $0x19d0] sm:$0xff]
    %v1766 = vld [vmem:[#allocation13 + $0x19d8] sm:$0xff]
    %v1767 = vld [vmem:[#allocation13 + $0x19e0] sm:$0xff]
    %v1768 = vld [vmem:[#allocation13 + $0x19e8] sm:$0xff]
    %v1769 = vld [vmem:[#allocation13 + $0x19f0] sm:$0xff]
    %v1770 = vld [vmem:[#allocation13 + $0x19f8] sm:$0xff]
    %v1771 = vld [vmem:[#allocation13 + $0x1a00] sm:$0xff]
    %v1772 = vld [vmem:[#allocation13 + $0x1a08] sm:$0xff]
    %v1773 = vld [vmem:[#allocation13 + $0x1a10] sm:$0xff]
    %v1774 = vld [vmem:[#allocation13 + $0x1a18] sm:$0xff]
    %v1775 = vld [vmem:[#allocation13 + $0x1a20] sm:$0xff]
    %v1776 = vld [vmem:[#allocation13 + $0x1a28] sm:$0xff]
    %v1777 = vld [vmem:[#allocation13 + $0x1a30] sm:$0xff]
    %v1778 = vld [vmem:[#allocation13 + $0x1a38] sm:$0xff]
    %v1779 = vld [vmem:[#allocation13 + $0x1a40] sm:$0xff]
    %v1780 = vld [vmem:[#allocation13 + $0x1a48] sm:$0xff]
    %v1781 = vld [vmem:[#allocation13 + $0x1a50] sm:$0xff]
    %v1782 = vld [vmem:[#allocation13 + $0x1a58] sm:$0xff]
    %v1783 = vld [vmem:[#allocation13 + $0x1a60] sm:$0xff]
    %v1784 = vld [vmem:[#allocation13 + $0x1a68] sm:$0xff]
    %v1785 = vld [vmem:[#allocation13 + $0x1a70] sm:$0xff]
    %v1786 = vld [vmem:[#allocation13 + $0x1a78] sm:$0xff]
    %v1787 = vld [vmem:[#allocation13 + $0x1a80] sm:$0xff]
    %v1788 = vld [vmem:[#allocation13 + $0x1a88] sm:$0xff]
    %v1789 = vld [vmem:[#allocation13 + $0x1a90] sm:$0xff]
    %v1790 = vld [vmem:[#allocation13 + $0x1a98] sm:$0xff]
    %v1791 = vld [vmem:[#allocation13 + $0x1aa0] sm:$0xff]
    %v1792 = vld [vmem:[#allocation13 + $0x1aa8] sm:$0xff]
    %v1793 = vld [vmem:[#allocation13 + $0x1ab0] sm:$0xff]
    %v1794 = vld [vmem:[#allocation13 + $0x1ab8] sm:$0xff]
    %v1795 = vld [vmem:[#allocation13 + $0x1ac0] sm:$0xff]
    %v1796 = vld [vmem:[#allocation13 + $0x1ac8] sm:$0xff]
    %v1797 = vld [vmem:[#allocation13 + $0x1ad0] sm:$0xff]
    %v1798 = vld [vmem:[#allocation13 + $0x1ad8] sm:$0xff]
    %v1799 = vld [vmem:[#allocation13 + $0x1ae0] sm:$0xff]
    %v1800 = vld [vmem:[#allocation13 + $0x1ae8] sm:$0xff]
    %v1801 = vld [vmem:[#allocation13 + $0x1af0] sm:$0xff]
    %v1802 = vld [vmem:[#allocation13 + $0x1af8] sm:$0xff]
    %v1803 = vld [vmem:[#allocation13 + $0x1b00] sm:$0xff]
    %v1804 = vld [vmem:[#allocation13 + $0x1b08] sm:$0xff]
    %v1805 = vld [vmem:[#allocation13 + $0x1b10] sm:$0xff]
    %v1806 = vld [vmem:[#allocation13 + $0x1b18] sm:$0xff]
    %v1807 = vld [vmem:[#allocation13 + $0x1b20] sm:$0xff]
    %v1808 = vld [vmem:[#allocation13 + $0x1b28] sm:$0xff]
    %v1809 = vld [vmem:[#allocation13 + $0x1b30] sm:$0xff]
    %v1810 = vld [vmem:[#allocation13 + $0x1b38] sm:$0xff]
    %v1811 = vld [vmem:[#allocation13 + $0x1b40] sm:$0xff]
    %v1812 = vld [vmem:[#allocation13 + $0x1b48] sm:$0xff]
    %v1813 = vld [vmem:[#allocation13 + $0x1b50] sm:$0xff]
    %v1814 = vld [vmem:[#allocation13 + $0x1b58] sm:$0xff]
    %v1815 = vld [vmem:[#allocation13 + $0x1b60] sm:$0xff]
    %v1816 = vld [vmem:[#allocation13 + $0x1b68] sm:$0xff]
    %v1817 = vld [vmem:[#allocation13 + $0x1b70] sm:$0xff]
    %v1818 = vld [vmem:[#allocation13 + $0x1b78] sm:$0xff]
    %v1819 = vld [vmem:[#allocation13 + $0x1b80] sm:$0xff]
    %v1820 = vld [vmem:[#allocation13 + $0x1b88] sm:$0xff]
    %v1821 = vld [vmem:[#allocation13 + $0x1b90] sm:$0xff]
    %v1822 = vld [vmem:[#allocation13 + $0x1b98] sm:$0xff]
    %v1823 = vld [vmem:[#allocation13 + $0x1ba0] sm:$0xff]
    %v1824 = vld [vmem:[#allocation13 + $0x1ba8] sm:$0xff]
    %v1825 = vld [vmem:[#allocation13 + $0x1bb0] sm:$0xff]
    %v1826 = vld [vmem:[#allocation13 + $0x1bb8] sm:$0xff]
    %v1827 = vld [vmem:[#allocation13 + $0x1bc0] sm:$0xff]
    %v1828 = vld [vmem:[#allocation13 + $0x1bc8] sm:$0xff]
    %v1829 = vld [vmem:[#allocation13 + $0x1bd0] sm:$0xff]
    %v1830 = vld [vmem:[#allocation13 + $0x1bd8] sm:$0xff]
    %v1831 = vld [vmem:[#allocation13 + $0x1be0] sm:$0xff]
    %v1832 = vld [vmem:[#allocation13 + $0x1be8] sm:$0xff]
    %v1833 = vld [vmem:[#allocation13 + $0x1bf0] sm:$0xff]
    %v1834 = vld [vmem:[#allocation13 + $0x1bf8] sm:$0xff]
    %v1835 = vld [vmem:[#allocation13 + $0x1c00] sm:$0xff]
    %v1836 = vld [vmem:[#allocation13 + $0x1c08] sm:$0xff]
    %v1837 = vld [vmem:[#allocation13 + $0x1c10] sm:$0xff]
    %v1838 = vld [vmem:[#allocation13 + $0x1c18] sm:$0xff]
    %v1839 = vld [vmem:[#allocation13 + $0x1c20] sm:$0xff]
    %v1840 = vld [vmem:[#allocation13 + $0x1c28] sm:$0xff]
    %v1841 = vld [vmem:[#allocation13 + $0x1c30] sm:$0xff]
    %v1842 = vld [vmem:[#allocation13 + $0x1c38] sm:$0xff]
    %v1843 = vld [vmem:[#allocation13 + $0x1c40] sm:$0xff]
    %v1844 = vld [vmem:[#allocation13 + $0x1c48] sm:$0xff]
    %v1845 = vld [vmem:[#allocation13 + $0x1c50] sm:$0xff]
    %v1846 = vld [vmem:[#allocation13 + $0x1c58] sm:$0xff]
    %v1847 = vld [vmem:[#allocation13 + $0x1c60] sm:$0xff]
    %v1848 = vld [vmem:[#allocation13 + $0x1c68] sm:$0xff]
    %v1849 = vld [vmem:[#allocation13 + $0x1c70] sm:$0xff]
    %v1850 = vld [vmem:[#allocation13 + $0x1c78] sm:$0xff]
    %v1851 = vld [vmem:[#allocation13 + $0x1c80] sm:$0xff]
    %v1852 = vld [vmem:[#allocation13 + $0x1c88] sm:$0xff]
    %v1853 = vld [vmem:[#allocation13 + $0x1c90] sm:$0xff]
    %v1854 = vld [vmem:[#allocation13 + $0x1c98] sm:$0xff]
    %v1855 = vld [vmem:[#allocation13 + $0x1ca0] sm:$0xff]
    %v1856 = vld [vmem:[#allocation13 + $0x1ca8] sm:$0xff]
    %v1857 = vld [vmem:[#allocation13 + $0x1cb0] sm:$0xff]
    %v1858 = vld [vmem:[#allocation13 + $0x1cb8] sm:$0xff]
    %v1859 = vld [vmem:[#allocation13 + $0x1cc0] sm:$0xff]
    %v1860 = vld [vmem:[#allocation13 + $0x1cc8] sm:$0xff]
    %v1861 = vld [vmem:[#allocation13 + $0x1cd0] sm:$0xff]
    %v1862 = vld [vmem:[#allocation13 + $0x1cd8] sm:$0xff]
    %v1863 = vld [vmem:[#allocation13 + $0x1ce0] sm:$0xff]
    %v1864 = vld [vmem:[#allocation13 + $0x1ce8] sm:$0xff]
    %v1865 = vld [vmem:[#allocation13 + $0x1cf0] sm:$0xff]
    %v1866 = vld [vmem:[#allocation13 + $0x1cf8] sm:$0xff]
    %v1867 = vld [vmem:[#allocation13 + $0x1d00] sm:$0xff]
    %v1868 = vld [vmem:[#allocation13 + $0x1d08] sm:$0xff]
    %v1869 = vld [vmem:[#allocation13 + $0x1d10] sm:$0xff]
    %v1870 = vld [vmem:[#allocation13 + $0x1d18] sm:$0xff]
    %v1871 = vld [vmem:[#allocation13 + $0x1d20] sm:$0xff]
    %v1872 = vld [vmem:[#allocation13 + $0x1d28] sm:$0xff]
    %v1873 = vld [vmem:[#allocation13 + $0x1d30] sm:$0xff]
    %v1874 = vld [vmem:[#allocation13 + $0x1d38] sm:$0xff]
    %v1875 = vld [vmem:[#allocation13 + $0x1d40] sm:$0xff]
    %v1876 = vld [vmem:[#allocation13 + $0x1d48] sm:$0xff]
    %v1877 = vld [vmem:[#allocation13 + $0x1d50] sm:$0xff]
    %v1878 = vld [vmem:[#allocation13 + $0x1d58] sm:$0xff]
    %v1879 = vld [vmem:[#allocation13 + $0x1d60] sm:$0xff]
    %v1880 = vld [vmem:[#allocation13 + $0x1d68] sm:$0xff]
    %v1881 = vld [vmem:[#allocation13 + $0x1d70] sm:$0xff]
    %v1882 = vld [vmem:[#allocation13 + $0x1d78] sm:$0xff]
    %v1883 = vld [vmem:[#allocation13 + $0x1d80] sm:$0xff]
    %v1884 = vld [vmem:[#allocation13 + $0x1d88] sm:$0xff]
    %v1885 = vld [vmem:[#allocation13 + $0x1d90] sm:$0xff]
    %v1886 = vld [vmem:[#allocation13 + $0x1d98] sm:$0xff]
    %v1887 = vld [vmem:[#allocation13 + $0x1da0] sm:$0xff]
    %v1888 = vld [vmem:[#allocation13 + $0x1da8] sm:$0xff]
    %v1889 = vld [vmem:[#allocation13 + $0x1db0] sm:$0xff]
    %v1890 = vld [vmem:[#allocation13 + $0x1db8] sm:$0xff]
    %v1891 = vld [vmem:[#allocation13 + $0x1dc0] sm:$0xff]
    %v1892 = vld [vmem:[#allocation13 + $0x1dc8] sm:$0xff]
    %v1893 = vld [vmem:[#allocation13 + $0x1dd0] sm:$0xff]
    %v1894 = vld [vmem:[#allocation13 + $0x1dd8] sm:$0xff]
    %v1895 = vld [vmem:[#allocation13 + $0x1de0] sm:$0xff]
    %v1896 = vld [vmem:[#allocation13 + $0x1de8] sm:$0xff]
    %v1897 = vld [vmem:[#allocation13 + $0x1df0] sm:$0xff]
    %v1898 = vld [vmem:[#allocation13 + $0x1df8] sm:$0xff]
    %v1899 = vld [vmem:[#allocation13 + $0x1e00] sm:$0xff]
    %v1900 = vld [vmem:[#allocation13 + $0x1e08] sm:$0xff]
    %v1901 = vld [vmem:[#allocation13 + $0x1e10] sm:$0xff]
    %v1902 = vld [vmem:[#allocation13 + $0x1e18] sm:$0xff]
    %v1903 = vld [vmem:[#allocation13 + $0x1e20] sm:$0xff]
    %v1904 = vld [vmem:[#allocation13 + $0x1e28] sm:$0xff]
    %v1905 = vld [vmem:[#allocation13 + $0x1e30] sm:$0xff]
    %v1906 = vld [vmem:[#allocation13 + $0x1e38] sm:$0xff]
    %v1907 = vld [vmem:[#allocation13 + $0x1e40] sm:$0xff]
    %v1908 = vld [vmem:[#allocation13 + $0x1e48] sm:$0xff]
    %v1909 = vld [vmem:[#allocation13 + $0x1e50] sm:$0xff]
    %v1910 = vld [vmem:[#allocation13 + $0x1e58] sm:$0xff]
    %v1911 = vld [vmem:[#allocation13 + $0x1e60] sm:$0xff]
    %v1912 = vld [vmem:[#allocation13 + $0x1e68] sm:$0xff]
    %v1913 = vld [vmem:[#allocation13 + $0x1e70] sm:$0xff]
    %v1914 = vld [vmem:[#allocation13 + $0x1e78] sm:$0xff]
    %v1915 = vld [vmem:[#allocation13 + $0x1e80] sm:$0xff]
    %v1916 = vld [vmem:[#allocation13 + $0x1e88] sm:$0xff]
    %v1917 = vld [vmem:[#allocation13 + $0x1e90] sm:$0xff]
    %v1918 = vld [vmem:[#allocation13 + $0x1e98] sm:$0xff]
    %v1919 = vld [vmem:[#allocation13 + $0x1ea0] sm:$0xff]
    %v1920 = vld [vmem:[#allocation13 + $0x1ea8] sm:$0xff]
    %v1921 = vld [vmem:[#allocation13 + $0x1eb0] sm:$0xff]
    %v1922 = vld [vmem:[#allocation13 + $0x1eb8] sm:$0xff]
    %v1923 = vld [vmem:[#allocation13 + $0x1ec0] sm:$0xff]
    %v1924 = vld [vmem:[#allocation13 + $0x1ec8] sm:$0xff]
    %v1925 = vld [vmem:[#allocation13 + $0x1ed0] sm:$0xff]
    %v1926 = vld [vmem:[#allocation13 + $0x1ed8] sm:$0xff]
    %v1927 = vld [vmem:[#allocation13 + $0x1ee0] sm:$0xff]
    %v1928 = vld [vmem:[#allocation13 + $0x1ee8] sm:$0xff]
    %v1929 = vld [vmem:[#allocation13 + $0x1ef0] sm:$0xff]
    %v1930 = vld [vmem:[#allocation13 + $0x1ef8] sm:$0xff]
    %v1931 = vld [vmem:[#allocation13 + $0x1f00] sm:$0xff]
    %v1932 = vld [vmem:[#allocation13 + $0x1f08] sm:$0xff]
    %v1933 = vld [vmem:[#allocation13 + $0x1f10] sm:$0xff]
    %v1934 = vld [vmem:[#allocation13 + $0x1f18] sm:$0xff]
    %v1935 = vld [vmem:[#allocation13 + $0x1f20] sm:$0xff]
    %v1936 = vld [vmem:[#allocation13 + $0x1f28] sm:$0xff]
    %v1937 = vld [vmem:[#allocation13 + $0x1f30] sm:$0xff]
    %v1938 = vld [vmem:[#allocation13 + $0x1f38] sm:$0xff]
    %v1939 = vld [vmem:[#allocation13 + $0x1f40] sm:$0xff]
    %v1940 = vld [vmem:[#allocation13 + $0x1f48] sm:$0xff]
    %v1941 = vld [vmem:[#allocation13 + $0x1f50] sm:$0xff]
    %v1942 = vld [vmem:[#allocation13 + $0x1f58] sm:$0xff]
    %v1943 = vld [vmem:[#allocation13 + $0x1f60] sm:$0xff]
    %v1944 = vld [vmem:[#allocation13 + $0x1f68] sm:$0xff]
    %v1945 = vld [vmem:[#allocation13 + $0x1f70] sm:$0xff]
    %v1946 = vld [vmem:[#allocation13 + $0x1f78] sm:$0xff]
    %v1947 = vld [vmem:[#allocation13 + $0x1f80] sm:$0xff]
    %v1948 = vld [vmem:[#allocation13 + $0x1f88] sm:$0xff]
    %v1949 = vld [vmem:[#allocation13 + $0x1f90] sm:$0xff]
    %v1950 = vld [vmem:[#allocation13 + $0x1f98] sm:$0xff]
    %v1951 = vld [vmem:[#allocation13 + $0x1fa0] sm:$0xff]
    %v1952 = vld [vmem:[#allocation13 + $0x1fa8] sm:$0xff]
    %v1953 = vld [vmem:[#allocation13 + $0x1fb0] sm:$0xff]
    %v1954 = vld [vmem:[#allocation13 + $0x1fb8] sm:$0xff]
    %v1955 = vld [vmem:[#allocation13 + $0x1fc0] sm:$0xff]
    %v1956 = vld [vmem:[#allocation13 + $0x1fc8] sm:$0xff]
    %v1957 = vld [vmem:[#allocation13 + $0x1fd0] sm:$0xff]
    %v1958 = vld [vmem:[#allocation13 + $0x1fd8] sm:$0xff]
    %v1959 = vld [vmem:[#allocation13 + $0x1fe0] sm:$0xff]
    %v1960 = vld [vmem:[#allocation13 + $0x1fe8] sm:$0xff]
    %v1961 = vld [vmem:[#allocation13 + $0x1ff0] sm:$0xff]
    %v1962 = vld [vmem:[#allocation13 + $0x1ff8] sm:$0xff]
    %v1963 = vld [vmem:[#allocation13 + $0x2000] sm:$0xff]
    %v1964 = vld [vmem:[#allocation13 + $0x2008] sm:$0xff]
    %v1965 = vld [vmem:[#allocation13 + $0x2010] sm:$0xff]
    %v1966 = vld [vmem:[#allocation13 + $0x2018] sm:$0xff]
    %v1967 = vld [vmem:[#allocation13 + $0x2020] sm:$0xff]
    %v1968 = vld [vmem:[#allocation13 + $0x2028] sm:$0xff]
    %v1969 = vld [vmem:[#allocation13 + $0x2030] sm:$0xff]
    %v1970 = vld [vmem:[#allocation13 + $0x2038] sm:$0xff]
    %v1971 = vld [vmem:[#allocation13 + $0x2040] sm:$0xff]
    %v1972 = vld [vmem:[#allocation13 + $0x2048] sm:$0xff]
    %v1973 = vld [vmem:[#allocation13 + $0x2050] sm:$0xff]
    %v1974 = vld [vmem:[#allocation13 + $0x2058] sm:$0xff]
    %v1975 = vld [vmem:[#allocation13 + $0x2060] sm:$0xff]
    %v1976 = vld [vmem:[#allocation13 + $0x2068] sm:$0xff]
    %v1977 = vld [vmem:[#allocation13 + $0x2070] sm:$0xff]
    %v1978 = vld [vmem:[#allocation13 + $0x2078] sm:$0xff]
    %v1979 = vld [vmem:[#allocation13 + $0x2080] sm:$0xff]
    %v1980 = vld [vmem:[#allocation13 + $0x2088] sm:$0xff]
    %v1981 = vld [vmem:[#allocation13 + $0x2090] sm:$0xff]
    %v1982 = vld [vmem:[#allocation13 + $0x2098] sm:$0xff]
    %v1983 = vld [vmem:[#allocation13 + $0x20a0] sm:$0xff]
    %v1984 = vld [vmem:[#allocation13 + $0x20a8] sm:$0xff]
    %v1985 = vld [vmem:[#allocation13 + $0x20b0] sm:$0xff]
    %v1986 = vld [vmem:[#allocation13 + $0x20b8] sm:$0xff]
    %v1987 = vld [vmem:[#allocation13 + $0x20c0] sm:$0xff]
    %v1988 = vld [vmem:[#allocation13 + $0x20c8] sm:$0xff]
    %v1989 = vld [vmem:[#allocation13 + $0x20d0] sm:$0xff]
    %v1990 = vld [vmem:[#allocation13 + $0x20d8] sm:$0xff]
    %v1991 = vld [vmem:[#allocation13 + $0x20e0] sm:$0xff]
    %v1992 = vld [vmem:[#allocation13 + $0x20e8] sm:$0xff]
    %v1993 = vld [vmem:[#allocation13 + $0x20f0] sm:$0xff]
    %v1994 = vld [vmem:[#allocation13 + $0x20f8] sm:$0xff]
    %v1995 = vld [vmem:[#allocation13 + $0x2100] sm:$0xff]
    %v1996 = vld [vmem:[#allocation13 + $0x2108] sm:$0xff]
    %v1997 = vld [vmem:[#allocation13 + $0x2110] sm:$0xff]
    %v1998 = vld [vmem:[#allocation13 + $0x2118] sm:$0xff]
    %v1999 = vld [vmem:[#allocation13 + $0x2120] sm:$0xff]
    %v2000 = vld [vmem:[#allocation13 + $0x2128] sm:$0xff]
    %v2001 = vld [vmem:[#allocation13 + $0x2130] sm:$0xff]
    %v2002 = vld [vmem:[#allocation13 + $0x2138] sm:$0xff]
    %v2003 = vld [vmem:[#allocation13 + $0x2140] sm:$0xff]
    %v2004 = vld [vmem:[#allocation13 + $0x2148] sm:$0xff]
    %v2005 = vld [vmem:[#allocation13 + $0x2150] sm:$0xff]
    %v2006 = vld [vmem:[#allocation13 + $0x2158] sm:$0xff]
    %v2007 = vld [vmem:[#allocation13 + $0x2160] sm:$0xff]
    %v2008 = vld [vmem:[#allocation13 + $0x2168] sm:$0xff]
    %v2009 = vld [vmem:[#allocation13 + $0x2170] sm:$0xff]
    %v2010 = vld [vmem:[#allocation13 + $0x2178] sm:$0xff]
    %v2011 = vld [vmem:[#allocation13 + $0x2180] sm:$0xff]
    %v2012 = vld [vmem:[#allocation13 + $0x2188] sm:$0xff]
    %v2013 = vld [vmem:[#allocation13 + $0x2190] sm:$0xff]
    %v2014 = vld [vmem:[#allocation13 + $0x2198] sm:$0xff]
    %v2015 = vld [vmem:[#allocation13 + $0x21a0] sm:$0xff]
    %v2016 = vld [vmem:[#allocation13 + $0x21a8] sm:$0xff]
    %v2017 = vld [vmem:[#allocation13 + $0x21b0] sm:$0xff]
    %v2018 = vld [vmem:[#allocation13 + $0x21b8] sm:$0xff]
    %v2019 = vld [vmem:[#allocation13 + $0x21c0] sm:$0xff]
    %v2020 = vld [vmem:[#allocation13 + $0x21c8] sm:$0xff]
    %v2021 = vld [vmem:[#allocation13 + $0x21d0] sm:$0xff]
    %v2022 = vld [vmem:[#allocation13 + $0x21d8] sm:$0xff]
    %v2023 = vld [vmem:[#allocation13 + $0x21e0] sm:$0xff]
    %v2024 = vld [vmem:[#allocation13 + $0x21e8] sm:$0xff]
    %v2025 = vld [vmem:[#allocation13 + $0x21f0] sm:$0xff]
    %v2026 = vld [vmem:[#allocation13 + $0x21f8] sm:$0xff]
    %v2027 = vld [vmem:[#allocation13 + $0x2200] sm:$0xff]
    %v2028 = vld [vmem:[#allocation13 + $0x2208] sm:$0xff]
    %v2029 = vld [vmem:[#allocation13 + $0x2210] sm:$0xff]
    %v2030 = vld [vmem:[#allocation13 + $0x2218] sm:$0xff]
    %v2031 = vld [vmem:[#allocation13 + $0x2220] sm:$0xff]
    %v2032 = vld [vmem:[#allocation13 + $0x2228] sm:$0xff]
    %v2033 = vld [vmem:[#allocation13 + $0x2230] sm:$0xff]
    %v2034 = vld [vmem:[#allocation13 + $0x2238] sm:$0xff]
    %v2035 = vld [vmem:[#allocation13 + $0x2240] sm:$0xff]
    %v2036 = vld [vmem:[#allocation13 + $0x2248] sm:$0xff]
    %v2037 = vld [vmem:[#allocation13 + $0x2250] sm:$0xff]
    %v2038 = vld [vmem:[#allocation13 + $0x2258] sm:$0xff]
    %v2039 = vld [vmem:[#allocation13 + $0x2260] sm:$0xff]
    %v2040 = vld [vmem:[#allocation13 + $0x2268] sm:$0xff]
    %v2041 = vld [vmem:[#allocation13 + $0x2270] sm:$0xff]
    %v2042 = vld [vmem:[#allocation13 + $0x2278] sm:$0xff]
    %v2043 = vld [vmem:[#allocation13 + $0x2280] sm:$0xff]
    %v2044 = vld [vmem:[#allocation13 + $0x2288] sm:$0xff]
    %v2045 = vld [vmem:[#allocation13 + $0x2290] sm:$0xff]
    %v2046 = vld [vmem:[#allocation13 + $0x2298] sm:$0xff]
    %v2047 = vld [vmem:[#allocation13 + $0x22a0] sm:$0xff]
    %v2048 = vld [vmem:[#allocation13 + $0x22a8] sm:$0xff]
    %v2049 = vld [vmem:[#allocation13 + $0x22b0] sm:$0xff]
    %v2050 = vld [vmem:[#allocation13 + $0x22b8] sm:$0xff]
    %v2051 = vld [vmem:[#allocation13 + $0x22c0] sm:$0xff]
    %v2052 = vld [vmem:[#allocation13 + $0x22c8] sm:$0xff]
    %v2053 = vld [vmem:[#allocation13 + $0x22d0] sm:$0xff]
    %v2054 = vld [vmem:[#allocation13 + $0x22d8] sm:$0xff]
    %v2055 = vld [vmem:[#allocation13 + $0x22e0] sm:$0xff]
    %v2056 = vld [vmem:[#allocation13 + $0x22e8] sm:$0xff]
    %v2057 = vld [vmem:[#allocation13 + $0x22f0] sm:$0xff]
    %v2058 = vld [vmem:[#allocation13 + $0x22f8] sm:$0xff]
    %v2059 = vld [vmem:[#allocation13 + $0x2300] sm:$0xff]
    %v2060 = vld [vmem:[#allocation13 + $0x2308] sm:$0xff]
    %v2061 = vld [vmem:[#allocation13 + $0x2310] sm:$0xff]
    %v2062 = vld [vmem:[#allocation13 + $0x2318] sm:$0xff]
    %v2063 = vld [vmem:[#allocation13 + $0x2320] sm:$0xff]
    %v2064 = vld [vmem:[#allocation13 + $0x2328] sm:$0xff]
    %v2065 = vld [vmem:[#allocation13 + $0x2330] sm:$0xff]
    %v2066 = vld [vmem:[#allocation13 + $0x2338] sm:$0xff]
    %v2067 = vld [vmem:[#allocation13 + $0x2340] sm:$0xff]
    %v2068 = vld [vmem:[#allocation13 + $0x2348] sm:$0xff]
    %v2069 = vld [vmem:[#allocation13 + $0x2350] sm:$0xff]
    %v2070 = vld [vmem:[#allocation13 + $0x2358] sm:$0xff]
    %v2071 = vld [vmem:[#allocation13 + $0x2360] sm:$0xff]
    %v2072 = vld [vmem:[#allocation13 + $0x2368] sm:$0xff]
    %v2073 = vld [vmem:[#allocation13 + $0x2370] sm:$0xff]
    %v2074 = vld [vmem:[#allocation13 + $0x2378] sm:$0xff]
    %v2075 = vld [vmem:[#allocation13 + $0x2380] sm:$0xff]
    %v2076 = vld [vmem:[#allocation13 + $0x2388] sm:$0xff]
    %v2077 = vld [vmem:[#allocation13 + $0x2390] sm:$0xff]
    %v2078 = vld [vmem:[#allocation13 + $0x2398] sm:$0xff]
    %v2079 = vld [vmem:[#allocation13 + $0x23a0] sm:$0xff]
    %v2080 = vld [vmem:[#allocation13 + $0x23a8] sm:$0xff]
    %v2081 = vld [vmem:[#allocation13 + $0x23b0] sm:$0xff]
    %v2082 = vld [vmem:[#allocation13 + $0x23b8] sm:$0xff]
    %v2083 = vld [vmem:[#allocation13 + $0x23c0] sm:$0xff]
    %v2084 = vld [vmem:[#allocation13 + $0x23c8] sm:$0xff]
    %v2085 = vld [vmem:[#allocation13 + $0x23d0] sm:$0xff]
    %v2086 = vld [vmem:[#allocation13 + $0x23d8] sm:$0xff]
    %v2087 = vld [vmem:[#allocation13 + $0x23e0] sm:$0xff]
    %v2088 = vld [vmem:[#allocation13 + $0x23e8] sm:$0xff]
    %v2089 = vld [vmem:[#allocation13 + $0x23f0] sm:$0xff]
    %v2090 = vld [vmem:[#allocation13 + $0x23f8] sm:$0xff]
    %v2091 = vld [vmem:[#allocation13 + $0x2400] sm:$0xff]
    %v2092 = vld [vmem:[#allocation13 + $0x2408] sm:$0xff]
    %v2093 = vld [vmem:[#allocation13 + $0x2410] sm:$0xff]
    %v2094 = vld [vmem:[#allocation13 + $0x2418] sm:$0xff]
    %v2095 = vld [vmem:[#allocation13 + $0x2420] sm:$0xff]
    %v2096 = vld [vmem:[#allocation13 + $0x2428] sm:$0xff]
    %v2097 = vld [vmem:[#allocation13 + $0x2430] sm:$0xff]
    %v2098 = vld [vmem:[#allocation13 + $0x2438] sm:$0xff]
    %v2099 = vld [vmem:[#allocation13 + $0x2440] sm:$0xff]
    %v2100 = vld [vmem:[#allocation13 + $0x2448] sm:$0xff]
    %v2101 = vld [vmem:[#allocation13 + $0x2450] sm:$0xff]
    %v2102 = vld [vmem:[#allocation13 + $0x2458] sm:$0xff]
    %v2103 = vld [vmem:[#allocation13 + $0x2460] sm:$0xff]
    %v2104 = vld [vmem:[#allocation13 + $0x2468] sm:$0xff]
    %v2105 = vld [vmem:[#allocation13 + $0x2470] sm:$0xff]
    %v2106 = vld [vmem:[#allocation13 + $0x2478] sm:$0xff]
    %v2107 = vld [vmem:[#allocation13 + $0x2480] sm:$0xff]
    %v2108 = vld [vmem:[#allocation13 + $0x2488] sm:$0xff]
    %v2109 = vld [vmem:[#allocation13 + $0x2490] sm:$0xff]
    %v2110 = vld [vmem:[#allocation13 + $0x2498] sm:$0xff]
    %v2111 = vld [vmem:[#allocation13 + $0x24a0] sm:$0xff]
    %v2112 = vld [vmem:[#allocation13 + $0x24a8] sm:$0xff]
    %v2113 = vld [vmem:[#allocation13 + $0x24b0] sm:$0xff]
    %v2114 = vld [vmem:[#allocation13 + $0x24b8] sm:$0xff]
    %v2115 = vld [vmem:[#allocation13 + $0x24c0] sm:$0xff]
    %v2116 = vld [vmem:[#allocation13 + $0x24c8] sm:$0xff]
    %v2117 = vld [vmem:[#allocation13 + $0x24d0] sm:$0xff]
    %v2118 = vld [vmem:[#allocation13 + $0x24d8] sm:$0xff]
    %v2119 = vld [vmem:[#allocation13 + $0x24e0] sm:$0xff]
    %v2120 = vld [vmem:[#allocation13 + $0x24e8] sm:$0xff]
    %v2121 = vld [vmem:[#allocation13 + $0x24f0] sm:$0xff]
    %v2122 = vld [vmem:[#allocation13 + $0x24f8] sm:$0xff]
    %v2123 = vld [vmem:[#allocation13 + $0x2500] sm:$0xff]
    %v2124 = vld [vmem:[#allocation13 + $0x2508] sm:$0xff]
    %v2125 = vld [vmem:[#allocation13 + $0x2510] sm:$0xff]
    %v2126 = vld [vmem:[#allocation13 + $0x2518] sm:$0xff]
    %v2127 = vld [vmem:[#allocation13 + $0x2520] sm:$0xff]
    %v2128 = vld [vmem:[#allocation13 + $0x2528] sm:$0xff]
    %v2129 = vld [vmem:[#allocation13 + $0x2530] sm:$0xff]
    %v2130 = vld [vmem:[#allocation13 + $0x2538] sm:$0xff]
    %v2131 = vld [vmem:[#allocation13 + $0x2540] sm:$0xff]
    %v2132 = vld [vmem:[#allocation13 + $0x2548] sm:$0xff]
    %v2133 = vld [vmem:[#allocation13 + $0x2550] sm:$0xff]
    %v2134 = vld [vmem:[#allocation13 + $0x2558] sm:$0xff]
    %v2135 = vld [vmem:[#allocation13 + $0x2560] sm:$0xff]
    %v2136 = vld [vmem:[#allocation13 + $0x2568] sm:$0xff]
    %v2137 = vld [vmem:[#allocation13 + $0x2570] sm:$0xff]
    %v2138 = vld [vmem:[#allocation13 + $0x2578] sm:$0xff]
    %v2139 = vld [vmem:[#allocation13 + $0x2580] sm:$0xff]
    %v2140 = vld [vmem:[#allocation13 + $0x2588] sm:$0xff]
    %v2141 = vld [vmem:[#allocation13 + $0x2590] sm:$0xff]
    %v2142 = vld [vmem:[#allocation13 + $0x2598] sm:$0xff]
    %v2143 = vld [vmem:[#allocation13 + $0x25a0] sm:$0xff]
    %v2144 = vld [vmem:[#allocation13 + $0x25a8] sm:$0xff]
    %v2145 = vld [vmem:[#allocation13 + $0x25b0] sm:$0xff]
    %v2146 = vld [vmem:[#allocation13 + $0x25b8] sm:$0xff]
    %v2147 = vld [vmem:[#allocation13 + $0x25c0] sm:$0xff]
    %v2148 = vld [vmem:[#allocation13 + $0x25c8] sm:$0xff]
    %v2149 = vld [vmem:[#allocation13 + $0x25d0] sm:$0xff]
    %v2150 = vld [vmem:[#allocation13 + $0x25d8] sm:$0xff]
    %v2151 = vld [vmem:[#allocation13 + $0x25e0] sm:$0xff]
    %v2152 = vld [vmem:[#allocation13 + $0x25e8] sm:$0xff]
    %v2153 = vld [vmem:[#allocation13 + $0x25f0] sm:$0xff]
    %v2154 = vld [vmem:[#allocation13 + $0x25f8] sm:$0xff]
    %v2155 = vld [vmem:[#allocation13 + $0x2600] sm:$0xff]
    %v2156 = vld [vmem:[#allocation13 + $0x2608] sm:$0xff]
    %v2157 = vld [vmem:[#allocation13 + $0x2610] sm:$0xff]
    %v2158 = vld [vmem:[#allocation13 + $0x2618] sm:$0xff]
    %v2159 = vld [vmem:[#allocation13 + $0x2620] sm:$0xff]
    %v2160 = vld [vmem:[#allocation13 + $0x2628] sm:$0xff]
    %v2161 = vld [vmem:[#allocation13 + $0x2630] sm:$0xff]
    %v2162 = vld [vmem:[#allocation13 + $0x2638] sm:$0xff]
    %v2163 = vld [vmem:[#allocation13 + $0x2640] sm:$0xff]
    %v2164 = vld [vmem:[#allocation13 + $0x2648] sm:$0xff]
    %v2165 = vld [vmem:[#allocation13 + $0x2650] sm:$0xff]
    %v2166 = vld [vmem:[#allocation13 + $0x2658] sm:$0xff]
    %v2167 = vld [vmem:[#allocation13 + $0x2660] sm:$0xff]
    %v2168 = vld [vmem:[#allocation13 + $0x2668] sm:$0xff]
    %v2169 = vld [vmem:[#allocation13 + $0x2670] sm:$0xff]
    %v2170 = vld [vmem:[#allocation13 + $0x2678] sm:$0xff]
    %v2171 = vld [vmem:[#allocation13 + $0x2680] sm:$0xff]
    %v2172 = vld [vmem:[#allocation13 + $0x2688] sm:$0xff]
    %v2173 = vld [vmem:[#allocation13 + $0x2690] sm:$0xff]
    %v2174 = vld [vmem:[#allocation13 + $0x2698] sm:$0xff]
    %v2175 = vld [vmem:[#allocation13 + $0x26a0] sm:$0xff]
    %v2176 = vld [vmem:[#allocation13 + $0x26a8] sm:$0xff]
    %v2177 = vld [vmem:[#allocation13 + $0x26b0] sm:$0xff]
    %v2178 = vld [vmem:[#allocation13 + $0x26b8] sm:$0xff]
    %v2179 = vld [vmem:[#allocation13 + $0x26c0] sm:$0xff]
    %v2180 = vld [vmem:[#allocation13 + $0x26c8] sm:$0xff]
    %v2181 = vld [vmem:[#allocation13 + $0x26d0] sm:$0xff]
    %v2182 = vld [vmem:[#allocation13 + $0x26d8] sm:$0xff]
    %v2183 = vld [vmem:[#allocation13 + $0x26e0] sm:$0xff]
    %v2184 = vld [vmem:[#allocation13 + $0x26e8] sm:$0xff]
    %v2185 = vld [vmem:[#allocation13 + $0x26f0] sm:$0xff]
    %v2186 = vld [vmem:[#allocation13 + $0x26f8] sm:$0xff]
    %v2187 = vld [vmem:[#allocation13 + $0x2700] sm:$0xff]
    %v2188 = vld [vmem:[#allocation13 + $0x2708] sm:$0xff]
    %v2189 = vld [vmem:[#allocation13 + $0x2710] sm:$0xff]
    %v2190 = vld [vmem:[#allocation13 + $0x2718] sm:$0xff]
    %v2191 = vld [vmem:[#allocation13 + $0x2720] sm:$0xff]
    %v2192 = vld [vmem:[#allocation13 + $0x2728] sm:$0xff]
    %v2193 = vld [vmem:[#allocation13 + $0x2730] sm:$0xff]
    %v2194 = vld [vmem:[#allocation13 + $0x2738] sm:$0xff]
    %v2195 = vld [vmem:[#allocation13 + $0x2740] sm:$0xff]
    %v2196 = vld [vmem:[#allocation13 + $0x2748] sm:$0xff]
    %v2197 = vld [vmem:[#allocation13 + $0x2750] sm:$0xff]
    %v2198 = vld [vmem:[#allocation13 + $0x2758] sm:$0xff]
    %v2199 = vld [vmem:[#allocation13 + $0x2760] sm:$0xff]
    %v2200 = vld [vmem:[#allocation13 + $0x2768] sm:$0xff]
    %v2201 = vld [vmem:[#allocation13 + $0x2770] sm:$0xff]
    %v2202 = vld [vmem:[#allocation13 + $0x2778] sm:$0xff]
    %v2203 = vld [vmem:[#allocation13 + $0x2780] sm:$0xff]
    %v2204 = vld [vmem:[#allocation13 + $0x2788] sm:$0xff]
    %v2205 = vld [vmem:[#allocation13 + $0x2790] sm:$0xff]
    %v2206 = vld [vmem:[#allocation13 + $0x2798] sm:$0xff]
    %v2207 = vld [vmem:[#allocation13 + $0x27a0] sm:$0xff]
    %v2208 = vld [vmem:[#allocation13 + $0x27a8] sm:$0xff]
    %v2209 = vld [vmem:[#allocation13 + $0x27b0] sm:$0xff]
    %v2210 = vld [vmem:[#allocation13 + $0x27b8] sm:$0xff]
    %v2211 = vld [vmem:[#allocation13 + $0x27c0] sm:$0xff]
    %v2212 = vld [vmem:[#allocation13 + $0x27c8] sm:$0xff]
    %v2213 = vld [vmem:[#allocation13 + $0x27d0] sm:$0xff]
    %v2214 = vld [vmem:[#allocation13 + $0x27d8] sm:$0xff]
    %v2215 = vld [vmem:[#allocation13 + $0x27e0] sm:$0xff]
    %v2216 = vld [vmem:[#allocation13 + $0x27e8] sm:$0xff]
    %v2217 = vld [vmem:[#allocation13 + $0x27f0] sm:$0xff]
    %v2218 = vld [vmem:[#allocation13 + $0x27f8] sm:$0xff]
    %v2219 = vld [vmem:[#allocation13 + $0x2800] sm:$0xff]
    %v2220 = vld [vmem:[#allocation13 + $0x2808] sm:$0xff]
    %v2221 = vld [vmem:[#allocation13 + $0x2810] sm:$0xff]
    %v2222 = vld [vmem:[#allocation13 + $0x2818] sm:$0xff]
    %v2223 = vld [vmem:[#allocation13 + $0x2820] sm:$0xff]
    %v2224 = vld [vmem:[#allocation13 + $0x2828] sm:$0xff]
    %v2225 = vld [vmem:[#allocation13 + $0x2830] sm:$0xff]
    %v2226 = vld [vmem:[#allocation13 + $0x2838] sm:$0xff]
    %v2227 = vld [vmem:[#allocation13 + $0x2840] sm:$0xff]
    %v2228 = vld [vmem:[#allocation13 + $0x2848] sm:$0xff]
    %v2229 = vld [vmem:[#allocation13 + $0x2850] sm:$0xff]
    %v2230 = vld [vmem:[#allocation13 + $0x2858] sm:$0xff]
    %v2231 = vld [vmem:[#allocation13 + $0x2860] sm:$0xff]
    %v2232 = vld [vmem:[#allocation13 + $0x2868] sm:$0xff]
    %v2233 = vld [vmem:[#allocation13 + $0x2870] sm:$0xff]
    %v2234 = vld [vmem:[#allocation13 + $0x2878] sm:$0xff]
    %v2235 = vld [vmem:[#allocation13 + $0x2880] sm:$0xff]
    %v2236 = vld [vmem:[#allocation13 + $0x2888] sm:$0xff]
    %v2237 = vld [vmem:[#allocation13 + $0x2890] sm:$0xff]
    %v2238 = vld [vmem:[#allocation13 + $0x2898] sm:$0xff]
    %v2239 = vld [vmem:[#allocation13 + $0x28a0] sm:$0xff]
    %v2240 = vld [vmem:[#allocation13 + $0x28a8] sm:$0xff]
    %v2241 = vld [vmem:[#allocation13 + $0x28b0] sm:$0xff]
    %v2242 = vld [vmem:[#allocation13 + $0x28b8] sm:$0xff]
    %v2243 = vld [vmem:[#allocation13 + $0x28c0] sm:$0xff]
    %v2244 = vld [vmem:[#allocation13 + $0x28c8] sm:$0xff]
    %v2245 = vld [vmem:[#allocation13 + $0x28d0] sm:$0xff]
    %v2246 = vld [vmem:[#allocation13 + $0x28d8] sm:$0xff]
    %v2247 = vld [vmem:[#allocation13 + $0x28e0] sm:$0xff]
    %v2248 = vld [vmem:[#allocation13 + $0x28e8] sm:$0xff]
    %v2249 = vld [vmem:[#allocation13 + $0x28f0] sm:$0xff]
    %v2250 = vld [vmem:[#allocation13 + $0x28f8] sm:$0xff]
    %v2251 = vld [vmem:[#allocation13 + $0x2900] sm:$0xff]
    %v2252 = vld [vmem:[#allocation13 + $0x2908] sm:$0xff]
    %v2253 = vld [vmem:[#allocation13 + $0x2910] sm:$0xff]
    %v2254 = vld [vmem:[#allocation13 + $0x2918] sm:$0xff]
    %v2255 = vld [vmem:[#allocation13 + $0x2920] sm:$0xff]
    %v2256 = vld [vmem:[#allocation13 + $0x2928] sm:$0xff]
    %v2257 = vld [vmem:[#allocation13 + $0x2930] sm:$0xff]
    %v2258 = vld [vmem:[#allocation13 + $0x2938] sm:$0xff]
    %v2259 = vld [vmem:[#allocation13 + $0x2940] sm:$0xff]
    %v2260 = vld [vmem:[#allocation13 + $0x2948] sm:$0xff]
    %v2261 = vld [vmem:[#allocation13 + $0x2950] sm:$0xff]
    %v2262 = vld [vmem:[#allocation13 + $0x2958] sm:$0xff]
    %v2263 = vld [vmem:[#allocation13 + $0x2960] sm:$0xff]
    %v2264 = vld [vmem:[#allocation13 + $0x2968] sm:$0xff]
    %v2265 = vld [vmem:[#allocation13 + $0x2970] sm:$0xff]
    %v2266 = vld [vmem:[#allocation13 + $0x2978] sm:$0xff]
    %v2267 = vld [vmem:[#allocation13 + $0x2980] sm:$0xff]
    %v2268 = vld [vmem:[#allocation13 + $0x2988] sm:$0xff]
    %v2269 = vld [vmem:[#allocation13 + $0x2990] sm:$0xff]
    %v2270 = vld [vmem:[#allocation13 + $0x2998] sm:$0xff]
    %v2271 = vld [vmem:[#allocation13 + $0x29a0] sm:$0xff]
    %v2272 = vld [vmem:[#allocation13 + $0x29a8] sm:$0xff]
    %v2273 = vld [vmem:[#allocation13 + $0x29b0] sm:$0xff]
    %v2274 = vld [vmem:[#allocation13 + $0x29b8] sm:$0xff]
    %v2275 = vld [vmem:[#allocation13 + $0x29c0] sm:$0xff]
    %v2276 = vld [vmem:[#allocation13 + $0x29c8] sm:$0xff]
    %v2277 = vld [vmem:[#allocation13 + $0x29d0] sm:$0xff]
    %v2278 = vld [vmem:[#allocation13 + $0x29d8] sm:$0xff]
    %v2279 = vld [vmem:[#allocation13 + $0x29e0] sm:$0xff]
    %v2280 = vld [vmem:[#allocation13 + $0x29e8] sm:$0xff]
    %v2281 = vld [vmem:[#allocation13 + $0x29f0] sm:$0xff]
    %v2282 = vld [vmem:[#allocation13 + $0x29f8] sm:$0xff]
    %v2283 = vld [vmem:[#allocation13 + $0x2a00] sm:$0xff]
    %v2284 = vld [vmem:[#allocation13 + $0x2a08] sm:$0xff]
    %v2285 = vld [vmem:[#allocation13 + $0x2a10] sm:$0xff]
    %v2286 = vld [vmem:[#allocation13 + $0x2a18] sm:$0xff]
    %v2287 = vld [vmem:[#allocation13 + $0x2a20] sm:$0xff]
    %v2288 = vld [vmem:[#allocation13 + $0x2a28] sm:$0xff]
    %v2289 = vld [vmem:[#allocation13 + $0x2a30] sm:$0xff]
    %v2290 = vld [vmem:[#allocation13 + $0x2a38] sm:$0xff]
    %v2291 = vld [vmem:[#allocation13 + $0x2a40] sm:$0xff]
    %v2292 = vld [vmem:[#allocation13 + $0x2a48] sm:$0xff]
    %v2293 = vld [vmem:[#allocation13 + $0x2a50] sm:$0xff]
    %v2294 = vld [vmem:[#allocation13 + $0x2a58] sm:$0xff]
    %v2295 = vld [vmem:[#allocation13 + $0x2a60] sm:$0xff]
    %v2296 = vld [vmem:[#allocation13 + $0x2a68] sm:$0xff]
    %v2297 = vld [vmem:[#allocation13 + $0x2a70] sm:$0xff]
    %v2298 = vld [vmem:[#allocation13 + $0x2a78] sm:$0xff]
    %v2299 = vld [vmem:[#allocation13 + $0x2a80] sm:$0xff]
    %v2300 = vld [vmem:[#allocation13 + $0x2a88] sm:$0xff]
    %v2301 = vld [vmem:[#allocation13 + $0x2a90] sm:$0xff]
    %v2302 = vld [vmem:[#allocation13 + $0x2a98] sm:$0xff]
    %v2303 = vld [vmem:[#allocation13 + $0x2aa0] sm:$0xff]
    %v2304 = vld [vmem:[#allocation13 + $0x2aa8] sm:$0xff]
    %v2305 = vld [vmem:[#allocation13 + $0x2ab0] sm:$0xff]
    %v2306 = vld [vmem:[#allocation13 + $0x2ab8] sm:$0xff]
    %v2307 = vld [vmem:[#allocation13 + $0x2ac0] sm:$0xff]
    %v2308 = vld [vmem:[#allocation13 + $0x2ac8] sm:$0xff]
    %v2309 = vld [vmem:[#allocation13 + $0x2ad0] sm:$0xff]
    %v2310 = vld [vmem:[#allocation13 + $0x2ad8] sm:$0xff]
    %v2311 = vld [vmem:[#allocation13 + $0x2ae0] sm:$0xff]
    %v2312 = vld [vmem:[#allocation13 + $0x2ae8] sm:$0xff]
    %v2313 = vld [vmem:[#allocation13 + $0x2af0] sm:$0xff]
    %v2314 = vld [vmem:[#allocation13 + $0x2af8] sm:$0xff]
    %v2315 = vld [vmem:[#allocation13 + $0x2b00] sm:$0xff]
    %v2316 = vld [vmem:[#allocation13 + $0x2b08] sm:$0xff]
    %v2317 = vld [vmem:[#allocation13 + $0x2b10] sm:$0xff]
    %v2318 = vld [vmem:[#allocation13 + $0x2b18] sm:$0xff]
    %v2319 = vld [vmem:[#allocation13 + $0x2b20] sm:$0xff]
    %v2320 = vld [vmem:[#allocation13 + $0x2b28] sm:$0xff]
    %v2321 = vld [vmem:[#allocation13 + $0x2b30] sm:$0xff]
    %v2322 = vld [vmem:[#allocation13 + $0x2b38] sm:$0xff]
    %v2323 = vld [vmem:[#allocation13 + $0x2b40] sm:$0xff]
    %v2324 = vld [vmem:[#allocation13 + $0x2b48] sm:$0xff]
    %v2325 = vld [vmem:[#allocation13 + $0x2b50] sm:$0xff]
    %v2326 = vld [vmem:[#allocation13 + $0x2b58] sm:$0xff]
    %v2327 = vld [vmem:[#allocation13 + $0x2b60] sm:$0xff]
    %v2328 = vld [vmem:[#allocation13 + $0x2b68] sm:$0xff]
    %v2329 = vld [vmem:[#allocation13 + $0x2b70] sm:$0xff]
    %v2330 = vld [vmem:[#allocation13 + $0x2b78] sm:$0xff]
    %v2331 = vld [vmem:[#allocation13 + $0x2b80] sm:$0xff]
    %v2332 = vld [vmem:[#allocation13 + $0x2b88] sm:$0xff]
    %v2333 = vld [vmem:[#allocation13 + $0x2b90] sm:$0xff]
    %v2334 = vld [vmem:[#allocation13 + $0x2b98] sm:$0xff]
    %v2335 = vld [vmem:[#allocation13 + $0x2ba0] sm:$0xff]
    %v2336 = vld [vmem:[#allocation13 + $0x2ba8] sm:$0xff]
    %v2337 = vld [vmem:[#allocation13 + $0x2bb0] sm:$0xff]
    %v2338 = vld [vmem:[#allocation13 + $0x2bb8] sm:$0xff]
    %v2339 = vld [vmem:[#allocation13 + $0x2bc0] sm:$0xff]
    %v2340 = vld [vmem:[#allocation13 + $0x2bc8] sm:$0xff]
    %v2341 = vld [vmem:[#allocation13 + $0x2bd0] sm:$0xff]
    %v2342 = vld [vmem:[#allocation13 + $0x2bd8] sm:$0xff]
    %v2343 = vld [vmem:[#allocation13 + $0x2be0] sm:$0xff]
    %v2344 = vld [vmem:[#allocation13 + $0x2be8] sm:$0xff]
    %v2345 = vld [vmem:[#allocation13 + $0x2bf0] sm:$0xff]
    %v2346 = vld [vmem:[#allocation13 + $0x2bf8] sm:$0xff]
    %v2347 = vld [vmem:[#allocation13 + $0x2c00] sm:$0xff]
    %v2348 = vld [vmem:[#allocation13 + $0x2c08] sm:$0xff]
    %v2349 = vld [vmem:[#allocation13 + $0x2c10] sm:$0xff]
    %v2350 = vld [vmem:[#allocation13 + $0x2c18] sm:$0xff]
    %v2351 = vld [vmem:[#allocation13 + $0x2c20] sm:$0xff]
    %v2352 = vld [vmem:[#allocation13 + $0x2c28] sm:$0xff]
    %v2353 = vld [vmem:[#allocation13 + $0x2c30] sm:$0xff]
    %v2354 = vld [vmem:[#allocation13 + $0x2c38] sm:$0xff]
    %v2355 = vld [vmem:[#allocation13 + $0x2c40] sm:$0xff]
    %v2356 = vld [vmem:[#allocation13 + $0x2c48] sm:$0xff]
    %v2357 = vld [vmem:[#allocation13 + $0x2c50] sm:$0xff]
    %v2358 = vld [vmem:[#allocation13 + $0x2c58] sm:$0xff]
    %v2359 = vld [vmem:[#allocation13 + $0x2c60] sm:$0xff]
    %v2360 = vld [vmem:[#allocation13 + $0x2c68] sm:$0xff]
    %v2361 = vld [vmem:[#allocation13 + $0x2c70] sm:$0xff]
    %v2362 = vld [vmem:[#allocation13 + $0x2c78] sm:$0xff]
    %v2363 = vld [vmem:[#allocation13 + $0x2c80] sm:$0xff]
    %v2364 = vld [vmem:[#allocation13 + $0x2c88] sm:$0xff]
    %v2365 = vld [vmem:[#allocation13 + $0x2c90] sm:$0xff]
    %v2366 = vld [vmem:[#allocation13 + $0x2c98] sm:$0xff]
    %v2367 = vld [vmem:[#allocation13 + $0x2ca0] sm:$0xff]
    %v2368 = vld [vmem:[#allocation13 + $0x2ca8] sm:$0xff]
    %v2369 = vld [vmem:[#allocation13 + $0x2cb0] sm:$0xff]
    %v2370 = vld [vmem:[#allocation13 + $0x2cb8] sm:$0xff]
    %v2371 = vld [vmem:[#allocation13 + $0x2cc0] sm:$0xff]
    %v2372 = vld [vmem:[#allocation13 + $0x2cc8] sm:$0xff]
    %v2373 = vld [vmem:[#allocation13 + $0x2cd0] sm:$0xff]
    %v2374 = vld [vmem:[#allocation13 + $0x2cd8] sm:$0xff]
    %v2375 = vld [vmem:[#allocation13 + $0x2ce0] sm:$0xff]
    %v2376 = vld [vmem:[#allocation13 + $0x2ce8] sm:$0xff]
    %v2377 = vld [vmem:[#allocation13 + $0x2cf0] sm:$0xff]
    %v2378 = vld [vmem:[#allocation13 + $0x2cf8] sm:$0xff]
    %v2379 = vld [vmem:[#allocation13 + $0x2d00] sm:$0xff]
    %v2380 = vld [vmem:[#allocation13 + $0x2d08] sm:$0xff]
    %v2381 = vld [vmem:[#allocation13 + $0x2d10] sm:$0xff]
    %v2382 = vld [vmem:[#allocation13 + $0x2d18] sm:$0xff]
    %v2383 = vld [vmem:[#allocation13 + $0x2d20] sm:$0xff]
    %v2384 = vld [vmem:[#allocation13 + $0x2d28] sm:$0xff]
    %v2385 = vld [vmem:[#allocation13 + $0x2d30] sm:$0xff]
    %v2386 = vld [vmem:[#allocation13 + $0x2d38] sm:$0xff]
    %v2387 = vld [vmem:[#allocation13 + $0x2d40] sm:$0xff]
    %v2388 = vld [vmem:[#allocation13 + $0x2d48] sm:$0xff]
    %v2389 = vld [vmem:[#allocation13 + $0x2d50] sm:$0xff]
    %v2390 = vld [vmem:[#allocation13 + $0x2d58] sm:$0xff]
    %v2391 = vld [vmem:[#allocation13 + $0x2d60] sm:$0xff]
    %v2392 = vld [vmem:[#allocation13 + $0x2d68] sm:$0xff]
    %v2393 = vld [vmem:[#allocation13 + $0x2d70] sm:$0xff]
    %v2394 = vld [vmem:[#allocation13 + $0x2d78] sm:$0xff]
    %v2395 = vld [vmem:[#allocation13 + $0x2d80] sm:$0xff]
    %v2396 = vld [vmem:[#allocation13 + $0x2d88] sm:$0xff]
    %v2397 = vld [vmem:[#allocation13 + $0x2d90] sm:$0xff]
    %v2398 = vld [vmem:[#allocation13 + $0x2d98] sm:$0xff]
    %v2399 = vld [vmem:[#allocation13 + $0x2da0] sm:$0xff]
    %v2400 = vld [vmem:[#allocation13 + $0x2da8] sm:$0xff]
    %v2401 = vld [vmem:[#allocation13 + $0x2db0] sm:$0xff]
    %v2402 = vld [vmem:[#allocation13 + $0x2db8] sm:$0xff]
    %v2403 = vld [vmem:[#allocation13 + $0x2dc0] sm:$0xff]
    %v2404 = vld [vmem:[#allocation13 + $0x2dc8] sm:$0xff]
    %v2405 = vld [vmem:[#allocation13 + $0x2dd0] sm:$0xff]
    %v2406 = vld [vmem:[#allocation13 + $0x2dd8] sm:$0xff]
    %v2407 = vld [vmem:[#allocation13 + $0x2de0] sm:$0xff]
    %v2408 = vld [vmem:[#allocation13 + $0x2de8] sm:$0xff]
    %v2409 = vld [vmem:[#allocation13 + $0x2df0] sm:$0xff]
    %v2410 = vld [vmem:[#allocation13 + $0x2df8] sm:$0xff]
    %v2411 = vld [vmem:[#allocation13 + $0x2e00] sm:$0xff]
    %v2412 = vld [vmem:[#allocation13 + $0x2e08] sm:$0xff]
    %v2413 = vld [vmem:[#allocation13 + $0x2e10] sm:$0xff]
    %v2414 = vld [vmem:[#allocation13 + $0x2e18] sm:$0xff]
    %v2415 = vld [vmem:[#allocation13 + $0x2e20] sm:$0xff]
    %v2416 = vld [vmem:[#allocation13 + $0x2e28] sm:$0xff]
    %v2417 = vld [vmem:[#allocation13 + $0x2e30] sm:$0xff]
    %v2418 = vld [vmem:[#allocation13 + $0x2e38] sm:$0xff]
    %v2419 = vld [vmem:[#allocation13 + $0x2e40] sm:$0xff]
    %v2420 = vld [vmem:[#allocation13 + $0x2e48] sm:$0xff]
    %v2421 = vld [vmem:[#allocation13 + $0x2e50] sm:$0xff]
    %v2422 = vld [vmem:[#allocation13 + $0x2e58] sm:$0xff]
    %v2423 = vld [vmem:[#allocation13 + $0x2e60] sm:$0xff]
    %v2424 = vld [vmem:[#allocation13 + $0x2e68] sm:$0xff]
    %v2425 = vld [vmem:[#allocation13 + $0x2e70] sm:$0xff]
    %v2426 = vld [vmem:[#allocation13 + $0x2e78] sm:$0xff]
    %v2427 = vld [vmem:[#allocation13 + $0x2e80] sm:$0xff]
    %v2428 = vld [vmem:[#allocation13 + $0x2e88] sm:$0xff]
    %v2429 = vld [vmem:[#allocation13 + $0x2e90] sm:$0xff]
    %v2430 = vld [vmem:[#allocation13 + $0x2e98] sm:$0xff]
    %v2431 = vld [vmem:[#allocation13 + $0x2ea0] sm:$0xff]
    %v2432 = vld [vmem:[#allocation13 + $0x2ea8] sm:$0xff]
    %v2433 = vld [vmem:[#allocation13 + $0x2eb0] sm:$0xff]
    %v2434 = vld [vmem:[#allocation13 + $0x2eb8] sm:$0xff]
    %v2435 = vld [vmem:[#allocation13 + $0x2ec0] sm:$0xff]
    %v2436 = vld [vmem:[#allocation13 + $0x2ec8] sm:$0xff]
    %v2437 = vld [vmem:[#allocation13 + $0x2ed0] sm:$0xff]
    %v2438 = vld [vmem:[#allocation13 + $0x2ed8] sm:$0xff]
    %v2439 = vld [vmem:[#allocation13 + $0x2ee0] sm:$0xff]
    %v2440 = vld [vmem:[#allocation13 + $0x2ee8] sm:$0xff]
    %v2441 = vld [vmem:[#allocation13 + $0x2ef0] sm:$0xff]
    %v2442 = vld [vmem:[#allocation13 + $0x2ef8] sm:$0xff]
    %v2443 = vld [vmem:[#allocation13 + $0x2f00] sm:$0xff]
    %v2444 = vld [vmem:[#allocation13 + $0x2f08] sm:$0xff]
    %v2445 = vld [vmem:[#allocation13 + $0x2f10] sm:$0xff]
    %v2446 = vld [vmem:[#allocation13 + $0x2f18] sm:$0xff]
    %v2447 = vld [vmem:[#allocation13 + $0x2f20] sm:$0xff]
    %v2448 = vld [vmem:[#allocation13 + $0x2f28] sm:$0xff]
    %v2449 = vld [vmem:[#allocation13 + $0x2f30] sm:$0xff]
    %v2450 = vld [vmem:[#allocation13 + $0x2f38] sm:$0xff]
    %v2451 = vld [vmem:[#allocation13 + $0x2f40] sm:$0xff]
    %v2452 = vld [vmem:[#allocation13 + $0x2f48] sm:$0xff]
    %v2453 = vld [vmem:[#allocation13 + $0x2f50] sm:$0xff]
    %v2454 = vld [vmem:[#allocation13 + $0x2f58] sm:$0xff]
    %v2455 = vld [vmem:[#allocation13 + $0x2f60] sm:$0xff]
    %v2456 = vld [vmem:[#allocation13 + $0x2f68] sm:$0xff]
    %v2457 = vld [vmem:[#allocation13 + $0x2f70] sm:$0xff]
    %v2458 = vld [vmem:[#allocation13 + $0x2f78] sm:$0xff]
    %v2459 = vld [vmem:[#allocation13 + $0x2f80] sm:$0xff]
    %v2460 = vld [vmem:[#allocation13 + $0x2f88] sm:$0xff]
    %v2461 = vld [vmem:[#allocation13 + $0x2f90] sm:$0xff]
    %v2462 = vld [vmem:[#allocation13 + $0x2f98] sm:$0xff]
    %v2463 = vld [vmem:[#allocation13 + $0x2fa0] sm:$0xff]
    %v2464 = vld [vmem:[#allocation13 + $0x2fa8] sm:$0xff]
    %v2465 = vld [vmem:[#allocation13 + $0x2fb0] sm:$0xff]
    %v2466 = vld [vmem:[#allocation13 + $0x2fb8] sm:$0xff]
    %v2467 = vld [vmem:[#allocation13 + $0x2fc0] sm:$0xff]
    %v2468 = vld [vmem:[#allocation13 + $0x2fc8] sm:$0xff]
    %v2469 = vld [vmem:[#allocation13 + $0x2fd0] sm:$0xff]
    %v2470 = vld [vmem:[#allocation13 + $0x2fd8] sm:$0xff]
    %v2471 = vld [vmem:[#allocation13 + $0x2fe0] sm:$0xff]
    %v2472 = vld [vmem:[#allocation13 + $0x2fe8] sm:$0xff]
    %v2473 = vld [vmem:[#allocation13 + $0x2ff0] sm:$0xff]
    %v2474 = vld [vmem:[#allocation13 + $0x2ff8] sm:$0xff]
    %v2475 = vld [vmem:[#allocation13 + $0x3000] sm:$0xff]
    %v2476 = vld [vmem:[#allocation13 + $0x3008] sm:$0xff]
    %v2477 = vld [vmem:[#allocation13 + $0x3010] sm:$0xff]
    %v2478 = vld [vmem:[#allocation13 + $0x3018] sm:$0xff]
    %v2479 = vld [vmem:[#allocation13 + $0x3020] sm:$0xff]
    %v2480 = vld [vmem:[#allocation13 + $0x3028] sm:$0xff]
    %v2481 = vld [vmem:[#allocation13 + $0x3030] sm:$0xff]
    %v2482 = vld [vmem:[#allocation13 + $0x3038] sm:$0xff]
    %v2483 = vld [vmem:[#allocation13 + $0x3040] sm:$0xff]
    %v2484 = vld [vmem:[#allocation13 + $0x3048] sm:$0xff]
    %v2485 = vld [vmem:[#allocation13 + $0x3050] sm:$0xff]
    %v2486 = vld [vmem:[#allocation13 + $0x3058] sm:$0xff]
    %v2487 = vld [vmem:[#allocation13 + $0x3060] sm:$0xff]
    %v2488 = vld [vmem:[#allocation13 + $0x3068] sm:$0xff]
    %v2489 = vld [vmem:[#allocation13 + $0x3070] sm:$0xff]
    %v2490 = vld [vmem:[#allocation13 + $0x3078] sm:$0xff]
    %v2491 = vld [vmem:[#allocation13 + $0x3080] sm:$0xff]
    %v2492 = vld [vmem:[#allocation13 + $0x3088] sm:$0xff]
    %v2493 = vld [vmem:[#allocation13 + $0x3090] sm:$0xff]
    %v2494 = vld [vmem:[#allocation13 + $0x3098] sm:$0xff]
    %v2495 = vld [vmem:[#allocation13 + $0x30a0] sm:$0xff]
    %v2496 = vld [vmem:[#allocation13 + $0x30a8] sm:$0xff]
    %v2497 = vld [vmem:[#allocation13 + $0x30b0] sm:$0xff]
    %v2498 = vld [vmem:[#allocation13 + $0x30b8] sm:$0xff]
    %v2499 = vld [vmem:[#allocation13 + $0x30c0] sm:$0xff]
    %v2500 = vld [vmem:[#allocation13 + $0x30c8] sm:$0xff]
    %v2501 = vld [vmem:[#allocation13 + $0x30d0] sm:$0xff]
    %v2502 = vld [vmem:[#allocation13 + $0x30d8] sm:$0xff]
    %v2503 = vld [vmem:[#allocation13 + $0x30e0] sm:$0xff]
    %v2504 = vld [vmem:[#allocation13 + $0x30e8] sm:$0xff]
    %v2505 = vld [vmem:[#allocation13 + $0x30f0] sm:$0xff]
    %v2506 = vld [vmem:[#allocation13 + $0x30f8] sm:$0xff]
    %v2507 = vld [vmem:[#allocation13 + $0x3100] sm:$0xff]
    %v2508 = vld [vmem:[#allocation13 + $0x3108] sm:$0xff]
    %v2509 = vld [vmem:[#allocation13 + $0x3110] sm:$0xff]
    %v2510 = vld [vmem:[#allocation13 + $0x3118] sm:$0xff]
    %v2511 = vld [vmem:[#allocation13 + $0x3120] sm:$0xff]
    %v2512 = vld [vmem:[#allocation13 + $0x3128] sm:$0xff]
    %v2513 = vld [vmem:[#allocation13 + $0x3130] sm:$0xff]
    %v2514 = vld [vmem:[#allocation13 + $0x3138] sm:$0xff]
    %v2515 = vld [vmem:[#allocation13 + $0x3140] sm:$0xff]
    %v2516 = vld [vmem:[#allocation13 + $0x3148] sm:$0xff]
    %v2517 = vld [vmem:[#allocation13 + $0x3150] sm:$0xff]
    %v2518 = vld [vmem:[#allocation13 + $0x3158] sm:$0xff]
    %v2519 = vld [vmem:[#allocation13 + $0x3160] sm:$0xff]
    %v2520 = vld [vmem:[#allocation13 + $0x3168] sm:$0xff]
    %v2521 = vld [vmem:[#allocation13 + $0x3170] sm:$0xff]
    %v2522 = vld [vmem:[#allocation13 + $0x3178] sm:$0xff]
    %v2523 = vld [vmem:[#allocation13 + $0x3180] sm:$0xff]
    %v2524 = vld [vmem:[#allocation13 + $0x3188] sm:$0xff]
    %v2525 = vld [vmem:[#allocation13 + $0x3190] sm:$0xff]
    %v2526 = vld [vmem:[#allocation13 + $0x3198] sm:$0xff]
    %v2527 = vld [vmem:[#allocation13 + $0x31a0] sm:$0xff]
    %v2528 = vld [vmem:[#allocation13 + $0x31a8] sm:$0xff]
    %v2529 = vld [vmem:[#allocation13 + $0x31b0] sm:$0xff]
    %v2530 = vld [vmem:[#allocation13 + $0x31b8] sm:$0xff]
    %v2531 = vld [vmem:[#allocation13 + $0x31c0] sm:$0xff]
    %v2532 = vld [vmem:[#allocation13 + $0x31c8] sm:$0xff]
    %v2533 = vld [vmem:[#allocation13 + $0x31d0] sm:$0xff]
    %v2534 = vld [vmem:[#allocation13 + $0x31d8] sm:$0xff]
    %v2535 = vld [vmem:[#allocation13 + $0x31e0] sm:$0xff]
    %v2536 = vld [vmem:[#allocation13 + $0x31e8] sm:$0xff]
    %v2537 = vld [vmem:[#allocation13 + $0x31f0] sm:$0xff]
    %v2538 = vld [vmem:[#allocation13 + $0x31f8] sm:$0xff]
    %v2539 = vld [vmem:[#allocation13 + $0x3200] sm:$0xff]
    %v2540 = vld [vmem:[#allocation13 + $0x3208] sm:$0xff]
    %v2541 = vld [vmem:[#allocation13 + $0x3210] sm:$0xff]
    %v2542 = vld [vmem:[#allocation13 + $0x3218] sm:$0xff]
    %v2543 = vld [vmem:[#allocation13 + $0x3220] sm:$0xff]
    %v2544 = vld [vmem:[#allocation13 + $0x3228] sm:$0xff]
    %v2545 = vld [vmem:[#allocation13 + $0x3230] sm:$0xff]
    %v2546 = vld [vmem:[#allocation13 + $0x3238] sm:$0xff]
    %v2547 = vld [vmem:[#allocation13 + $0x3240] sm:$0xff]
    %v2548 = vld [vmem:[#allocation13 + $0x3248] sm:$0xff]
    %v2549 = vld [vmem:[#allocation13 + $0x3250] sm:$0xff]
    %v2550 = vld [vmem:[#allocation13 + $0x3258] sm:$0xff]
    %v2551 = vld [vmem:[#allocation13 + $0x3260] sm:$0xff]
    %v2552 = vld [vmem:[#allocation13 + $0x3268] sm:$0xff]
    %v2553 = vld [vmem:[#allocation13 + $0x3270] sm:$0xff]
    %v2554 = vld [vmem:[#allocation13 + $0x3278] sm:$0xff]
    %v2555 = vld [vmem:[#allocation13 + $0x3280] sm:$0xff]
    %v2556 = vld [vmem:[#allocation13 + $0x3288] sm:$0xff]
    %v2557 = vld [vmem:[#allocation13 + $0x3290] sm:$0xff]
    %v2558 = vld [vmem:[#allocation13 + $0x3298] sm:$0xff]
    %v2559 = vld [vmem:[#allocation13 + $0x32a0] sm:$0xff]
    %v2560 = vld [vmem:[#allocation13 + $0x32a8] sm:$0xff]
    %v2561 = vld [vmem:[#allocation13 + $0x32b0] sm:$0xff]
    %v2562 = vld [vmem:[#allocation13 + $0x32b8] sm:$0xff]
    %v2563 = vld [vmem:[#allocation13 + $0x32c0] sm:$0xff]
    %v2564 = vld [vmem:[#allocation13 + $0x32c8] sm:$0xff]
    %v2565 = vld [vmem:[#allocation13 + $0x32d0] sm:$0xff]
    %v2566 = vld [vmem:[#allocation13 + $0x32d8] sm:$0xff]
    %v2567 = vld [vmem:[#allocation13 + $0x32e0] sm:$0xff]
    %v2568 = vld [vmem:[#allocation13 + $0x32e8] sm:$0xff]
    %v2569 = vld [vmem:[#allocation13 + $0x32f0] sm:$0xff]
    %v2570 = vld [vmem:[#allocation13 + $0x32f8] sm:$0xff]
    %v2571 = vld [vmem:[#allocation13 + $0x3300] sm:$0xff]
    %v2572 = vld [vmem:[#allocation13 + $0x3308] sm:$0xff]
    %v2573 = vld [vmem:[#allocation13 + $0x3310] sm:$0xff]
    %v2574 = vld [vmem:[#allocation13 + $0x3318] sm:$0xff]
    %v2575 = vld [vmem:[#allocation13 + $0x3320] sm:$0xff]
    %v2576 = vld [vmem:[#allocation13 + $0x3328] sm:$0xff]
    %v2577 = vld [vmem:[#allocation13 + $0x3330] sm:$0xff]
    %v2578 = vld [vmem:[#allocation13 + $0x3338] sm:$0xff]
    %v2579 = vld [vmem:[#allocation13 + $0x3340] sm:$0xff]
    %v2580 = vld [vmem:[#allocation13 + $0x3348] sm:$0xff]
    %v2581 = vld [vmem:[#allocation13 + $0x3350] sm:$0xff]
    %v2582 = vld [vmem:[#allocation13 + $0x3358] sm:$0xff]
    %v2583 = vld [vmem:[#allocation13 + $0x3360] sm:$0xff]
    %v2584 = vld [vmem:[#allocation13 + $0x3368] sm:$0xff]
    %v2585 = vld [vmem:[#allocation13 + $0x3370] sm:$0xff]
    %v2586 = vld [vmem:[#allocation13 + $0x3378] sm:$0xff]
    %v2587 = vld [vmem:[#allocation13 + $0x3380] sm:$0xff]
    %v2588 = vld [vmem:[#allocation13 + $0x3388] sm:$0xff]
    %v2589 = vld [vmem:[#allocation13 + $0x3390] sm:$0xff]
    %v2590 = vld [vmem:[#allocation13 + $0x3398] sm:$0xff]
    %v2591 = vld [vmem:[#allocation13 + $0x33a0] sm:$0xff]
    %v2592 = vld [vmem:[#allocation13 + $0x33a8] sm:$0xff]
    %v2593 = vld [vmem:[#allocation13 + $0x33b0] sm:$0xff]
    %v2594 = vld [vmem:[#allocation13 + $0x33b8] sm:$0xff]
    %v2595 = vld [vmem:[#allocation13 + $0x33c0] sm:$0xff]
    %v2596 = vld [vmem:[#allocation13 + $0x33c8] sm:$0xff]
    %v2597 = vld [vmem:[#allocation13 + $0x33d0] sm:$0xff]
    %v2598 = vld [vmem:[#allocation13 + $0x33d8] sm:$0xff]
    %v2599 = vld [vmem:[#allocation13 + $0x33e0] sm:$0xff]
    %v2600 = vld [vmem:[#allocation13 + $0x33e8] sm:$0xff]
    %v2601 = vld [vmem:[#allocation13 + $0x33f0] sm:$0xff]
    %v2602 = vld [vmem:[#allocation13 + $0x33f8] sm:$0xff]
    %v2603 = vld [vmem:[#allocation13 + $0x3400] sm:$0xff]
    %v2604 = vld [vmem:[#allocation13 + $0x3408] sm:$0xff]
    %v2605 = vld [vmem:[#allocation13 + $0x3410] sm:$0xff]
    %v2606 = vld [vmem:[#allocation13 + $0x3418] sm:$0xff]
    %v2607 = vld [vmem:[#allocation13 + $0x3420] sm:$0xff]
    %v2608 = vld [vmem:[#allocation13 + $0x3428] sm:$0xff]
    %v2609 = vld [vmem:[#allocation13 + $0x3430] sm:$0xff]
    %v2610 = vld [vmem:[#allocation13 + $0x3438] sm:$0xff]
    %v2611 = vld [vmem:[#allocation13 + $0x3440] sm:$0xff]
    %v2612 = vld [vmem:[#allocation13 + $0x3448] sm:$0xff]
    %v2613 = vld [vmem:[#allocation13 + $0x3450] sm:$0xff]
    %v2614 = vld [vmem:[#allocation13 + $0x3458] sm:$0xff]
    %v2615 = vld [vmem:[#allocation13 + $0x3460] sm:$0xff]
    %v2616 = vld [vmem:[#allocation13 + $0x3468] sm:$0xff]
    %v2617 = vld [vmem:[#allocation13 + $0x3470] sm:$0xff]
    %v2618 = vld [vmem:[#allocation13 + $0x3478] sm:$0xff]
    %v2619 = vld [vmem:[#allocation13 + $0x3480] sm:$0xff]
    %v2620 = vld [vmem:[#allocation13 + $0x3488] sm:$0xff]
    %v2621 = vld [vmem:[#allocation13 + $0x3490] sm:$0xff]
    %v2622 = vld [vmem:[#allocation13 + $0x3498] sm:$0xff]
    %v2623 = vld [vmem:[#allocation13 + $0x34a0] sm:$0xff]
    %v2624 = vld [vmem:[#allocation13 + $0x34a8] sm:$0xff]
    %v2625 = vld [vmem:[#allocation13 + $0x34b0] sm:$0xff]
    %v2626 = vld [vmem:[#allocation13 + $0x34b8] sm:$0xff]
    %v2627 = vld [vmem:[#allocation13 + $0x34c0] sm:$0xff]
    %v2628 = vld [vmem:[#allocation13 + $0x34c8] sm:$0xff]
    %v2629 = vld [vmem:[#allocation13 + $0x34d0] sm:$0xff]
    %v2630 = vld [vmem:[#allocation13 + $0x34d8] sm:$0xff]
    %v2631 = vld [vmem:[#allocation13 + $0x34e0] sm:$0xff]
    %v2632 = vld [vmem:[#allocation13 + $0x34e8] sm:$0xff]
    %v2633 = vld [vmem:[#allocation13 + $0x34f0] sm:$0xff]
    %v2634 = vld [vmem:[#allocation13 + $0x34f8] sm:$0xff]
    %v2635 = vld [vmem:[#allocation13 + $0x3500] sm:$0xff]
    %v2636 = vld [vmem:[#allocation13 + $0x3508] sm:$0xff]
    %v2637 = vld [vmem:[#allocation13 + $0x3510] sm:$0xff]
    %v2638 = vld [vmem:[#allocation13 + $0x3518] sm:$0xff]
    %v2639 = vld [vmem:[#allocation13 + $0x3520] sm:$0xff]
    %v2640 = vld [vmem:[#allocation13 + $0x3528] sm:$0xff]
    %v2641 = vld [vmem:[#allocation13 + $0x3530] sm:$0xff]
    %v2642 = vld [vmem:[#allocation13 + $0x3538] sm:$0xff]
    %v2643 = vld [vmem:[#allocation13 + $0x3540] sm:$0xff]
    %v2644 = vld [vmem:[#allocation13 + $0x3548] sm:$0xff]
    %v2645 = vld [vmem:[#allocation13 + $0x3550] sm:$0xff]
    %v2646 = vld [vmem:[#allocation13 + $0x3558] sm:$0xff]
    %v2647 = vld [vmem:[#allocation13 + $0x3560] sm:$0xff]
    %v2648 = vld [vmem:[#allocation13 + $0x3568] sm:$0xff]
    %v2649 = vld [vmem:[#allocation13 + $0x3570] sm:$0xff]
    %v2650 = vld [vmem:[#allocation13 + $0x3578] sm:$0xff]
    %v2651 = vld [vmem:[#allocation13 + $0x3580] sm:$0xff]
    %v2652 = vld [vmem:[#allocation13 + $0x3588] sm:$0xff]
    %v2653 = vld [vmem:[#allocation13 + $0x3590] sm:$0xff]
    %v2654 = vld [vmem:[#allocation13 + $0x3598] sm:$0xff]
    %v2655 = vld [vmem:[#allocation13 + $0x35a0] sm:$0xff]
    %v2656 = vld [vmem:[#allocation13 + $0x35a8] sm:$0xff]
    %v2657 = vld [vmem:[#allocation13 + $0x35b0] sm:$0xff]
    %v2658 = vld [vmem:[#allocation13 + $0x35b8] sm:$0xff]
    %v2659 = vld [vmem:[#allocation13 + $0x35c0] sm:$0xff]
    %v2660 = vld [vmem:[#allocation13 + $0x35c8] sm:$0xff]
    %v2661 = vld [vmem:[#allocation13 + $0x35d0] sm:$0xff]
    %v2662 = vld [vmem:[#allocation13 + $0x35d8] sm:$0xff]
    %v2663 = vld [vmem:[#allocation13 + $0x35e0] sm:$0xff]
    %v2664 = vld [vmem:[#allocation13 + $0x35e8] sm:$0xff]
    %v2665 = vld [vmem:[#allocation13 + $0x35f0] sm:$0xff]
    %v2666 = vld [vmem:[#allocation13 + $0x35f8] sm:$0xff]
    %v2667 = vld [vmem:[#allocation13 + $0x3600] sm:$0xff]
    %v2668 = vld [vmem:[#allocation13 + $0x3608] sm:$0xff]
    %v2669 = vld [vmem:[#allocation13 + $0x3610] sm:$0xff]
    %v2670 = vld [vmem:[#allocation13 + $0x3618] sm:$0xff]
    %v2671 = vld [vmem:[#allocation13 + $0x3620] sm:$0xff]
    %v2672 = vld [vmem:[#allocation13 + $0x3628] sm:$0xff]
    %v2673 = vld [vmem:[#allocation13 + $0x3630] sm:$0xff]
    %v2674 = vld [vmem:[#allocation13 + $0x3638] sm:$0xff]
    %v2675 = vld [vmem:[#allocation13 + $0x3640] sm:$0xff]
    %v2676 = vld [vmem:[#allocation13 + $0x3648] sm:$0xff]
    %v2677 = vld [vmem:[#allocation13 + $0x3650] sm:$0xff]
    %v2678 = vld [vmem:[#allocation13 + $0x3658] sm:$0xff]
    %v2679 = vld [vmem:[#allocation13 + $0x3660] sm:$0xff]
    %v2680 = vld [vmem:[#allocation13 + $0x3668] sm:$0xff]
    %v2681 = vld [vmem:[#allocation13 + $0x3670] sm:$0xff]
    %v2682 = vld [vmem:[#allocation13 + $0x3678] sm:$0xff]
    %v2683 = vld [vmem:[#allocation13 + $0x3680] sm:$0xff]
    %v2684 = vld [vmem:[#allocation13 + $0x3688] sm:$0xff]
    %v2685 = vld [vmem:[#allocation13 + $0x3690] sm:$0xff]
    %v2686 = vld [vmem:[#allocation13 + $0x3698] sm:$0xff]
    %v2687 = vld [vmem:[#allocation13 + $0x36a0] sm:$0xff]
    %v2688 = vld [vmem:[#allocation13 + $0x36a8] sm:$0xff]
    %v2689 = vld [vmem:[#allocation13 + $0x36b0] sm:$0xff]
    %v2690 = vld [vmem:[#allocation13 + $0x36b8] sm:$0xff]
    %v2691 = vld [vmem:[#allocation13 + $0x36c0] sm:$0xff]
    %v2692 = vld [vmem:[#allocation13 + $0x36c8] sm:$0xff]
    %v2693 = vld [vmem:[#allocation13 + $0x36d0] sm:$0xff]
    %v2694 = vld [vmem:[#allocation13 + $0x36d8] sm:$0xff]
    %v2695 = vld [vmem:[#allocation13 + $0x36e0] sm:$0xff]
    %v2696 = vld [vmem:[#allocation13 + $0x36e8] sm:$0xff]
    %v2697 = vld [vmem:[#allocation13 + $0x36f0] sm:$0xff]
    %v2698 = vld [vmem:[#allocation13 + $0x36f8] sm:$0xff]
    %v2699 = vld [vmem:[#allocation13 + $0x3700] sm:$0xff]
    %v2700 = vld [vmem:[#allocation13 + $0x3708] sm:$0xff]
    %v2701 = vld [vmem:[#allocation13 + $0x3710] sm:$0xff]
    %v2702 = vld [vmem:[#allocation13 + $0x3718] sm:$0xff]
    %v2703 = vld [vmem:[#allocation13 + $0x3720] sm:$0xff]
    %v2704 = vld [vmem:[#allocation13 + $0x3728] sm:$0xff]
    %v2705 = vld [vmem:[#allocation13 + $0x3730] sm:$0xff]
    %v2706 = vld [vmem:[#allocation13 + $0x3738] sm:$0xff]
    %v2707 = vld [vmem:[#allocation13 + $0x3740] sm:$0xff]
    %v2708 = vld [vmem:[#allocation13 + $0x3748] sm:$0xff]
    %v2709 = vld [vmem:[#allocation13 + $0x3750] sm:$0xff]
    %v2710 = vld [vmem:[#allocation13 + $0x3758] sm:$0xff]
    %v2711 = vld [vmem:[#allocation13 + $0x3760] sm:$0xff]
    %v2712 = vld [vmem:[#allocation13 + $0x3768] sm:$0xff]
    %v2713 = vld [vmem:[#allocation13 + $0x3770] sm:$0xff]
    %v2714 = vld [vmem:[#allocation13 + $0x3778] sm:$0xff]
    %v2715 = vld [vmem:[#allocation13 + $0x3780] sm:$0xff]
    %v2716 = vld [vmem:[#allocation13 + $0x3788] sm:$0xff]
    %v2717 = vld [vmem:[#allocation13 + $0x3790] sm:$0xff]
    %v2718 = vld [vmem:[#allocation13 + $0x3798] sm:$0xff]
    %v2719 = vld [vmem:[#allocation13 + $0x37a0] sm:$0xff]
    %v2720 = vld [vmem:[#allocation13 + $0x37a8] sm:$0xff]
    %v2721 = vld [vmem:[#allocation13 + $0x37b0] sm:$0xff]
    %v2722 = vld [vmem:[#allocation13 + $0x37b8] sm:$0xff]
    %v2723 = vld [vmem:[#allocation13 + $0x37c0] sm:$0xff]
    %v2724 = vld [vmem:[#allocation13 + $0x37c8] sm:$0xff]
    %v2725 = vld [vmem:[#allocation13 + $0x37d0] sm:$0xff]
    %v2726 = vld [vmem:[#allocation13 + $0x37d8] sm:$0xff]
    %v2727 = vld [vmem:[#allocation13 + $0x37e0] sm:$0xff]
    %v2728 = vld [vmem:[#allocation13 + $0x37e8] sm:$0xff]
    %v2729 = vld [vmem:[#allocation13 + $0x37f0] sm:$0xff]
    %v2730 = vld [vmem:[#allocation13 + $0x37f8] sm:$0xff]
    %v2731 = vld [vmem:[#allocation13 + $0x3800] sm:$0xff]
    %v2732 = vld [vmem:[#allocation13 + $0x3808] sm:$0xff]
    %v2733 = vld [vmem:[#allocation13 + $0x3810] sm:$0xff]
    %v2734 = vld [vmem:[#allocation13 + $0x3818] sm:$0xff]
    %v2735 = vld [vmem:[#allocation13 + $0x3820] sm:$0xff]
    %v2736 = vld [vmem:[#allocation13 + $0x3828] sm:$0xff]
    %v2737 = vld [vmem:[#allocation13 + $0x3830] sm:$0xff]
    %v2738 = vld [vmem:[#allocation13 + $0x3838] sm:$0xff]
    %v2739 = vld [vmem:[#allocation13 + $0x3840] sm:$0xff]
    %v2740 = vld [vmem:[#allocation13 + $0x3848] sm:$0xff]
    %v2741 = vld [vmem:[#allocation13 + $0x3850] sm:$0xff]
    %v2742 = vld [vmem:[#allocation13 + $0x3858] sm:$0xff]
    %v2743 = vld [vmem:[#allocation13 + $0x3860] sm:$0xff]
    %v2744 = vld [vmem:[#allocation13 + $0x3868] sm:$0xff]
    %v2745 = vld [vmem:[#allocation13 + $0x3870] sm:$0xff]
    %v2746 = vld [vmem:[#allocation13 + $0x3878] sm:$0xff]
    %v2747 = vld [vmem:[#allocation13 + $0x3880] sm:$0xff]
    %v2748 = vld [vmem:[#allocation13 + $0x3888] sm:$0xff]
    %v2749 = vld [vmem:[#allocation13 + $0x3890] sm:$0xff]
    %v2750 = vld [vmem:[#allocation13 + $0x3898] sm:$0xff]
    %v2751 = vld [vmem:[#allocation13 + $0x38a0] sm:$0xff]
    %v2752 = vld [vmem:[#allocation13 + $0x38a8] sm:$0xff]
    %v2753 = vld [vmem:[#allocation13 + $0x38b0] sm:$0xff]
    %v2754 = vld [vmem:[#allocation13 + $0x38b8] sm:$0xff]
    %v2755 = vld [vmem:[#allocation13 + $0x38c0] sm:$0xff]
    %v2756 = vld [vmem:[#allocation13 + $0x38c8] sm:$0xff]
    %v2757 = vld [vmem:[#allocation13 + $0x38d0] sm:$0xff]
    %v2758 = vld [vmem:[#allocation13 + $0x38d8] sm:$0xff]
    %v2759 = vld [vmem:[#allocation13 + $0x38e0] sm:$0xff]
    %v2760 = vld [vmem:[#allocation13 + $0x38e8] sm:$0xff]
    %v2761 = vld [vmem:[#allocation13 + $0x38f0] sm:$0xff]
    %v2762 = vld [vmem:[#allocation13 + $0x38f8] sm:$0xff]
    %v2763 = vld [vmem:[#allocation13 + $0x3900] sm:$0xff]
    %v2764 = vld [vmem:[#allocation13 + $0x3908] sm:$0xf]
    %v2765 = vld [vmem:[#allocation13 + $0x3910] sm:$0xf]
    %v2766 = vld [vmem:[#allocation13 + $0x3918] sm:$0xf]
    %v2767 = vld [vmem:[#allocation13 + $0x3920] sm:$0xf]
    %v2768 = vld [vmem:[#allocation13 + $0x3928] sm:$0xf]
    %v2769 = vld [vmem:[#allocation13 + $0x3930] sm:$0xf]
    %v2770 = vld [vmem:[#allocation13 + $0x3938] sm:$0xf]
    %v2771 = vld [vmem:[#allocation13 + $0x3940] sm:$0xf]
    %v2772 = vld [vmem:[#allocation13 + $0x3948] sm:$0xf]
    %v2773 = vld [vmem:[#allocation13 + $0x3950] sm:$0xf]
    %v2774 = vld [vmem:[#allocation13 + $0x3958] sm:$0xf]
    %v2775 = vld [vmem:[#allocation13 + $0x3960] sm:$0xf]
    %v2776 = vld [vmem:[#allocation13 + $0x3968] sm:$0xf]
    %v2777 = vld [vmem:[#allocation13 + $0x3970] sm:$0xf]
    %v2778 = vld [vmem:[#allocation13 + $0x3978] sm:$0xf]
    %v2779 = vld [vmem:[#allocation13 + $0x3980] sm:$0xf]
    %v2780 = vld [vmem:[#allocation13 + $0x3988] sm:$0xf]
    %v2781 = vld [vmem:[#allocation13 + $0x3990] sm:$0xf]
    %v2782 = vld [vmem:[#allocation13 + $0x3998] sm:$0xf]
    %v2783 = vld [vmem:[#allocation13 + $0x39a0] sm:$0xf]
    %v2784 = vld [vmem:[#allocation13 + $0x39a8] sm:$0xf]
    %v2785 = vld [vmem:[#allocation13 + $0x39b0] sm:$0xf]
    %v2786 = vld [vmem:[#allocation13 + $0x39b8] sm:$0xf]
    %v2787 = vld [vmem:[#allocation13 + $0x39c0] sm:$0xf]
    %v2788 = vld [vmem:[#allocation13 + $0x39c8] sm:$0xf]
    %v2789 = vld [vmem:[#allocation15] sm:$0xff]
    %v2790 = vld [vmem:[#allocation15 + $0x8] sm:$0xff]
    %v2791 = vld [vmem:[#allocation15 + $0x10] sm:$0xff]
    %v2792 = vld [vmem:[#allocation15 + $0x18] sm:$0x1]
    %v2797 = vlaneseq
    %v2798 = vshrl.u32 %v2797, 7
    %v2799 = vsub.s32 0, %v2798
    %v2800 = vrot.slane %v2789, %v2799
    %v2801 = vlaneseq
    %v2802 = vshrl.u32 %v2801, 7
    %v2803 = vsub.s32 1, %v2802
    %v2804 = vrot.slane %v2789, %v2803
    %v2805 = vlaneseq
    %v2806 = vshrl.u32 %v2805, 7
    %v2807 = vsub.s32 2, %v2806
    %v2808 = vrot.slane %v2789, %v2807
    %v2809 = vlaneseq
    %v2810 = vshrl.u32 %v2809, 7
    %v2811 = vsub.s32 3, %v2810
    %v2812 = vrot.slane %v2789, %v2811
    %v2813 = vlaneseq
    %v2814 = vshrl.u32 %v2813, 7
    %v2815 = vsub.s32 4, %v2814
    %v2816 = vrot.slane %v2789, %v2815
    %v2817 = vlaneseq
    %v2818 = vshrl.u32 %v2817, 7
    %v2819 = vsub.s32 5, %v2818
    %v2820 = vrot.slane %v2789, %v2819
    %v2821 = vlaneseq
    %v2822 = vshrl.u32 %v2821, 7
    %v2823 = vsub.s32 6, %v2822
    %v2824 = vrot.slane %v2789, %v2823
    %v2825 = vlaneseq
    %v2826 = vshrl.u32 %v2825, 7
    %v2827 = vsub.s32 7, %v2826
    %v2828 = vrot.slane %v2789, %v2827
    %v2829 = vlaneseq
    %v2830 = vshrl.u32 %v2829, 7
    %v2831 = vsub.s32 0, %v2830
    %v2832 = vrot.slane %v2790, %v2831
    %v2833 = vlaneseq
    %v2834 = vshrl.u32 %v2833, 7
    %v2835 = vsub.s32 1, %v2834
    %v2836 = vrot.slane %v2790, %v2835
    %v2837 = vlaneseq
    %v2838 = vshrl.u32 %v2837, 7
    %v2839 = vsub.s32 2, %v2838
    %v2840 = vrot.slane %v2790, %v2839
    %v2841 = vlaneseq
    %v2842 = vshrl.u32 %v2841, 7
    %v2843 = vsub.s32 3, %v2842
    %v2844 = vrot.slane %v2790, %v2843
    %v2845 = vlaneseq
    %v2846 = vshrl.u32 %v2845, 7
    %v2847 = vsub.s32 4, %v2846
    %v2848 = vrot.slane %v2790, %v2847
    %v2849 = vlaneseq
    %v2850 = vshrl.u32 %v2849, 7
    %v2851 = vsub.s32 5, %v2850
    %v2852 = vrot.slane %v2790, %v2851
    %v2853 = vlaneseq
    %v2854 = vshrl.u32 %v2853, 7
    %v2855 = vsub.s32 6, %v2854
    %v2856 = vrot.slane %v2790, %v2855
    %v2857 = vlaneseq
    %v2858 = vshrl.u32 %v2857, 7
    %v2859 = vsub.s32 7, %v2858
    %v2860 = vrot.slane %v2790, %v2859
    %v2861 = vlaneseq
    %v2862 = vshrl.u32 %v2861, 7
    %v2863 = vsub.s32 0, %v2862
    %v2864 = vrot.slane %v2791, %v2863
    %v2865 = vlaneseq
    %v2866 = vshrl.u32 %v2865, 7
    %v2867 = vsub.s32 1, %v2866
    %v2868 = vrot.slane %v2791, %v2867
    %v2869 = vlaneseq
    %v2870 = vshrl.u32 %v2869, 7
    %v2871 = vsub.s32 2, %v2870
    %v2872 = vrot.slane %v2791, %v2871
    %v2873 = vlaneseq
    %v2874 = vshrl.u32 %v2873, 7
    %v2875 = vsub.s32 3, %v2874
    %v2876 = vrot.slane %v2791, %v2875
    %v2877 = vlaneseq
    %v2878 = vshrl.u32 %v2877, 7
    %v2879 = vsub.s32 4, %v2878
    %v2880 = vrot.slane %v2791, %v2879
    %v2881 = vlaneseq
    %v2882 = vshrl.u32 %v2881, 7
    %v2883 = vsub.s32 5, %v2882
    %v2884 = vrot.slane %v2791, %v2883
    %v2885 = vlaneseq
    %v2886 = vshrl.u32 %v2885, 7
    %v2887 = vsub.s32 6, %v2886
    %v2888 = vrot.slane %v2791, %v2887
    %v2889 = vlaneseq
    %v2890 = vshrl.u32 %v2889, 7
    %v2891 = vsub.s32 7, %v2890
    %v2892 = vrot.slane %v2791, %v2891
    %v2893 = vlaneseq
    %v2894 = vshrl.u32 %v2893, 7
    %v2895 = vsub.s32 0, %v2894
    %v2896 = vrot.slane %v2792, %v2895
    %v2923 = vsel %vm733, %v938, 0
    %v2926 = vsel %vm738, %v2764, 0
    %v2929 = vsel %vm738, %v2765, 0
    %v2932 = vsel %vm738, %v2766, 0
    %v2935 = vsel %vm738, %v2767, 0
    %v2938 = vsel %vm738, %v2768, 0
    %v2941 = vsel %vm738, %v2769, 0
    %v2944 = vsel %vm738, %v2770, 0
    %v2947 = vsel %vm738, %v2771, 0
    %v2950 = vsel %vm738, %v2772, 0
    %v2953 = vsel %vm738, %v2773, 0
    %v2956 = vsel %vm738, %v2774, 0
    %v2959 = vsel %vm738, %v2775, 0
    %v2962 = vsel %vm738, %v2776, 0
    %v2965 = vsel %vm738, %v2777, 0
    %v2968 = vsel %vm738, %v2778, 0
    %v2971 = vsel %vm738, %v2779, 0
    %v2974 = vsel %vm738, %v2780, 0
    %v2977 = vsel %vm738, %v2781, 0
    %v2980 = vsel %vm738, %v2782, 0
    %v2983 = vsel %vm738, %v2783, 0
    %v2986 = vsel %vm738, %v2784, 0
    %v2989 = vsel %vm738, %v2785, 0
    %v2992 = vsel %vm738, %v2786, 0
    %v2995 = vsel %vm738, %v2787, 0
    %v2998 = vsel %vm738, %v2788, 0
    %3000 = vmatprep.subr.mxu0 %v1315
    %3001 = vmatpush1.msra.mxu0 %v1314
    %3002 = vmatprep.subr.mxu0 %v1290
    %3003 = vmatpush1.msra.mxu0 %v1289
    %3004 = vmatprep.subr.mxu0 %v1265
    %3005 = vmatpush1.msra.mxu0 %v1264
    %3006 = vmatprep.subr.mxu0 %v1240
    %3007 = vmatpush1.msra.mxu0 %v1239
    %3008 = vmatprep.subr.mxu0 %v1215
    %3009 = vmatpush1.msra.mxu0 %v1214
    %3010 = vmatprep.subr.mxu0 %v1190
    %3011 = vmatpush1.msra.mxu0 %v1189
    %3012 = vmatprep.subr.mxu0 %v1165
    %3013 = vmatpush1.msra.mxu0 %v1164
    %3014 = vmatprep.subr.mxu0 %v1140
    %3015 = vmatpush1.msra.mxu0 %v1139
    %3016 = vmatprep.subr.mxu0 %v1115
    %3017 = vmatpush1.msra.mxu0 %v1114
    %3018 = vmatprep.subr.mxu0 %v1090
    %3019 = vmatpush1.msra.mxu0 %v1089
    %3020 = vmatprep.subr.mxu0 %v1065
    %3021 = vmatpush1.msra.mxu0 %v1064
    %3022 = vmatprep.subr.mxu0 %v1040
    %3023 = vmatpush1.msra.mxu0 %v1039
    %3024 = vmatprep.subr.mxu0 %v1015
    %3025 = vmatpush1.msra.mxu0 %v1014
    %3026 = vmatprep.subr.mxu0 %v990
    %3027 = vmatpush1.msra.mxu0 %v989
    %3028 = vmatprep.subr.mxu0 %v965
    %3029 = vmatpush1.msra.mxu0 %v964
    %3030 = vmatprep.subr.mxu0 %v940
    %3031 = vmatpush1.msra.mxu0 %v939
    %3032 = vmatprep.subr.mxu0 %v1715
    %3033 = vmatpush2.msra.mxu0 %v1714
    %3034 = vmatprep.subr.mxu0 %v1690
    %3035 = vmatpush2.msra.mxu0 %v1689
    %3036 = vmatprep.subr.mxu0 %v1665
    %3037 = vmatpush2.msra.mxu0 %v1664
    %3038 = vmatprep.subr.mxu0 %v1640
    %3039 = vmatpush2.msra.mxu0 %v1639
    %3040 = vmatprep.subr.mxu0 %v1615
    %3041 = vmatpush2.msra.mxu0 %v1614
    %3042 = vmatprep.subr.mxu0 %v1590
    %3043 = vmatpush2.msra.mxu0 %v1589
    %3044 = vmatprep.subr.mxu0 %v1565
    %3045 = vmatpush2.msra.mxu0 %v1564
    %3046 = vmatprep.subr.mxu0 %v1540
    %3047 = vmatpush2.msra.mxu0 %v1539
    %3048 = vmatprep.subr.mxu0 %v1515
    %3049 = vmatpush2.msra.mxu0 %v1514
    %3050 = vmatprep.subr.mxu0 %v1490
    %3051 = vmatpush2.msra.mxu0 %v1489
    %3052 = vmatprep.subr.mxu0 %v1465
    %3053 = vmatpush2.msra.mxu0 %v1464
    %3054 = vmatprep.subr.mxu0 %v1440
    %3055 = vmatpush2.msra.mxu0 %v1439
    %3056 = vmatprep.subr.mxu0 %v1415
    %3057 = vmatpush2.msra.mxu0 %v1414
    %3058 = vmatprep.subr.mxu0 %v1390
    %3059 = vmatpush2.msra.mxu0 %v1389
    %3060 = vmatprep.subr.mxu0 %v1365
    %3061 = vmatpush2.msra.mxu0 %v1364
    %3062 = vmatprep.subr.mxu0 %v1340
    %3063 = vmatpush2.msra.mxu0 %v1339
    %3064 = vmatprep.mubr.f32.mxu0 %v935
    %3065 = vmatmul.mubr.f32.gmra.mxu0 %v934
    %v3066 = vpop.f32.mrf.mxu0
    %v3067 = vadd.f32 %v2800, %v3066
    %v3068 = vpop.f32.mrf.mxu0
    %v3069 = vadd.f32 %v2804, %v3068
    %3070 = vdwg.mxu0
    %3071 = vmatprep.subr.mxu0 %v2115
    %3072 = vmatpush1.msra.mxu0 %v2114
    %3073 = vmatprep.subr.mxu0 %v2090
    %3074 = vmatpush1.msra.mxu0 %v2089
    %3075 = vmatprep.subr.mxu0 %v2065
    %3076 = vmatpush1.msra.mxu0 %v2064
    %3077 = vmatprep.subr.mxu0 %v2040
    %3078 = vmatpush1.msra.mxu0 %v2039
    %3079 = vmatprep.subr.mxu0 %v2015
    %3080 = vmatpush1.msra.mxu0 %v2014
    %3081 = vmatprep.subr.mxu0 %v1990
    %3082 = vmatpush1.msra.mxu0 %v1989
    %3083 = vmatprep.subr.mxu0 %v1965
    %3084 = vmatpush1.msra.mxu0 %v1964
    %3085 = vmatprep.subr.mxu0 %v1940
    %3086 = vmatpush1.msra.mxu0 %v1939
    %3087 = vmatprep.subr.mxu0 %v1915
    %3088 = vmatpush1.msra.mxu0 %v1914
    %3089 = vmatprep.subr.mxu0 %v1890
    %3090 = vmatpush1.msra.mxu0 %v1889
    %3091 = vmatprep.subr.mxu0 %v1865
    %3092 = vmatpush1.msra.mxu0 %v1864
    %3093 = vmatprep.subr.mxu0 %v1840
    %3094 = vmatpush1.msra.mxu0 %v1839
    %3095 = vmatprep.subr.mxu0 %v1815
    %3096 = vmatpush1.msra.mxu0 %v1814
    %3097 = vmatprep.subr.mxu0 %v1790
    %3098 = vmatpush1.msra.mxu0 %v1789
    %3099 = vmatprep.subr.mxu0 %v1765
    %3100 = vmatpush1.msra.mxu0 %v1764
    %3101 = vmatprep.subr.mxu0 %v1740
    %3102 = vmatpush1.msra.mxu0 %v1739
    %3103 = vmatprep.subr.mxu0 %v2515
    %3104 = vmatpush2.msra.mxu0 %v2514
    %3105 = vmatprep.subr.mxu0 %v2490
    %3106 = vmatpush2.msra.mxu0 %v2489
    %3107 = vmatprep.subr.mxu0 %v2465
    %3108 = vmatpush2.msra.mxu0 %v2464
    %3109 = vmatprep.subr.mxu0 %v2440
    %3110 = vmatpush2.msra.mxu0 %v2439
    %3111 = vmatprep.subr.mxu0 %v2415
    %3112 = vmatpush2.msra.mxu0 %v2414
    %3113 = vmatprep.subr.mxu0 %v2390
    %3114 = vmatpush2.msra.mxu0 %v2389
    %3115 = vmatprep.subr.mxu0 %v2365
    %3116 = vmatpush2.msra.mxu0 %v2364
    %3117 = vmatprep.subr.mxu0 %v2340
    %3118 = vmatpush2.msra.mxu0 %v2339
    %3119 = vmatprep.subr.mxu0 %v2315
    %3120 = vmatpush2.msra.mxu0 %v2314
    %3121 = vmatprep.subr.mxu0 %v2290
    %3122 = vmatpush2.msra.mxu0 %v2289
    %3123 = vmatprep.subr.mxu0 %v2265
    %3124 = vmatpush2.msra.mxu0 %v2264
    %3125 = vmatprep.subr.mxu0 %v2240
    %3126 = vmatpush2.msra.mxu0 %v2239
    %3127 = vmatprep.subr.mxu0 %v2215
    %3128 = vmatpush2.msra.mxu0 %v2214
    %3129 = vmatprep.subr.mxu0 %v2190
    %3130 = vmatpush2.msra.mxu0 %v2189
    %3131 = vmatprep.subr.mxu0 %v2165
    %3132 = vmatpush2.msra.mxu0 %v2164
    %3133 = vmatprep.subr.mxu0 %v2140
    %3134 = vmatpush2.msra.mxu0 %v2139
    %3135 = vmatprep.mubr.f32.mxu0 %v937
    %3136 = vmatmul.mubr.f32.gmra.mxu0 %v936
    %v3137 = vpop.f32.mrf.mxu0
    %v3138 = vadd.f32 %v3067, %v3137
    %v3139 = vpop.f32.mrf.mxu0
    %v3140 = vadd.f32 %v3069, %v3139
    %3141 = vdwg.mxu0
    %3142 = vmatprep.subr.mxu0 0.0
    %3143 = vmatpush1.msra.mxu0 0.0
    %3144 = vmatprep.subr.mxu0 0.0
    %3145 = vmatpush1.msra.mxu0 0.0
    %3146 = vmatprep.subr.mxu0 0.0
    %3147 = vmatpush1.msra.mxu0 0.0
    %3148 = vmatprep.subr.mxu0 0.0
    %3149 = vmatpush1.msra.mxu0 0.0
    %3150 = vmatprep.subr.mxu0 0.0
    %3151 = vmatpush1.msra.mxu0 0.0
    %3152 = vmatprep.subr.mxu0 0.0
    %3153 = vmatpush1.msra.mxu0 0.0
    %3154 = vmatprep.subr.mxu0 %v2929
    %3155 = vmatpush1.msra.mxu0 %v2926
    %3156 = vmatprep.subr.mxu0 %v2740
    %3157 = vmatpush1.msra.mxu0 %v2739
    %3158 = vmatprep.subr.mxu0 %v2715
    %3159 = vmatpush1.msra.mxu0 %v2714
    %3160 = vmatprep.subr.mxu0 %v2690
    %3161 = vmatpush1.msra.mxu0 %v2689
    %3162 = vmatprep.subr.mxu0 %v2665
    %3163 = vmatpush1.msra.mxu0 %v2664
    %3164 = vmatprep.subr.mxu0 %v2640
    %3165 = vmatpush1.msra.mxu0 %v2639
    %3166 = vmatprep.subr.mxu0 %v2615
    %3167 = vmatpush1.msra.mxu0 %v2614
    %3168 = vmatprep.subr.mxu0 %v2590
    %3169 = vmatpush1.msra.mxu0 %v2589
    %3170 = vmatprep.subr.mxu0 %v2565
    %3171 = vmatpush1.msra.mxu0 %v2564
    %3172 = vmatprep.subr.mxu0 %v2540
    %3173 = vmatpush1.msra.mxu0 %v2539
    %3174 = vmatprep.subr.mxu0 0.0
    %3175 = vmatpush2.msra.mxu0 0.0
    %3176 = vmatprep.subr.mxu0 0.0
    %3177 = vmatpush2.msra.mxu0 0.0
    %3178 = vmatprep.subr.mxu0 0.0
    %3179 = vmatpush2.msra.mxu0 0.0
    %3180 = vmatprep.subr.mxu0 0.0
    %3181 = vmatpush2.msra.mxu0 0.0
    %3182 = vmatprep.subr.mxu0 0.0
    %3183 = vmatpush2.msra.mxu0 0.0
    %3184 = vmatprep.subr.mxu0 0.0
    %3185 = vmatpush2.msra.mxu0 0.0
    %3186 = vmatprep.subr.mxu0 0.0
    %3187 = vmatpush2.msra.mxu0 0.0
    %3188 = vmatprep.subr.mxu0 0.0
    %3189 = vmatpush2.msra.mxu0 0.0
    %3190 = vmatprep.subr.mxu0 0.0
    %3191 = vmatpush2.msra.mxu0 0.0
    %3192 = vmatprep.subr.mxu0 0.0
    %3193 = vmatpush2.msra.mxu0 0.0
    %3194 = vmatprep.subr.mxu0 0.0
    %3195 = vmatpush2.msra.mxu0 0.0
    %3196 = vmatprep.subr.mxu0 0.0
    %3197 = vmatpush2.msra.mxu0 0.0
    %3198 = vmatprep.subr.mxu0 0.0
    %3199 = vmatpush2.msra.mxu0 0.0
    %3200 = vmatprep.subr.mxu0 0.0
    %3201 = vmatpush2.msra.mxu0 0.0
    %3202 = vmatprep.subr.mxu0 0.0
    %3203 = vmatpush2.msra.mxu0 0.0
    %3204 = vmatprep.subr.mxu0 0.0
    %3205 = vmatpush2.msra.mxu0 0.0
    %3206 = vmatprep.mubr.f32.mxu0 0.0
    %3207 = vmatmul.mubr.f32.gmra.mxu0 %v2923
    %v3208 = vpop.f32.mrf.mxu0
    %v3209 = vadd.f32 %v3138, %v3208
    %v3210 = vpop.f32.mrf.mxu0
    %v3211 = vadd.f32 %v3140, %v3210
    %3212 = vdwg.mxu0
    %3213 = vmatprep.subr.mxu0 %v1317
    %3214 = vmatpush1.msra.mxu0 %v1316
    %3215 = vmatprep.subr.mxu0 %v1292
    %3216 = vmatpush1.msra.mxu0 %v1291
    %3217 = vmatprep.subr.mxu0 %v1267
    %3218 = vmatpush1.msra.mxu0 %v1266
    %3219 = vmatprep.subr.mxu0 %v1242
    %3220 = vmatpush1.msra.mxu0 %v1241
    %3221 = vmatprep.subr.mxu0 %v1217
    %3222 = vmatpush1.msra.mxu0 %v1216
    %3223 = vmatprep.subr.mxu0 %v1192
    %3224 = vmatpush1.msra.mxu0 %v1191
    %3225 = vmatprep.subr.mxu0 %v1167
    %3226 = vmatpush1.msra.mxu0 %v1166
    %3227 = vmatprep.subr.mxu0 %v1142
    %3228 = vmatpush1.msra.mxu0 %v1141
    %3229 = vmatprep.subr.mxu0 %v1117
    %3230 = vmatpush1.msra.mxu0 %v1116
    %3231 = vmatprep.subr.mxu0 %v1092
    %3232 = vmatpush1.msra.mxu0 %v1091
    %3233 = vmatprep.subr.mxu0 %v1067
    %3234 = vmatpush1.msra.mxu0 %v1066
    %3235 = vmatprep.subr.mxu0 %v1042
    %3236 = vmatpush1.msra.mxu0 %v1041
    %3237 = vmatprep.subr.mxu0 %v1017
    %3238 = vmatpush1.msra.mxu0 %v1016
    %3239 = vmatprep.subr.mxu0 %v992
    %3240 = vmatpush1.msra.mxu0 %v991
    %3241 = vmatprep.subr.mxu0 %v967
    %3242 = vmatpush1.msra.mxu0 %v966
    %3243 = vmatprep.subr.mxu0 %v942
    %3244 = vmatpush1.msra.mxu0 %v941
    %3245 = vmatprep.subr.mxu0 %v1717
    %3246 = vmatpush2.msra.mxu0 %v1716
    %3247 = vmatprep.subr.mxu0 %v1692
    %3248 = vmatpush2.msra.mxu0 %v1691
    %3249 = vmatprep.subr.mxu0 %v1667
    %3250 = vmatpush2.msra.mxu0 %v1666
    %3251 = vmatprep.subr.mxu0 %v1642
    %3252 = vmatpush2.msra.mxu0 %v1641
    %3253 = vmatprep.subr.mxu0 %v1617
    %3254 = vmatpush2.msra.mxu0 %v1616
    %3255 = vmatprep.subr.mxu0 %v1592
    %3256 = vmatpush2.msra.mxu0 %v1591
    %3257 = vmatprep.subr.mxu0 %v1567
    %3258 = vmatpush2.msra.mxu0 %v1566
    %3259 = vmatprep.subr.mxu0 %v1542
    %3260 = vmatpush2.msra.mxu0 %v1541
    %3261 = vmatprep.subr.mxu0 %v1517
    %3262 = vmatpush2.msra.mxu0 %v1516
    %3263 = vmatprep.subr.mxu0 %v1492
    %3264 = vmatpush2.msra.mxu0 %v1491
    %3265 = vmatprep.subr.mxu0 %v1467
    %3266 = vmatpush2.msra.mxu0 %v1466
    %3267 = vmatprep.subr.mxu0 %v1442
    %3268 = vmatpush2.msra.mxu0 %v1441
    %3269 = vmatprep.subr.mxu0 %v1417
    %3270 = vmatpush2.msra.mxu0 %v1416
    %3271 = vmatprep.subr.mxu0 %v1392
    %3272 = vmatpush2.msra.mxu0 %v1391
    %3273 = vmatprep.subr.mxu0 %v1367
    %3274 = vmatpush2.msra.mxu0 %v1366
    %3275 = vmatprep.subr.mxu0 %v1342
    %3276 = vmatpush2.msra.mxu0 %v1341
    %3277 = vmatprep.mubr.f32.mxu0 %v935
    %3278 = vmatmul.mubr.f32.gmra.mxu0 %v934
    %v3279 = vpop.f32.mrf.mxu0
    %v3280 = vadd.f32 %v2808, %v3279
    %v3281 = vpop.f32.mrf.mxu0
    %v3282 = vadd.f32 %v2812, %v3281
    %3283 = vdwg.mxu0
    %3284 = vmatprep.subr.mxu0 %v2117
    %3285 = vmatpush1.msra.mxu0 %v2116
    %3286 = vmatprep.subr.mxu0 %v2092
    %3287 = vmatpush1.msra.mxu0 %v2091
    %3288 = vmatprep.subr.mxu0 %v2067
    %3289 = vmatpush1.msra.mxu0 %v2066
    %3290 = vmatprep.subr.mxu0 %v2042
    %3291 = vmatpush1.msra.mxu0 %v2041
    %3292 = vmatprep.subr.mxu0 %v2017
    %3293 = vmatpush1.msra.mxu0 %v2016
    %3294 = vmatprep.subr.mxu0 %v1992
    %3295 = vmatpush1.msra.mxu0 %v1991
    %3296 = vmatprep.subr.mxu0 %v1967
    %3297 = vmatpush1.msra.mxu0 %v1966
    %3298 = vmatprep.subr.mxu0 %v1942
    %3299 = vmatpush1.msra.mxu0 %v1941
    %3300 = vmatprep.subr.mxu0 %v1917
    %3301 = vmatpush1.msra.mxu0 %v1916
    %3302 = vmatprep.subr.mxu0 %v1892
    %3303 = vmatpush1.msra.mxu0 %v1891
    %3304 = vmatprep.subr.mxu0 %v1867
    %3305 = vmatpush1.msra.mxu0 %v1866
    %3306 = vmatprep.subr.mxu0 %v1842
    %3307 = vmatpush1.msra.mxu0 %v1841
    %3308 = vmatprep.subr.mxu0 %v1817
    %3309 = vmatpush1.msra.mxu0 %v1816
    %3310 = vmatprep.subr.mxu0 %v1792
    %3311 = vmatpush1.msra.mxu0 %v1791
    %3312 = vmatprep.subr.mxu0 %v1767
    %3313 = vmatpush1.msra.mxu0 %v1766
    %3314 = vmatprep.subr.mxu0 %v1742
    %3315 = vmatpush1.msra.mxu0 %v1741
    %3316 = vmatprep.subr.mxu0 %v2517
    %3317 = vmatpush2.msra.mxu0 %v2516
    %3318 = vmatprep.subr.mxu0 %v2492
    %3319 = vmatpush2.msra.mxu0 %v2491
    %3320 = vmatprep.subr.mxu0 %v2467
    %3321 = vmatpush2.msra.mxu0 %v2466
    %3322 = vmatprep.subr.mxu0 %v2442
    %3323 = vmatpush2.msra.mxu0 %v2441
    %3324 = vmatprep.subr.mxu0 %v2417
    %3325 = vmatpush2.msra.mxu0 %v2416
    %3326 = vmatprep.subr.mxu0 %v2392
    %3327 = vmatpush2.msra.mxu0 %v2391
    %3328 = vmatprep.subr.mxu0 %v2367
    %3329 = vmatpush2.msra.mxu0 %v2366
    %3330 = vmatprep.subr.mxu0 %v2342
    %3331 = vmatpush2.msra.mxu0 %v2341
    %3332 = vmatprep.subr.mxu0 %v2317
    %3333 = vmatpush2.msra.mxu0 %v2316
    %3334 = vmatprep.subr.mxu0 %v2292
    %3335 = vmatpush2.msra.mxu0 %v2291
    %3336 = vmatprep.subr.mxu0 %v2267
    %3337 = vmatpush2.msra.mxu0 %v2266
    %3338 = vmatprep.subr.mxu0 %v2242
    %3339 = vmatpush2.msra.mxu0 %v2241
    %3340 = vmatprep.subr.mxu0 %v2217
    %3341 = vmatpush2.msra.mxu0 %v2216
    %3342 = vmatprep.subr.mxu0 %v2192
    %3343 = vmatpush2.msra.mxu0 %v2191
    %3344 = vmatprep.subr.mxu0 %v2167
    %3345 = vmatpush2.msra.mxu0 %v2166
    %3346 = vmatprep.subr.mxu0 %v2142
    %3347 = vmatpush2.msra.mxu0 %v2141
    %3348 = vmatprep.mubr.f32.mxu0 %v937
    %3349 = vmatmul.mubr.f32.gmra.mxu0 %v936
    %v3350 = vpop.f32.mrf.mxu0
    %v3351 = vadd.f32 %v3280, %v3350
    %v3352 = vpop.f32.mrf.mxu0
    %v3353 = vadd.f32 %v3282, %v3352
    %3354 = vdwg.mxu0
    %3355 = vmatprep.subr.mxu0 0.0
    %3356 = vmatpush1.msra.mxu0 0.0
    %3357 = vmatprep.subr.mxu0 0.0
    %3358 = vmatpush1.msra.mxu0 0.0
    %3359 = vmatprep.subr.mxu0 0.0
    %3360 = vmatpush1.msra.mxu0 0.0
    %3361 = vmatprep.subr.mxu0 0.0
    %3362 = vmatpush1.msra.mxu0 0.0
    %3363 = vmatprep.subr.mxu0 0.0
    %3364 = vmatpush1.msra.mxu0 0.0
    %3365 = vmatprep.subr.mxu0 0.0
    %3366 = vmatpush1.msra.mxu0 0.0
    %3367 = vmatprep.subr.mxu0 %v2935
    %3368 = vmatpush1.msra.mxu0 %v2932
    %3369 = vmatprep.subr.mxu0 %v2742
    %3370 = vmatpush1.msra.mxu0 %v2741
    %3371 = vmatprep.subr.mxu0 %v2717
    %3372 = vmatpush1.msra.mxu0 %v2716
    %3373 = vmatprep.subr.mxu0 %v2692
    %3374 = vmatpush1.msra.mxu0 %v2691
    %3375 = vmatprep.subr.mxu0 %v2667
    %3376 = vmatpush1.msra.mxu0 %v2666
    %3377 = vmatprep.subr.mxu0 %v2642
    %3378 = vmatpush1.msra.mxu0 %v2641
    %3379 = vmatprep.subr.mxu0 %v2617
    %3380 = vmatpush1.msra.mxu0 %v2616
    %3381 = vmatprep.subr.mxu0 %v2592
    %3382 = vmatpush1.msra.mxu0 %v2591
    %3383 = vmatprep.subr.mxu0 %v2567
    %3384 = vmatpush1.msra.mxu0 %v2566
    %3385 = vmatprep.subr.mxu0 %v2542
    %3386 = vmatpush1.msra.mxu0 %v2541
    %3387 = vmatprep.subr.mxu0 0.0
    %3388 = vmatpush2.msra.mxu0 0.0
    %3389 = vmatprep.subr.mxu0 0.0
    %3390 = vmatpush2.msra.mxu0 0.0
    %3391 = vmatprep.subr.mxu0 0.0
    %3392 = vmatpush2.msra.mxu0 0.0
    %3393 = vmatprep.subr.mxu0 0.0
    %3394 = vmatpush2.msra.mxu0 0.0
    %3395 = vmatprep.subr.mxu0 0.0
    %3396 = vmatpush2.msra.mxu0 0.0
    %3397 = vmatprep.subr.mxu0 0.0
    %3398 = vmatpush2.msra.mxu0 0.0
    %3399 = vmatprep.subr.mxu0 0.0
    %3400 = vmatpush2.msra.mxu0 0.0
    %3401 = vmatprep.subr.mxu0 0.0
    %3402 = vmatpush2.msra.mxu0 0.0
    %3403 = vmatprep.subr.mxu0 0.0
    %3404 = vmatpush2.msra.mxu0 0.0
    %3405 = vmatprep.subr.mxu0 0.0
    %3406 = vmatpush2.msra.mxu0 0.0
    %3407 = vmatprep.subr.mxu0 0.0
    %3408 = vmatpush2.msra.mxu0 0.0
    %3409 = vmatprep.subr.mxu0 0.0
    %3410 = vmatpush2.msra.mxu0 0.0
    %3411 = vmatprep.subr.mxu0 0.0
    %3412 = vmatpush2.msra.mxu0 0.0
    %3413 = vmatprep.subr.mxu0 0.0
    %3414 = vmatpush2.msra.mxu0 0.0
    %3415 = vmatprep.subr.mxu0 0.0
    %3416 = vmatpush2.msra.mxu0 0.0
    %3417 = vmatprep.subr.mxu0 0.0
    %3418 = vmatpush2.msra.mxu0 0.0
    %3419 = vmatprep.mubr.f32.mxu0 0.0
    %3420 = vmatmul.mubr.f32.gmra.mxu0 %v2923
    %v3421 = vpop.f32.mrf.mxu0
    %v3422 = vadd.f32 %v3351, %v3421
    %v3423 = vpop.f32.mrf.mxu0
    %v3424 = vadd.f32 %v3353, %v3423
    %3425 = vdwg.mxu0
    %3426 = vmatprep.subr.mxu0 %v1319
    %3427 = vmatpush1.msra.mxu0 %v1318
    %3428 = vmatprep.subr.mxu0 %v1294
    %3429 = vmatpush1.msra.mxu0 %v1293
    %3430 = vmatprep.subr.mxu0 %v1269
    %3431 = vmatpush1.msra.mxu0 %v1268
    %3432 = vmatprep.subr.mxu0 %v1244
    %3433 = vmatpush1.msra.mxu0 %v1243
    %3434 = vmatprep.subr.mxu0 %v1219
    %3435 = vmatpush1.msra.mxu0 %v1218
    %3436 = vmatprep.subr.mxu0 %v1194
    %3437 = vmatpush1.msra.mxu0 %v1193
    %3438 = vmatprep.subr.mxu0 %v1169
    %3439 = vmatpush1.msra.mxu0 %v1168
    %3440 = vmatprep.subr.mxu0 %v1144
    %3441 = vmatpush1.msra.mxu0 %v1143
    %3442 = vmatprep.subr.mxu0 %v1119
    %3443 = vmatpush1.msra.mxu0 %v1118
    %3444 = vmatprep.subr.mxu0 %v1094
    %3445 = vmatpush1.msra.mxu0 %v1093
    %3446 = vmatprep.subr.mxu0 %v1069
    %3447 = vmatpush1.msra.mxu0 %v1068
    %3448 = vmatprep.subr.mxu0 %v1044
    %3449 = vmatpush1.msra.mxu0 %v1043
    %3450 = vmatprep.subr.mxu0 %v1019
    %3451 = vmatpush1.msra.mxu0 %v1018
    %3452 = vmatprep.subr.mxu0 %v994
    %3453 = vmatpush1.msra.mxu0 %v993
    %3454 = vmatprep.subr.mxu0 %v969
    %3455 = vmatpush1.msra.mxu0 %v968
    %3456 = vmatprep.subr.mxu0 %v944
    %3457 = vmatpush1.msra.mxu0 %v943
    %3458 = vmatprep.subr.mxu0 %v1719
    %3459 = vmatpush2.msra.mxu0 %v1718
    %3460 = vmatprep.subr.mxu0 %v1694
    %3461 = vmatpush2.msra.mxu0 %v1693
    %3462 = vmatprep.subr.mxu0 %v1669
    %3463 = vmatpush2.msra.mxu0 %v1668
    %3464 = vmatprep.subr.mxu0 %v1644
    %3465 = vmatpush2.msra.mxu0 %v1643
    %3466 = vmatprep.subr.mxu0 %v1619
    %3467 = vmatpush2.msra.mxu0 %v1618
    %3468 = vmatprep.subr.mxu0 %v1594
    %3469 = vmatpush2.msra.mxu0 %v1593
    %3470 = vmatprep.subr.mxu0 %v1569
    %3471 = vmatpush2.msra.mxu0 %v1568
    %3472 = vmatprep.subr.mxu0 %v1544
    %3473 = vmatpush2.msra.mxu0 %v1543
    %3474 = vmatprep.subr.mxu0 %v1519
    %3475 = vmatpush2.msra.mxu0 %v1518
    %3476 = vmatprep.subr.mxu0 %v1494
    %3477 = vmatpush2.msra.mxu0 %v1493
    %3478 = vmatprep.subr.mxu0 %v1469
    %3479 = vmatpush2.msra.mxu0 %v1468
    %3480 = vmatprep.subr.mxu0 %v1444
    %3481 = vmatpush2.msra.mxu0 %v1443
    %3482 = vmatprep.subr.mxu0 %v1419
    %3483 = vmatpush2.msra.mxu0 %v1418
    %3484 = vmatprep.subr.mxu0 %v1394
    %3485 = vmatpush2.msra.mxu0 %v1393
    %3486 = vmatprep.subr.mxu0 %v1369
    %3487 = vmatpush2.msra.mxu0 %v1368
    %3488 = vmatprep.subr.mxu0 %v1344
    %3489 = vmatpush2.msra.mxu0 %v1343
    %3490 = vmatprep.mubr.f32.mxu0 %v935
    %3491 = vmatmul.mubr.f32.gmra.mxu0 %v934
    %v3492 = vpop.f32.mrf.mxu0
    %v3493 = vadd.f32 %v2816, %v3492
    %v3494 = vpop.f32.mrf.mxu0
    %v3495 = vadd.f32 %v2820, %v3494
    %3496 = vdwg.mxu0
    %3497 = vmatprep.subr.mxu0 %v2119
    %3498 = vmatpush1.msra.mxu0 %v2118
    %3499 = vmatprep.subr.mxu0 %v2094
    %3500 = vmatpush1.msra.mxu0 %v2093
    %3501 = vmatprep.subr.mxu0 %v2069
    %3502 = vmatpush1.msra.mxu0 %v2068
    %3503 = vmatprep.subr.mxu0 %v2044
    %3504 = vmatpush1.msra.mxu0 %v2043
    %3505 = vmatprep.subr.mxu0 %v2019
    %3506 = vmatpush1.msra.mxu0 %v2018
    %3507 = vmatprep.subr.mxu0 %v1994
    %3508 = vmatpush1.msra.mxu0 %v1993
    %3509 = vmatprep.subr.mxu0 %v1969
    %3510 = vmatpush1.msra.mxu0 %v1968
    %3511 = vmatprep.subr.mxu0 %v1944
    %3512 = vmatpush1.msra.mxu0 %v1943
    %3513 = vmatprep.subr.mxu0 %v1919
    %3514 = vmatpush1.msra.mxu0 %v1918
    %3515 = vmatprep.subr.mxu0 %v1894
    %3516 = vmatpush1.msra.mxu0 %v1893
    %3517 = vmatprep.subr.mxu0 %v1869
    %3518 = vmatpush1.msra.mxu0 %v1868
    %3519 = vmatprep.subr.mxu0 %v1844
    %3520 = vmatpush1.msra.mxu0 %v1843
    %3521 = vmatprep.subr.mxu0 %v1819
    %3522 = vmatpush1.msra.mxu0 %v1818
    %3523 = vmatprep.subr.mxu0 %v1794
    %3524 = vmatpush1.msra.mxu0 %v1793
    %3525 = vmatprep.subr.mxu0 %v1769
    %3526 = vmatpush1.msra.mxu0 %v1768
    %3527 = vmatprep.subr.mxu0 %v1744
    %3528 = vmatpush1.msra.mxu0 %v1743
    %3529 = vmatprep.subr.mxu0 %v2519
    %3530 = vmatpush2.msra.mxu0 %v2518
    %3531 = vmatprep.subr.mxu0 %v2494
    %3532 = vmatpush2.msra.mxu0 %v2493
    %3533 = vmatprep.subr.mxu0 %v2469
    %3534 = vmatpush2.msra.mxu0 %v2468
    %3535 = vmatprep.subr.mxu0 %v2444
    %3536 = vmatpush2.msra.mxu0 %v2443
    %3537 = vmatprep.subr.mxu0 %v2419
    %3538 = vmatpush2.msra.mxu0 %v2418
    %3539 = vmatprep.subr.mxu0 %v2394
    %3540 = vmatpush2.msra.mxu0 %v2393
    %3541 = vmatprep.subr.mxu0 %v2369
    %3542 = vmatpush2.msra.mxu0 %v2368
    %3543 = vmatprep.subr.mxu0 %v2344
    %3544 = vmatpush2.msra.mxu0 %v2343
    %3545 = vmatprep.subr.mxu0 %v2319
    %3546 = vmatpush2.msra.mxu0 %v2318
    %3547 = vmatprep.subr.mxu0 %v2294
    %3548 = vmatpush2.msra.mxu0 %v2293
    %3549 = vmatprep.subr.mxu0 %v2269
    %3550 = vmatpush2.msra.mxu0 %v2268
    %3551 = vmatprep.subr.mxu0 %v2244
    %3552 = vmatpush2.msra.mxu0 %v2243
    %3553 = vmatprep.subr.mxu0 %v2219
    %3554 = vmatpush2.msra.mxu0 %v2218
    %3555 = vmatprep.subr.mxu0 %v2194
    %3556 = vmatpush2.msra.mxu0 %v2193
    %3557 = vmatprep.subr.mxu0 %v2169
    %3558 = vmatpush2.msra.mxu0 %v2168
    %3559 = vmatprep.subr.mxu0 %v2144
    %3560 = vmatpush2.msra.mxu0 %v2143
    %3561 = vmatprep.mubr.f32.mxu0 %v937
    %3562 = vmatmul.mubr.f32.gmra.mxu0 %v936
    %v3563 = vpop.f32.mrf.mxu0
    %v3564 = vadd.f32 %v3493, %v3563
    %v3565 = vpop.f32.mrf.mxu0
    %v3566 = vadd.f32 %v3495, %v3565
    %3567 = vdwg.mxu0
    %3568 = vmatprep.subr.mxu0 0.0
    %3569 = vmatpush1.msra.mxu0 0.0
    %3570 = vmatprep.subr.mxu0 0.0
    %3571 = vmatpush1.msra.mxu0 0.0
    %3572 = vmatprep.subr.mxu0 0.0
    %3573 = vmatpush1.msra.mxu0 0.0
    %3574 = vmatprep.subr.mxu0 0.0
    %3575 = vmatpush1.msra.mxu0 0.0
    %3576 = vmatprep.subr.mxu0 0.0
    %3577 = vmatpush1.msra.mxu0 0.0
    %3578 = vmatprep.subr.mxu0 0.0
    %3579 = vmatpush1.msra.mxu0 0.0
    %3580 = vmatprep.subr.mxu0 %v2941
    %3581 = vmatpush1.msra.mxu0 %v2938
    %3582 = vmatprep.subr.mxu0 %v2744
    %3583 = vmatpush1.msra.mxu0 %v2743
    %3584 = vmatprep.subr.mxu0 %v2719
    %3585 = vmatpush1.msra.mxu0 %v2718
    %3586 = vmatprep.subr.mxu0 %v2694
    %3587 = vmatpush1.msra.mxu0 %v2693
    %3588 = vmatprep.subr.mxu0 %v2669
    %3589 = vmatpush1.msra.mxu0 %v2668
    %3590 = vmatprep.subr.mxu0 %v2644
    %3591 = vmatpush1.msra.mxu0 %v2643
    %3592 = vmatprep.subr.mxu0 %v2619
    %3593 = vmatpush1.msra.mxu0 %v2618
    %3594 = vmatprep.subr.mxu0 %v2594
    %3595 = vmatpush1.msra.mxu0 %v2593
    %3596 = vmatprep.subr.mxu0 %v2569
    %3597 = vmatpush1.msra.mxu0 %v2568
    %3598 = vmatprep.subr.mxu0 %v2544
    %3599 = vmatpush1.msra.mxu0 %v2543
    %3600 = vmatprep.subr.mxu0 0.0
    %3601 = vmatpush2.msra.mxu0 0.0
    %3602 = vmatprep.subr.mxu0 0.0
    %3603 = vmatpush2.msra.mxu0 0.0
    %3604 = vmatprep.subr.mxu0 0.0
    %3605 = vmatpush2.msra.mxu0 0.0
    %3606 = vmatprep.subr.mxu0 0.0
    %3607 = vmatpush2.msra.mxu0 0.0
    %3608 = vmatprep.subr.mxu0 0.0
    %3609 = vmatpush2.msra.mxu0 0.0
    %3610 = vmatprep.subr.mxu0 0.0
    %3611 = vmatpush2.msra.mxu0 0.0
    %3612 = vmatprep.subr.mxu0 0.0
    %3613 = vmatpush2.msra.mxu0 0.0
    %3614 = vmatprep.subr.mxu0 0.0
    %3615 = vmatpush2.msra.mxu0 0.0
    %3616 = vmatprep.subr.mxu0 0.0
    %3617 = vmatpush2.msra.mxu0 0.0
    %3618 = vmatprep.subr.mxu0 0.0
    %3619 = vmatpush2.msra.mxu0 0.0
    %3620 = vmatprep.subr.mxu0 0.0
    %3621 = vmatpush2.msra.mxu0 0.0
    %3622 = vmatprep.subr.mxu0 0.0
    %3623 = vmatpush2.msra.mxu0 0.0
    %3624 = vmatprep.subr.mxu0 0.0
    %3625 = vmatpush2.msra.mxu0 0.0
    %3626 = vmatprep.subr.mxu0 0.0
    %3627 = vmatpush2.msra.mxu0 0.0
    %3628 = vmatprep.subr.mxu0 0.0
    %3629 = vmatpush2.msra.mxu0 0.0
    %3630 = vmatprep.subr.mxu0 0.0
    %3631 = vmatpush2.msra.mxu0 0.0
    %3632 = vmatprep.mubr.f32.mxu0 0.0
    %3633 = vmatmul.mubr.f32.gmra.mxu0 %v2923
    %v3634 = vpop.f32.mrf.mxu0
    %v3635 = vadd.f32 %v3564, %v3634
    %v3636 = vpop.f32.mrf.mxu0
    %v3637 = vadd.f32 %v3566, %v3636
    %3638 = vdwg.mxu0
    %3639 = vmatprep.subr.mxu0 %v1321
    %3640 = vmatpush1.msra.mxu0 %v1320
    %3641 = vmatprep.subr.mxu0 %v1296
    %3642 = vmatpush1.msra.mxu0 %v1295
    %3643 = vmatprep.subr.mxu0 %v1271
    %3644 = vmatpush1.msra.mxu0 %v1270
    %3645 = vmatprep.subr.mxu0 %v1246
    %3646 = vmatpush1.msra.mxu0 %v1245
    %3647 = vmatprep.subr.mxu0 %v1221
    %3648 = vmatpush1.msra.mxu0 %v1220
    %3649 = vmatprep.subr.mxu0 %v1196
    %3650 = vmatpush1.msra.mxu0 %v1195
    %3651 = vmatprep.subr.mxu0 %v1171
    %3652 = vmatpush1.msra.mxu0 %v1170
    %3653 = vmatprep.subr.mxu0 %v1146
    %3654 = vmatpush1.msra.mxu0 %v1145
    %3655 = vmatprep.subr.mxu0 %v1121
    %3656 = vmatpush1.msra.mxu0 %v1120
    %3657 = vmatprep.subr.mxu0 %v1096
    %3658 = vmatpush1.msra.mxu0 %v1095
    %3659 = vmatprep.subr.mxu0 %v1071
    %3660 = vmatpush1.msra.mxu0 %v1070
    %3661 = vmatprep.subr.mxu0 %v1046
    %3662 = vmatpush1.msra.mxu0 %v1045
    %3663 = vmatprep.subr.mxu0 %v1021
    %3664 = vmatpush1.msra.mxu0 %v1020
    %3665 = vmatprep.subr.mxu0 %v996
    %3666 = vmatpush1.msra.mxu0 %v995
    %3667 = vmatprep.subr.mxu0 %v971
    %3668 = vmatpush1.msra.mxu0 %v970
    %3669 = vmatprep.subr.mxu0 %v946
    %3670 = vmatpush1.msra.mxu0 %v945
    %3671 = vmatprep.subr.mxu0 %v1721
    %3672 = vmatpush2.msra.mxu0 %v1720
    %3673 = vmatprep.subr.mxu0 %v1696
    %3674 = vmatpush2.msra.mxu0 %v1695
    %3675 = vmatprep.subr.mxu0 %v1671
    %3676 = vmatpush2.msra.mxu0 %v1670
    %3677 = vmatprep.subr.mxu0 %v1646
    %3678 = vmatpush2.msra.mxu0 %v1645
    %3679 = vmatprep.subr.mxu0 %v1621
    %3680 = vmatpush2.msra.mxu0 %v1620
    %3681 = vmatprep.subr.mxu0 %v1596
    %3682 = vmatpush2.msra.mxu0 %v1595
    %3683 = vmatprep.subr.mxu0 %v1571
    %3684 = vmatpush2.msra.mxu0 %v1570
    %3685 = vmatprep.subr.mxu0 %v1546
    %3686 = vmatpush2.msra.mxu0 %v1545
    %3687 = vmatprep.subr.mxu0 %v1521
    %3688 = vmatpush2.msra.mxu0 %v1520
    %3689 = vmatprep.subr.mxu0 %v1496
    %3690 = vmatpush2.msra.mxu0 %v1495
    %3691 = vmatprep.subr.mxu0 %v1471
    %3692 = vmatpush2.msra.mxu0 %v1470
    %3693 = vmatprep.subr.mxu0 %v1446
    %3694 = vmatpush2.msra.mxu0 %v1445
    %3695 = vmatprep.subr.mxu0 %v1421
    %3696 = vmatpush2.msra.mxu0 %v1420
    %3697 = vmatprep.subr.mxu0 %v1396
    %3698 = vmatpush2.msra.mxu0 %v1395
    %3699 = vmatprep.subr.mxu0 %v1371
    %3700 = vmatpush2.msra.mxu0 %v1370
    %3701 = vmatprep.subr.mxu0 %v1346
    %3702 = vmatpush2.msra.mxu0 %v1345
    %3703 = vmatprep.mubr.f32.mxu0 %v935
    %3704 = vmatmul.mubr.f32.gmra.mxu0 %v934
    %v3705 = vpop.f32.mrf.mxu0
    %v3706 = vadd.f32 %v2824, %v3705
    %v3707 = vpop.f32.mrf.mxu0
    %v3708 = vadd.f32 %v2828, %v3707
    %3709 = vdwg.mxu0
    %3710 = vmatprep.subr.mxu0 %v2121
    %3711 = vmatpush1.msra.mxu0 %v2120
    %3712 = vmatprep.subr.mxu0 %v2096
    %3713 = vmatpush1.msra.mxu0 %v2095
    %3714 = vmatprep.subr.mxu0 %v2071
    %3715 = vmatpush1.msra.mxu0 %v2070
    %3716 = vmatprep.subr.mxu0 %v2046
    %3717 = vmatpush1.msra.mxu0 %v2045
    %3718 = vmatprep.subr.mxu0 %v2021
    %3719 = vmatpush1.msra.mxu0 %v2020
    %3720 = vmatprep.subr.mxu0 %v1996
    %3721 = vmatpush1.msra.mxu0 %v1995
    %3722 = vmatprep.subr.mxu0 %v1971
    %3723 = vmatpush1.msra.mxu0 %v1970
    %3724 = vmatprep.subr.mxu0 %v1946
    %3725 = vmatpush1.msra.mxu0 %v1945
    %3726 = vmatprep.subr.mxu0 %v1921
    %3727 = vmatpush1.msra.mxu0 %v1920
    %3728 = vmatprep.subr.mxu0 %v1896
    %3729 = vmatpush1.msra.mxu0 %v1895
    %3730 = vmatprep.subr.mxu0 %v1871
    %3731 = vmatpush1.msra.mxu0 %v1870
    %3732 = vmatprep.subr.mxu0 %v1846
    %3733 = vmatpush1.msra.mxu0 %v1845
    %3734 = vmatprep.subr.mxu0 %v1821
    %3735 = vmatpush1.msra.mxu0 %v1820
    %3736 = vmatprep.subr.mxu0 %v1796
    %3737 = vmatpush1.msra.mxu0 %v1795
    %3738 = vmatprep.subr.mxu0 %v1771
    %3739 = vmatpush1.msra.mxu0 %v1770
    %3740 = vmatprep.subr.mxu0 %v1746
    %3741 = vmatpush1.msra.mxu0 %v1745
    %3742 = vmatprep.subr.mxu0 %v2521
    %3743 = vmatpush2.msra.mxu0 %v2520
    %3744 = vmatprep.subr.mxu0 %v2496
    %3745 = vmatpush2.msra.mxu0 %v2495
    %3746 = vmatprep.subr.mxu0 %v2471
    %3747 = vmatpush2.msra.mxu0 %v2470
    %3748 = vmatprep.subr.mxu0 %v2446
    %3749 = vmatpush2.msra.mxu0 %v2445
    %3750 = vmatprep.subr.mxu0 %v2421
    %3751 = vmatpush2.msra.mxu0 %v2420
    %3752 = vmatprep.subr.mxu0 %v2396
    %3753 = vmatpush2.msra.mxu0 %v2395
    %3754 = vmatprep.subr.mxu0 %v2371
    %3755 = vmatpush2.msra.mxu0 %v2370
    %3756 = vmatprep.subr.mxu0 %v2346
    %3757 = vmatpush2.msra.mxu0 %v2345
    %3758 = vmatprep.subr.mxu0 %v2321
    %3759 = vmatpush2.msra.mxu0 %v2320
    %3760 = vmatprep.subr.mxu0 %v2296
    %3761 = vmatpush2.msra.mxu0 %v2295
    %3762 = vmatprep.subr.mxu0 %v2271
    %3763 = vmatpush2.msra.mxu0 %v2270
    %3764 = vmatprep.subr.mxu0 %v2246
    %3765 = vmatpush2.msra.mxu0 %v2245
    %3766 = vmatprep.subr.mxu0 %v2221
    %3767 = vmatpush2.msra.mxu0 %v2220
    %3768 = vmatprep.subr.mxu0 %v2196
    %3769 = vmatpush2.msra.mxu0 %v2195
    %3770 = vmatprep.subr.mxu0 %v2171
    %3771 = vmatpush2.msra.mxu0 %v2170
    %3772 = vmatprep.subr.mxu0 %v2146
    %3773 = vmatpush2.msra.mxu0 %v2145
    %3774 = vmatprep.mubr.f32.mxu0 %v937
    %3775 = vmatmul.mubr.f32.gmra.mxu0 %v936
    %v3776 = vpop.f32.mrf.mxu0
    %v3777 = vadd.f32 %v3706, %v3776
    %v3778 = vpop.f32.mrf.mxu0
    %v3779 = vadd.f32 %v3708, %v3778
    %3780 = vdwg.mxu0
    %3781 = vmatprep.subr.mxu0 0.0
    %3782 = vmatpush1.msra.mxu0 0.0
    %3783 = vmatprep.subr.mxu0 0.0
    %3784 = vmatpush1.msra.mxu0 0.0
    %3785 = vmatprep.subr.mxu0 0.0
    %3786 = vmatpush1.msra.mxu0 0.0
    %3787 = vmatprep.subr.mxu0 0.0
    %3788 = vmatpush1.msra.mxu0 0.0
    %3789 = vmatprep.subr.mxu0 0.0
    %3790 = vmatpush1.msra.mxu0 0.0
    %3791 = vmatprep.subr.mxu0 0.0
    %3792 = vmatpush1.msra.mxu0 0.0
    %3793 = vmatprep.subr.mxu0 %v2947
    %3794 = vmatpush1.msra.mxu0 %v2944
    %3795 = vmatprep.subr.mxu0 %v2746
    %3796 = vmatpush1.msra.mxu0 %v2745
    %3797 = vmatprep.subr.mxu0 %v2721
    %3798 = vmatpush1.msra.mxu0 %v2720
    %3799 = vmatprep.subr.mxu0 %v2696
    %3800 = vmatpush1.msra.mxu0 %v2695
    %3801 = vmatprep.subr.mxu0 %v2671
    %3802 = vmatpush1.msra.mxu0 %v2670
    %3803 = vmatprep.subr.mxu0 %v2646
    %3804 = vmatpush1.msra.mxu0 %v2645
    %3805 = vmatprep.subr.mxu0 %v2621
    %3806 = vmatpush1.msra.mxu0 %v2620
    %3807 = vmatprep.subr.mxu0 %v2596
    %3808 = vmatpush1.msra.mxu0 %v2595
    %3809 = vmatprep.subr.mxu0 %v2571
    %3810 = vmatpush1.msra.mxu0 %v2570
    %3811 = vmatprep.subr.mxu0 %v2546
    %3812 = vmatpush1.msra.mxu0 %v2545
    %3813 = vmatprep.subr.mxu0 0.0
    %3814 = vmatpush2.msra.mxu0 0.0
    %3815 = vmatprep.subr.mxu0 0.0
    %3816 = vmatpush2.msra.mxu0 0.0
    %3817 = vmatprep.subr.mxu0 0.0
    %3818 = vmatpush2.msra.mxu0 0.0
    %3819 = vmatprep.subr.mxu0 0.0
    %3820 = vmatpush2.msra.mxu0 0.0
    %3821 = vmatprep.subr.mxu0 0.0
    %3822 = vmatpush2.msra.mxu0 0.0
    %3823 = vmatprep.subr.mxu0 0.0
    %3824 = vmatpush2.msra.mxu0 0.0
    %3825 = vmatprep.subr.mxu0 0.0
    %3826 = vmatpush2.msra.mxu0 0.0
    %3827 = vmatprep.subr.mxu0 0.0
    %3828 = vmatpush2.msra.mxu0 0.0
    %3829 = vmatprep.subr.mxu0 0.0
    %3830 = vmatpush2.msra.mxu0 0.0
    %3831 = vmatprep.subr.mxu0 0.0
    %3832 = vmatpush2.msra.mxu0 0.0
    %3833 = vmatprep.subr.mxu0 0.0
    %3834 = vmatpush2.msra.mxu0 0.0
    %3835 = vmatprep.subr.mxu0 0.0
    %3836 = vmatpush2.msra.mxu0 0.0
    %3837 = vmatprep.subr.mxu0 0.0
    %3838 = vmatpush2.msra.mxu0 0.0
    %3839 = vmatprep.subr.mxu0 0.0
    %3840 = vmatpush2.msra.mxu0 0.0
    %3841 = vmatprep.subr.mxu0 0.0
    %3842 = vmatpush2.msra.mxu0 0.0
    %3843 = vmatprep.subr.mxu0 0.0
    %3844 = vmatpush2.msra.mxu0 0.0
    %3845 = vmatprep.mubr.f32.mxu0 0.0
    %3846 = vmatmul.mubr.f32.gmra.mxu0 %v2923
    %v3847 = vpop.f32.mrf.mxu0
    %v3848 = vadd.f32 %v3777, %v3847
    %v3849 = vpop.f32.mrf.mxu0
    %v3850 = vadd.f32 %v3779, %v3849
    %3851 = vdwg.mxu0
    %3852 = vmatprep.subr.mxu0 %v1323
    %3853 = vmatpush1.msra.mxu0 %v1322
    %3854 = vmatprep.subr.mxu0 %v1298
    %3855 = vmatpush1.msra.mxu0 %v1297
    %3856 = vmatprep.subr.mxu0 %v1273
    %3857 = vmatpush1.msra.mxu0 %v1272
    %3858 = vmatprep.subr.mxu0 %v1248
    %3859 = vmatpush1.msra.mxu0 %v1247
    %3860 = vmatprep.subr.mxu0 %v1223
    %3861 = vmatpush1.msra.mxu0 %v1222
    %3862 = vmatprep.subr.mxu0 %v1198
    %3863 = vmatpush1.msra.mxu0 %v1197
    %3864 = vmatprep.subr.mxu0 %v1173
    %3865 = vmatpush1.msra.mxu0 %v1172
    %3866 = vmatprep.subr.mxu0 %v1148
    %3867 = vmatpush1.msra.mxu0 %v1147
    %3868 = vmatprep.subr.mxu0 %v1123
    %3869 = vmatpush1.msra.mxu0 %v1122
    %3870 = vmatprep.subr.mxu0 %v1098
    %3871 = vmatpush1.msra.mxu0 %v1097
    %3872 = vmatprep.subr.mxu0 %v1073
    %3873 = vmatpush1.msra.mxu0 %v1072
    %3874 = vmatprep.subr.mxu0 %v1048
    %3875 = vmatpush1.msra.mxu0 %v1047
    %3876 = vmatprep.subr.mxu0 %v1023
    %3877 = vmatpush1.msra.mxu0 %v1022
    %3878 = vmatprep.subr.mxu0 %v998
    %3879 = vmatpush1.msra.mxu0 %v997
    %3880 = vmatprep.subr.mxu0 %v973
    %3881 = vmatpush1.msra.mxu0 %v972
    %3882 = vmatprep.subr.mxu0 %v948
    %3883 = vmatpush1.msra.mxu0 %v947
    %3884 = vmatprep.subr.mxu0 %v1723
    %3885 = vmatpush2.msra.mxu0 %v1722
    %3886 = vmatprep.subr.mxu0 %v1698
    %3887 = vmatpush2.msra.mxu0 %v1697
    %3888 = vmatprep.subr.mxu0 %v1673
    %3889 = vmatpush2.msra.mxu0 %v1672
    %3890 = vmatprep.subr.mxu0 %v1648
    %3891 = vmatpush2.msra.mxu0 %v1647
    %3892 = vmatprep.subr.mxu0 %v1623
    %3893 = vmatpush2.msra.mxu0 %v1622
    %3894 = vmatprep.subr.mxu0 %v1598
    %3895 = vmatpush2.msra.mxu0 %v1597
    %3896 = vmatprep.subr.mxu0 %v1573
    %3897 = vmatpush2.msra.mxu0 %v1572
    %3898 = vmatprep.subr.mxu0 %v1548
    %3899 = vmatpush2.msra.mxu0 %v1547
    %3900 = vmatprep.subr.mxu0 %v1523
    %3901 = vmatpush2.msra.mxu0 %v1522
    %3902 = vmatprep.subr.mxu0 %v1498
    %3903 = vmatpush2.msra.mxu0 %v1497
    %3904 = vmatprep.subr.mxu0 %v1473
    %3905 = vmatpush2.msra.mxu0 %v1472
    %3906 = vmatprep.subr.mxu0 %v1448
    %3907 = vmatpush2.msra.mxu0 %v1447
    %3908 = vmatprep.subr.mxu0 %v1423
    %3909 = vmatpush2.msra.mxu0 %v1422
    %3910 = vmatprep.subr.mxu0 %v1398
    %3911 = vmatpush2.msra.mxu0 %v1397
    %3912 = vmatprep.subr.mxu0 %v1373
    %3913 = vmatpush2.msra.mxu0 %v1372
    %3914 = vmatprep.subr.mxu0 %v1348
    %3915 = vmatpush2.msra.mxu0 %v1347
    %3916 = vmatprep.mubr.f32.mxu0 %v935
    %3917 = vmatmul.mubr.f32.gmra.mxu0 %v934
    %v3918 = vpop.f32.mrf.mxu0
    %v3919 = vadd.f32 %v2832, %v3918
    %v3920 = vpop.f32.mrf.mxu0
    %v3921 = vadd.f32 %v2836, %v3920
    %3922 = vdwg.mxu0
    %3923 = vmatprep.subr.mxu0 %v2123
    %3924 = vmatpush1.msra.mxu0 %v2122
    %3925 = vmatprep.subr.mxu0 %v2098
    %3926 = vmatpush1.msra.mxu0 %v2097
    %3927 = vmatprep.subr.mxu0 %v2073
    %3928 = vmatpush1.msra.mxu0 %v2072
    %3929 = vmatprep.subr.mxu0 %v2048
    %3930 = vmatpush1.msra.mxu0 %v2047
    %3931 = vmatprep.subr.mxu0 %v2023
    %3932 = vmatpush1.msra.mxu0 %v2022
    %3933 = vmatprep.subr.mxu0 %v1998
    %3934 = vmatpush1.msra.mxu0 %v1997
    %3935 = vmatprep.subr.mxu0 %v1973
    %3936 = vmatpush1.msra.mxu0 %v1972
    %3937 = vmatprep.subr.mxu0 %v1948
    %3938 = vmatpush1.msra.mxu0 %v1947
    %3939 = vmatprep.subr.mxu0 %v1923
    %3940 = vmatpush1.msra.mxu0 %v1922
    %3941 = vmatprep.subr.mxu0 %v1898
    %3942 = vmatpush1.msra.mxu0 %v1897
    %3943 = vmatprep.subr.mxu0 %v1873
    %3944 = vmatpush1.msra.mxu0 %v1872
    %3945 = vmatprep.subr.mxu0 %v1848
    %3946 = vmatpush1.msra.mxu0 %v1847
    %3947 = vmatprep.subr.mxu0 %v1823
    %3948 = vmatpush1.msra.mxu0 %v1822
    %3949 = vmatprep.subr.mxu0 %v1798
    %3950 = vmatpush1.msra.mxu0 %v1797
    %3951 = vmatprep.subr.mxu0 %v1773
    %3952 = vmatpush1.msra.mxu0 %v1772
    %3953 = vmatprep.subr.mxu0 %v1748
    %3954 = vmatpush1.msra.mxu0 %v1747
    %3955 = vmatprep.subr.mxu0 %v2523
    %3956 = vmatpush2.msra.mxu0 %v2522
    %3957 = vmatprep.subr.mxu0 %v2498
    %3958 = vmatpush2.msra.mxu0 %v2497
    %3959 = vmatprep.subr.mxu0 %v2473
    %3960 = vmatpush2.msra.mxu0 %v2472
    %3961 = vmatprep.subr.mxu0 %v2448
    %3962 = vmatpush2.msra.mxu0 %v2447
    %3963 = vmatprep.subr.mxu0 %v2423
    %3964 = vmatpush2.msra.mxu0 %v2422
    %3965 = vmatprep.subr.mxu0 %v2398
    %3966 = vmatpush2.msra.mxu0 %v2397
    %3967 = vmatprep.subr.mxu0 %v2373
    %3968 = vmatpush2.msra.mxu0 %v2372
    %3969 = vmatprep.subr.mxu0 %v2348
    %3970 = vmatpush2.msra.mxu0 %v2347
    %3971 = vmatprep.subr.mxu0 %v2323
    %3972 = vmatpush2.msra.mxu0 %v2322
    %3973 = vmatprep.subr.mxu0 %v2298
    %3974 = vmatpush2.msra.mxu0 %v2297
    %3975 = vmatprep.subr.mxu0 %v2273
    %3976 = vmatpush2.msra.mxu0 %v2272
    %3977 = vmatprep.subr.mxu0 %v2248
    %3978 = vmatpush2.msra.mxu0 %v2247
    %3979 = vmatprep.subr.mxu0 %v2223
    %3980 = vmatpush2.msra.mxu0 %v2222
    %3981 = vmatprep.subr.mxu0 %v2198
    %3982 = vmatpush2.msra.mxu0 %v2197
    %3983 = vmatprep.subr.mxu0 %v2173
    %3984 = vmatpush2.msra.mxu0 %v2172
    %3985 = vmatprep.subr.mxu0 %v2148
    %3986 = vmatpush2.msra.mxu0 %v2147
    %3987 = vmatprep.mubr.f32.mxu0 %v937
    %3988 = vmatmul.mubr.f32.gmra.mxu0 %v936
    %v3989 = vpop.f32.mrf.mxu0
    %v3990 = vadd.f32 %v3919, %v3989
    %v3991 = vpop.f32.mrf.mxu0
    %v3992 = vadd.f32 %v3921, %v3991
    %3993 = vdwg.mxu0
    %3994 = vmatprep.subr.mxu0 0.0
    %3995 = vmatpush1.msra.mxu0 0.0
    %3996 = vmatprep.subr.mxu0 0.0
    %3997 = vmatpush1.msra.mxu0 0.0
    %3998 = vmatprep.subr.mxu0 0.0
    %3999 = vmatpush1.msra.mxu0 0.0
    %4000 = vmatprep.subr.mxu0 0.0
    %4001 = vmatpush1.msra.mxu0 0.0
    %4002 = vmatprep.subr.mxu0 0.0
    %4003 = vmatpush1.msra.mxu0 0.0
    %4004 = vmatprep.subr.mxu0 0.0
    %4005 = vmatpush1.msra.mxu0 0.0
    %4006 = vmatprep.subr.mxu0 %v2953
    %4007 = vmatpush1.msra.mxu0 %v2950
    %4008 = vmatprep.subr.mxu0 %v2748
    %4009 = vmatpush1.msra.mxu0 %v2747
    %4010 = vmatprep.subr.mxu0 %v2723
    %4011 = vmatpush1.msra.mxu0 %v2722
    %4012 = vmatprep.subr.mxu0 %v2698
    %4013 = vmatpush1.msra.mxu0 %v2697
    %4014 = vmatprep.subr.mxu0 %v2673
    %4015 = vmatpush1.msra.mxu0 %v2672
    %4016 = vmatprep.subr.mxu0 %v2648
    %4017 = vmatpush1.msra.mxu0 %v2647
    %4018 = vmatprep.subr.mxu0 %v2623
    %4019 = vmatpush1.msra.mxu0 %v2622
    %4020 = vmatprep.subr.mxu0 %v2598
    %4021 = vmatpush1.msra.mxu0 %v2597
    %4022 = vmatprep.subr.mxu0 %v2573
    %4023 = vmatpush1.msra.mxu0 %v2572
    %4024 = vmatprep.subr.mxu0 %v2548
    %4025 = vmatpush1.msra.mxu0 %v2547
    %4026 = vmatprep.subr.mxu0 0.0
    %4027 = vmatpush2.msra.mxu0 0.0
    %4028 = vmatprep.subr.mxu0 0.0
    %4029 = vmatpush2.msra.mxu0 0.0
    %4030 = vmatprep.subr.mxu0 0.0
    %4031 = vmatpush2.msra.mxu0 0.0
    %4032 = vmatprep.subr.mxu0 0.0
    %4033 = vmatpush2.msra.mxu0 0.0
    %4034 = vmatprep.subr.mxu0 0.0
    %4035 = vmatpush2.msra.mxu0 0.0
    %4036 = vmatprep.subr.mxu0 0.0
    %4037 = vmatpush2.msra.mxu0 0.0
    %4038 = vmatprep.subr.mxu0 0.0
    %4039 = vmatpush2.msra.mxu0 0.0
    %4040 = vmatprep.subr.mxu0 0.0
    %4041 = vmatpush2.msra.mxu0 0.0
    %4042 = vmatprep.subr.mxu0 0.0
    %4043 = vmatpush2.msra.mxu0 0.0
    %4044 = vmatprep.subr.mxu0 0.0
    %4045 = vmatpush2.msra.mxu0 0.0
    %4046 = vmatprep.subr.mxu0 0.0
    %4047 = vmatpush2.msra.mxu0 0.0
    %4048 = vmatprep.subr.mxu0 0.0
    %4049 = vmatpush2.msra.mxu0 0.0
    %4050 = vmatprep.subr.mxu0 0.0
    %4051 = vmatpush2.msra.mxu0 0.0
    %4052 = vmatprep.subr.mxu0 0.0
    %4053 = vmatpush2.msra.mxu0 0.0
    %4054 = vmatprep.subr.mxu0 0.0
    %4055 = vmatpush2.msra.mxu0 0.0
    %4056 = vmatprep.subr.mxu0 0.0
    %4057 = vmatpush2.msra.mxu0 0.0
    %4058 = vmatprep.mubr.f32.mxu0 0.0
    %4059 = vmatmul.mubr.f32.gmra.mxu0 %v2923
    %v4060 = vpop.f32.mrf.mxu0
    %v4061 = vadd.f32 %v3990, %v4060
    %v4062 = vpop.f32.mrf.mxu0
    %v4063 = vadd.f32 %v3992, %v4062
    %4064 = vdwg.mxu0
    %4065 = vmatprep.subr.mxu0 %v1325
    %4066 = vmatpush1.msra.mxu0 %v1324
    %4067 = vmatprep.subr.mxu0 %v1300
    %4068 = vmatpush1.msra.mxu0 %v1299
    %4069 = vmatprep.subr.mxu0 %v1275
    %4070 = vmatpush1.msra.mxu0 %v1274
    %4071 = vmatprep.subr.mxu0 %v1250
    %4072 = vmatpush1.msra.mxu0 %v1249
    %4073 = vmatprep.subr.mxu0 %v1225
    %4074 = vmatpush1.msra.mxu0 %v1224
    %4075 = vmatprep.subr.mxu0 %v1200
    %4076 = vmatpush1.msra.mxu0 %v1199
    %4077 = vmatprep.subr.mxu0 %v1175
    %4078 = vmatpush1.msra.mxu0 %v1174
    %4079 = vmatprep.subr.mxu0 %v1150
    %4080 = vmatpush1.msra.mxu0 %v1149
    %4081 = vmatprep.subr.mxu0 %v1125
    %4082 = vmatpush1.msra.mxu0 %v1124
    %4083 = vmatprep.subr.mxu0 %v1100
    %4084 = vmatpush1.msra.mxu0 %v1099
    %4085 = vmatprep.subr.mxu0 %v1075
    %4086 = vmatpush1.msra.mxu0 %v1074
    %4087 = vmatprep.subr.mxu0 %v1050
    %4088 = vmatpush1.msra.mxu0 %v1049
    %4089 = vmatprep.subr.mxu0 %v1025
    %4090 = vmatpush1.msra.mxu0 %v1024
    %4091 = vmatprep.subr.mxu0 %v1000
    %4092 = vmatpush1.msra.mxu0 %v999
    %4093 = vmatprep.subr.mxu0 %v975
    %4094 = vmatpush1.msra.mxu0 %v974
    %4095 = vmatprep.subr.mxu0 %v950
    %4096 = vmatpush1.msra.mxu0 %v949
    %4097 = vmatprep.subr.mxu0 %v1725
    %4098 = vmatpush2.msra.mxu0 %v1724
    %4099 = vmatprep.subr.mxu0 %v1700
    %4100 = vmatpush2.msra.mxu0 %v1699
    %4101 = vmatprep.subr.mxu0 %v1675
    %4102 = vmatpush2.msra.mxu0 %v1674
    %4103 = vmatprep.subr.mxu0 %v1650
    %4104 = vmatpush2.msra.mxu0 %v1649
    %4105 = vmatprep.subr.mxu0 %v1625
    %4106 = vmatpush2.msra.mxu0 %v1624
    %4107 = vmatprep.subr.mxu0 %v1600
    %4108 = vmatpush2.msra.mxu0 %v1599
    %4109 = vmatprep.subr.mxu0 %v1575
    %4110 = vmatpush2.msra.mxu0 %v1574
    %4111 = vmatprep.subr.mxu0 %v1550
    %4112 = vmatpush2.msra.mxu0 %v1549
    %4113 = vmatprep.subr.mxu0 %v1525
    %4114 = vmatpush2.msra.mxu0 %v1524
    %4115 = vmatprep.subr.mxu0 %v1500
    %4116 = vmatpush2.msra.mxu0 %v1499
    %4117 = vmatprep.subr.mxu0 %v1475
    %4118 = vmatpush2.msra.mxu0 %v1474
    %4119 = vmatprep.subr.mxu0 %v1450
    %4120 = vmatpush2.msra.mxu0 %v1449
    %4121 = vmatprep.subr.mxu0 %v1425
    %4122 = vmatpush2.msra.mxu0 %v1424
    %4123 = vmatprep.subr.mxu0 %v1400
    %4124 = vmatpush2.msra.mxu0 %v1399
    %4125 = vmatprep.subr.mxu0 %v1375
    %4126 = vmatpush2.msra.mxu0 %v1374
    %4127 = vmatprep.subr.mxu0 %v1350
    %4128 = vmatpush2.msra.mxu0 %v1349
    %4129 = vmatprep.mubr.f32.mxu0 %v935
    %4130 = vmatmul.mubr.f32.gmra.mxu0 %v934
    %v4131 = vpop.f32.mrf.mxu0
    %v4132 = vadd.f32 %v2840, %v4131
    %v4133 = vpop.f32.mrf.mxu0
    %v4134 = vadd.f32 %v2844, %v4133
    %4135 = vdwg.mxu0
    %4136 = vmatprep.subr.mxu0 %v2125
    %4137 = vmatpush1.msra.mxu0 %v2124
    %4138 = vmatprep.subr.mxu0 %v2100
    %4139 = vmatpush1.msra.mxu0 %v2099
    %4140 = vmatprep.subr.mxu0 %v2075
    %4141 = vmatpush1.msra.mxu0 %v2074
    %4142 = vmatprep.subr.mxu0 %v2050
    %4143 = vmatpush1.msra.mxu0 %v2049
    %4144 = vmatprep.subr.mxu0 %v2025
    %4145 = vmatpush1.msra.mxu0 %v2024
    %4146 = vmatprep.subr.mxu0 %v2000
    %4147 = vmatpush1.msra.mxu0 %v1999
    %4148 = vmatprep.subr.mxu0 %v1975
    %4149 = vmatpush1.msra.mxu0 %v1974
    %4150 = vmatprep.subr.mxu0 %v1950
    %4151 = vmatpush1.msra.mxu0 %v1949
    %4152 = vmatprep.subr.mxu0 %v1925
    %4153 = vmatpush1.msra.mxu0 %v1924
    %4154 = vmatprep.subr.mxu0 %v1900
    %4155 = vmatpush1.msra.mxu0 %v1899
    %4156 = vmatprep.subr.mxu0 %v1875
    %4157 = vmatpush1.msra.mxu0 %v1874
    %4158 = vmatprep.subr.mxu0 %v1850
    %4159 = vmatpush1.msra.mxu0 %v1849
    %4160 = vmatprep.subr.mxu0 %v1825
    %4161 = vmatpush1.msra.mxu0 %v1824
    %4162 = vmatprep.subr.mxu0 %v1800
    %4163 = vmatpush1.msra.mxu0 %v1799
    %4164 = vmatprep.subr.mxu0 %v1775
    %4165 = vmatpush1.msra.mxu0 %v1774
    %4166 = vmatprep.subr.mxu0 %v1750
    %4167 = vmatpush1.msra.mxu0 %v1749
    %4168 = vmatprep.subr.mxu0 %v2525
    %4169 = vmatpush2.msra.mxu0 %v2524
    %4170 = vmatprep.subr.mxu0 %v2500
    %4171 = vmatpush2.msra.mxu0 %v2499
    %4172 = vmatprep.subr.mxu0 %v2475
    %4173 = vmatpush2.msra.mxu0 %v2474
    %4174 = vmatprep.subr.mxu0 %v2450
    %4175 = vmatpush2.msra.mxu0 %v2449
    %4176 = vmatprep.subr.mxu0 %v2425
    %4177 = vmatpush2.msra.mxu0 %v2424
    %4178 = vmatprep.subr.mxu0 %v2400
    %4179 = vmatpush2.msra.mxu0 %v2399
    %4180 = vmatprep.subr.mxu0 %v2375
    %4181 = vmatpush2.msra.mxu0 %v2374
    %4182 = vmatprep.subr.mxu0 %v2350
    %4183 = vmatpush2.msra.mxu0 %v2349
    %4184 = vmatprep.subr.mxu0 %v2325
    %4185 = vmatpush2.msra.mxu0 %v2324
    %4186 = vmatprep.subr.mxu0 %v2300
    %4187 = vmatpush2.msra.mxu0 %v2299
    %4188 = vmatprep.subr.mxu0 %v2275
    %4189 = vmatpush2.msra.mxu0 %v2274
    %4190 = vmatprep.subr.mxu0 %v2250
    %4191 = vmatpush2.msra.mxu0 %v2249
    %4192 = vmatprep.subr.mxu0 %v2225
    %4193 = vmatpush2.msra.mxu0 %v2224
    %4194 = vmatprep.subr.mxu0 %v2200
    %4195 = vmatpush2.msra.mxu0 %v2199
    %4196 = vmatprep.subr.mxu0 %v2175
    %4197 = vmatpush2.msra.mxu0 %v2174
    %4198 = vmatprep.subr.mxu0 %v2150
    %4199 = vmatpush2.msra.mxu0 %v2149
    %4200 = vmatprep.mubr.f32.mxu0 %v937
    %4201 = vmatmul.mubr.f32.gmra.mxu0 %v936
    %v4202 = vpop.f32.mrf.mxu0
    %v4203 = vadd.f32 %v4132, %v4202
    %v4204 = vpop.f32.mrf.mxu0
    %v4205 = vadd.f32 %v4134, %v4204
    %4206 = vdwg.mxu0
    %4207 = vmatprep.subr.mxu0 0.0
    %4208 = vmatpush1.msra.mxu0 0.0
    %4209 = vmatprep.subr.mxu0 0.0
    %4210 = vmatpush1.msra.mxu0 0.0
    %4211 = vmatprep.subr.mxu0 0.0
    %4212 = vmatpush1.msra.mxu0 0.0
    %4213 = vmatprep.subr.mxu0 0.0
    %4214 = vmatpush1.msra.mxu0 0.0
    %4215 = vmatprep.subr.mxu0 0.0
    %4216 = vmatpush1.msra.mxu0 0.0
    %4217 = vmatprep.subr.mxu0 0.0
    %4218 = vmatpush1.msra.mxu0 0.0
    %4219 = vmatprep.subr.mxu0 %v2959
    %4220 = vmatpush1.msra.mxu0 %v2956
    %4221 = vmatprep.subr.mxu0 %v2750
    %4222 = vmatpush1.msra.mxu0 %v2749
    %4223 = vmatprep.subr.mxu0 %v2725
    %4224 = vmatpush1.msra.mxu0 %v2724
    %4225 = vmatprep.subr.mxu0 %v2700
    %4226 = vmatpush1.msra.mxu0 %v2699
    %4227 = vmatprep.subr.mxu0 %v2675
    %4228 = vmatpush1.msra.mxu0 %v2674
    %4229 = vmatprep.subr.mxu0 %v2650
    %4230 = vmatpush1.msra.mxu0 %v2649
    %4231 = vmatprep.subr.mxu0 %v2625
    %4232 = vmatpush1.msra.mxu0 %v2624
    %4233 = vmatprep.subr.mxu0 %v2600
    %4234 = vmatpush1.msra.mxu0 %v2599
    %4235 = vmatprep.subr.mxu0 %v2575
    %4236 = vmatpush1.msra.mxu0 %v2574
    %4237 = vmatprep.subr.mxu0 %v2550
    %4238 = vmatpush1.msra.mxu0 %v2549
    %4239 = vmatprep.subr.mxu0 0.0
    %4240 = vmatpush2.msra.mxu0 0.0
    %4241 = vmatprep.subr.mxu0 0.0
    %4242 = vmatpush2.msra.mxu0 0.0
    %4243 = vmatprep.subr.mxu0 0.0
    %4244 = vmatpush2.msra.mxu0 0.0
    %4245 = vmatprep.subr.mxu0 0.0
    %4246 = vmatpush2.msra.mxu0 0.0
    %4247 = vmatprep.subr.mxu0 0.0
    %4248 = vmatpush2.msra.mxu0 0.0
    %4249 = vmatprep.subr.mxu0 0.0
    %4250 = vmatpush2.msra.mxu0 0.0
    %4251 = vmatprep.subr.mxu0 0.0
    %4252 = vmatpush2.msra.mxu0 0.0
    %4253 = vmatprep.subr.mxu0 0.0
    %4254 = vmatpush2.msra.mxu0 0.0
    %4255 = vmatprep.subr.mxu0 0.0
    %4256 = vmatpush2.msra.mxu0 0.0
    %4257 = vmatprep.subr.mxu0 0.0
    %4258 = vmatpush2.msra.mxu0 0.0
    %4259 = vmatprep.subr.mxu0 0.0
    %4260 = vmatpush2.msra.mxu0 0.0
    %4261 = vmatprep.subr.mxu0 0.0
    %4262 = vmatpush2.msra.mxu0 0.0
    %4263 = vmatprep.subr.mxu0 0.0
    %4264 = vmatpush2.msra.mxu0 0.0
    %4265 = vmatprep.subr.mxu0 0.0
    %4266 = vmatpush2.msra.mxu0 0.0
    %4267 = vmatprep.subr.mxu0 0.0
    %4268 = vmatpush2.msra.mxu0 0.0
    %4269 = vmatprep.subr.mxu0 0.0
    %4270 = vmatpush2.msra.mxu0 0.0
    %4271 = vmatprep.mubr.f32.mxu0 0.0
    %4272 = vmatmul.mubr.f32.gmra.mxu0 %v2923
    %v4273 = vpop.f32.mrf.mxu0
    %v4274 = vadd.f32 %v4203, %v4273
    %v4275 = vpop.f32.mrf.mxu0
    %v4276 = vadd.f32 %v4205, %v4275
    %4277 = vdwg.mxu0
    %4278 = vmatprep.subr.mxu0 %v1327
    %4279 = vmatpush1.msra.mxu0 %v1326
    %4280 = vmatprep.subr.mxu0 %v1302
    %4281 = vmatpush1.msra.mxu0 %v1301
    %4282 = vmatprep.subr.mxu0 %v1277
    %4283 = vmatpush1.msra.mxu0 %v1276
    %4284 = vmatprep.subr.mxu0 %v1252
    %4285 = vmatpush1.msra.mxu0 %v1251
    %4286 = vmatprep.subr.mxu0 %v1227
    %4287 = vmatpush1.msra.mxu0 %v1226
    %4288 = vmatprep.subr.mxu0 %v1202
    %4289 = vmatpush1.msra.mxu0 %v1201
    %4290 = vmatprep.subr.mxu0 %v1177
    %4291 = vmatpush1.msra.mxu0 %v1176
    %4292 = vmatprep.subr.mxu0 %v1152
    %4293 = vmatpush1.msra.mxu0 %v1151
    %4294 = vmatprep.subr.mxu0 %v1127
    %4295 = vmatpush1.msra.mxu0 %v1126
    %4296 = vmatprep.subr.mxu0 %v1102
    %4297 = vmatpush1.msra.mxu0 %v1101
    %4298 = vmatprep.subr.mxu0 %v1077
    %4299 = vmatpush1.msra.mxu0 %v1076
    %4300 = vmatprep.subr.mxu0 %v1052
    %4301 = vmatpush1.msra.mxu0 %v1051
    %4302 = vmatprep.subr.mxu0 %v1027
    %4303 = vmatpush1.msra.mxu0 %v1026
    %4304 = vmatprep.subr.mxu0 %v1002
    %4305 = vmatpush1.msra.mxu0 %v1001
    %4306 = vmatprep.subr.mxu0 %v977
    %4307 = vmatpush1.msra.mxu0 %v976
    %4308 = vmatprep.subr.mxu0 %v952
    %4309 = vmatpush1.msra.mxu0 %v951
    %4310 = vmatprep.subr.mxu0 %v1727
    %4311 = vmatpush2.msra.mxu0 %v1726
    %4312 = vmatprep.subr.mxu0 %v1702
    %4313 = vmatpush2.msra.mxu0 %v1701
    %4314 = vmatprep.subr.mxu0 %v1677
    %4315 = vmatpush2.msra.mxu0 %v1676
    %4316 = vmatprep.subr.mxu0 %v1652
    %4317 = vmatpush2.msra.mxu0 %v1651
    %4318 = vmatprep.subr.mxu0 %v1627
    %4319 = vmatpush2.msra.mxu0 %v1626
    %4320 = vmatprep.subr.mxu0 %v1602
    %4321 = vmatpush2.msra.mxu0 %v1601
    %4322 = vmatprep.subr.mxu0 %v1577
    %4323 = vmatpush2.msra.mxu0 %v1576
    %4324 = vmatprep.subr.mxu0 %v1552
    %4325 = vmatpush2.msra.mxu0 %v1551
    %4326 = vmatprep.subr.mxu0 %v1527
    %4327 = vmatpush2.msra.mxu0 %v1526
    %4328 = vmatprep.subr.mxu0 %v1502
    %4329 = vmatpush2.msra.mxu0 %v1501
    %4330 = vmatprep.subr.mxu0 %v1477
    %4331 = vmatpush2.msra.mxu0 %v1476
    %4332 = vmatprep.subr.mxu0 %v1452
    %4333 = vmatpush2.msra.mxu0 %v1451
    %4334 = vmatprep.subr.mxu0 %v1427
    %4335 = vmatpush2.msra.mxu0 %v1426
    %4336 = vmatprep.subr.mxu0 %v1402
    %4337 = vmatpush2.msra.mxu0 %v1401
    %4338 = vmatprep.subr.mxu0 %v1377
    %4339 = vmatpush2.msra.mxu0 %v1376
    %4340 = vmatprep.subr.mxu0 %v1352
    %4341 = vmatpush2.msra.mxu0 %v1351
    %4342 = vmatprep.mubr.f32.mxu0 %v935
    %4343 = vmatmul.mubr.f32.gmra.mxu0 %v934
    %v4344 = vpop.f32.mrf.mxu0
    %v4345 = vadd.f32 %v2848, %v4344
    %v4346 = vpop.f32.mrf.mxu0
    %v4347 = vadd.f32 %v2852, %v4346
    %4348 = vdwg.mxu0
    %4349 = vmatprep.subr.mxu0 %v2127
    %4350 = vmatpush1.msra.mxu0 %v2126
    %4351 = vmatprep.subr.mxu0 %v2102
    %4352 = vmatpush1.msra.mxu0 %v2101
    %4353 = vmatprep.subr.mxu0 %v2077
    %4354 = vmatpush1.msra.mxu0 %v2076
    %4355 = vmatprep.subr.mxu0 %v2052
    %4356 = vmatpush1.msra.mxu0 %v2051
    %4357 = vmatprep.subr.mxu0 %v2027
    %4358 = vmatpush1.msra.mxu0 %v2026
    %4359 = vmatprep.subr.mxu0 %v2002
    %4360 = vmatpush1.msra.mxu0 %v2001
    %4361 = vmatprep.subr.mxu0 %v1977
    %4362 = vmatpush1.msra.mxu0 %v1976
    %4363 = vmatprep.subr.mxu0 %v1952
    %4364 = vmatpush1.msra.mxu0 %v1951
    %4365 = vmatprep.subr.mxu0 %v1927
    %4366 = vmatpush1.msra.mxu0 %v1926
    %4367 = vmatprep.subr.mxu0 %v1902
    %4368 = vmatpush1.msra.mxu0 %v1901
    %4369 = vmatprep.subr.mxu0 %v1877
    %4370 = vmatpush1.msra.mxu0 %v1876
    %4371 = vmatprep.subr.mxu0 %v1852
    %4372 = vmatpush1.msra.mxu0 %v1851
    %4373 = vmatprep.subr.mxu0 %v1827
    %4374 = vmatpush1.msra.mxu0 %v1826
    %4375 = vmatprep.subr.mxu0 %v1802
    %4376 = vmatpush1.msra.mxu0 %v1801
    %4377 = vmatprep.subr.mxu0 %v1777
    %4378 = vmatpush1.msra.mxu0 %v1776
    %4379 = vmatprep.subr.mxu0 %v1752
    %4380 = vmatpush1.msra.mxu0 %v1751
    %4381 = vmatprep.subr.mxu0 %v2527
    %4382 = vmatpush2.msra.mxu0 %v2526
    %4383 = vmatprep.subr.mxu0 %v2502
    %4384 = vmatpush2.msra.mxu0 %v2501
    %4385 = vmatprep.subr.mxu0 %v2477
    %4386 = vmatpush2.msra.mxu0 %v2476
    %4387 = vmatprep.subr.mxu0 %v2452
    %4388 = vmatpush2.msra.mxu0 %v2451
    %4389 = vmatprep.subr.mxu0 %v2427
    %4390 = vmatpush2.msra.mxu0 %v2426
    %4391 = vmatprep.subr.mxu0 %v2402
    %4392 = vmatpush2.msra.mxu0 %v2401
    %4393 = vmatprep.subr.mxu0 %v2377
    %4394 = vmatpush2.msra.mxu0 %v2376
    %4395 = vmatprep.subr.mxu0 %v2352
    %4396 = vmatpush2.msra.mxu0 %v2351
    %4397 = vmatprep.subr.mxu0 %v2327
    %4398 = vmatpush2.msra.mxu0 %v2326
    %4399 = vmatprep.subr.mxu0 %v2302
    %4400 = vmatpush2.msra.mxu0 %v2301
    %4401 = vmatprep.subr.mxu0 %v2277
    %4402 = vmatpush2.msra.mxu0 %v2276
    %4403 = vmatprep.subr.mxu0 %v2252
    %4404 = vmatpush2.msra.mxu0 %v2251
    %4405 = vmatprep.subr.mxu0 %v2227
    %4406 = vmatpush2.msra.mxu0 %v2226
    %4407 = vmatprep.subr.mxu0 %v2202
    %4408 = vmatpush2.msra.mxu0 %v2201
    %4409 = vmatprep.subr.mxu0 %v2177
    %4410 = vmatpush2.msra.mxu0 %v2176
    %4411 = vmatprep.subr.mxu0 %v2152
    %4412 = vmatpush2.msra.mxu0 %v2151
    %4413 = vmatprep.mubr.f32.mxu0 %v937
    %4414 = vmatmul.mubr.f32.gmra.mxu0 %v936
    %v4415 = vpop.f32.mrf.mxu0
    %v4416 = vadd.f32 %v4345, %v4415
    %v4417 = vpop.f32.mrf.mxu0
    %v4418 = vadd.f32 %v4347, %v4417
    %4419 = vdwg.mxu0
    %4420 = vmatprep.subr.mxu0 0.0
    %4421 = vmatpush1.msra.mxu0 0.0
    %4422 = vmatprep.subr.mxu0 0.0
    %4423 = vmatpush1.msra.mxu0 0.0
    %4424 = vmatprep.subr.mxu0 0.0
    %4425 = vmatpush1.msra.mxu0 0.0
    %4426 = vmatprep.subr.mxu0 0.0
    %4427 = vmatpush1.msra.mxu0 0.0
    %4428 = vmatprep.subr.mxu0 0.0
    %4429 = vmatpush1.msra.mxu0 0.0
    %4430 = vmatprep.subr.mxu0 0.0
    %4431 = vmatpush1.msra.mxu0 0.0
    %4432 = vmatprep.subr.mxu0 %v2965
    %4433 = vmatpush1.msra.mxu0 %v2962
    %4434 = vmatprep.subr.mxu0 %v2752
    %4435 = vmatpush1.msra.mxu0 %v2751
    %4436 = vmatprep.subr.mxu0 %v2727
    %4437 = vmatpush1.msra.mxu0 %v2726
    %4438 = vmatprep.subr.mxu0 %v2702
    %4439 = vmatpush1.msra.mxu0 %v2701
    %4440 = vmatprep.subr.mxu0 %v2677
    %4441 = vmatpush1.msra.mxu0 %v2676
    %4442 = vmatprep.subr.mxu0 %v2652
    %4443 = vmatpush1.msra.mxu0 %v2651
    %4444 = vmatprep.subr.mxu0 %v2627
    %4445 = vmatpush1.msra.mxu0 %v2626
    %4446 = vmatprep.subr.mxu0 %v2602
    %4447 = vmatpush1.msra.mxu0 %v2601
    %4448 = vmatprep.subr.mxu0 %v2577
    %4449 = vmatpush1.msra.mxu0 %v2576
    %4450 = vmatprep.subr.mxu0 %v2552
    %4451 = vmatpush1.msra.mxu0 %v2551
    %4452 = vmatprep.subr.mxu0 0.0
    %4453 = vmatpush2.msra.mxu0 0.0
    %4454 = vmatprep.subr.mxu0 0.0
    %4455 = vmatpush2.msra.mxu0 0.0
    %4456 = vmatprep.subr.mxu0 0.0
    %4457 = vmatpush2.msra.mxu0 0.0
    %4458 = vmatprep.subr.mxu0 0.0
    %4459 = vmatpush2.msra.mxu0 0.0
    %4460 = vmatprep.subr.mxu0 0.0
    %4461 = vmatpush2.msra.mxu0 0.0
    %4462 = vmatprep.subr.mxu0 0.0
    %4463 = vmatpush2.msra.mxu0 0.0
    %4464 = vmatprep.subr.mxu0 0.0
    %4465 = vmatpush2.msra.mxu0 0.0
    %4466 = vmatprep.subr.mxu0 0.0
    %4467 = vmatpush2.msra.mxu0 0.0
    %4468 = vmatprep.subr.mxu0 0.0
    %4469 = vmatpush2.msra.mxu0 0.0
    %4470 = vmatprep.subr.mxu0 0.0
    %4471 = vmatpush2.msra.mxu0 0.0
    %4472 = vmatprep.subr.mxu0 0.0
    %4473 = vmatpush2.msra.mxu0 0.0
    %4474 = vmatprep.subr.mxu0 0.0
    %4475 = vmatpush2.msra.mxu0 0.0
    %4476 = vmatprep.subr.mxu0 0.0
    %4477 = vmatpush2.msra.mxu0 0.0
    %4478 = vmatprep.subr.mxu0 0.0
    %4479 = vmatpush2.msra.mxu0 0.0
    %4480 = vmatprep.subr.mxu0 0.0
    %4481 = vmatpush2.msra.mxu0 0.0
    %4482 = vmatprep.subr.mxu0 0.0
    %4483 = vmatpush2.msra.mxu0 0.0
    %4484 = vmatprep.mubr.f32.mxu0 0.0
    %4485 = vmatmul.mubr.f32.gmra.mxu0 %v2923
    %v4486 = vpop.f32.mrf.mxu0
    %v4487 = vadd.f32 %v4416, %v4486
    %v4488 = vpop.f32.mrf.mxu0
    %v4489 = vadd.f32 %v4418, %v4488
    %4490 = vdwg.mxu0
    %4491 = vmatprep.subr.mxu0 %v1329
    %4492 = vmatpush1.msra.mxu0 %v1328
    %4493 = vmatprep.subr.mxu0 %v1304
    %4494 = vmatpush1.msra.mxu0 %v1303
    %4495 = vmatprep.subr.mxu0 %v1279
    %4496 = vmatpush1.msra.mxu0 %v1278
    %4497 = vmatprep.subr.mxu0 %v1254
    %4498 = vmatpush1.msra.mxu0 %v1253
    %4499 = vmatprep.subr.mxu0 %v1229
    %4500 = vmatpush1.msra.mxu0 %v1228
    %4501 = vmatprep.subr.mxu0 %v1204
    %4502 = vmatpush1.msra.mxu0 %v1203
    %4503 = vmatprep.subr.mxu0 %v1179
    %4504 = vmatpush1.msra.mxu0 %v1178
    %4505 = vmatprep.subr.mxu0 %v1154
    %4506 = vmatpush1.msra.mxu0 %v1153
    %4507 = vmatprep.subr.mxu0 %v1129
    %4508 = vmatpush1.msra.mxu0 %v1128
    %4509 = vmatprep.subr.mxu0 %v1104
    %4510 = vmatpush1.msra.mxu0 %v1103
    %4511 = vmatprep.subr.mxu0 %v1079
    %4512 = vmatpush1.msra.mxu0 %v1078
    %4513 = vmatprep.subr.mxu0 %v1054
    %4514 = vmatpush1.msra.mxu0 %v1053
    %4515 = vmatprep.subr.mxu0 %v1029
    %4516 = vmatpush1.msra.mxu0 %v1028
    %4517 = vmatprep.subr.mxu0 %v1004
    %4518 = vmatpush1.msra.mxu0 %v1003
    %4519 = vmatprep.subr.mxu0 %v979
    %4520 = vmatpush1.msra.mxu0 %v978
    %4521 = vmatprep.subr.mxu0 %v954
    %4522 = vmatpush1.msra.mxu0 %v953
    %4523 = vmatprep.subr.mxu0 %v1729
    %4524 = vmatpush2.msra.mxu0 %v1728
    %4525 = vmatprep.subr.mxu0 %v1704
    %4526 = vmatpush2.msra.mxu0 %v1703
    %4527 = vmatprep.subr.mxu0 %v1679
    %4528 = vmatpush2.msra.mxu0 %v1678
    %4529 = vmatprep.subr.mxu0 %v1654
    %4530 = vmatpush2.msra.mxu0 %v1653
    %4531 = vmatprep.subr.mxu0 %v1629
    %4532 = vmatpush2.msra.mxu0 %v1628
    %4533 = vmatprep.subr.mxu0 %v1604
    %4534 = vmatpush2.msra.mxu0 %v1603
    %4535 = vmatprep.subr.mxu0 %v1579
    %4536 = vmatpush2.msra.mxu0 %v1578
    %4537 = vmatprep.subr.mxu0 %v1554
    %4538 = vmatpush2.msra.mxu0 %v1553
    %4539 = vmatprep.subr.mxu0 %v1529
    %4540 = vmatpush2.msra.mxu0 %v1528
    %4541 = vmatprep.subr.mxu0 %v1504
    %4542 = vmatpush2.msra.mxu0 %v1503
    %4543 = vmatprep.subr.mxu0 %v1479
    %4544 = vmatpush2.msra.mxu0 %v1478
    %4545 = vmatprep.subr.mxu0 %v1454
    %4546 = vmatpush2.msra.mxu0 %v1453
    %4547 = vmatprep.subr.mxu0 %v1429
    %4548 = vmatpush2.msra.mxu0 %v1428
    %4549 = vmatprep.subr.mxu0 %v1404
    %4550 = vmatpush2.msra.mxu0 %v1403
    %4551 = vmatprep.subr.mxu0 %v1379
    %4552 = vmatpush2.msra.mxu0 %v1378
    %4553 = vmatprep.subr.mxu0 %v1354
    %4554 = vmatpush2.msra.mxu0 %v1353
    %4555 = vmatprep.mubr.f32.mxu0 %v935
    %4556 = vmatmul.mubr.f32.gmra.mxu0 %v934
    %v4557 = vpop.f32.mrf.mxu0
    %v4558 = vadd.f32 %v2856, %v4557
    %v4559 = vpop.f32.mrf.mxu0
    %v4560 = vadd.f32 %v2860, %v4559
    %4561 = vdwg.mxu0
    %4562 = vmatprep.subr.mxu0 %v2129
    %4563 = vmatpush1.msra.mxu0 %v2128
    %4564 = vmatprep.subr.mxu0 %v2104
    %4565 = vmatpush1.msra.mxu0 %v2103
    %4566 = vmatprep.subr.mxu0 %v2079
    %4567 = vmatpush1.msra.mxu0 %v2078
    %4568 = vmatprep.subr.mxu0 %v2054
    %4569 = vmatpush1.msra.mxu0 %v2053
    %4570 = vmatprep.subr.mxu0 %v2029
    %4571 = vmatpush1.msra.mxu0 %v2028
    %4572 = vmatprep.subr.mxu0 %v2004
    %4573 = vmatpush1.msra.mxu0 %v2003
    %4574 = vmatprep.subr.mxu0 %v1979
    %4575 = vmatpush1.msra.mxu0 %v1978
    %4576 = vmatprep.subr.mxu0 %v1954
    %4577 = vmatpush1.msra.mxu0 %v1953
    %4578 = vmatprep.subr.mxu0 %v1929
    %4579 = vmatpush1.msra.mxu0 %v1928
    %4580 = vmatprep.subr.mxu0 %v1904
    %4581 = vmatpush1.msra.mxu0 %v1903
    %4582 = vmatprep.subr.mxu0 %v1879
    %4583 = vmatpush1.msra.mxu0 %v1878
    %4584 = vmatprep.subr.mxu0 %v1854
    %4585 = vmatpush1.msra.mxu0 %v1853
    %4586 = vmatprep.subr.mxu0 %v1829
    %4587 = vmatpush1.msra.mxu0 %v1828
    %4588 = vmatprep.subr.mxu0 %v1804
    %4589 = vmatpush1.msra.mxu0 %v1803
    %4590 = vmatprep.subr.mxu0 %v1779
    %4591 = vmatpush1.msra.mxu0 %v1778
    %4592 = vmatprep.subr.mxu0 %v1754
    %4593 = vmatpush1.msra.mxu0 %v1753
    %4594 = vmatprep.subr.mxu0 %v2529
    %4595 = vmatpush2.msra.mxu0 %v2528
    %4596 = vmatprep.subr.mxu0 %v2504
    %4597 = vmatpush2.msra.mxu0 %v2503
    %4598 = vmatprep.subr.mxu0 %v2479
    %4599 = vmatpush2.msra.mxu0 %v2478
    %4600 = vmatprep.subr.mxu0 %v2454
    %4601 = vmatpush2.msra.mxu0 %v2453
    %4602 = vmatprep.subr.mxu0 %v2429
    %4603 = vmatpush2.msra.mxu0 %v2428
    %4604 = vmatprep.subr.mxu0 %v2404
    %4605 = vmatpush2.msra.mxu0 %v2403
    %4606 = vmatprep.subr.mxu0 %v2379
    %4607 = vmatpush2.msra.mxu0 %v2378
    %4608 = vmatprep.subr.mxu0 %v2354
    %4609 = vmatpush2.msra.mxu0 %v2353
    %4610 = vmatprep.subr.mxu0 %v2329
    %4611 = vmatpush2.msra.mxu0 %v2328
    %4612 = vmatprep.subr.mxu0 %v2304
    %4613 = vmatpush2.msra.mxu0 %v2303
    %4614 = vmatprep.subr.mxu0 %v2279
    %4615 = vmatpush2.msra.mxu0 %v2278
    %4616 = vmatprep.subr.mxu0 %v2254
    %4617 = vmatpush2.msra.mxu0 %v2253
    %4618 = vmatprep.subr.mxu0 %v2229
    %4619 = vmatpush2.msra.mxu0 %v2228
    %4620 = vmatprep.subr.mxu0 %v2204
    %4621 = vmatpush2.msra.mxu0 %v2203
    %4622 = vmatprep.subr.mxu0 %v2179
    %4623 = vmatpush2.msra.mxu0 %v2178
    %4624 = vmatprep.subr.mxu0 %v2154
    %4625 = vmatpush2.msra.mxu0 %v2153
    %4626 = vmatprep.mubr.f32.mxu0 %v937
    %4627 = vmatmul.mubr.f32.gmra.mxu0 %v936
    %v4628 = vpop.f32.mrf.mxu0
    %v4629 = vadd.f32 %v4558, %v4628
    %v4630 = vpop.f32.mrf.mxu0
    %v4631 = vadd.f32 %v4560, %v4630
    %4632 = vdwg.mxu0
    %4633 = vmatprep.subr.mxu0 0.0
    %4634 = vmatpush1.msra.mxu0 0.0
    %4635 = vmatprep.subr.mxu0 0.0
    %4636 = vmatpush1.msra.mxu0 0.0
    %4637 = vmatprep.subr.mxu0 0.0
    %4638 = vmatpush1.msra.mxu0 0.0
    %4639 = vmatprep.subr.mxu0 0.0
    %4640 = vmatpush1.msra.mxu0 0.0
    %4641 = vmatprep.subr.mxu0 0.0
    %4642 = vmatpush1.msra.mxu0 0.0
    %4643 = vmatprep.subr.mxu0 0.0
    %4644 = vmatpush1.msra.mxu0 0.0
    %4645 = vmatprep.subr.mxu0 %v2971
    %4646 = vmatpush1.msra.mxu0 %v2968
    %4647 = vmatprep.subr.mxu0 %v2754
    %4648 = vmatpush1.msra.mxu0 %v2753
    %4649 = vmatprep.subr.mxu0 %v2729
    %4650 = vmatpush1.msra.mxu0 %v2728
    %4651 = vmatprep.subr.mxu0 %v2704
    %4652 = vmatpush1.msra.mxu0 %v2703
    %4653 = vmatprep.subr.mxu0 %v2679
    %4654 = vmatpush1.msra.mxu0 %v2678
    %4655 = vmatprep.subr.mxu0 %v2654
    %4656 = vmatpush1.msra.mxu0 %v2653
    %4657 = vmatprep.subr.mxu0 %v2629
    %4658 = vmatpush1.msra.mxu0 %v2628
    %4659 = vmatprep.subr.mxu0 %v2604
    %4660 = vmatpush1.msra.mxu0 %v2603
    %4661 = vmatprep.subr.mxu0 %v2579
    %4662 = vmatpush1.msra.mxu0 %v2578
    %4663 = vmatprep.subr.mxu0 %v2554
    %4664 = vmatpush1.msra.mxu0 %v2553
    %4665 = vmatprep.subr.mxu0 0.0
    %4666 = vmatpush2.msra.mxu0 0.0
    %4667 = vmatprep.subr.mxu0 0.0
    %4668 = vmatpush2.msra.mxu0 0.0
    %4669 = vmatprep.subr.mxu0 0.0
    %4670 = vmatpush2.msra.mxu0 0.0
    %4671 = vmatprep.subr.mxu0 0.0
    %4672 = vmatpush2.msra.mxu0 0.0
    %4673 = vmatprep.subr.mxu0 0.0
    %4674 = vmatpush2.msra.mxu0 0.0
    %4675 = vmatprep.subr.mxu0 0.0
    %4676 = vmatpush2.msra.mxu0 0.0
    %4677 = vmatprep.subr.mxu0 0.0
    %4678 = vmatpush2.msra.mxu0 0.0
    %4679 = vmatprep.subr.mxu0 0.0
    %4680 = vmatpush2.msra.mxu0 0.0
    %4681 = vmatprep.subr.mxu0 0.0
    %4682 = vmatpush2.msra.mxu0 0.0
    %4683 = vmatprep.subr.mxu0 0.0
    %4684 = vmatpush2.msra.mxu0 0.0
    %4685 = vmatprep.subr.mxu0 0.0
    %4686 = vmatpush2.msra.mxu0 0.0
    %4687 = vmatprep.subr.mxu0 0.0
    %4688 = vmatpush2.msra.mxu0 0.0
    %4689 = vmatprep.subr.mxu0 0.0
    %4690 = vmatpush2.msra.mxu0 0.0
    %4691 = vmatprep.subr.mxu0 0.0
    %4692 = vmatpush2.msra.mxu0 0.0
    %4693 = vmatprep.subr.mxu0 0.0
    %4694 = vmatpush2.msra.mxu0 0.0
    %4695 = vmatprep.subr.mxu0 0.0
    %4696 = vmatpush2.msra.mxu0 0.0
    %4697 = vmatprep.mubr.f32.mxu0 0.0
    %4698 = vmatmul.mubr.f32.gmra.mxu0 %v2923
    %v4699 = vpop.f32.mrf.mxu0
    %v4700 = vadd.f32 %v4629, %v4699
    %v4701 = vpop.f32.mrf.mxu0
    %v4702 = vadd.f32 %v4631, %v4701
    %4703 = vdwg.mxu0
    %4704 = vmatprep.subr.mxu0 %v1331
    %4705 = vmatpush1.msra.mxu0 %v1330
    %4706 = vmatprep.subr.mxu0 %v1306
    %4707 = vmatpush1.msra.mxu0 %v1305
    %4708 = vmatprep.subr.mxu0 %v1281
    %4709 = vmatpush1.msra.mxu0 %v1280
    %4710 = vmatprep.subr.mxu0 %v1256
    %4711 = vmatpush1.msra.mxu0 %v1255
    %4712 = vmatprep.subr.mxu0 %v1231
    %4713 = vmatpush1.msra.mxu0 %v1230
    %4714 = vmatprep.subr.mxu0 %v1206
    %4715 = vmatpush1.msra.mxu0 %v1205
    %4716 = vmatprep.subr.mxu0 %v1181
    %4717 = vmatpush1.msra.mxu0 %v1180
    %4718 = vmatprep.subr.mxu0 %v1156
    %4719 = vmatpush1.msra.mxu0 %v1155
    %4720 = vmatprep.subr.mxu0 %v1131
    %4721 = vmatpush1.msra.mxu0 %v1130
    %4722 = vmatprep.subr.mxu0 %v1106
    %4723 = vmatpush1.msra.mxu0 %v1105
    %4724 = vmatprep.subr.mxu0 %v1081
    %4725 = vmatpush1.msra.mxu0 %v1080
    %4726 = vmatprep.subr.mxu0 %v1056
    %4727 = vmatpush1.msra.mxu0 %v1055
    %4728 = vmatprep.subr.mxu0 %v1031
    %4729 = vmatpush1.msra.mxu0 %v1030
    %4730 = vmatprep.subr.mxu0 %v1006
    %4731 = vmatpush1.msra.mxu0 %v1005
    %4732 = vmatprep.subr.mxu0 %v981
    %4733 = vmatpush1.msra.mxu0 %v980
    %4734 = vmatprep.subr.mxu0 %v956
    %4735 = vmatpush1.msra.mxu0 %v955
    %4736 = vmatprep.subr.mxu0 %v1731
    %4737 = vmatpush2.msra.mxu0 %v1730
    %4738 = vmatprep.subr.mxu0 %v1706
    %4739 = vmatpush2.msra.mxu0 %v1705
    %4740 = vmatprep.subr.mxu0 %v1681
    %4741 = vmatpush2.msra.mxu0 %v1680
    %4742 = vmatprep.subr.mxu0 %v1656
    %4743 = vmatpush2.msra.mxu0 %v1655
    %4744 = vmatprep.subr.mxu0 %v1631
    %4745 = vmatpush2.msra.mxu0 %v1630
    %4746 = vmatprep.subr.mxu0 %v1606
    %4747 = vmatpush2.msra.mxu0 %v1605
    %4748 = vmatprep.subr.mxu0 %v1581
    %4749 = vmatpush2.msra.mxu0 %v1580
    %4750 = vmatprep.subr.mxu0 %v1556
    %4751 = vmatpush2.msra.mxu0 %v1555
    %4752 = vmatprep.subr.mxu0 %v1531
    %4753 = vmatpush2.msra.mxu0 %v1530
    %4754 = vmatprep.subr.mxu0 %v1506
    %4755 = vmatpush2.msra.mxu0 %v1505
    %4756 = vmatprep.subr.mxu0 %v1481
    %4757 = vmatpush2.msra.mxu0 %v1480
    %4758 = vmatprep.subr.mxu0 %v1456
    %4759 = vmatpush2.msra.mxu0 %v1455
    %4760 = vmatprep.subr.mxu0 %v1431
    %4761 = vmatpush2.msra.mxu0 %v1430
    %4762 = vmatprep.subr.mxu0 %v1406
    %4763 = vmatpush2.msra.mxu0 %v1405
    %4764 = vmatprep.subr.mxu0 %v1381
    %4765 = vmatpush2.msra.mxu0 %v1380
    %4766 = vmatprep.subr.mxu0 %v1356
    %4767 = vmatpush2.msra.mxu0 %v1355
    %4768 = vmatprep.mubr.f32.mxu0 %v935
    %4769 = vmatmul.mubr.f32.gmra.mxu0 %v934
    %v4770 = vpop.f32.mrf.mxu0
    %v4771 = vadd.f32 %v2864, %v4770
    %v4772 = vpop.f32.mrf.mxu0
    %v4773 = vadd.f32 %v2868, %v4772
    %4774 = vdwg.mxu0
    %4775 = vmatprep.subr.mxu0 %v2131
    %4776 = vmatpush1.msra.mxu0 %v2130
    %4777 = vmatprep.subr.mxu0 %v2106
    %4778 = vmatpush1.msra.mxu0 %v2105
    %4779 = vmatprep.subr.mxu0 %v2081
    %4780 = vmatpush1.msra.mxu0 %v2080
    %4781 = vmatprep.subr.mxu0 %v2056
    %4782 = vmatpush1.msra.mxu0 %v2055
    %4783 = vmatprep.subr.mxu0 %v2031
    %4784 = vmatpush1.msra.mxu0 %v2030
    %4785 = vmatprep.subr.mxu0 %v2006
    %4786 = vmatpush1.msra.mxu0 %v2005
    %4787 = vmatprep.subr.mxu0 %v1981
    %4788 = vmatpush1.msra.mxu0 %v1980
    %4789 = vmatprep.subr.mxu0 %v1956
    %4790 = vmatpush1.msra.mxu0 %v1955
    %4791 = vmatprep.subr.mxu0 %v1931
    %4792 = vmatpush1.msra.mxu0 %v1930
    %4793 = vmatprep.subr.mxu0 %v1906
    %4794 = vmatpush1.msra.mxu0 %v1905
    %4795 = vmatprep.subr.mxu0 %v1881
    %4796 = vmatpush1.msra.mxu0 %v1880
    %4797 = vmatprep.subr.mxu0 %v1856
    %4798 = vmatpush1.msra.mxu0 %v1855
    %4799 = vmatprep.subr.mxu0 %v1831
    %4800 = vmatpush1.msra.mxu0 %v1830
    %4801 = vmatprep.subr.mxu0 %v1806
    %4802 = vmatpush1.msra.mxu0 %v1805
    %4803 = vmatprep.subr.mxu0 %v1781
    %4804 = vmatpush1.msra.mxu0 %v1780
    %4805 = vmatprep.subr.mxu0 %v1756
    %4806 = vmatpush1.msra.mxu0 %v1755
    %4807 = vmatprep.subr.mxu0 %v2531
    %4808 = vmatpush2.msra.mxu0 %v2530
    %4809 = vmatprep.subr.mxu0 %v2506
    %4810 = vmatpush2.msra.mxu0 %v2505
    %4811 = vmatprep.subr.mxu0 %v2481
    %4812 = vmatpush2.msra.mxu0 %v2480
    %4813 = vmatprep.subr.mxu0 %v2456
    %4814 = vmatpush2.msra.mxu0 %v2455
    %4815 = vmatprep.subr.mxu0 %v2431
    %4816 = vmatpush2.msra.mxu0 %v2430
    %4817 = vmatprep.subr.mxu0 %v2406
    %4818 = vmatpush2.msra.mxu0 %v2405
    %4819 = vmatprep.subr.mxu0 %v2381
    %4820 = vmatpush2.msra.mxu0 %v2380
    %4821 = vmatprep.subr.mxu0 %v2356
    %4822 = vmatpush2.msra.mxu0 %v2355
    %4823 = vmatprep.subr.mxu0 %v2331
    %4824 = vmatpush2.msra.mxu0 %v2330
    %4825 = vmatprep.subr.mxu0 %v2306
    %4826 = vmatpush2.msra.mxu0 %v2305
    %4827 = vmatprep.subr.mxu0 %v2281
    %4828 = vmatpush2.msra.mxu0 %v2280
    %4829 = vmatprep.subr.mxu0 %v2256
    %4830 = vmatpush2.msra.mxu0 %v2255
    %4831 = vmatprep.subr.mxu0 %v2231
    %4832 = vmatpush2.msra.mxu0 %v2230
    %4833 = vmatprep.subr.mxu0 %v2206
    %4834 = vmatpush2.msra.mxu0 %v2205
    %4835 = vmatprep.subr.mxu0 %v2181
    %4836 = vmatpush2.msra.mxu0 %v2180
    %4837 = vmatprep.subr.mxu0 %v2156
    %4838 = vmatpush2.msra.mxu0 %v2155
    %4839 = vmatprep.mubr.f32.mxu0 %v937
    %4840 = vmatmul.mubr.f32.gmra.mxu0 %v936
    %v4841 = vpop.f32.mrf.mxu0
    %v4842 = vadd.f32 %v4771, %v4841
    %v4843 = vpop.f32.mrf.mxu0
    %v4844 = vadd.f32 %v4773, %v4843
    %4845 = vdwg.mxu0
    %4846 = vmatprep.subr.mxu0 0.0
    %4847 = vmatpush1.msra.mxu0 0.0
    %4848 = vmatprep.subr.mxu0 0.0
    %4849 = vmatpush1.msra.mxu0 0.0
    %4850 = vmatprep.subr.mxu0 0.0
    %4851 = vmatpush1.msra.mxu0 0.0
    %4852 = vmatprep.subr.mxu0 0.0
    %4853 = vmatpush1.msra.mxu0 0.0
    %4854 = vmatprep.subr.mxu0 0.0
    %4855 = vmatpush1.msra.mxu0 0.0
    %4856 = vmatprep.subr.mxu0 0.0
    %4857 = vmatpush1.msra.mxu0 0.0
    %4858 = vmatprep.subr.mxu0 %v2977
    %4859 = vmatpush1.msra.mxu0 %v2974
    %4860 = vmatprep.subr.mxu0 %v2756
    %4861 = vmatpush1.msra.mxu0 %v2755
    %4862 = vmatprep.subr.mxu0 %v2731
    %4863 = vmatpush1.msra.mxu0 %v2730
    %4864 = vmatprep.subr.mxu0 %v2706
    %4865 = vmatpush1.msra.mxu0 %v2705
    %4866 = vmatprep.subr.mxu0 %v2681
    %4867 = vmatpush1.msra.mxu0 %v2680
    %4868 = vmatprep.subr.mxu0 %v2656
    %4869 = vmatpush1.msra.mxu0 %v2655
    %4870 = vmatprep.subr.mxu0 %v2631
    %4871 = vmatpush1.msra.mxu0 %v2630
    %4872 = vmatprep.subr.mxu0 %v2606
    %4873 = vmatpush1.msra.mxu0 %v2605
    %4874 = vmatprep.subr.mxu0 %v2581
    %4875 = vmatpush1.msra.mxu0 %v2580
    %4876 = vmatprep.subr.mxu0 %v2556
    %4877 = vmatpush1.msra.mxu0 %v2555
    %4878 = vmatprep.subr.mxu0 0.0
    %4879 = vmatpush2.msra.mxu0 0.0
    %4880 = vmatprep.subr.mxu0 0.0
    %4881 = vmatpush2.msra.mxu0 0.0
    %4882 = vmatprep.subr.mxu0 0.0
    %4883 = vmatpush2.msra.mxu0 0.0
    %4884 = vmatprep.subr.mxu0 0.0
    %4885 = vmatpush2.msra.mxu0 0.0
    %4886 = vmatprep.subr.mxu0 0.0
    %4887 = vmatpush2.msra.mxu0 0.0
    %4888 = vmatprep.subr.mxu0 0.0
    %4889 = vmatpush2.msra.mxu0 0.0
    %4890 = vmatprep.subr.mxu0 0.0
    %4891 = vmatpush2.msra.mxu0 0.0
    %4892 = vmatprep.subr.mxu0 0.0
    %4893 = vmatpush2.msra.mxu0 0.0
    %4894 = vmatprep.subr.mxu0 0.0
    %4895 = vmatpush2.msra.mxu0 0.0
    %4896 = vmatprep.subr.mxu0 0.0
    %4897 = vmatpush2.msra.mxu0 0.0
    %4898 = vmatprep.subr.mxu0 0.0
    %4899 = vmatpush2.msra.mxu0 0.0
    %4900 = vmatprep.subr.mxu0 0.0
    %4901 = vmatpush2.msra.mxu0 0.0
    %4902 = vmatprep.subr.mxu0 0.0
    %4903 = vmatpush2.msra.mxu0 0.0
    %4904 = vmatprep.subr.mxu0 0.0
    %4905 = vmatpush2.msra.mxu0 0.0
    %4906 = vmatprep.subr.mxu0 0.0
    %4907 = vmatpush2.msra.mxu0 0.0
    %4908 = vmatprep.subr.mxu0 0.0
    %4909 = vmatpush2.msra.mxu0 0.0
    %4910 = vmatprep.mubr.f32.mxu0 0.0
    %4911 = vmatmul.mubr.f32.gmra.mxu0 %v2923
    %v4912 = vpop.f32.mrf.mxu0
    %v4913 = vadd.f32 %v4842, %v4912
    %v4914 = vpop.f32.mrf.mxu0
    %v4915 = vadd.f32 %v4844, %v4914
    %4916 = vdwg.mxu0
    %4917 = vmatprep.subr.mxu0 %v1333
    %4918 = vmatpush1.msra.mxu0 %v1332
    %4919 = vmatprep.subr.mxu0 %v1308
    %4920 = vmatpush1.msra.mxu0 %v1307
    %4921 = vmatprep.subr.mxu0 %v1283
    %4922 = vmatpush1.msra.mxu0 %v1282
    %4923 = vmatprep.subr.mxu0 %v1258
    %4924 = vmatpush1.msra.mxu0 %v1257
    %4925 = vmatprep.subr.mxu0 %v1233
    %4926 = vmatpush1.msra.mxu0 %v1232
    %4927 = vmatprep.subr.mxu0 %v1208
    %4928 = vmatpush1.msra.mxu0 %v1207
    %4929 = vmatprep.subr.mxu0 %v1183
    %4930 = vmatpush1.msra.mxu0 %v1182
    %4931 = vmatprep.subr.mxu0 %v1158
    %4932 = vmatpush1.msra.mxu0 %v1157
    %4933 = vmatprep.subr.mxu0 %v1133
    %4934 = vmatpush1.msra.mxu0 %v1132
    %4935 = vmatprep.subr.mxu0 %v1108
    %4936 = vmatpush1.msra.mxu0 %v1107
    %4937 = vmatprep.subr.mxu0 %v1083
    %4938 = vmatpush1.msra.mxu0 %v1082
    %4939 = vmatprep.subr.mxu0 %v1058
    %4940 = vmatpush1.msra.mxu0 %v1057
    %4941 = vmatprep.subr.mxu0 %v1033
    %4942 = vmatpush1.msra.mxu0 %v1032
    %4943 = vmatprep.subr.mxu0 %v1008
    %4944 = vmatpush1.msra.mxu0 %v1007
    %4945 = vmatprep.subr.mxu0 %v983
    %4946 = vmatpush1.msra.mxu0 %v982
    %4947 = vmatprep.subr.mxu0 %v958
    %4948 = vmatpush1.msra.mxu0 %v957
    %4949 = vmatprep.subr.mxu0 %v1733
    %4950 = vmatpush2.msra.mxu0 %v1732
    %4951 = vmatprep.subr.mxu0 %v1708
    %4952 = vmatpush2.msra.mxu0 %v1707
    %4953 = vmatprep.subr.mxu0 %v1683
    %4954 = vmatpush2.msra.mxu0 %v1682
    %4955 = vmatprep.subr.mxu0 %v1658
    %4956 = vmatpush2.msra.mxu0 %v1657
    %4957 = vmatprep.subr.mxu0 %v1633
    %4958 = vmatpush2.msra.mxu0 %v1632
    %4959 = vmatprep.subr.mxu0 %v1608
    %4960 = vmatpush2.msra.mxu0 %v1607
    %4961 = vmatprep.subr.mxu0 %v1583
    %4962 = vmatpush2.msra.mxu0 %v1582
    %4963 = vmatprep.subr.mxu0 %v1558
    %4964 = vmatpush2.msra.mxu0 %v1557
    %4965 = vmatprep.subr.mxu0 %v1533
    %4966 = vmatpush2.msra.mxu0 %v1532
    %4967 = vmatprep.subr.mxu0 %v1508
    %4968 = vmatpush2.msra.mxu0 %v1507
    %4969 = vmatprep.subr.mxu0 %v1483
    %4970 = vmatpush2.msra.mxu0 %v1482
    %4971 = vmatprep.subr.mxu0 %v1458
    %4972 = vmatpush2.msra.mxu0 %v1457
    %4973 = vmatprep.subr.mxu0 %v1433
    %4974 = vmatpush2.msra.mxu0 %v1432
    %4975 = vmatprep.subr.mxu0 %v1408
    %4976 = vmatpush2.msra.mxu0 %v1407
    %4977 = vmatprep.subr.mxu0 %v1383
    %4978 = vmatpush2.msra.mxu0 %v1382
    %4979 = vmatprep.subr.mxu0 %v1358
    %4980 = vmatpush2.msra.mxu0 %v1357
    %4981 = vmatprep.mubr.f32.mxu0 %v935
    %4982 = vmatmul.mubr.f32.gmra.mxu0 %v934
    %v4983 = vpop.f32.mrf.mxu0
    %v4984 = vadd.f32 %v2872, %v4983
    %v4985 = vpop.f32.mrf.mxu0
    %v4986 = vadd.f32 %v2876, %v4985
    %4987 = vdwg.mxu0
    %4988 = vmatprep.subr.mxu0 %v2133
    %4989 = vmatpush1.msra.mxu0 %v2132
    %4990 = vmatprep.subr.mxu0 %v2108
    %4991 = vmatpush1.msra.mxu0 %v2107
    %4992 = vmatprep.subr.mxu0 %v2083
    %4993 = vmatpush1.msra.mxu0 %v2082
    %4994 = vmatprep.subr.mxu0 %v2058
    %4995 = vmatpush1.msra.mxu0 %v2057
    %4996 = vmatprep.subr.mxu0 %v2033
    %4997 = vmatpush1.msra.mxu0 %v2032
    %4998 = vmatprep.subr.mxu0 %v2008
    %4999 = vmatpush1.msra.mxu0 %v2007
    %5000 = vmatprep.subr.mxu0 %v1983
    %5001 = vmatpush1.msra.mxu0 %v1982
    %5002 = vmatprep.subr.mxu0 %v1958
    %5003 = vmatpush1.msra.mxu0 %v1957
    %5004 = vmatprep.subr.mxu0 %v1933
    %5005 = vmatpush1.msra.mxu0 %v1932
    %5006 = vmatprep.subr.mxu0 %v1908
    %5007 = vmatpush1.msra.mxu0 %v1907
    %5008 = vmatprep.subr.mxu0 %v1883
    %5009 = vmatpush1.msra.mxu0 %v1882
    %5010 = vmatprep.subr.mxu0 %v1858
    %5011 = vmatpush1.msra.mxu0 %v1857
    %5012 = vmatprep.subr.mxu0 %v1833
    %5013 = vmatpush1.msra.mxu0 %v1832
    %5014 = vmatprep.subr.mxu0 %v1808
    %5015 = vmatpush1.msra.mxu0 %v1807
    %5016 = vmatprep.subr.mxu0 %v1783
    %5017 = vmatpush1.msra.mxu0 %v1782
    %5018 = vmatprep.subr.mxu0 %v1758
    %5019 = vmatpush1.msra.mxu0 %v1757
    %5020 = vmatprep.subr.mxu0 %v2533
    %5021 = vmatpush2.msra.mxu0 %v2532
    %5022 = vmatprep.subr.mxu0 %v2508
    %5023 = vmatpush2.msra.mxu0 %v2507
    %5024 = vmatprep.subr.mxu0 %v2483
    %5025 = vmatpush2.msra.mxu0 %v2482
    %5026 = vmatprep.subr.mxu0 %v2458
    %5027 = vmatpush2.msra.mxu0 %v2457
    %5028 = vmatprep.subr.mxu0 %v2433
    %5029 = vmatpush2.msra.mxu0 %v2432
    %5030 = vmatprep.subr.mxu0 %v2408
    %5031 = vmatpush2.msra.mxu0 %v2407
    %5032 = vmatprep.subr.mxu0 %v2383
    %5033 = vmatpush2.msra.mxu0 %v2382
    %5034 = vmatprep.subr.mxu0 %v2358
    %5035 = vmatpush2.msra.mxu0 %v2357
    %5036 = vmatprep.subr.mxu0 %v2333
    %5037 = vmatpush2.msra.mxu0 %v2332
    %5038 = vmatprep.subr.mxu0 %v2308
    %5039 = vmatpush2.msra.mxu0 %v2307
    %5040 = vmatprep.subr.mxu0 %v2283
    %5041 = vmatpush2.msra.mxu0 %v2282
    %5042 = vmatprep.subr.mxu0 %v2258
    %5043 = vmatpush2.msra.mxu0 %v2257
    %5044 = vmatprep.subr.mxu0 %v2233
    %5045 = vmatpush2.msra.mxu0 %v2232
    %5046 = vmatprep.subr.mxu0 %v2208
    %5047 = vmatpush2.msra.mxu0 %v2207
    %5048 = vmatprep.subr.mxu0 %v2183
    %5049 = vmatpush2.msra.mxu0 %v2182
    %5050 = vmatprep.subr.mxu0 %v2158
    %5051 = vmatpush2.msra.mxu0 %v2157
    %5052 = vmatprep.mubr.f32.mxu0 %v937
    %5053 = vmatmul.mubr.f32.gmra.mxu0 %v936
    %v5054 = vpop.f32.mrf.mxu0
    %v5055 = vadd.f32 %v4984, %v5054
    %v5056 = vpop.f32.mrf.mxu0
    %v5057 = vadd.f32 %v4986, %v5056
    %5058 = vdwg.mxu0
    %5059 = vmatprep.subr.mxu0 0.0
    %5060 = vmatpush1.msra.mxu0 0.0
    %5061 = vmatprep.subr.mxu0 0.0
    %5062 = vmatpush1.msra.mxu0 0.0
    %5063 = vmatprep.subr.mxu0 0.0
    %5064 = vmatpush1.msra.mxu0 0.0
    %5065 = vmatprep.subr.mxu0 0.0
    %5066 = vmatpush1.msra.mxu0 0.0
    %5067 = vmatprep.subr.mxu0 0.0
    %5068 = vmatpush1.msra.mxu0 0.0
    %5069 = vmatprep.subr.mxu0 0.0
    %5070 = vmatpush1.msra.mxu0 0.0
    %5071 = vmatprep.subr.mxu0 %v2983
    %5072 = vmatpush1.msra.mxu0 %v2980
    %5073 = vmatprep.subr.mxu0 %v2758
    %5074 = vmatpush1.msra.mxu0 %v2757
    %5075 = vmatprep.subr.mxu0 %v2733
    %5076 = vmatpush1.msra.mxu0 %v2732
    %5077 = vmatprep.subr.mxu0 %v2708
    %5078 = vmatpush1.msra.mxu0 %v2707
    %5079 = vmatprep.subr.mxu0 %v2683
    %5080 = vmatpush1.msra.mxu0 %v2682
    %5081 = vmatprep.subr.mxu0 %v2658
    %5082 = vmatpush1.msra.mxu0 %v2657
    %5083 = vmatprep.subr.mxu0 %v2633
    %5084 = vmatpush1.msra.mxu0 %v2632
    %5085 = vmatprep.subr.mxu0 %v2608
    %5086 = vmatpush1.msra.mxu0 %v2607
    %5087 = vmatprep.subr.mxu0 %v2583
    %5088 = vmatpush1.msra.mxu0 %v2582
    %5089 = vmatprep.subr.mxu0 %v2558
    %5090 = vmatpush1.msra.mxu0 %v2557
    %5091 = vmatprep.subr.mxu0 0.0
    %5092 = vmatpush2.msra.mxu0 0.0
    %5093 = vmatprep.subr.mxu0 0.0
    %5094 = vmatpush2.msra.mxu0 0.0
    %5095 = vmatprep.subr.mxu0 0.0
    %5096 = vmatpush2.msra.mxu0 0.0
    %5097 = vmatprep.subr.mxu0 0.0
    %5098 = vmatpush2.msra.mxu0 0.0
    %5099 = vmatprep.subr.mxu0 0.0
    %5100 = vmatpush2.msra.mxu0 0.0
    %5101 = vmatprep.subr.mxu0 0.0
    %5102 = vmatpush2.msra.mxu0 0.0
    %5103 = vmatprep.subr.mxu0 0.0
    %5104 = vmatpush2.msra.mxu0 0.0
    %5105 = vmatprep.subr.mxu0 0.0
    %5106 = vmatpush2.msra.mxu0 0.0
    %5107 = vmatprep.subr.mxu0 0.0
    %5108 = vmatpush2.msra.mxu0 0.0
    %5109 = vmatprep.subr.mxu0 0.0
    %5110 = vmatpush2.msra.mxu0 0.0
    %5111 = vmatprep.subr.mxu0 0.0
    %5112 = vmatpush2.msra.mxu0 0.0
    %5113 = vmatprep.subr.mxu0 0.0
    %5114 = vmatpush2.msra.mxu0 0.0
    %5115 = vmatprep.subr.mxu0 0.0
    %5116 = vmatpush2.msra.mxu0 0.0
    %5117 = vmatprep.subr.mxu0 0.0
    %5118 = vmatpush2.msra.mxu0 0.0
    %5119 = vmatprep.subr.mxu0 0.0
    %5120 = vmatpush2.msra.mxu0 0.0
    %5121 = vmatprep.subr.mxu0 0.0
    %5122 = vmatpush2.msra.mxu0 0.0
    %5123 = vmatprep.mubr.f32.mxu0 0.0
    %5124 = vmatmul.mubr.f32.gmra.mxu0 %v2923
    %v5125 = vpop.f32.mrf.mxu0
    %v5126 = vadd.f32 %v5055, %v5125
    %v5127 = vpop.f32.mrf.mxu0
    %v5128 = vadd.f32 %v5057, %v5127
    %5129 = vdwg.mxu0
    %5130 = vmatprep.subr.mxu0 %v1335
    %5131 = vmatpush1.msra.mxu0 %v1334
    %5132 = vmatprep.subr.mxu0 %v1310
    %5133 = vmatpush1.msra.mxu0 %v1309
    %5134 = vmatprep.subr.mxu0 %v1285
    %5135 = vmatpush1.msra.mxu0 %v1284
    %5136 = vmatprep.subr.mxu0 %v1260
    %5137 = vmatpush1.msra.mxu0 %v1259
    %5138 = vmatprep.subr.mxu0 %v1235
    %5139 = vmatpush1.msra.mxu0 %v1234
    %5140 = vmatprep.subr.mxu0 %v1210
    %5141 = vmatpush1.msra.mxu0 %v1209
    %5142 = vmatprep.subr.mxu0 %v1185
    %5143 = vmatpush1.msra.mxu0 %v1184
    %5144 = vmatprep.subr.mxu0 %v1160
    %5145 = vmatpush1.msra.mxu0 %v1159
    %5146 = vmatprep.subr.mxu0 %v1135
    %5147 = vmatpush1.msra.mxu0 %v1134
    %5148 = vmatprep.subr.mxu0 %v1110
    %5149 = vmatpush1.msra.mxu0 %v1109
    %5150 = vmatprep.subr.mxu0 %v1085
    %5151 = vmatpush1.msra.mxu0 %v1084
    %5152 = vmatprep.subr.mxu0 %v1060
    %5153 = vmatpush1.msra.mxu0 %v1059
    %5154 = vmatprep.subr.mxu0 %v1035
    %5155 = vmatpush1.msra.mxu0 %v1034
    %5156 = vmatprep.subr.mxu0 %v1010
    %5157 = vmatpush1.msra.mxu0 %v1009
    %5158 = vmatprep.subr.mxu0 %v985
    %5159 = vmatpush1.msra.mxu0 %v984
    %5160 = vmatprep.subr.mxu0 %v960
    %5161 = vmatpush1.msra.mxu0 %v959
    %5162 = vmatprep.subr.mxu0 %v1735
    %5163 = vmatpush2.msra.mxu0 %v1734
    %5164 = vmatprep.subr.mxu0 %v1710
    %5165 = vmatpush2.msra.mxu0 %v1709
    %5166 = vmatprep.subr.mxu0 %v1685
    %5167 = vmatpush2.msra.mxu0 %v1684
    %5168 = vmatprep.subr.mxu0 %v1660
    %5169 = vmatpush2.msra.mxu0 %v1659
    %5170 = vmatprep.subr.mxu0 %v1635
    %5171 = vmatpush2.msra.mxu0 %v1634
    %5172 = vmatprep.subr.mxu0 %v1610
    %5173 = vmatpush2.msra.mxu0 %v1609
    %5174 = vmatprep.subr.mxu0 %v1585
    %5175 = vmatpush2.msra.mxu0 %v1584
    %5176 = vmatprep.subr.mxu0 %v1560
    %5177 = vmatpush2.msra.mxu0 %v1559
    %5178 = vmatprep.subr.mxu0 %v1535
    %5179 = vmatpush2.msra.mxu0 %v1534
    %5180 = vmatprep.subr.mxu0 %v1510
    %5181 = vmatpush2.msra.mxu0 %v1509
    %5182 = vmatprep.subr.mxu0 %v1485
    %5183 = vmatpush2.msra.mxu0 %v1484
    %5184 = vmatprep.subr.mxu0 %v1460
    %5185 = vmatpush2.msra.mxu0 %v1459
    %5186 = vmatprep.subr.mxu0 %v1435
    %5187 = vmatpush2.msra.mxu0 %v1434
    %5188 = vmatprep.subr.mxu0 %v1410
    %5189 = vmatpush2.msra.mxu0 %v1409
    %5190 = vmatprep.subr.mxu0 %v1385
    %5191 = vmatpush2.msra.mxu0 %v1384
    %5192 = vmatprep.subr.mxu0 %v1360
    %5193 = vmatpush2.msra.mxu0 %v1359
    %5194 = vmatprep.mubr.f32.mxu0 %v935
    %5195 = vmatmul.mubr.f32.gmra.mxu0 %v934
    %v5196 = vpop.f32.mrf.mxu0
    %v5197 = vadd.f32 %v2880, %v5196
    %v5198 = vpop.f32.mrf.mxu0
    %v5199 = vadd.f32 %v2884, %v5198
    %5200 = vdwg.mxu0
    %5201 = vmatprep.subr.mxu0 %v2135
    %5202 = vmatpush1.msra.mxu0 %v2134
    %5203 = vmatprep.subr.mxu0 %v2110
    %5204 = vmatpush1.msra.mxu0 %v2109
    %5205 = vmatprep.subr.mxu0 %v2085
    %5206 = vmatpush1.msra.mxu0 %v2084
    %5207 = vmatprep.subr.mxu0 %v2060
    %5208 = vmatpush1.msra.mxu0 %v2059
    %5209 = vmatprep.subr.mxu0 %v2035
    %5210 = vmatpush1.msra.mxu0 %v2034
    %5211 = vmatprep.subr.mxu0 %v2010
    %5212 = vmatpush1.msra.mxu0 %v2009
    %5213 = vmatprep.subr.mxu0 %v1985
    %5214 = vmatpush1.msra.mxu0 %v1984
    %5215 = vmatprep.subr.mxu0 %v1960
    %5216 = vmatpush1.msra.mxu0 %v1959
    %5217 = vmatprep.subr.mxu0 %v1935
    %5218 = vmatpush1.msra.mxu0 %v1934
    %5219 = vmatprep.subr.mxu0 %v1910
    %5220 = vmatpush1.msra.mxu0 %v1909
    %5221 = vmatprep.subr.mxu0 %v1885
    %5222 = vmatpush1.msra.mxu0 %v1884
    %5223 = vmatprep.subr.mxu0 %v1860
    %5224 = vmatpush1.msra.mxu0 %v1859
    %5225 = vmatprep.subr.mxu0 %v1835
    %5226 = vmatpush1.msra.mxu0 %v1834
    %5227 = vmatprep.subr.mxu0 %v1810
    %5228 = vmatpush1.msra.mxu0 %v1809
    %5229 = vmatprep.subr.mxu0 %v1785
    %5230 = vmatpush1.msra.mxu0 %v1784
    %5231 = vmatprep.subr.mxu0 %v1760
    %5232 = vmatpush1.msra.mxu0 %v1759
    %5233 = vmatprep.subr.mxu0 %v2535
    %5234 = vmatpush2.msra.mxu0 %v2534
    %5235 = vmatprep.subr.mxu0 %v2510
    %5236 = vmatpush2.msra.mxu0 %v2509
    %5237 = vmatprep.subr.mxu0 %v2485
    %5238 = vmatpush2.msra.mxu0 %v2484
    %5239 = vmatprep.subr.mxu0 %v2460
    %5240 = vmatpush2.msra.mxu0 %v2459
    %5241 = vmatprep.subr.mxu0 %v2435
    %5242 = vmatpush2.msra.mxu0 %v2434
    %5243 = vmatprep.subr.mxu0 %v2410
    %5244 = vmatpush2.msra.mxu0 %v2409
    %5245 = vmatprep.subr.mxu0 %v2385
    %5246 = vmatpush2.msra.mxu0 %v2384
    %5247 = vmatprep.subr.mxu0 %v2360
    %5248 = vmatpush2.msra.mxu0 %v2359
    %5249 = vmatprep.subr.mxu0 %v2335
    %5250 = vmatpush2.msra.mxu0 %v2334
    %5251 = vmatprep.subr.mxu0 %v2310
    %5252 = vmatpush2.msra.mxu0 %v2309
    %5253 = vmatprep.subr.mxu0 %v2285
    %5254 = vmatpush2.msra.mxu0 %v2284
    %5255 = vmatprep.subr.mxu0 %v2260
    %5256 = vmatpush2.msra.mxu0 %v2259
    %5257 = vmatprep.subr.mxu0 %v2235
    %5258 = vmatpush2.msra.mxu0 %v2234
    %5259 = vmatprep.subr.mxu0 %v2210
    %5260 = vmatpush2.msra.mxu0 %v2209
    %5261 = vmatprep.subr.mxu0 %v2185
    %5262 = vmatpush2.msra.mxu0 %v2184
    %5263 = vmatprep.subr.mxu0 %v2160
    %5264 = vmatpush2.msra.mxu0 %v2159
    %5265 = vmatprep.mubr.f32.mxu0 %v937
    %5266 = vmatmul.mubr.f32.gmra.mxu0 %v936
    %v5267 = vpop.f32.mrf.mxu0
    %v5268 = vadd.f32 %v5197, %v5267
    %v5269 = vpop.f32.mrf.mxu0
    %v5270 = vadd.f32 %v5199, %v5269
    %5271 = vdwg.mxu0
    %5272 = vmatprep.subr.mxu0 0.0
    %5273 = vmatpush1.msra.mxu0 0.0
    %5274 = vmatprep.subr.mxu0 0.0
    %5275 = vmatpush1.msra.mxu0 0.0
    %5276 = vmatprep.subr.mxu0 0.0
    %5277 = vmatpush1.msra.mxu0 0.0
    %5278 = vmatprep.subr.mxu0 0.0
    %5279 = vmatpush1.msra.mxu0 0.0
    %5280 = vmatprep.subr.mxu0 0.0
    %5281 = vmatpush1.msra.mxu0 0.0
    %5282 = vmatprep.subr.mxu0 0.0
    %5283 = vmatpush1.msra.mxu0 0.0
    %5284 = vmatprep.subr.mxu0 %v2989
    %5285 = vmatpush1.msra.mxu0 %v2986
    %5286 = vmatprep.subr.mxu0 %v2760
    %5287 = vmatpush1.msra.mxu0 %v2759
    %5288 = vmatprep.subr.mxu0 %v2735
    %5289 = vmatpush1.msra.mxu0 %v2734
    %5290 = vmatprep.subr.mxu0 %v2710
    %5291 = vmatpush1.msra.mxu0 %v2709
    %5292 = vmatprep.subr.mxu0 %v2685
    %5293 = vmatpush1.msra.mxu0 %v2684
    %5294 = vmatprep.subr.mxu0 %v2660
    %5295 = vmatpush1.msra.mxu0 %v2659
    %5296 = vmatprep.subr.mxu0 %v2635
    %5297 = vmatpush1.msra.mxu0 %v2634
    %5298 = vmatprep.subr.mxu0 %v2610
    %5299 = vmatpush1.msra.mxu0 %v2609
    %5300 = vmatprep.subr.mxu0 %v2585
    %5301 = vmatpush1.msra.mxu0 %v2584
    %5302 = vmatprep.subr.mxu0 %v2560
    %5303 = vmatpush1.msra.mxu0 %v2559
    %5304 = vmatprep.subr.mxu0 0.0
    %5305 = vmatpush2.msra.mxu0 0.0
    %5306 = vmatprep.subr.mxu0 0.0
    %5307 = vmatpush2.msra.mxu0 0.0
    %5308 = vmatprep.subr.mxu0 0.0
    %5309 = vmatpush2.msra.mxu0 0.0
    %5310 = vmatprep.subr.mxu0 0.0
    %5311 = vmatpush2.msra.mxu0 0.0
    %5312 = vmatprep.subr.mxu0 0.0
    %5313 = vmatpush2.msra.mxu0 0.0
    %5314 = vmatprep.subr.mxu0 0.0
    %5315 = vmatpush2.msra.mxu0 0.0
    %5316 = vmatprep.subr.mxu0 0.0
    %5317 = vmatpush2.msra.mxu0 0.0
    %5318 = vmatprep.subr.mxu0 0.0
    %5319 = vmatpush2.msra.mxu0 0.0
    %5320 = vmatprep.subr.mxu0 0.0
    %5321 = vmatpush2.msra.mxu0 0.0
    %5322 = vmatprep.subr.mxu0 0.0
    %5323 = vmatpush2.msra.mxu0 0.0
    %5324 = vmatprep.subr.mxu0 0.0
    %5325 = vmatpush2.msra.mxu0 0.0
    %5326 = vmatprep.subr.mxu0 0.0
    %5327 = vmatpush2.msra.mxu0 0.0
    %5328 = vmatprep.subr.mxu0 0.0
    %5329 = vmatpush2.msra.mxu0 0.0
    %5330 = vmatprep.subr.mxu0 0.0
    %5331 = vmatpush2.msra.mxu0 0.0
    %5332 = vmatprep.subr.mxu0 0.0
    %5333 = vmatpush2.msra.mxu0 0.0
    %5334 = vmatprep.subr.mxu0 0.0
    %5335 = vmatpush2.msra.mxu0 0.0
    %5336 = vmatprep.mubr.f32.mxu0 0.0
    %5337 = vmatmul.mubr.f32.gmra.mxu0 %v2923
    %v5338 = vpop.f32.mrf.mxu0
    %v5339 = vadd.f32 %v5268, %v5338
    %v5340 = vpop.f32.mrf.mxu0
    %v5341 = vadd.f32 %v5270, %v5340
    %5342 = vdwg.mxu0
    %5343 = vmatprep.subr.mxu0 %v1337
    %5344 = vmatpush1.msra.mxu0 %v1336
    %5345 = vmatprep.subr.mxu0 %v1312
    %5346 = vmatpush1.msra.mxu0 %v1311
    %5347 = vmatprep.subr.mxu0 %v1287
    %5348 = vmatpush1.msra.mxu0 %v1286
    %5349 = vmatprep.subr.mxu0 %v1262
    %5350 = vmatpush1.msra.mxu0 %v1261
    %5351 = vmatprep.subr.mxu0 %v1237
    %5352 = vmatpush1.msra.mxu0 %v1236
    %5353 = vmatprep.subr.mxu0 %v1212
    %5354 = vmatpush1.msra.mxu0 %v1211
    %5355 = vmatprep.subr.mxu0 %v1187
    %5356 = vmatpush1.msra.mxu0 %v1186
    %5357 = vmatprep.subr.mxu0 %v1162
    %5358 = vmatpush1.msra.mxu0 %v1161
    %5359 = vmatprep.subr.mxu0 %v1137
    %5360 = vmatpush1.msra.mxu0 %v1136
    %5361 = vmatprep.subr.mxu0 %v1112
    %5362 = vmatpush1.msra.mxu0 %v1111
    %5363 = vmatprep.subr.mxu0 %v1087
    %5364 = vmatpush1.msra.mxu0 %v1086
    %5365 = vmatprep.subr.mxu0 %v1062
    %5366 = vmatpush1.msra.mxu0 %v1061
    %5367 = vmatprep.subr.mxu0 %v1037
    %5368 = vmatpush1.msra.mxu0 %v1036
    %5369 = vmatprep.subr.mxu0 %v1012
    %5370 = vmatpush1.msra.mxu0 %v1011
    %5371 = vmatprep.subr.mxu0 %v987
    %5372 = vmatpush1.msra.mxu0 %v986
    %5373 = vmatprep.subr.mxu0 %v962
    %5374 = vmatpush1.msra.mxu0 %v961
    %5375 = vmatprep.subr.mxu0 %v1737
    %5376 = vmatpush2.msra.mxu0 %v1736
    %5377 = vmatprep.subr.mxu0 %v1712
    %5378 = vmatpush2.msra.mxu0 %v1711
    %5379 = vmatprep.subr.mxu0 %v1687
    %5380 = vmatpush2.msra.mxu0 %v1686
    %5381 = vmatprep.subr.mxu0 %v1662
    %5382 = vmatpush2.msra.mxu0 %v1661
    %5383 = vmatprep.subr.mxu0 %v1637
    %5384 = vmatpush2.msra.mxu0 %v1636
    %5385 = vmatprep.subr.mxu0 %v1612
    %5386 = vmatpush2.msra.mxu0 %v1611
    %5387 = vmatprep.subr.mxu0 %v1587
    %5388 = vmatpush2.msra.mxu0 %v1586
    %5389 = vmatprep.subr.mxu0 %v1562
    %5390 = vmatpush2.msra.mxu0 %v1561
    %5391 = vmatprep.subr.mxu0 %v1537
    %5392 = vmatpush2.msra.mxu0 %v1536
    %5393 = vmatprep.subr.mxu0 %v1512
    %5394 = vmatpush2.msra.mxu0 %v1511
    %5395 = vmatprep.subr.mxu0 %v1487
    %5396 = vmatpush2.msra.mxu0 %v1486
    %5397 = vmatprep.subr.mxu0 %v1462
    %5398 = vmatpush2.msra.mxu0 %v1461
    %5399 = vmatprep.subr.mxu0 %v1437
    %5400 = vmatpush2.msra.mxu0 %v1436
    %5401 = vmatprep.subr.mxu0 %v1412
    %5402 = vmatpush2.msra.mxu0 %v1411
    %5403 = vmatprep.subr.mxu0 %v1387
    %5404 = vmatpush2.msra.mxu0 %v1386
    %5405 = vmatprep.subr.mxu0 %v1362
    %5406 = vmatpush2.msra.mxu0 %v1361
    %5407 = vmatprep.mubr.f32.mxu0 %v935
    %5408 = vmatmul.mubr.f32.gmra.mxu0 %v934
    %v5409 = vpop.f32.mrf.mxu0
    %v5410 = vadd.f32 %v2888, %v5409
    %v5411 = vpop.f32.mrf.mxu0
    %v5412 = vadd.f32 %v2892, %v5411
    %5413 = vdwg.mxu0
    %5414 = vmatprep.subr.mxu0 %v2137
    %5415 = vmatpush1.msra.mxu0 %v2136
    %5416 = vmatprep.subr.mxu0 %v2112
    %5417 = vmatpush1.msra.mxu0 %v2111
    %5418 = vmatprep.subr.mxu0 %v2087
    %5419 = vmatpush1.msra.mxu0 %v2086
    %5420 = vmatprep.subr.mxu0 %v2062
    %5421 = vmatpush1.msra.mxu0 %v2061
    %5422 = vmatprep.subr.mxu0 %v2037
    %5423 = vmatpush1.msra.mxu0 %v2036
    %5424 = vmatprep.subr.mxu0 %v2012
    %5425 = vmatpush1.msra.mxu0 %v2011
    %5426 = vmatprep.subr.mxu0 %v1987
    %5427 = vmatpush1.msra.mxu0 %v1986
    %5428 = vmatprep.subr.mxu0 %v1962
    %5429 = vmatpush1.msra.mxu0 %v1961
    %5430 = vmatprep.subr.mxu0 %v1937
    %5431 = vmatpush1.msra.mxu0 %v1936
    %5432 = vmatprep.subr.mxu0 %v1912
    %5433 = vmatpush1.msra.mxu0 %v1911
    %5434 = vmatprep.subr.mxu0 %v1887
    %5435 = vmatpush1.msra.mxu0 %v1886
    %5436 = vmatprep.subr.mxu0 %v1862
    %5437 = vmatpush1.msra.mxu0 %v1861
    %5438 = vmatprep.subr.mxu0 %v1837
    %5439 = vmatpush1.msra.mxu0 %v1836
    %5440 = vmatprep.subr.mxu0 %v1812
    %5441 = vmatpush1.msra.mxu0 %v1811
    %5442 = vmatprep.subr.mxu0 %v1787
    %5443 = vmatpush1.msra.mxu0 %v1786
    %5444 = vmatprep.subr.mxu0 %v1762
    %5445 = vmatpush1.msra.mxu0 %v1761
    %5446 = vmatprep.subr.mxu0 %v2537
    %5447 = vmatpush2.msra.mxu0 %v2536
    %5448 = vmatprep.subr.mxu0 %v2512
    %5449 = vmatpush2.msra.mxu0 %v2511
    %5450 = vmatprep.subr.mxu0 %v2487
    %5451 = vmatpush2.msra.mxu0 %v2486
    %5452 = vmatprep.subr.mxu0 %v2462
    %5453 = vmatpush2.msra.mxu0 %v2461
    %5454 = vmatprep.subr.mxu0 %v2437
    %5455 = vmatpush2.msra.mxu0 %v2436
    %5456 = vmatprep.subr.mxu0 %v2412
    %5457 = vmatpush2.msra.mxu0 %v2411
    %5458 = vmatprep.subr.mxu0 %v2387
    %5459 = vmatpush2.msra.mxu0 %v2386
    %5460 = vmatprep.subr.mxu0 %v2362
    %5461 = vmatpush2.msra.mxu0 %v2361
    %5462 = vmatprep.subr.mxu0 %v2337
    %5463 = vmatpush2.msra.mxu0 %v2336
    %5464 = vmatprep.subr.mxu0 %v2312
    %5465 = vmatpush2.msra.mxu0 %v2311
    %5466 = vmatprep.subr.mxu0 %v2287
    %5467 = vmatpush2.msra.mxu0 %v2286
    %5468 = vmatprep.subr.mxu0 %v2262
    %5469 = vmatpush2.msra.mxu0 %v2261
    %5470 = vmatprep.subr.mxu0 %v2237
    %5471 = vmatpush2.msra.mxu0 %v2236
    %5472 = vmatprep.subr.mxu0 %v2212
    %5473 = vmatpush2.msra.mxu0 %v2211
    %5474 = vmatprep.subr.mxu0 %v2187
    %5475 = vmatpush2.msra.mxu0 %v2186
    %5476 = vmatprep.subr.mxu0 %v2162
    %5477 = vmatpush2.msra.mxu0 %v2161
    %5478 = vmatprep.mubr.f32.mxu0 %v937
    %5479 = vmatmul.mubr.f32.gmra.mxu0 %v936
    %v5480 = vpop.f32.mrf.mxu0
    %v5481 = vadd.f32 %v5410, %v5480
    %v5482 = vpop.f32.mrf.mxu0
    %v5483 = vadd.f32 %v5412, %v5482
    %5484 = vdwg.mxu0
    %5485 = vmatprep.subr.mxu0 0.0
    %5486 = vmatpush1.msra.mxu0 0.0
    %5487 = vmatprep.subr.mxu0 0.0
    %5488 = vmatpush1.msra.mxu0 0.0
    %5489 = vmatprep.subr.mxu0 0.0
    %5490 = vmatpush1.msra.mxu0 0.0
    %5491 = vmatprep.subr.mxu0 0.0
    %5492 = vmatpush1.msra.mxu0 0.0
    %5493 = vmatprep.subr.mxu0 0.0
    %5494 = vmatpush1.msra.mxu0 0.0
    %5495 = vmatprep.subr.mxu0 0.0
    %5496 = vmatpush1.msra.mxu0 0.0
    %5497 = vmatprep.subr.mxu0 %v2995
    %5498 = vmatpush1.msra.mxu0 %v2992
    %5499 = vmatprep.subr.mxu0 %v2762
    %5500 = vmatpush1.msra.mxu0 %v2761
    %5501 = vmatprep.subr.mxu0 %v2737
    %5502 = vmatpush1.msra.mxu0 %v2736
    %5503 = vmatprep.subr.mxu0 %v2712
    %5504 = vmatpush1.msra.mxu0 %v2711
    %5505 = vmatprep.subr.mxu0 %v2687
    %5506 = vmatpush1.msra.mxu0 %v2686
    %5507 = vmatprep.subr.mxu0 %v2662
    %5508 = vmatpush1.msra.mxu0 %v2661
    %5509 = vmatprep.subr.mxu0 %v2637
    %5510 = vmatpush1.msra.mxu0 %v2636
    %5511 = vmatprep.subr.mxu0 %v2612
    %5512 = vmatpush1.msra.mxu0 %v2611
    %5513 = vmatprep.subr.mxu0 %v2587
    %5514 = vmatpush1.msra.mxu0 %v2586
    %5515 = vmatprep.subr.mxu0 %v2562
    %5516 = vmatpush1.msra.mxu0 %v2561
    %5517 = vmatprep.subr.mxu0 0.0
    %5518 = vmatpush2.msra.mxu0 0.0
    %5519 = vmatprep.subr.mxu0 0.0
    %5520 = vmatpush2.msra.mxu0 0.0
    %5521 = vmatprep.subr.mxu0 0.0
    %5522 = vmatpush2.msra.mxu0 0.0
    %5523 = vmatprep.subr.mxu0 0.0
    %5524 = vmatpush2.msra.mxu0 0.0
    %5525 = vmatprep.subr.mxu0 0.0
    %5526 = vmatpush2.msra.mxu0 0.0
    %5527 = vmatprep.subr.mxu0 0.0
    %5528 = vmatpush2.msra.mxu0 0.0
    %5529 = vmatprep.subr.mxu0 0.0
    %5530 = vmatpush2.msra.mxu0 0.0
    %5531 = vmatprep.subr.mxu0 0.0
    %5532 = vmatpush2.msra.mxu0 0.0
    %5533 = vmatprep.subr.mxu0 0.0
    %5534 = vmatpush2.msra.mxu0 0.0
    %5535 = vmatprep.subr.mxu0 0.0
    %5536 = vmatpush2.msra.mxu0 0.0
    %5537 = vmatprep.subr.mxu0 0.0
    %5538 = vmatpush2.msra.mxu0 0.0
    %5539 = vmatprep.subr.mxu0 0.0
    %5540 = vmatpush2.msra.mxu0 0.0
    %5541 = vmatprep.subr.mxu0 0.0
    %5542 = vmatpush2.msra.mxu0 0.0
    %5543 = vmatprep.subr.mxu0 0.0
    %5544 = vmatpush2.msra.mxu0 0.0
    %5545 = vmatprep.subr.mxu0 0.0
    %5546 = vmatpush2.msra.mxu0 0.0
    %5547 = vmatprep.subr.mxu0 0.0
    %5548 = vmatpush2.msra.mxu0 0.0
    %5549 = vmatprep.mubr.f32.mxu0 0.0
    %5550 = vmatmul.mubr.f32.gmra.mxu0 %v2923
    %v5551 = vpop.f32.mrf.mxu0
    %v5552 = vadd.f32 %v5481, %v5551
    %v5553 = vpop.f32.mrf.mxu0
    %v5554 = vadd.f32 %v5483, %v5553
    %5555 = vdwg.mxu0
    %5556 = vmatprep.subr.mxu0 0.0
    %5557 = vmatpush1.msra.mxu0 %v1338
    %5558 = vmatprep.subr.mxu0 0.0
    %5559 = vmatpush1.msra.mxu0 %v1313
    %5560 = vmatprep.subr.mxu0 0.0
    %5561 = vmatpush1.msra.mxu0 %v1288
    %5562 = vmatprep.subr.mxu0 0.0
    %5563 = vmatpush1.msra.mxu0 %v1263
    %5564 = vmatprep.subr.mxu0 0.0
    %5565 = vmatpush1.msra.mxu0 %v1238
    %5566 = vmatprep.subr.mxu0 0.0
    %5567 = vmatpush1.msra.mxu0 %v1213
    %5568 = vmatprep.subr.mxu0 0.0
    %5569 = vmatpush1.msra.mxu0 %v1188
    %5570 = vmatprep.subr.mxu0 0.0
    %5571 = vmatpush1.msra.mxu0 %v1163
    %5572 = vmatprep.subr.mxu0 0.0
    %5573 = vmatpush1.msra.mxu0 %v1138
    %5574 = vmatprep.subr.mxu0 0.0
    %5575 = vmatpush1.msra.mxu0 %v1113
    %5576 = vmatprep.subr.mxu0 0.0
    %5577 = vmatpush1.msra.mxu0 %v1088
    %5578 = vmatprep.subr.mxu0 0.0
    %5579 = vmatpush1.msra.mxu0 %v1063
    %5580 = vmatprep.subr.mxu0 0.0
    %5581 = vmatpush1.msra.mxu0 %v1038
    %5582 = vmatprep.subr.mxu0 0.0
    %5583 = vmatpush1.msra.mxu0 %v1013
    %5584 = vmatprep.subr.mxu0 0.0
    %5585 = vmatpush1.msra.mxu0 %v988
    %5586 = vmatprep.subr.mxu0 0.0
    %5587 = vmatpush1.msra.mxu0 %v963
    %5588 = vmatprep.subr.mxu0 0.0
    %5589 = vmatpush2.msra.mxu0 %v1738
    %5590 = vmatprep.subr.mxu0 0.0
    %5591 = vmatpush2.msra.mxu0 %v1713
    %5592 = vmatprep.subr.mxu0 0.0
    %5593 = vmatpush2.msra.mxu0 %v1688
    %5594 = vmatprep.subr.mxu0 0.0
    %5595 = vmatpush2.msra.mxu0 %v1663
    %5596 = vmatprep.subr.mxu0 0.0
    %5597 = vmatpush2.msra.mxu0 %v1638
    %5598 = vmatprep.subr.mxu0 0.0
    %5599 = vmatpush2.msra.mxu0 %v1613
    %5600 = vmatprep.subr.mxu0 0.0
    %5601 = vmatpush2.msra.mxu0 %v1588
    %5602 = vmatprep.subr.mxu0 0.0
    %5603 = vmatpush2.msra.mxu0 %v1563
    %5604 = vmatprep.subr.mxu0 0.0
    %5605 = vmatpush2.msra.mxu0 %v1538
    %5606 = vmatprep.subr.mxu0 0.0
    %5607 = vmatpush2.msra.mxu0 %v1513
    %5608 = vmatprep.subr.mxu0 0.0
    %5609 = vmatpush2.msra.mxu0 %v1488
    %5610 = vmatprep.subr.mxu0 0.0
    %5611 = vmatpush2.msra.mxu0 %v1463
    %5612 = vmatprep.subr.mxu0 0.0
    %5613 = vmatpush2.msra.mxu0 %v1438
    %5614 = vmatprep.subr.mxu0 0.0
    %5615 = vmatpush2.msra.mxu0 %v1413
    %5616 = vmatprep.subr.mxu0 0.0
    %5617 = vmatpush2.msra.mxu0 %v1388
    %5618 = vmatprep.subr.mxu0 0.0
    %5619 = vmatpush2.msra.mxu0 %v1363
    %5620 = vmatprep.mubr.f32.mxu0 %v935
    %5621 = vmatmul.mubr.f32.gmra.mxu0 %v934
    %v5622 = vpop.f32.mrf.mxu0
    %v5623 = vadd.f32 %v2896, %v5622
    %v5624 = vpop.f32.mrf.mxu0
    %5625 = vdwg.mxu0
    %5626 = vmatprep.subr.mxu0 0.0
    %5627 = vmatpush1.msra.mxu0 %v2138
    %5628 = vmatprep.subr.mxu0 0.0
    %5629 = vmatpush1.msra.mxu0 %v2113
    %5630 = vmatprep.subr.mxu0 0.0
    %5631 = vmatpush1.msra.mxu0 %v2088
    %5632 = vmatprep.subr.mxu0 0.0
    %5633 = vmatpush1.msra.mxu0 %v2063
    %5634 = vmatprep.subr.mxu0 0.0
    %5635 = vmatpush1.msra.mxu0 %v2038
    %5636 = vmatprep.subr.mxu0 0.0
    %5637 = vmatpush1.msra.mxu0 %v2013
    %5638 = vmatprep.subr.mxu0 0.0
    %5639 = vmatpush1.msra.mxu0 %v1988
    %5640 = vmatprep.subr.mxu0 0.0
    %5641 = vmatpush1.msra.mxu0 %v1963
    %5642 = vmatprep.subr.mxu0 0.0
    %5643 = vmatpush1.msra.mxu0 %v1938
    %5644 = vmatprep.subr.mxu0 0.0
    %5645 = vmatpush1.msra.mxu0 %v1913
    %5646 = vmatprep.subr.mxu0 0.0
    %5647 = vmatpush1.msra.mxu0 %v1888
    %5648 = vmatprep.subr.mxu0 0.0
    %5649 = vmatpush1.msra.mxu0 %v1863
    %5650 = vmatprep.subr.mxu0 0.0
    %5651 = vmatpush1.msra.mxu0 %v1838
    %5652 = vmatprep.subr.mxu0 0.0
    %5653 = vmatpush1.msra.mxu0 %v1813
    %5654 = vmatprep.subr.mxu0 0.0
    %5655 = vmatpush1.msra.mxu0 %v1788
    %5656 = vmatprep.subr.mxu0 0.0
    %5657 = vmatpush1.msra.mxu0 %v1763
    %5658 = vmatprep.subr.mxu0 0.0
    %5659 = vmatpush2.msra.mxu0 %v2538
    %5660 = vmatprep.subr.mxu0 0.0
    %5661 = vmatpush2.msra.mxu0 %v2513
    %5662 = vmatprep.subr.mxu0 0.0
    %5663 = vmatpush2.msra.mxu0 %v2488
    %5664 = vmatprep.subr.mxu0 0.0
    %5665 = vmatpush2.msra.mxu0 %v2463
    %5666 = vmatprep.subr.mxu0 0.0
    %5667 = vmatpush2.msra.mxu0 %v2438
    %5668 = vmatprep.subr.mxu0 0.0
    %5669 = vmatpush2.msra.mxu0 %v2413
    %5670 = vmatprep.subr.mxu0 0.0
    %5671 = vmatpush2.msra.mxu0 %v2388
    %5672 = vmatprep.subr.mxu0 0.0
    %5673 = vmatpush2.msra.mxu0 %v2363
    %5674 = vmatprep.subr.mxu0 0.0
    %5675 = vmatpush2.msra.mxu0 %v2338
    %5676 = vmatprep.subr.mxu0 0.0
    %5677 = vmatpush2.msra.mxu0 %v2313
    %5678 = vmatprep.subr.mxu0 0.0
    %5679 = vmatpush2.msra.mxu0 %v2288
    %5680 = vmatprep.subr.mxu0 0.0
    %5681 = vmatpush2.msra.mxu0 %v2263
    %5682 = vmatprep.subr.mxu0 0.0
    %5683 = vmatpush2.msra.mxu0 %v2238
    %5684 = vmatprep.subr.mxu0 0.0
    %5685 = vmatpush2.msra.mxu0 %v2213
    %5686 = vmatprep.subr.mxu0 0.0
    %5687 = vmatpush2.msra.mxu0 %v2188
    %5688 = vmatprep.subr.mxu0 0.0
    %5689 = vmatpush2.msra.mxu0 %v2163
    %5690 = vmatprep.mubr.f32.mxu0 %v937
    %5691 = vmatmul.mubr.f32.gmra.mxu0 %v936
    %v5692 = vpop.f32.mrf.mxu0
    %v5693 = vadd.f32 %v5623, %v5692
    %v5694 = vpop.f32.mrf.mxu0
    %5695 = vdwg.mxu0
    %5696 = vmatprep.subr.mxu0 0.0
    %5697 = vmatpush1.msra.mxu0 0.0
    %5698 = vmatprep.subr.mxu0 0.0
    %5699 = vmatpush1.msra.mxu0 0.0
    %5700 = vmatprep.subr.mxu0 0.0
    %5701 = vmatpush1.msra.mxu0 0.0
    %5702 = vmatprep.subr.mxu0 0.0
    %5703 = vmatpush1.msra.mxu0 0.0
    %5704 = vmatprep.subr.mxu0 0.0
    %5705 = vmatpush1.msra.mxu0 0.0
    %5706 = vmatprep.subr.mxu0 0.0
    %5707 = vmatpush1.msra.mxu0 0.0
    %5708 = vmatprep.subr.mxu0 0.0
    %5709 = vmatpush1.msra.mxu0 %v2998
    %5710 = vmatprep.subr.mxu0 0.0
    %5711 = vmatpush1.msra.mxu0 %v2763
    %5712 = vmatprep.subr.mxu0 0.0
    %5713 = vmatpush1.msra.mxu0 %v2738
    %5714 = vmatprep.subr.mxu0 0.0
    %5715 = vmatpush1.msra.mxu0 %v2713
    %5716 = vmatprep.subr.mxu0 0.0
    %5717 = vmatpush1.msra.mxu0 %v2688
    %5718 = vmatprep.subr.mxu0 0.0
    %5719 = vmatpush1.msra.mxu0 %v2663
    %5720 = vmatprep.subr.mxu0 0.0
    %5721 = vmatpush1.msra.mxu0 %v2638
    %5722 = vmatprep.subr.mxu0 0.0
    %5723 = vmatpush1.msra.mxu0 %v2613
    %5724 = vmatprep.subr.mxu0 0.0
    %5725 = vmatpush1.msra.mxu0 %v2588
    %5726 = vmatprep.subr.mxu0 0.0
    %5727 = vmatpush1.msra.mxu0 %v2563
    %5728 = vmatprep.subr.mxu0 0.0
    %5729 = vmatpush2.msra.mxu0 0.0
    %5730 = vmatprep.subr.mxu0 0.0
    %5731 = vmatpush2.msra.mxu0 0.0
    %5732 = vmatprep.subr.mxu0 0.0
    %5733 = vmatpush2.msra.mxu0 0.0
    %5734 = vmatprep.subr.mxu0 0.0
    %5735 = vmatpush2.msra.mxu0 0.0
    %5736 = vmatprep.subr.mxu0 0.0
    %5737 = vmatpush2.msra.mxu0 0.0
    %5738 = vmatprep.subr.mxu0 0.0
    %5739 = vmatpush2.msra.mxu0 0.0
    %5740 = vmatprep.subr.mxu0 0.0
    %5741 = vmatpush2.msra.mxu0 0.0
    %5742 = vmatprep.subr.mxu0 0.0
    %5743 = vmatpush2.msra.mxu0 0.0
    %5744 = vmatprep.subr.mxu0 0.0
    %5745 = vmatpush2.msra.mxu0 0.0
    %5746 = vmatprep.subr.mxu0 0.0
    %5747 = vmatpush2.msra.mxu0 0.0
    %5748 = vmatprep.subr.mxu0 0.0
    %5749 = vmatpush2.msra.mxu0 0.0
    %5750 = vmatprep.subr.mxu0 0.0
    %5751 = vmatpush2.msra.mxu0 0.0
    %5752 = vmatprep.subr.mxu0 0.0
    %5753 = vmatpush2.msra.mxu0 0.0
    %5754 = vmatprep.subr.mxu0 0.0
    %5755 = vmatpush2.msra.mxu0 0.0
    %5756 = vmatprep.subr.mxu0 0.0
    %5757 = vmatpush2.msra.mxu0 0.0
    %5758 = vmatprep.subr.mxu0 0.0
    %5759 = vmatpush2.msra.mxu0 0.0
    %5760 = vmatprep.mubr.f32.mxu0 0.0
    %5761 = vmatmul.mubr.f32.gmra.mxu0 %v2923
    %v5762 = vpop.f32.mrf.mxu0
    %v5763 = vadd.f32 %v5693, %v5762
    %v5764 = vpop.f32.mrf.mxu0
    %5765 = vdwg.mxu0
    %v5766 = vmax.f32 %v3209, 0.0
    %v5767 = vmax.f32 %v3211, 0.0
    %v5768 = vmax.f32 %v3422, 0.0
    %v5769 = vmax.f32 %v3424, 0.0
    %v5770 = vmax.f32 %v3635, 0.0
    %v5771 = vmax.f32 %v3637, 0.0
    %v5772 = vmax.f32 %v3848, 0.0
    %v5773 = vmax.f32 %v3850, 0.0
    %v5774 = vmax.f32 %v4061, 0.0
    %v5775 = vmax.f32 %v4063, 0.0
    %v5776 = vmax.f32 %v4274, 0.0
    %v5777 = vmax.f32 %v4276, 0.0
    %v5778 = vmax.f32 %v4487, 0.0
    %v5779 = vmax.f32 %v4489, 0.0
    %v5780 = vmax.f32 %v4700, 0.0
    %v5781 = vmax.f32 %v4702, 0.0
    %v5782 = vmax.f32 %v4913, 0.0
    %v5783 = vmax.f32 %v4915, 0.0
    %v5784 = vmax.f32 %v5126, 0.0
    %v5785 = vmax.f32 %v5128, 0.0
    %v5786 = vmax.f32 %v5339, 0.0
    %v5787 = vmax.f32 %v5341, 0.0
    %v5788 = vmax.f32 %v5552, 0.0
    %v5789 = vmax.f32 %v5554, 0.0
    %v5790 = vmax.f32 %v5763, 0.0
    %v5791 = vld [vmem:[#allocation16] sm:$0xff]
    %v5792 = vld [vmem:[#allocation16 + $0x8] sm:$0xff]
    %v5793 = vld [vmem:[#allocation16 + $0x10] sm:$0xff]
    %v5794 = vld [vmem:[#allocation16 + $0x18] sm:$0xff]
    %v5795 = vld [vmem:[#allocation16 + $0x20] sm:$0xff]
    %v5796 = vld [vmem:[#allocation16 + $0x28] sm:$0xff]
    %v5797 = vld [vmem:[#allocation16 + $0x30] sm:$0xff]
    %v5798 = vld [vmem:[#allocation16 + $0x38] sm:$0xff]
    %v5799 = vld [vmem:[#allocation16 + $0x40] sm:$0xff]
    %v5800 = vld [vmem:[#allocation16 + $0x48] sm:$0xff]
    %v5801 = vld [vmem:[#allocation16 + $0x50] sm:$0xff]
    %v5802 = vld [vmem:[#allocation16 + $0x58] sm:$0xff]
    %v5803 = vld [vmem:[#allocation16 + $0x60] sm:$0xff]
    %v5804 = vld [vmem:[#allocation16 + $0x68] sm:$0xff]
    %v5805 = vld [vmem:[#allocation16 + $0x70] sm:$0xff]
    %v5806 = vld [vmem:[#allocation16 + $0x78] sm:$0xff]
    %v5807 = vld [vmem:[#allocation16 + $0x80] sm:$0xff]
    %v5808 = vld [vmem:[#allocation16 + $0x88] sm:$0xff]
    %v5809 = vld [vmem:[#allocation16 + $0x90] sm:$0xff]
    %v5810 = vld [vmem:[#allocation16 + $0x98] sm:$0xff]
    %v5811 = vld [vmem:[#allocation16 + $0xa0] sm:$0xff]
    %v5812 = vld [vmem:[#allocation16 + $0xa8] sm:$0xff]
    %v5813 = vld [vmem:[#allocation16 + $0xb0] sm:$0xff]
    %v5814 = vld [vmem:[#allocation16 + $0xb8] sm:$0xff]
    %v5815 = vld [vmem:[#allocation16 + $0xc0] sm:$0xff]
    %v5816 = vld [vmem:[#allocation16 + $0xc8] sm:$0xff]
    %v5817 = vld [vmem:[#allocation16 + $0xd0] sm:$0xff]
    %v5818 = vld [vmem:[#allocation16 + $0xd8] sm:$0xff]
    %v5819 = vld [vmem:[#allocation16 + $0xe0] sm:$0xff]
    %v5820 = vld [vmem:[#allocation16 + $0xe8] sm:$0xff]
    %v5821 = vld [vmem:[#allocation16 + $0xf0] sm:$0xff]
    %v5822 = vld [vmem:[#allocation16 + $0xf8] sm:$0xff]
    %v5823 = vld [vmem:[#allocation16 + $0x100] sm:$0xff]
    %v5824 = vld [vmem:[#allocation16 + $0x108] sm:$0xff]
    %v5825 = vld [vmem:[#allocation16 + $0x110] sm:$0xff]
    %v5826 = vld [vmem:[#allocation16 + $0x118] sm:$0xff]
    %v5827 = vld [vmem:[#allocation16 + $0x120] sm:$0xff]
    %v5828 = vld [vmem:[#allocation16 + $0x128] sm:$0xff]
    %v5829 = vld [vmem:[#allocation16 + $0x130] sm:$0xff]
    %v5830 = vld [vmem:[#allocation16 + $0x138] sm:$0xff]
    %v5831 = vld [vmem:[#allocation16 + $0x140] sm:$0xff]
    %v5832 = vld [vmem:[#allocation16 + $0x148] sm:$0xff]
    %v5833 = vld [vmem:[#allocation16 + $0x150] sm:$0xff]
    %v5834 = vld [vmem:[#allocation16 + $0x158] sm:$0xff]
    %v5835 = vld [vmem:[#allocation16 + $0x160] sm:$0xff]
    %v5836 = vld [vmem:[#allocation16 + $0x168] sm:$0xff]
    %v5837 = vld [vmem:[#allocation16 + $0x170] sm:$0xff]
    %v5838 = vld [vmem:[#allocation16 + $0x178] sm:$0xff]
    %v5839 = vld [vmem:[#allocation16 + $0x180] sm:$0xff]
    %v5840 = vld [vmem:[#allocation16 + $0x188] sm:$0xff]
    %v5841 = vld [vmem:[%s12] sm:$0xff]
    %v5842 = vld [vmem:[%s12 + $0x8] sm:$0xff]
    %v5843 = vsel %vm633, %v5766, 0.0
    %v5844 = vrot.slane %v5843, 4
    %v5845 = vadd.f32 %v5843, %v5844
    %v5846 = vrot.slane %v5845, 2
    %v5847 = vadd.f32 %v5845, %v5846
    %v5848 = vrot.slane %v5847, 1
    %v5849 = vadd.f32 %v5847, %v5848
    %v5850 = vsel %vm633, %v5767, 0.0
    %v5851 = vrot.slane %v5850, 4
    %v5852 = vadd.f32 %v5850, %v5851
    %v5853 = vrot.slane %v5852, 2
    %v5854 = vadd.f32 %v5852, %v5853
    %v5855 = vrot.slane %v5854, 1
    %v5856 = vadd.f32 %v5854, %v5855
    %v5857 = vsel %vm633, %v5768, 0.0
    %v5858 = vrot.slane %v5857, 4
    %v5859 = vadd.f32 %v5857, %v5858
    %v5860 = vrot.slane %v5859, 2
    %v5861 = vadd.f32 %v5859, %v5860
    %v5862 = vrot.slane %v5861, 1
    %v5863 = vadd.f32 %v5861, %v5862
    %v5864 = vsel %vm633, %v5769, 0.0
    %v5865 = vrot.slane %v5864, 4
    %v5866 = vadd.f32 %v5864, %v5865
    %v5867 = vrot.slane %v5866, 2
    %v5868 = vadd.f32 %v5866, %v5867
    %v5869 = vrot.slane %v5868, 1
    %v5870 = vadd.f32 %v5868, %v5869
    %v5871 = vsel %vm633, %v5770, 0.0
    %v5872 = vrot.slane %v5871, 4
    %v5873 = vadd.f32 %v5871, %v5872
    %v5874 = vrot.slane %v5873, 2
    %v5875 = vadd.f32 %v5873, %v5874
    %v5876 = vrot.slane %v5875, 1
    %v5877 = vadd.f32 %v5875, %v5876
    %v5878 = vsel %vm633, %v5771, 0.0
    %v5879 = vrot.slane %v5878, 4
    %v5880 = vadd.f32 %v5878, %v5879
    %v5881 = vrot.slane %v5880, 2
    %v5882 = vadd.f32 %v5880, %v5881
    %v5883 = vrot.slane %v5882, 1
    %v5884 = vadd.f32 %v5882, %v5883
    %v5885 = vsel %vm633, %v5772, 0.0
    %v5886 = vrot.slane %v5885, 4
    %v5887 = vadd.f32 %v5885, %v5886
    %v5888 = vrot.slane %v5887, 2
    %v5889 = vadd.f32 %v5887, %v5888
    %v5890 = vrot.slane %v5889, 1
    %v5891 = vadd.f32 %v5889, %v5890
    %v5892 = vsel %vm633, %v5773, 0.0
    %v5893 = vrot.slane %v5892, 4
    %v5894 = vadd.f32 %v5892, %v5893
    %v5895 = vrot.slane %v5894, 2
    %v5896 = vadd.f32 %v5894, %v5895
    %v5897 = vrot.slane %v5896, 1
    %v5898 = vadd.f32 %v5896, %v5897
    %v5899 = vsel %vm633, %v5774, 0.0
    %v5900 = vrot.slane %v5899, 4
    %v5901 = vadd.f32 %v5899, %v5900
    %v5902 = vrot.slane %v5901, 2
    %v5903 = vadd.f32 %v5901, %v5902
    %v5904 = vrot.slane %v5903, 1
    %v5905 = vadd.f32 %v5903, %v5904
    %v5906 = vsel %vm633, %v5775, 0.0
    %v5907 = vrot.slane %v5906, 4
    %v5908 = vadd.f32 %v5906, %v5907
    %v5909 = vrot.slane %v5908, 2
    %v5910 = vadd.f32 %v5908, %v5909
    %v5911 = vrot.slane %v5910, 1
    %v5912 = vadd.f32 %v5910, %v5911
    %v5913 = vsel %vm633, %v5776, 0.0
    %v5914 = vrot.slane %v5913, 4
    %v5915 = vadd.f32 %v5913, %v5914
    %v5916 = vrot.slane %v5915, 2
    %v5917 = vadd.f32 %v5915, %v5916
    %v5918 = vrot.slane %v5917, 1
    %v5919 = vadd.f32 %v5917, %v5918
    %v5920 = vsel %vm633, %v5777, 0.0
    %v5921 = vrot.slane %v5920, 4
    %v5922 = vadd.f32 %v5920, %v5921
    %v5923 = vrot.slane %v5922, 2
    %v5924 = vadd.f32 %v5922, %v5923
    %v5925 = vrot.slane %v5924, 1
    %v5926 = vadd.f32 %v5924, %v5925
    %v5927 = vsel %vm633, %v5778, 0.0
    %v5928 = vrot.slane %v5927, 4
    %v5929 = vadd.f32 %v5927, %v5928
    %v5930 = vrot.slane %v5929, 2
    %v5931 = vadd.f32 %v5929, %v5930
    %v5932 = vrot.slane %v5931, 1
    %v5933 = vadd.f32 %v5931, %v5932
    %v5934 = vsel %vm633, %v5779, 0.0
    %v5935 = vrot.slane %v5934, 4
    %v5936 = vadd.f32 %v5934, %v5935
    %v5937 = vrot.slane %v5936, 2
    %v5938 = vadd.f32 %v5936, %v5937
    %v5939 = vrot.slane %v5938, 1
    %v5940 = vadd.f32 %v5938, %v5939
    %v5941 = vsel %vm633, %v5780, 0.0
    %v5942 = vrot.slane %v5941, 4
    %v5943 = vadd.f32 %v5941, %v5942
    %v5944 = vrot.slane %v5943, 2
    %v5945 = vadd.f32 %v5943, %v5944
    %v5946 = vrot.slane %v5945, 1
    %v5947 = vadd.f32 %v5945, %v5946
    %v5948 = vsel %vm633, %v5781, 0.0
    %v5949 = vrot.slane %v5948, 4
    %v5950 = vadd.f32 %v5948, %v5949
    %v5951 = vrot.slane %v5950, 2
    %v5952 = vadd.f32 %v5950, %v5951
    %v5953 = vrot.slane %v5952, 1
    %v5954 = vadd.f32 %v5952, %v5953
    %v5955 = vsel %vm633, %v5782, 0.0
    %v5956 = vrot.slane %v5955, 4
    %v5957 = vadd.f32 %v5955, %v5956
    %v5958 = vrot.slane %v5957, 2
    %v5959 = vadd.f32 %v5957, %v5958
    %v5960 = vrot.slane %v5959, 1
    %v5961 = vadd.f32 %v5959, %v5960
    %v5962 = vsel %vm633, %v5783, 0.0
    %v5963 = vrot.slane %v5962, 4
    %v5964 = vadd.f32 %v5962, %v5963
    %v5965 = vrot.slane %v5964, 2
    %v5966 = vadd.f32 %v5964, %v5965
    %v5967 = vrot.slane %v5966, 1
    %v5968 = vadd.f32 %v5966, %v5967
    %v5969 = vsel %vm633, %v5784, 0.0
    %v5970 = vrot.slane %v5969, 4
    %v5971 = vadd.f32 %v5969, %v5970
    %v5972 = vrot.slane %v5971, 2
    %v5973 = vadd.f32 %v5971, %v5972
    %v5974 = vrot.slane %v5973, 1
    %v5975 = vadd.f32 %v5973, %v5974
    %v5976 = vsel %vm633, %v5785, 0.0
    %v5977 = vrot.slane %v5976, 4
    %v5978 = vadd.f32 %v5976, %v5977
    %v5979 = vrot.slane %v5978, 2
    %v5980 = vadd.f32 %v5978, %v5979
    %v5981 = vrot.slane %v5980, 1
    %v5982 = vadd.f32 %v5980, %v5981
    %v5983 = vsel %vm633, %v5786, 0.0
    %v5984 = vrot.slane %v5983, 4
    %v5985 = vadd.f32 %v5983, %v5984
    %v5986 = vrot.slane %v5985, 2
    %v5987 = vadd.f32 %v5985, %v5986
    %v5988 = vrot.slane %v5987, 1
    %v5989 = vadd.f32 %v5987, %v5988
    %v5990 = vsel %vm633, %v5787, 0.0
    %v5991 = vrot.slane %v5990, 4
    %v5992 = vadd.f32 %v5990, %v5991
    %v5993 = vrot.slane %v5992, 2
    %v5994 = vadd.f32 %v5992, %v5993
    %v5995 = vrot.slane %v5994, 1
    %v5996 = vadd.f32 %v5994, %v5995
    %v5997 = vsel %vm633, %v5788, 0.0
    %v5998 = vrot.slane %v5997, 4
    %v5999 = vadd.f32 %v5997, %v5998
    %v6000 = vrot.slane %v5999, 2
    %v6001 = vadd.f32 %v5999, %v6000
    %v6002 = vrot.slane %v6001, 1
    %v6003 = vadd.f32 %v6001, %v6002
    %v6004 = vsel %vm633, %v5789, 0.0
    %v6005 = vrot.slane %v6004, 4
    %v6006 = vadd.f32 %v6004, %v6005
    %v6007 = vrot.slane %v6006, 2
    %v6008 = vadd.f32 %v6006, %v6007
    %v6009 = vrot.slane %v6008, 1
    %v6010 = vadd.f32 %v6008, %v6009
    %vm6011 = vcmask 517120
    %v6012 = vsel %vm6011, %v5790, 0.0
    %v6013 = vrot.slane %v6012, 4
    %v6014 = vadd.f32 %v6012, %v6013
    %v6015 = vrot.slane %v6014, 2
    %v6016 = vadd.f32 %v6014, %v6015
    %v6017 = vrot.slane %v6016, 1
    %v6018 = vadd.f32 %v6016, %v6017
    %v6019 = vmul.f32 %v5849, %v267
    %v6020 = vmul.f32 %v5856, %v267
    %v6021 = vmul.f32 %v5863, %v267
    %v6022 = vmul.f32 %v5870, %v267
    %v6023 = vmul.f32 %v5877, %v267
    %v6024 = vmul.f32 %v5884, %v267
    %v6025 = vmul.f32 %v5891, %v267
    %v6026 = vmul.f32 %v5898, %v267
    %v6027 = vmul.f32 %v5905, %v267
    %v6028 = vmul.f32 %v5912, %v267
    %v6029 = vmul.f32 %v5919, %v267
    %v6030 = vmul.f32 %v5926, %v267
    %v6031 = vmul.f32 %v5933, %v267
    %v6032 = vmul.f32 %v5940, %v267
    %v6033 = vmul.f32 %v5947, %v267
    %v6034 = vmul.f32 %v5954, %v267
    %v6035 = vmul.f32 %v5961, %v267
    %v6036 = vmul.f32 %v5968, %v267
    %v6037 = vmul.f32 %v5975, %v267
    %v6038 = vmul.f32 %v5982, %v267
    %v6039 = vmul.f32 %v5989, %v267
    %v6040 = vmul.f32 %v5996, %v267
    %v6041 = vmul.f32 %v6003, %v267
    %v6042 = vmul.f32 %v6010, %v267
    %v6043 = vmul.f32 %v6018, %v267
    %v6044 = vmul.f32 %v5766, %v5766
    %v6045 = vmul.f32 %v5767, %v5767
    %v6046 = vmul.f32 %v5768, %v5768
    %v6047 = vmul.f32 %v5769, %v5769
    %v6048 = vmul.f32 %v5770, %v5770
    %v6049 = vmul.f32 %v5771, %v5771
    %v6050 = vmul.f32 %v5772, %v5772
    %v6051 = vmul.f32 %v5773, %v5773
    %v6052 = vmul.f32 %v5774, %v5774
    %v6053 = vmul.f32 %v5775, %v5775
    %v6054 = vmul.f32 %v5776, %v5776
    %v6055 = vmul.f32 %v5777, %v5777
    %v6056 = vmul.f32 %v5778, %v5778
    %v6057 = vmul.f32 %v5779, %v5779
    %v6058 = vmul.f32 %v5780, %v5780
    %v6059 = vmul.f32 %v5781, %v5781
    %v6060 = vmul.f32 %v5782, %v5782
    %v6061 = vmul.f32 %v5783, %v5783
    %v6062 = vmul.f32 %v5784, %v5784
    %v6063 = vmul.f32 %v5785, %v5785
    %v6064 = vmul.f32 %v5786, %v5786
    %v6065 = vmul.f32 %v5787, %v5787
    %v6066 = vmul.f32 %v5788, %v5788
    %v6067 = vmul.f32 %v5789, %v5789
    %v6068 = vmul.f32 %v5790, %v5790
    %v6069 = vsel %vm633, %v6044, 0.0
    %v6070 = vrot.slane %v6069, 4
    %v6071 = vadd.f32 %v6069, %v6070
    %v6072 = vrot.slane %v6071, 2
    %v6073 = vadd.f32 %v6071, %v6072
    %v6074 = vrot.slane %v6073, 1
    %v6075 = vadd.f32 %v6073, %v6074
    %v6076 = vsel %vm633, %v6045, 0.0
    %v6077 = vrot.slane %v6076, 4
    %v6078 = vadd.f32 %v6076, %v6077
    %v6079 = vrot.slane %v6078, 2
    %v6080 = vadd.f32 %v6078, %v6079
    %v6081 = vrot.slane %v6080, 1
    %v6082 = vadd.f32 %v6080, %v6081
    %v6083 = vsel %vm633, %v6046, 0.0
    %v6084 = vrot.slane %v6083, 4
    %v6085 = vadd.f32 %v6083, %v6084
    %v6086 = vrot.slane %v6085, 2
    %v6087 = vadd.f32 %v6085, %v6086
    %v6088 = vrot.slane %v6087, 1
    %v6089 = vadd.f32 %v6087, %v6088
    %v6090 = vsel %vm633, %v6047, 0.0
    %v6091 = vrot.slane %v6090, 4
    %v6092 = vadd.f32 %v6090, %v6091
    %v6093 = vrot.slane %v6092, 2
    %v6094 = vadd.f32 %v6092, %v6093
    %v6095 = vrot.slane %v6094, 1
    %v6096 = vadd.f32 %v6094, %v6095
    %v6097 = vsel %vm633, %v6048, 0.0
    %v6098 = vrot.slane %v6097, 4
    %v6099 = vadd.f32 %v6097, %v6098
    %v6100 = vrot.slane %v6099, 2
    %v6101 = vadd.f32 %v6099, %v6100
    %v6102 = vrot.slane %v6101, 1
    %v6103 = vadd.f32 %v6101, %v6102
    %v6104 = vsel %vm633, %v6049, 0.0
    %v6105 = vrot.slane %v6104, 4
    %v6106 = vadd.f32 %v6104, %v6105
    %v6107 = vrot.slane %v6106, 2
    %v6108 = vadd.f32 %v6106, %v6107
    %v6109 = vrot.slane %v6108, 1
    %v6110 = vadd.f32 %v6108, %v6109
    %v6111 = vsel %vm633, %v6050, 0.0
    %v6112 = vrot.slane %v6111, 4
    %v6113 = vadd.f32 %v6111, %v6112
    %v6114 = vrot.slane %v6113, 2
    %v6115 = vadd.f32 %v6113, %v6114
    %v6116 = vrot.slane %v6115, 1
    %v6117 = vadd.f32 %v6115, %v6116
    %v6118 = vsel %vm633, %v6051, 0.0
    %v6119 = vrot.slane %v6118, 4
    %v6120 = vadd.f32 %v6118, %v6119
    %v6121 = vrot.slane %v6120, 2
    %v6122 = vadd.f32 %v6120, %v6121
    %v6123 = vrot.slane %v6122, 1
    %v6124 = vadd.f32 %v6122, %v6123
    %v6125 = vsel %vm633, %v6052, 0.0
    %v6126 = vrot.slane %v6125, 4
    %v6127 = vadd.f32 %v6125, %v6126
    %v6128 = vrot.slane %v6127, 2
    %v6129 = vadd.f32 %v6127, %v6128
    %v6130 = vrot.slane %v6129, 1
    %v6131 = vadd.f32 %v6129, %v6130
    %v6132 = vsel %vm633, %v6053, 0.0
    %v6133 = vrot.slane %v6132, 4
    %v6134 = vadd.f32 %v6132, %v6133
    %v6135 = vrot.slane %v6134, 2
    %v6136 = vadd.f32 %v6134, %v6135
    %v6137 = vrot.slane %v6136, 1
    %v6138 = vadd.f32 %v6136, %v6137
    %v6139 = vsel %vm633, %v6054, 0.0
    %v6140 = vrot.slane %v6139, 4
    %v6141 = vadd.f32 %v6139, %v6140
    %v6142 = vrot.slane %v6141, 2
    %v6143 = vadd.f32 %v6141, %v6142
    %v6144 = vrot.slane %v6143, 1
    %v6145 = vadd.f32 %v6143, %v6144
    %v6146 = vsel %vm633, %v6055, 0.0
    %v6147 = vrot.slane %v6146, 4
    %v6148 = vadd.f32 %v6146, %v6147
    %v6149 = vrot.slane %v6148, 2
    %v6150 = vadd.f32 %v6148, %v6149
    %v6151 = vrot.slane %v6150, 1
    %v6152 = vadd.f32 %v6150, %v6151
    %v6153 = vsel %vm633, %v6056, 0.0
    %v6154 = vrot.slane %v6153, 4
    %v6155 = vadd.f32 %v6153, %v6154
    %v6156 = vrot.slane %v6155, 2
    %v6157 = vadd.f32 %v6155, %v6156
    %v6158 = vrot.slane %v6157, 1
    %v6159 = vadd.f32 %v6157, %v6158
    %v6160 = vsel %vm633, %v6057, 0.0
    %v6161 = vrot.slane %v6160, 4
    %v6162 = vadd.f32 %v6160, %v6161
    %v6163 = vrot.slane %v6162, 2
    %v6164 = vadd.f32 %v6162, %v6163
    %v6165 = vrot.slane %v6164, 1
    %v6166 = vadd.f32 %v6164, %v6165
    %v6167 = vsel %vm633, %v6058, 0.0
    %v6168 = vrot.slane %v6167, 4
    %v6169 = vadd.f32 %v6167, %v6168
    %v6170 = vrot.slane %v6169, 2
    %v6171 = vadd.f32 %v6169, %v6170
    %v6172 = vrot.slane %v6171, 1
    %v6173 = vadd.f32 %v6171, %v6172
    %v6174 = vsel %vm633, %v6059, 0.0
    %v6175 = vrot.slane %v6174, 4
    %v6176 = vadd.f32 %v6174, %v6175
    %v6177 = vrot.slane %v6176, 2
    %v6178 = vadd.f32 %v6176, %v6177
    %v6179 = vrot.slane %v6178, 1
    %v6180 = vadd.f32 %v6178, %v6179
    %v6181 = vsel %vm633, %v6060, 0.0
    %v6182 = vrot.slane %v6181, 4
    %v6183 = vadd.f32 %v6181, %v6182
    %v6184 = vrot.slane %v6183, 2
    %v6185 = vadd.f32 %v6183, %v6184
    %v6186 = vrot.slane %v6185, 1
    %v6187 = vadd.f32 %v6185, %v6186
    %v6188 = vsel %vm633, %v6061, 0.0
    %v6189 = vrot.slane %v6188, 4
    %v6190 = vadd.f32 %v6188, %v6189
    %v6191 = vrot.slane %v6190, 2
    %v6192 = vadd.f32 %v6190, %v6191
    %v6193 = vrot.slane %v6192, 1
    %v6194 = vadd.f32 %v6192, %v6193
    %v6195 = vsel %vm633, %v6062, 0.0
    %v6196 = vrot.slane %v6195, 4
    %v6197 = vadd.f32 %v6195, %v6196
    %v6198 = vrot.slane %v6197, 2
    %v6199 = vadd.f32 %v6197, %v6198
    %v6200 = vrot.slane %v6199, 1
    %v6201 = vadd.f32 %v6199, %v6200
    %v6202 = vsel %vm633, %v6063, 0.0
    %v6203 = vrot.slane %v6202, 4
    %v6204 = vadd.f32 %v6202, %v6203
    %v6205 = vrot.slane %v6204, 2
    %v6206 = vadd.f32 %v6204, %v6205
    %v6207 = vrot.slane %v6206, 1
    %v6208 = vadd.f32 %v6206, %v6207
    %v6209 = vsel %vm633, %v6064, 0.0
    %v6210 = vrot.slane %v6209, 4
    %v6211 = vadd.f32 %v6209, %v6210
    %v6212 = vrot.slane %v6211, 2
    %v6213 = vadd.f32 %v6211, %v6212
    %v6214 = vrot.slane %v6213, 1
    %v6215 = vadd.f32 %v6213, %v6214
    %v6216 = vsel %vm633, %v6065, 0.0
    %v6217 = vrot.slane %v6216, 4
    %v6218 = vadd.f32 %v6216, %v6217
    %v6219 = vrot.slane %v6218, 2
    %v6220 = vadd.f32 %v6218, %v6219
    %v6221 = vrot.slane %v6220, 1
    %v6222 = vadd.f32 %v6220, %v6221
    %v6223 = vsel %vm633, %v6066, 0.0
    %v6224 = vrot.slane %v6223, 4
    %v6225 = vadd.f32 %v6223, %v6224
    %v6226 = vrot.slane %v6225, 2
    %v6227 = vadd.f32 %v6225, %v6226
    %v6228 = vrot.slane %v6227, 1
    %v6229 = vadd.f32 %v6227, %v6228
    %v6230 = vsel %vm633, %v6067, 0.0
    %v6231 = vrot.slane %v6230, 4
    %v6232 = vadd.f32 %v6230, %v6231
    %v6233 = vrot.slane %v6232, 2
    %v6234 = vadd.f32 %v6232, %v6233
    %v6235 = vrot.slane %v6234, 1
    %v6236 = vadd.f32 %v6234, %v6235
    %v6237 = vsel %vm6011, %v6068, 0.0
    %v6238 = vrot.slane %v6237, 4
    %v6239 = vadd.f32 %v6237, %v6238
    %v6240 = vrot.slane %v6239, 2
    %v6241 = vadd.f32 %v6239, %v6240
    %v6242 = vrot.slane %v6241, 1
    %v6243 = vadd.f32 %v6241, %v6242
    %v6244 = vmul.f32 %v6075, %v267
    %v6245 = vmul.f32 %v6082, %v267
    %v6246 = vmul.f32 %v6089, %v267
    %v6247 = vmul.f32 %v6096, %v267
    %v6248 = vmul.f32 %v6103, %v267
    %v6249 = vmul.f32 %v6110, %v267
    %v6250 = vmul.f32 %v6117, %v267
    %v6251 = vmul.f32 %v6124, %v267
    %v6252 = vmul.f32 %v6131, %v267
    %v6253 = vmul.f32 %v6138, %v267
    %v6254 = vmul.f32 %v6145, %v267
    %v6255 = vmul.f32 %v6152, %v267
    %v6256 = vmul.f32 %v6159, %v267
    %v6257 = vmul.f32 %v6166, %v267
    %v6258 = vmul.f32 %v6173, %v267
    %v6259 = vmul.f32 %v6180, %v267
    %v6260 = vmul.f32 %v6187, %v267
    %v6261 = vmul.f32 %v6194, %v267
    %v6262 = vmul.f32 %v6201, %v267
    %v6263 = vmul.f32 %v6208, %v267
    %v6264 = vmul.f32 %v6215, %v267
    %v6265 = vmul.f32 %v6222, %v267
    %v6266 = vmul.f32 %v6229, %v267
    %v6267 = vmul.f32 %v6236, %v267
    %v6268 = vmul.f32 %v6243, %v267
    %v6269 = vmul.f32 %v5791, %v6019
    %v6270 = vmul.f32 %v5792, %v6020
    %v6271 = vmul.f32 %v5793, %v6021
    %v6272 = vmul.f32 %v5794, %v6022
    %v6273 = vmul.f32 %v5795, %v6023
    %v6274 = vmul.f32 %v5796, %v6024
    %v6275 = vmul.f32 %v5797, %v6025
    %v6276 = vmul.f32 %v5798, %v6026
    %v6277 = vmul.f32 %v5799, %v6027
    %v6278 = vmul.f32 %v5800, %v6028
    %v6279 = vmul.f32 %v5801, %v6029
    %v6280 = vmul.f32 %v5802, %v6030
    %v6281 = vmul.f32 %v5803, %v6031
    %v6282 = vmul.f32 %v5804, %v6032
    %v6283 = vmul.f32 %v5805, %v6033
    %v6284 = vmul.f32 %v5806, %v6034
    %v6285 = vmul.f32 %v5807, %v6035
    %v6286 = vmul.f32 %v5808, %v6036
    %v6287 = vmul.f32 %v5809, %v6037
    %v6288 = vmul.f32 %v5810, %v6038
    %v6289 = vmul.f32 %v5811, %v6039
    %v6290 = vmul.f32 %v5812, %v6040
    %v6291 = vmul.f32 %v5813, %v6041
    %v6292 = vmul.f32 %v5814, %v6042
    %v6293 = vmul.f32 %v5815, %v6043
    %v6294 = vmul.f32 %v5816, %v6019
    %v6295 = vmul.f32 %v5817, %v6020
    %v6296 = vmul.f32 %v5818, %v6021
    %v6297 = vmul.f32 %v5819, %v6022
    %v6298 = vmul.f32 %v5820, %v6023
    %v6299 = vmul.f32 %v5821, %v6024
    %v6300 = vmul.f32 %v5822, %v6025
    %v6301 = vmul.f32 %v5823, %v6026
    %v6302 = vmul.f32 %v5824, %v6027
    %v6303 = vmul.f32 %v5825, %v6028
    %v6304 = vmul.f32 %v5826, %v6029
    %v6305 = vmul.f32 %v5827, %v6030
    %v6306 = vmul.f32 %v5828, %v6031
    %v6307 = vmul.f32 %v5829, %v6032
    %v6308 = vmul.f32 %v5830, %v6033
    %v6309 = vmul.f32 %v5831, %v6034
    %v6310 = vmul.f32 %v5832, %v6035
    %v6311 = vmul.f32 %v5833, %v6036
    %v6312 = vmul.f32 %v5834, %v6037
    %v6313 = vmul.f32 %v5835, %v6038
    %v6314 = vmul.f32 %v5836, %v6039
    %v6315 = vmul.f32 %v5837, %v6040
    %v6316 = vmul.f32 %v5838, %v6041
    %v6317 = vmul.f32 %v5839, %v6042
    %v6318 = vmul.f32 %v5840, %v6043
    %v6319 = vadd.f32 %v6269, %v6270
    %v6320 = vadd.f32 %v6319, %v6271
    %v6321 = vadd.f32 %v6320, %v6272
    %v6322 = vadd.f32 %v6321, %v6273
    %v6323 = vadd.f32 %v6322, %v6274
    %v6324 = vadd.f32 %v6323, %v6275
    %v6325 = vadd.f32 %v6324, %v6276
    %v6326 = vadd.f32 %v6325, %v6277
    %v6327 = vadd.f32 %v6326, %v6278
    %v6328 = vadd.f32 %v6327, %v6279
    %v6329 = vadd.f32 %v6328, %v6280
    %v6330 = vadd.f32 %v6329, %v6281
    %v6331 = vadd.f32 %v6330, %v6282
    %v6332 = vadd.f32 %v6331, %v6283
    %v6333 = vadd.f32 %v6332, %v6284
    %v6334 = vadd.f32 %v6333, %v6285
    %v6335 = vadd.f32 %v6334, %v6286
    %v6336 = vadd.f32 %v6335, %v6287
    %v6337 = vadd.f32 %v6336, %v6288
    %v6338 = vadd.f32 %v6337, %v6289
    %v6339 = vadd.f32 %v6338, %v6290
    %v6340 = vadd.f32 %v6339, %v6291
    %v6341 = vadd.f32 %v6340, %v6292
    %vm6342 = vcmask 523264
    %v6343 = vsel %vm6342, %v6293, 0.0
    %v6344 = vadd.f32 %v6341, %v6343
    %6345 = vadd.xlane.f32.xlu0 %v6344
    %v6346 = vpop.xlane.xlu0 %6345
    %v6347 = vadd.f32 %v6294, %v6295
    %v6348 = vadd.f32 %v6347, %v6296
    %v6349 = vadd.f32 %v6348, %v6297
    %v6350 = vadd.f32 %v6349, %v6298
    %v6351 = vadd.f32 %v6350, %v6299
    %v6352 = vadd.f32 %v6351, %v6300
    %v6353 = vadd.f32 %v6352, %v6301
    %v6354 = vadd.f32 %v6353, %v6302
    %v6355 = vadd.f32 %v6354, %v6303
    %v6356 = vadd.f32 %v6355, %v6304
    %v6357 = vadd.f32 %v6356, %v6305
    %v6358 = vadd.f32 %v6357, %v6306
    %v6359 = vadd.f32 %v6358, %v6307
    %v6360 = vadd.f32 %v6359, %v6308
    %v6361 = vadd.f32 %v6360, %v6309
    %v6362 = vadd.f32 %v6361, %v6310
    %v6363 = vadd.f32 %v6362, %v6311
    %v6364 = vadd.f32 %v6363, %v6312
    %v6365 = vadd.f32 %v6364, %v6313
    %v6366 = vadd.f32 %v6365, %v6314
    %v6367 = vadd.f32 %v6366, %v6315
    %v6368 = vadd.f32 %v6367, %v6316
    %v6369 = vadd.f32 %v6368, %v6317
    %v6370 = vsel %vm6342, %v6318, 0.0
    %v6371 = vadd.f32 %v6369, %v6370
    %6372 = vadd.xlane.f32.xlu0 %v6371
    %v6373 = vpop.xlane.xlu0 %6372
    %v6374 = vmul.f32 %v6346, 0.0051020407
    %v6375 = vmul.f32 %v6373, 0.0051020407
    %v6376 = vmul.f32 %v5791, %v6244
    %v6377 = vmul.f32 %v5792, %v6245
    %v6378 = vmul.f32 %v5793, %v6246
    %v6379 = vmul.f32 %v5794, %v6247
    %v6380 = vmul.f32 %v5795, %v6248
    %v6381 = vmul.f32 %v5796, %v6249
    %v6382 = vmul.f32 %v5797, %v6250
    %v6383 = vmul.f32 %v5798, %v6251
    %v6384 = vmul.f32 %v5799, %v6252
    %v6385 = vmul.f32 %v5800, %v6253
    %v6386 = vmul.f32 %v5801, %v6254
    %v6387 = vmul.f32 %v5802, %v6255
    %v6388 = vmul.f32 %v5803, %v6256
    %v6389 = vmul.f32 %v5804, %v6257
    %v6390 = vmul.f32 %v5805, %v6258
    %v6391 = vmul.f32 %v5806, %v6259
    %v6392 = vmul.f32 %v5807, %v6260
    %v6393 = vmul.f32 %v5808, %v6261
    %v6394 = vmul.f32 %v5809, %v6262
    %v6395 = vmul.f32 %v5810, %v6263
    %v6396 = vmul.f32 %v5811, %v6264
    %v6397 = vmul.f32 %v5812, %v6265
    %v6398 = vmul.f32 %v5813, %v6266
    %v6399 = vmul.f32 %v5814, %v6267
    %v6400 = vmul.f32 %v5815, %v6268
    %v6401 = vmul.f32 %v5816, %v6244
    %v6402 = vmul.f32 %v5817, %v6245
    %v6403 = vmul.f32 %v5818, %v6246
    %v6404 = vmul.f32 %v5819, %v6247
    %v6405 = vmul.f32 %v5820, %v6248
    %v6406 = vmul.f32 %v5821, %v6249
    %v6407 = vmul.f32 %v5822, %v6250
    %v6408 = vmul.f32 %v5823, %v6251
    %v6409 = vmul.f32 %v5824, %v6252
    %v6410 = vmul.f32 %v5825, %v6253
    %v6411 = vmul.f32 %v5826, %v6254
    %v6412 = vmul.f32 %v5827, %v6255
    %v6413 = vmul.f32 %v5828, %v6256
    %v6414 = vmul.f32 %v5829, %v6257
    %v6415 = vmul.f32 %v5830, %v6258
    %v6416 = vmul.f32 %v5831, %v6259
    %v6417 = vmul.f32 %v5832, %v6260
    %v6418 = vmul.f32 %v5833, %v6261
    %v6419 = vmul.f32 %v5834, %v6262
    %v6420 = vmul.f32 %v5835, %v6263
    %v6421 = vmul.f32 %v5836, %v6264
    %v6422 = vmul.f32 %v5837, %v6265
    %v6423 = vmul.f32 %v5838, %v6266
    %v6424 = vmul.f32 %v5839, %v6267
    %v6425 = vmul.f32 %v5840, %v6268
    %v6426 = vadd.f32 %v6376, %v6377
    %v6427 = vadd.f32 %v6426, %v6378
    %v6428 = vadd.f32 %v6427, %v6379
    %v6429 = vadd.f32 %v6428, %v6380
    %v6430 = vadd.f32 %v6429, %v6381
    %v6431 = vadd.f32 %v6430, %v6382
    %v6432 = vadd.f32 %v6431, %v6383
    %v6433 = vadd.f32 %v6432, %v6384
    %v6434 = vadd.f32 %v6433, %v6385
    %v6435 = vadd.f32 %v6434, %v6386
    %v6436 = vadd.f32 %v6435, %v6387
    %v6437 = vadd.f32 %v6436, %v6388
    %v6438 = vadd.f32 %v6437, %v6389
    %v6439 = vadd.f32 %v6438, %v6390
    %v6440 = vadd.f32 %v6439, %v6391
    %v6441 = vadd.f32 %v6440, %v6392
    %v6442 = vadd.f32 %v6441, %v6393
    %v6443 = vadd.f32 %v6442, %v6394
    %v6444 = vadd.f32 %v6443, %v6395
    %v6445 = vadd.f32 %v6444, %v6396
    %v6446 = vadd.f32 %v6445, %v6397
    %v6447 = vadd.f32 %v6446, %v6398
    %v6448 = vadd.f32 %v6447, %v6399
    %v6449 = vsel %vm6342, %v6400, 0.0
    %v6450 = vadd.f32 %v6448, %v6449
    %6451 = vadd.xlane.f32.xlu0 %v6450
    %v6452 = vpop.xlane.xlu0 %6451
    %v6453 = vadd.f32 %v6401, %v6402
    %v6454 = vadd.f32 %v6453, %v6403
    %v6455 = vadd.f32 %v6454, %v6404
    %v6456 = vadd.f32 %v6455, %v6405
    %v6457 = vadd.f32 %v6456, %v6406
    %v6458 = vadd.f32 %v6457, %v6407
    %v6459 = vadd.f32 %v6458, %v6408
    %v6460 = vadd.f32 %v6459, %v6409
    %v6461 = vadd.f32 %v6460, %v6410
    %v6462 = vadd.f32 %v6461, %v6411
    %v6463 = vadd.f32 %v6462, %v6412
    %v6464 = vadd.f32 %v6463, %v6413
    %v6465 = vadd.f32 %v6464, %v6414
    %v6466 = vadd.f32 %v6465, %v6415
    %v6467 = vadd.f32 %v6466, %v6416
    %v6468 = vadd.f32 %v6467, %v6417
    %v6469 = vadd.f32 %v6468, %v6418
    %v6470 = vadd.f32 %v6469, %v6419
    %v6471 = vadd.f32 %v6470, %v6420
    %v6472 = vadd.f32 %v6471, %v6421
    %v6473 = vadd.f32 %v6472, %v6422
    %v6474 = vadd.f32 %v6473, %v6423
    %v6475 = vadd.f32 %v6474, %v6424
    %v6476 = vsel %vm6342, %v6425, 0.0
    %v6477 = vadd.f32 %v6475, %v6476
    %6478 = vadd.xlane.f32.xlu0 %v6477
    %v6479 = vpop.xlane.xlu0 %6478
    %v6480 = vmul.f32 %v6452, 0.0051020407
    %v6481 = vmul.f32 %v6479, 0.0051020407
    %v6482 = vmul.f32 %v6374, %v6374
    %v6483 = vmul.f32 %v6375, %v6375
    %v6484 = vsub.f32 %v6480, %v6482
    %v6485 = vsub.f32 %v6481, %v6483
    %v6486 = vmax.f32 %v6484, 0.0
    %v6487 = vmax.f32 %v6485, 0.0
    %v6488 = vadd.f32 %v6486, 1e-05
    %v6489 = vadd.f32 %v6487, 1e-05
    %v6490 = vrsqrt.pop %v6488
    %v6491 = vrsqrt.pop %v6489
    %v6492 = vmul.f32 %v5841, %v6490
    %v6493 = vmul.f32 %v5842, %v6491
    %v6494 = vmul.f32 %v6374, %v6492
    %v6495 = vmul.f32 %v6375, %v6493
    %6498 = vrot.lane.b32.xlu0 %v6494, 1
    %v6499 = vpop.permute.xlu0 %6498
    %6500 = vrot.lane.b32.xlu0 %v6495, 1
    %v6501 = vpop.permute.xlu0 %6500
    %v6504 = vsub.f32 %v5841, %v6499
    %v6505 = vsub.f32 %v5842, %v6501
    %6507 = vset.pattern.permute.xlu0 0
    %6508 = vperm.xlu0 %6507, %v6492
    %v6509 = vpop.permute.xlu0 %6508
    %6512 = vset.pattern.permute.xlu0 0
    %6513 = vperm.xlu0 %6512, %v6493
    %v6514 = vpop.permute.xlu0 %6513
    %v6516 = vmul.f32 %v5791, %v6509
    %v6517 = vmul.f32 %v5792, %v6509
    %v6518 = vmul.f32 %v5793, %v6509
    %v6519 = vmul.f32 %v5794, %v6509
    %v6520 = vmul.f32 %v5795, %v6509
    %v6521 = vmul.f32 %v5796, %v6509
    %v6522 = vmul.f32 %v5797, %v6509
    %v6523 = vmul.f32 %v5798, %v6509
    %v6524 = vmul.f32 %v5799, %v6509
    %v6525 = vmul.f32 %v5800, %v6509
    %v6526 = vmul.f32 %v5801, %v6509
    %v6527 = vmul.f32 %v5802, %v6509
    %v6528 = vmul.f32 %v5803, %v6509
    %v6529 = vmul.f32 %v5804, %v6509
    %v6530 = vmul.f32 %v5805, %v6509
    %v6531 = vmul.f32 %v5806, %v6509
    %v6532 = vmul.f32 %v5807, %v6509
    %v6533 = vmul.f32 %v5808, %v6509
    %v6534 = vmul.f32 %v5809, %v6509
    %v6535 = vmul.f32 %v5810, %v6509
    %v6536 = vmul.f32 %v5811, %v6509
    %v6537 = vmul.f32 %v5812, %v6509
    %v6538 = vmul.f32 %v5813, %v6509
    %v6539 = vmul.f32 %v5814, %v6509
    %v6540 = vmul.f32 %v5815, %v6509
    %v6541 = vmul.f32 %v5816, %v6514
    %v6542 = vmul.f32 %v5817, %v6514
    %v6543 = vmul.f32 %v5818, %v6514
    %v6544 = vmul.f32 %v5819, %v6514
    %v6545 = vmul.f32 %v5820, %v6514
    %v6546 = vmul.f32 %v5821, %v6514
    %v6547 = vmul.f32 %v5822, %v6514
    %v6548 = vmul.f32 %v5823, %v6514
    %v6549 = vmul.f32 %v5824, %v6514
    %v6550 = vmul.f32 %v5825, %v6514
    %v6551 = vmul.f32 %v5826, %v6514
    %v6552 = vmul.f32 %v5827, %v6514
    %v6553 = vmul.f32 %v5828, %v6514
    %v6554 = vmul.f32 %v5829, %v6514
    %v6555 = vmul.f32 %v5830, %v6514
    %v6556 = vmul.f32 %v5831, %v6514
    %v6557 = vmul.f32 %v5832, %v6514
    %v6558 = vmul.f32 %v5833, %v6514
    %v6559 = vmul.f32 %v5834, %v6514
    %v6560 = vmul.f32 %v5835, %v6514
    %v6561 = vmul.f32 %v5836, %v6514
    %v6562 = vmul.f32 %v5837, %v6514
    %v6563 = vmul.f32 %v5838, %v6514
    %v6564 = vmul.f32 %v5839, %v6514
    %v6565 = vmul.f32 %v5840, %v6514
    %v6566 = vadd.f32 %v6516, %v6541
    %v6567 = vrot.slane %v6566, 4
    %v6568 = vadd.f32 %v6566, %v6567
    %v6569 = vrot.slane %v6568, 2
    %v6570 = vadd.f32 %v6568, %v6569
    %v6571 = vrot.slane %v6570, 1
    %v6572 = vadd.f32 %v6570, %v6571
    %v6573 = vadd.f32 %v6517, %v6542
    %v6574 = vrot.slane %v6573, 4
    %v6575 = vadd.f32 %v6573, %v6574
    %v6576 = vrot.slane %v6575, 2
    %v6577 = vadd.f32 %v6575, %v6576
    %v6578 = vrot.slane %v6577, 1
    %v6579 = vadd.f32 %v6577, %v6578
    %v6580 = vadd.f32 %v6518, %v6543
    %v6581 = vrot.slane %v6580, 4
    %v6582 = vadd.f32 %v6580, %v6581
    %v6583 = vrot.slane %v6582, 2
    %v6584 = vadd.f32 %v6582, %v6583
    %v6585 = vrot.slane %v6584, 1
    %v6586 = vadd.f32 %v6584, %v6585
    %v6587 = vadd.f32 %v6519, %v6544
    %v6588 = vrot.slane %v6587, 4
    %v6589 = vadd.f32 %v6587, %v6588
    %v6590 = vrot.slane %v6589, 2
    %v6591 = vadd.f32 %v6589, %v6590
    %v6592 = vrot.slane %v6591, 1
    %v6593 = vadd.f32 %v6591, %v6592
    %v6594 = vadd.f32 %v6520, %v6545
    %v6595 = vrot.slane %v6594, 4
    %v6596 = vadd.f32 %v6594, %v6595
    %v6597 = vrot.slane %v6596, 2
    %v6598 = vadd.f32 %v6596, %v6597
    %v6599 = vrot.slane %v6598, 1
    %v6600 = vadd.f32 %v6598, %v6599
    %v6601 = vadd.f32 %v6521, %v6546
    %v6602 = vrot.slane %v6601, 4
    %v6603 = vadd.f32 %v6601, %v6602
    %v6604 = vrot.slane %v6603, 2
    %v6605 = vadd.f32 %v6603, %v6604
    %v6606 = vrot.slane %v6605, 1
    %v6607 = vadd.f32 %v6605, %v6606
    %v6608 = vadd.f32 %v6522, %v6547
    %v6609 = vrot.slane %v6608, 4
    %v6610 = vadd.f32 %v6608, %v6609
    %v6611 = vrot.slane %v6610, 2
    %v6612 = vadd.f32 %v6610, %v6611
    %v6613 = vrot.slane %v6612, 1
    %v6614 = vadd.f32 %v6612, %v6613
    %v6615 = vadd.f32 %v6523, %v6548
    %v6616 = vrot.slane %v6615, 4
    %v6617 = vadd.f32 %v6615, %v6616
    %v6618 = vrot.slane %v6617, 2
    %v6619 = vadd.f32 %v6617, %v6618
    %v6620 = vrot.slane %v6619, 1
    %v6621 = vadd.f32 %v6619, %v6620
    %v6622 = vadd.f32 %v6524, %v6549
    %v6623 = vrot.slane %v6622, 4
    %v6624 = vadd.f32 %v6622, %v6623
    %v6625 = vrot.slane %v6624, 2
    %v6626 = vadd.f32 %v6624, %v6625
    %v6627 = vrot.slane %v6626, 1
    %v6628 = vadd.f32 %v6626, %v6627
    %v6629 = vadd.f32 %v6525, %v6550
    %v6630 = vrot.slane %v6629, 4
    %v6631 = vadd.f32 %v6629, %v6630
    %v6632 = vrot.slane %v6631, 2
    %v6633 = vadd.f32 %v6631, %v6632
    %v6634 = vrot.slane %v6633, 1
    %v6635 = vadd.f32 %v6633, %v6634
    %v6636 = vadd.f32 %v6526, %v6551
    %v6637 = vrot.slane %v6636, 4
    %v6638 = vadd.f32 %v6636, %v6637
    %v6639 = vrot.slane %v6638, 2
    %v6640 = vadd.f32 %v6638, %v6639
    %v6641 = vrot.slane %v6640, 1
    %v6642 = vadd.f32 %v6640, %v6641
    %v6643 = vadd.f32 %v6527, %v6552
    %v6644 = vrot.slane %v6643, 4
    %v6645 = vadd.f32 %v6643, %v6644
    %v6646 = vrot.slane %v6645, 2
    %v6647 = vadd.f32 %v6645, %v6646
    %v6648 = vrot.slane %v6647, 1
    %v6649 = vadd.f32 %v6647, %v6648
    %v6650 = vadd.f32 %v6528, %v6553
    %v6651 = vrot.slane %v6650, 4
    %v6652 = vadd.f32 %v6650, %v6651
    %v6653 = vrot.slane %v6652, 2
    %v6654 = vadd.f32 %v6652, %v6653
    %v6655 = vrot.slane %v6654, 1
    %v6656 = vadd.f32 %v6654, %v6655
    %v6657 = vadd.f32 %v6529, %v6554
    %v6658 = vrot.slane %v6657, 4
    %v6659 = vadd.f32 %v6657, %v6658
    %v6660 = vrot.slane %v6659, 2
    %v6661 = vadd.f32 %v6659, %v6660
    %v6662 = vrot.slane %v6661, 1
    %v6663 = vadd.f32 %v6661, %v6662
    %v6664 = vadd.f32 %v6530, %v6555
    %v6665 = vrot.slane %v6664, 4
    %v6666 = vadd.f32 %v6664, %v6665
    %v6667 = vrot.slane %v6666, 2
    %v6668 = vadd.f32 %v6666, %v6667
    %v6669 = vrot.slane %v6668, 1
    %v6670 = vadd.f32 %v6668, %v6669
    %v6671 = vadd.f32 %v6531, %v6556
    %v6672 = vrot.slane %v6671, 4
    %v6673 = vadd.f32 %v6671, %v6672
    %v6674 = vrot.slane %v6673, 2
    %v6675 = vadd.f32 %v6673, %v6674
    %v6676 = vrot.slane %v6675, 1
    %v6677 = vadd.f32 %v6675, %v6676
    %v6678 = vadd.f32 %v6532, %v6557
    %v6679 = vrot.slane %v6678, 4
    %v6680 = vadd.f32 %v6678, %v6679
    %v6681 = vrot.slane %v6680, 2
    %v6682 = vadd.f32 %v6680, %v6681
    %v6683 = vrot.slane %v6682, 1
    %v6684 = vadd.f32 %v6682, %v6683
    %v6685 = vadd.f32 %v6533, %v6558
    %v6686 = vrot.slane %v6685, 4
    %v6687 = vadd.f32 %v6685, %v6686
    %v6688 = vrot.slane %v6687, 2
    %v6689 = vadd.f32 %v6687, %v6688
    %v6690 = vrot.slane %v6689, 1
    %v6691 = vadd.f32 %v6689, %v6690
    %v6692 = vadd.f32 %v6534, %v6559
    %v6693 = vrot.slane %v6692, 4
    %v6694 = vadd.f32 %v6692, %v6693
    %v6695 = vrot.slane %v6694, 2
    %v6696 = vadd.f32 %v6694, %v6695
    %v6697 = vrot.slane %v6696, 1
    %v6698 = vadd.f32 %v6696, %v6697
    %v6699 = vadd.f32 %v6535, %v6560
    %v6700 = vrot.slane %v6699, 4
    %v6701 = vadd.f32 %v6699, %v6700
    %v6702 = vrot.slane %v6701, 2
    %v6703 = vadd.f32 %v6701, %v6702
    %v6704 = vrot.slane %v6703, 1
    %v6705 = vadd.f32 %v6703, %v6704
    %v6706 = vadd.f32 %v6536, %v6561
    %v6707 = vrot.slane %v6706, 4
    %v6708 = vadd.f32 %v6706, %v6707
    %v6709 = vrot.slane %v6708, 2
    %v6710 = vadd.f32 %v6708, %v6709
    %v6711 = vrot.slane %v6710, 1
    %v6712 = vadd.f32 %v6710, %v6711
    %v6713 = vadd.f32 %v6537, %v6562
    %v6714 = vrot.slane %v6713, 4
    %v6715 = vadd.f32 %v6713, %v6714
    %v6716 = vrot.slane %v6715, 2
    %v6717 = vadd.f32 %v6715, %v6716
    %v6718 = vrot.slane %v6717, 1
    %v6719 = vadd.f32 %v6717, %v6718
    %v6720 = vadd.f32 %v6538, %v6563
    %v6721 = vrot.slane %v6720, 4
    %v6722 = vadd.f32 %v6720, %v6721
    %v6723 = vrot.slane %v6722, 2
    %v6724 = vadd.f32 %v6722, %v6723
    %v6725 = vrot.slane %v6724, 1
    %v6726 = vadd.f32 %v6724, %v6725
    %v6727 = vadd.f32 %v6539, %v6564
    %v6728 = vrot.slane %v6727, 4
    %v6729 = vadd.f32 %v6727, %v6728
    %v6730 = vrot.slane %v6729, 2
    %v6731 = vadd.f32 %v6729, %v6730
    %v6732 = vrot.slane %v6731, 1
    %v6733 = vadd.f32 %v6731, %v6732
    %v6734 = vsel %vm6342, %v6540, 0.0
    %v6735 = vsel %vm6342, %v6565, 0.0
    %v6736 = vadd.f32 %v6734, %v6735
    %v6737 = vrot.slane %v6736, 4
    %v6738 = vadd.f32 %v6736, %v6737
    %v6739 = vrot.slane %v6738, 2
    %v6740 = vadd.f32 %v6738, %v6739
    %v6741 = vrot.slane %v6740, 1
    %v6742 = vadd.f32 %v6740, %v6741
    %6744 = vset.pattern.permute.xlu0 1
    %6745 = vperm.xlu0 %6744, %v6504
    %v6746 = vpop.permute.xlu0 %6745
    %6749 = vset.pattern.permute.xlu0 1
    %6750 = vperm.xlu0 %6749, %v6505
    %v6751 = vpop.permute.xlu0 %6750
    %v6753 = vmul.f32 %v5791, %v6746
    %v6754 = vmul.f32 %v5792, %v6746
    %v6755 = vmul.f32 %v5793, %v6746
    %v6756 = vmul.f32 %v5794, %v6746
    %v6757 = vmul.f32 %v5795, %v6746
    %v6758 = vmul.f32 %v5796, %v6746
    %v6759 = vmul.f32 %v5797, %v6746
    %v6760 = vmul.f32 %v5798, %v6746
    %v6761 = vmul.f32 %v5799, %v6746
    %v6762 = vmul.f32 %v5800, %v6746
    %v6763 = vmul.f32 %v5801, %v6746
    %v6764 = vmul.f32 %v5802, %v6746
    %v6765 = vmul.f32 %v5803, %v6746
    %v6766 = vmul.f32 %v5804, %v6746
    %v6767 = vmul.f32 %v5805, %v6746
    %v6768 = vmul.f32 %v5806, %v6746
    %v6769 = vmul.f32 %v5807, %v6746
    %v6770 = vmul.f32 %v5808, %v6746
    %v6771 = vmul.f32 %v5809, %v6746
    %v6772 = vmul.f32 %v5810, %v6746
    %v6773 = vmul.f32 %v5811, %v6746
    %v6774 = vmul.f32 %v5812, %v6746
    %v6775 = vmul.f32 %v5813, %v6746
    %v6776 = vmul.f32 %v5814, %v6746
    %v6777 = vmul.f32 %v5815, %v6746
    %v6778 = vmul.f32 %v5816, %v6751
    %v6779 = vmul.f32 %v5817, %v6751
    %v6780 = vmul.f32 %v5818, %v6751
    %v6781 = vmul.f32 %v5819, %v6751
    %v6782 = vmul.f32 %v5820, %v6751
    %v6783 = vmul.f32 %v5821, %v6751
    %v6784 = vmul.f32 %v5822, %v6751
    %v6785 = vmul.f32 %v5823, %v6751
    %v6786 = vmul.f32 %v5824, %v6751
    %v6787 = vmul.f32 %v5825, %v6751
    %v6788 = vmul.f32 %v5826, %v6751
    %v6789 = vmul.f32 %v5827, %v6751
    %v6790 = vmul.f32 %v5828, %v6751
    %v6791 = vmul.f32 %v5829, %v6751
    %v6792 = vmul.f32 %v5830, %v6751
    %v6793 = vmul.f32 %v5831, %v6751
    %v6794 = vmul.f32 %v5832, %v6751
    %v6795 = vmul.f32 %v5833, %v6751
    %v6796 = vmul.f32 %v5834, %v6751
    %v6797 = vmul.f32 %v5835, %v6751
    %v6798 = vmul.f32 %v5836, %v6751
    %v6799 = vmul.f32 %v5837, %v6751
    %v6800 = vmul.f32 %v5838, %v6751
    %v6801 = vmul.f32 %v5839, %v6751
    %v6802 = vmul.f32 %v5840, %v6751
    %v6803 = vadd.f32 %v6753, %v6778
    %v6804 = vrot.slane %v6803, 4
    %v6805 = vadd.f32 %v6803, %v6804
    %v6806 = vrot.slane %v6805, 2
    %v6807 = vadd.f32 %v6805, %v6806
    %v6808 = vrot.slane %v6807, 1
    %v6809 = vadd.f32 %v6807, %v6808
    %v6810 = vadd.f32 %v6754, %v6779
    %v6811 = vrot.slane %v6810, 4
    %v6812 = vadd.f32 %v6810, %v6811
    %v6813 = vrot.slane %v6812, 2
    %v6814 = vadd.f32 %v6812, %v6813
    %v6815 = vrot.slane %v6814, 1
    %v6816 = vadd.f32 %v6814, %v6815
    %v6817 = vadd.f32 %v6755, %v6780
    %v6818 = vrot.slane %v6817, 4
    %v6819 = vadd.f32 %v6817, %v6818
    %v6820 = vrot.slane %v6819, 2
    %v6821 = vadd.f32 %v6819, %v6820
    %v6822 = vrot.slane %v6821, 1
    %v6823 = vadd.f32 %v6821, %v6822
    %v6824 = vadd.f32 %v6756, %v6781
    %v6825 = vrot.slane %v6824, 4
    %v6826 = vadd.f32 %v6824, %v6825
    %v6827 = vrot.slane %v6826, 2
    %v6828 = vadd.f32 %v6826, %v6827
    %v6829 = vrot.slane %v6828, 1
    %v6830 = vadd.f32 %v6828, %v6829
    %v6831 = vadd.f32 %v6757, %v6782
    %v6832 = vrot.slane %v6831, 4
    %v6833 = vadd.f32 %v6831, %v6832
    %v6834 = vrot.slane %v6833, 2
    %v6835 = vadd.f32 %v6833, %v6834
    %v6836 = vrot.slane %v6835, 1
    %v6837 = vadd.f32 %v6835, %v6836
    %v6838 = vadd.f32 %v6758, %v6783
    %v6839 = vrot.slane %v6838, 4
    %v6840 = vadd.f32 %v6838, %v6839
    %v6841 = vrot.slane %v6840, 2
    %v6842 = vadd.f32 %v6840, %v6841
    %v6843 = vrot.slane %v6842, 1
    %v6844 = vadd.f32 %v6842, %v6843
    %v6845 = vadd.f32 %v6759, %v6784
    %v6846 = vrot.slane %v6845, 4
    %v6847 = vadd.f32 %v6845, %v6846
    %v6848 = vrot.slane %v6847, 2
    %v6849 = vadd.f32 %v6847, %v6848
    %v6850 = vrot.slane %v6849, 1
    %v6851 = vadd.f32 %v6849, %v6850
    %v6852 = vadd.f32 %v6760, %v6785
    %v6853 = vrot.slane %v6852, 4
    %v6854 = vadd.f32 %v6852, %v6853
    %v6855 = vrot.slane %v6854, 2
    %v6856 = vadd.f32 %v6854, %v6855
    %v6857 = vrot.slane %v6856, 1
    %v6858 = vadd.f32 %v6856, %v6857
    %v6859 = vadd.f32 %v6761, %v6786
    %v6860 = vrot.slane %v6859, 4
    %v6861 = vadd.f32 %v6859, %v6860
    %v6862 = vrot.slane %v6861, 2
    %v6863 = vadd.f32 %v6861, %v6862
    %v6864 = vrot.slane %v6863, 1
    %v6865 = vadd.f32 %v6863, %v6864
    %v6866 = vadd.f32 %v6762, %v6787
    %v6867 = vrot.slane %v6866, 4
    %v6868 = vadd.f32 %v6866, %v6867
    %v6869 = vrot.slane %v6868, 2
    %v6870 = vadd.f32 %v6868, %v6869
    %v6871 = vrot.slane %v6870, 1
    %v6872 = vadd.f32 %v6870, %v6871
    %v6873 = vadd.f32 %v6763, %v6788
    %v6874 = vrot.slane %v6873, 4
    %v6875 = vadd.f32 %v6873, %v6874
    %v6876 = vrot.slane %v6875, 2
    %v6877 = vadd.f32 %v6875, %v6876
    %v6878 = vrot.slane %v6877, 1
    %v6879 = vadd.f32 %v6877, %v6878
    %v6880 = vadd.f32 %v6764, %v6789
    %v6881 = vrot.slane %v6880, 4
    %v6882 = vadd.f32 %v6880, %v6881
    %v6883 = vrot.slane %v6882, 2
    %v6884 = vadd.f32 %v6882, %v6883
    %v6885 = vrot.slane %v6884, 1
    %v6886 = vadd.f32 %v6884, %v6885
    %v6887 = vadd.f32 %v6765, %v6790
    %v6888 = vrot.slane %v6887, 4
    %v6889 = vadd.f32 %v6887, %v6888
    %v6890 = vrot.slane %v6889, 2
    %v6891 = vadd.f32 %v6889, %v6890
    %v6892 = vrot.slane %v6891, 1
    %v6893 = vadd.f32 %v6891, %v6892
    %v6894 = vadd.f32 %v6766, %v6791
    %v6895 = vrot.slane %v6894, 4
    %v6896 = vadd.f32 %v6894, %v6895
    %v6897 = vrot.slane %v6896, 2
    %v6898 = vadd.f32 %v6896, %v6897
    %v6899 = vrot.slane %v6898, 1
    %v6900 = vadd.f32 %v6898, %v6899
    %v6901 = vadd.f32 %v6767, %v6792
    %v6902 = vrot.slane %v6901, 4
    %v6903 = vadd.f32 %v6901, %v6902
    %v6904 = vrot.slane %v6903, 2
    %v6905 = vadd.f32 %v6903, %v6904
    %v6906 = vrot.slane %v6905, 1
    %v6907 = vadd.f32 %v6905, %v6906
    %v6908 = vadd.f32 %v6768, %v6793
    %v6909 = vrot.slane %v6908, 4
    %v6910 = vadd.f32 %v6908, %v6909
    %v6911 = vrot.slane %v6910, 2
    %v6912 = vadd.f32 %v6910, %v6911
    %v6913 = vrot.slane %v6912, 1
    %v6914 = vadd.f32 %v6912, %v6913
    %v6915 = vadd.f32 %v6769, %v6794
    %v6916 = vrot.slane %v6915, 4
    %v6917 = vadd.f32 %v6915, %v6916
    %v6918 = vrot.slane %v6917, 2
    %v6919 = vadd.f32 %v6917, %v6918
    %v6920 = vrot.slane %v6919, 1
    %v6921 = vadd.f32 %v6919, %v6920
    %v6922 = vadd.f32 %v6770, %v6795
    %v6923 = vrot.slane %v6922, 4
    %v6924 = vadd.f32 %v6922, %v6923
    %v6925 = vrot.slane %v6924, 2
    %v6926 = vadd.f32 %v6924, %v6925
    %v6927 = vrot.slane %v6926, 1
    %v6928 = vadd.f32 %v6926, %v6927
    %v6929 = vadd.f32 %v6771, %v6796
    %v6930 = vrot.slane %v6929, 4
    %v6931 = vadd.f32 %v6929, %v6930
    %v6932 = vrot.slane %v6931, 2
    %v6933 = vadd.f32 %v6931, %v6932
    %v6934 = vrot.slane %v6933, 1
    %v6935 = vadd.f32 %v6933, %v6934
    %v6936 = vadd.f32 %v6772, %v6797
    %v6937 = vrot.slane %v6936, 4
    %v6938 = vadd.f32 %v6936, %v6937
    %v6939 = vrot.slane %v6938, 2
    %v6940 = vadd.f32 %v6938, %v6939
    %v6941 = vrot.slane %v6940, 1
    %v6942 = vadd.f32 %v6940, %v6941
    %v6943 = vadd.f32 %v6773, %v6798
    %v6944 = vrot.slane %v6943, 4
    %v6945 = vadd.f32 %v6943, %v6944
    %v6946 = vrot.slane %v6945, 2
    %v6947 = vadd.f32 %v6945, %v6946
    %v6948 = vrot.slane %v6947, 1
    %v6949 = vadd.f32 %v6947, %v6948
    %v6950 = vadd.f32 %v6774, %v6799
    %v6951 = vrot.slane %v6950, 4
    %v6952 = vadd.f32 %v6950, %v6951
    %v6953 = vrot.slane %v6952, 2
    %v6954 = vadd.f32 %v6952, %v6953
    %v6955 = vrot.slane %v6954, 1
    %v6956 = vadd.f32 %v6954, %v6955
    %v6957 = vadd.f32 %v6775, %v6800
    %v6958 = vrot.slane %v6957, 4
    %v6959 = vadd.f32 %v6957, %v6958
    %v6960 = vrot.slane %v6959, 2
    %v6961 = vadd.f32 %v6959, %v6960
    %v6962 = vrot.slane %v6961, 1
    %v6963 = vadd.f32 %v6961, %v6962
    %v6964 = vadd.f32 %v6776, %v6801
    %v6965 = vrot.slane %v6964, 4
    %v6966 = vadd.f32 %v6964, %v6965
    %v6967 = vrot.slane %v6966, 2
    %v6968 = vadd.f32 %v6966, %v6967
    %v6969 = vrot.slane %v6968, 1
    %v6970 = vadd.f32 %v6968, %v6969
    %v6971 = vsel %vm6342, %v6777, 0.0
    %v6972 = vsel %vm6342, %v6802, 0.0
    %v6973 = vadd.f32 %v6971, %v6972
    %v6974 = vrot.slane %v6973, 4
    %v6975 = vadd.f32 %v6973, %v6974
    %v6976 = vrot.slane %v6975, 2
    %v6977 = vadd.f32 %v6975, %v6976
    %v6978 = vrot.slane %v6977, 1
    %v6979 = vadd.f32 %v6977, %v6978
    %v6980 = vmul.f32 %v5766, %v6572
    %v6981 = vmul.f32 %v5767, %v6579
    %v6982 = vmul.f32 %v5768, %v6586
    %v6983 = vmul.f32 %v5769, %v6593
    %v6984 = vmul.f32 %v5770, %v6600
    %v6985 = vmul.f32 %v5771, %v6607
    %v6986 = vmul.f32 %v5772, %v6614
    %v6987 = vmul.f32 %v5773, %v6621
    %v6988 = vmul.f32 %v5774, %v6628
    %v6989 = vmul.f32 %v5775, %v6635
    %v6990 = vmul.f32 %v5776, %v6642
    %v6991 = vmul.f32 %v5777, %v6649
    %v6992 = vmul.f32 %v5778, %v6656
    %v6993 = vmul.f32 %v5779, %v6663
    %v6994 = vmul.f32 %v5780, %v6670
    %v6995 = vmul.f32 %v5781, %v6677
    %v6996 = vmul.f32 %v5782, %v6684
    %v6997 = vmul.f32 %v5783, %v6691
    %v6998 = vmul.f32 %v5784, %v6698
    %v6999 = vmul.f32 %v5785, %v6705
    %v7000 = vmul.f32 %v5786, %v6712
    %v7001 = vmul.f32 %v5787, %v6719
    %v7002 = vmul.f32 %v5788, %v6726
    %v7003 = vmul.f32 %v5789, %v6733
    %v7004 = vmul.f32 %v5790, %v6742
    %v7005 = vadd.f32 %v6980, %v6809
    %v7006 = vadd.f32 %v6981, %v6816
    %v7007 = vadd.f32 %v6982, %v6823
    %v7008 = vadd.f32 %v6983, %v6830
    %v7009 = vadd.f32 %v6984, %v6837
    %v7010 = vadd.f32 %v6985, %v6844
    %v7011 = vadd.f32 %v6986, %v6851
    %v7012 = vadd.f32 %v6987, %v6858
    %v7013 = vadd.f32 %v6988, %v6865
    %v7014 = vadd.f32 %v6989, %v6872
    %v7015 = vadd.f32 %v6990, %v6879
    %v7016 = vadd.f32 %v6991, %v6886
    %v7017 = vadd.f32 %v6992, %v6893
    %v7018 = vadd.f32 %v6993, %v6900
    %v7019 = vadd.f32 %v6994, %v6907
    %v7020 = vadd.f32 %v6995, %v6914
    %v7021 = vadd.f32 %v6996, %v6921
    %v7022 = vadd.f32 %v6997, %v6928
    %v7023 = vadd.f32 %v6998, %v6935
    %v7024 = vadd.f32 %v6999, %v6942
    %v7025 = vadd.f32 %v7000, %v6949
    %v7026 = vadd.f32 %v7001, %v6956
    %v7027 = vadd.f32 %v7002, %v6963
    %v7028 = vadd.f32 %v7003, %v6970
    %v7029 = vadd.f32 %v7004, %v6979
    %v7055 = vcombine.low %v7005, %v7006
    %v7056 = vcombine.low %v7007, %v7008
    %v7058 = vunpack.c.l.s4 1983009808
    %v7059 = vunpack.c.0.s8 %v7058
    %v7060 = vlaneseq
    %v7061 = vshrl.u32 %v7060, 7
    %v7062 = vsub.s32 %v7059, %v7061
    %v7063 = vrot.slane %v7055, %v7062
    %v7065 = vunpack.c.l.s4 1983009808
    %v7066 = vunpack.c.0.s8 %v7065
    %v7067 = vlaneseq
    %v7068 = vshrl.u32 %v7067, 7
    %v7069 = vsub.s32 %v7066, %v7068
    %v7070 = vrot.slane %v7056, %v7069
    %v7071 = vcombine.low %v7063, %v7070
    %v7072 = vcombine.low %v7009, %v7010
    %v7073 = vcombine.low %v7011, %v7012
    %v7075 = vunpack.c.l.s4 1983009808
    %v7076 = vunpack.c.0.s8 %v7075
    %v7077 = vlaneseq
    %v7078 = vshrl.u32 %v7077, 7
    %v7079 = vsub.s32 %v7076, %v7078
    %v7080 = vrot.slane %v7072, %v7079
    %v7082 = vunpack.c.l.s4 1983009808
    %v7083 = vunpack.c.0.s8 %v7082
    %v7084 = vlaneseq
    %v7085 = vshrl.u32 %v7084, 7
    %v7086 = vsub.s32 %v7083, %v7085
    %v7087 = vrot.slane %v7073, %v7086
    %v7088 = vcombine.low %v7080, %v7087
    %v7089 = vcombine.low %v7013, %v7014
    %v7090 = vcombine.low %v7015, %v7016
    %v7092 = vunpack.c.l.s4 1983009808
    %v7093 = vunpack.c.0.s8 %v7092
    %v7094 = vlaneseq
    %v7095 = vshrl.u32 %v7094, 7
    %v7096 = vsub.s32 %v7093, %v7095
    %v7097 = vrot.slane %v7089, %v7096
    %v7099 = vunpack.c.l.s4 1983009808
    %v7100 = vunpack.c.0.s8 %v7099
    %v7101 = vlaneseq
    %v7102 = vshrl.u32 %v7101, 7
    %v7103 = vsub.s32 %v7100, %v7102
    %v7104 = vrot.slane %v7090, %v7103
    %v7105 = vcombine.low %v7097, %v7104
    %v7106 = vcombine.low %v7017, %v7018
    %v7107 = vcombine.low %v7019, %v7020
    %v7109 = vunpack.c.l.s4 1983009808
    %v7110 = vunpack.c.0.s8 %v7109
    %v7111 = vlaneseq
    %v7112 = vshrl.u32 %v7111, 7
    %v7113 = vsub.s32 %v7110, %v7112
    %v7114 = vrot.slane %v7106, %v7113
    %v7116 = vunpack.c.l.s4 1983009808
    %v7117 = vunpack.c.0.s8 %v7116
    %v7118 = vlaneseq
    %v7119 = vshrl.u32 %v7118, 7
    %v7120 = vsub.s32 %v7117, %v7119
    %v7121 = vrot.slane %v7107, %v7120
    %v7122 = vcombine.low %v7114, %v7121
    %v7123 = vcombine.low %v7021, %v7022
    %v7124 = vcombine.low %v7023, %v7024
    %v7126 = vunpack.c.l.s4 1983009808
    %v7127 = vunpack.c.0.s8 %v7126
    %v7128 = vlaneseq
    %v7129 = vshrl.u32 %v7128, 7
    %v7130 = vsub.s32 %v7127, %v7129
    %v7131 = vrot.slane %v7123, %v7130
    %v7133 = vunpack.c.l.s4 1983009808
    %v7134 = vunpack.c.0.s8 %v7133
    %v7135 = vlaneseq
    %v7136 = vshrl.u32 %v7135, 7
    %v7137 = vsub.s32 %v7134, %v7136
    %v7138 = vrot.slane %v7124, %v7137
    %v7139 = vcombine.low %v7131, %v7138
    %v7140 = vcombine.low %v7025, %v7026
    %v7141 = vcombine.low %v7027, %v7028
    %v7143 = vunpack.c.l.s4 1983009808
    %v7144 = vunpack.c.0.s8 %v7143
    %v7145 = vlaneseq
    %v7146 = vshrl.u32 %v7145, 7
    %v7147 = vsub.s32 %v7144, %v7146
    %v7148 = vrot.slane %v7140, %v7147
    %v7150 = vunpack.c.l.s4 1983009808
    %v7151 = vunpack.c.0.s8 %v7150
    %v7152 = vlaneseq
    %v7153 = vshrl.u32 %v7152, 7
    %v7154 = vsub.s32 %v7151, %v7153
    %v7155 = vrot.slane %v7141, %v7154
    %v7156 = vcombine.low %v7148, %v7155
    %v7158 = vunpack.c.l.s4 1983009808
    %v7159 = vunpack.c.0.s8 %v7158
    %v7160 = vlaneseq
    %v7161 = vshrl.u32 %v7160, 7
    %v7162 = vsub.s32 %v7159, %v7161
    %v7163 = vrot.slane %v7029, %v7162
    %7171 = vst [vmem:[%s13] sm:$0xff] %v7071
    %7172 = vst [vmem:[%s13 + $0x8] sm:$0xff] %v7088
    %7173 = vst [vmem:[%s13 + $0x10] sm:$0xff] %v7105
    %7174 = vst [vmem:[%s13 + $0x18] sm:$0xff] %v7122
    %7175 = vst [vmem:[%s13 + $0x20] sm:$0xff] %v7139
    %7176 = vst [vmem:[%s13 + $0x28] sm:$0xff] %v7156
    %7177 = vst.msk [vmem:[%s13 + $0x30] sm:$0x3] %vm6011, %v7163
    // Predicated region
    $region94: #{decoder_forward.2} parent=1 // pred_check
      _
    $region95: #{decoder_forward.2} parent=1 // pred_check_branch
      %7179 = sbr.rel (0) target = $region97
    $region96: #{decoder_forward.2} parent=1 // pred_region
      _
    $region97: #{decoder_forward.2} parent=1 // pred_fallthru
      _
    // Predicated region
    $region98: #{decoder_forward.2} parent=1 // pred_check
      _
    $region99: #{decoder_forward.2} parent=1 // pred_check_branch
      %7181 = sbr.rel (0) target = $region101
    $region100: #{decoder_forward.2} parent=1 // pred_region
      _
    $region101: #{decoder_forward.2} parent=1 // pred_fallthru
      _
    %7182 = vsyncpa [#allocation3], 1
    %7183 = vsyncpa [#allocation5], 1
    %7184 = vsyncpa [#allocation8], 1
    %7185 = vsyncpa [#allocation11], 1
    %7186 = vsyncpa [#allocation14], 1
    %7187 = vsyncpa [#allocation17], 1

</llo_original>
